<compile_context>
chip_gen: v6e
topology: v6e:2x2x1
jax: 0.10.0
libtpu: 0.0.40
codegen_flags: <defaults>
</compile_context>

<pallas_src>
import functools

import jax
import jax.numpy as jnp
from jax.experimental import pallas as pl
from jax.experimental.pallas import tpu as pltpu  # noqa: F401  (memory spaces etc.)


# ----------------------- per-layer input projection kernel -------------------
def _input_proj_kernel(x_ref, wf_ref, wb_ref, bf_ref, bb_ref, gf_ref, gb_ref):
    """One big matmul per direction for the whole sequence.

    x_ref  : (T*B, Din)
    wf/wb  : (Din, 4H)   W_ih^T for forward / backward direction
    bf/bb  : (1, 4H)     combined bias (b_ih + b_hh)
    gf/gb  : (T*B, 4H)   precomputed input contribution to the gates
    """
    x = x_ref[...]
    gf_ref[...] = jnp.dot(x, wf_ref[...], preferred_element_type=jnp.float32) + bf_ref[...]
    gb_ref[...] = jnp.dot(x, wb_ref[...], preferred_element_type=jnp.float32) + bb_ref[...]


def input_proj(x_flat, wih_f, wih_b, b_f, b_b):
    TB = x_flat.shape[0]
    G = wih_f.shape[1]
    return pl.pallas_call(
        _input_proj_kernel,
        out_shape=(jax.ShapeDtypeStruct((TB, G), jnp.float32),
                   jax.ShapeDtypeStruct((TB, G), jnp.float32)),
    )(x_flat, wih_f, wih_b, b_f, b_b)


# ------------------------------- LSTM cell math -------------------------------
def _lstm_cell(gates, c, H):
    """PyTorch gate order i, f, g, o. H = 128 -> lane-aligned slices."""
    i = jax.nn.sigmoid(gates[:, 0 * H:1 * H])
    f = jax.nn.sigmoid(gates[:, 1 * H:2 * H])
    g = jnp.tanh(gates[:, 2 * H:3 * H])
    o = jax.nn.sigmoid(gates[:, 3 * H:4 * H])
    c_new = f * c + i * g
    h_new = o * jnp.tanh(c_new)
    return h_new, c_new


# -------------------- bidirectional layer kernel (sequence out) ---------------
def _bilstm_seq_kernel(gxf_ref, gxb_ref, whf_ref, whb_ref, out_ref, *, batch):
    """Both directions of one LSTM layer in a single invocation.

    gxf/gxb : (T*B, 4H)  precomputed x@W_ih + b per direction
    whf/whb : (H, 4H)    W_hh^T per direction
    out     : (T*B, 2H)  [:, :H] = forward h_t, [:, H:] = backward h_t (aligned)
    """
    TB = gxf_ref.shape[0]
    H = whf_ref.shape[0]
    T = TB // batch

    zeros = jnp.zeros((batch, H), jnp.float32)
    h_f, c_f, h_b, c_b = zeros, zeros, zeros, zeros

    # T is small and static -> fully unrolled, all indices/slices static.
    # TODO(synk): for long sequences switch to lax.fori_loop / a grid axis.
    for s in range(T):
        tb = T - 1 - s  # backward direction walks time in reverse, no HBM [::-1]
        gates_f = gxf_ref[pl.ds(s * batch, batch), :] + jnp.dot(
            h_f, whf_ref[...], preferred_element_type=jnp.float32)
        gates_b = gxb_ref[pl.ds(tb * batch, batch), :] + jnp.dot(
            h_b, whb_ref[...], preferred_element_type=jnp.float32)
        h_f, c_f = _lstm_cell(gates_f, c_f, H)
        h_b, c_b = _lstm_cell(gates_b, c_b, H)
        out_ref[pl.ds(s * batch, batch), 0:H] = h_f
        out_ref[pl.ds(tb * batch, batch), H:2 * H] = h_b


def bilstm_seq(gxf, gxb, whh_f, whh_b, *, batch):
    TB = gxf.shape[0]
    H = whh_f.shape[0]
    return pl.pallas_call(
        functools.partial(_bilstm_seq_kernel, batch=batch),
        out_shape=jax.ShapeDtypeStruct((TB, 2 * H), jnp.float32),
    )(gxf, gxb, whh_f, whh_b)


# ------------- final bidirectional layer kernel with fused classifier ---------
def _bilstm_final_fc_kernel(gxf_ref, gxb_ref, whf_ref, whb_ref,
                            fcw_ref, fcb_ref, out_ref, *, batch):
    """Final layer: only the last fwd/bwd hidden states are needed, so no
    per-step stores; the Linear head is fused after the recurrence."""
    TB = gxf_ref.shape[0]
    H = whf_ref.shape[0]
    T = TB // batch

    zeros = jnp.zeros((batch, H), jnp.float32)
    h_f, c_f, h_b, c_b = zeros, zeros, zeros, zeros

    for s in range(T):
        tb = T - 1 - s
        gates_f = gxf_ref[pl.ds(s * batch, batch), :] + jnp.dot(
            h_f, whf_ref[...], preferred_element_type=jnp.float32)
        gates_b = gxb_ref[pl.ds(tb * batch, batch), :] + jnp.dot(
            h_b, whb_ref[...], preferred_element_type=jnp.float32)
        h_f, c_f = _lstm_cell(gates_f, c_f, H)
        h_b, c_b = _lstm_cell(gates_b, c_b, H)

    # hidden = cat(h_fwd_last, h_bwd_last); fc applied without materializing
    # the concat: split W^T by rows (static, sublane-aligned at H=128).
    out_ref[...] = (jnp.dot(h_f, fcw_ref[0:H, :], preferred_element_type=jnp.float32)
                    + jnp.dot(h_b, fcw_ref[H:2 * H, :], preferred_element_type=jnp.float32)
                    + fcb_ref[...])


def bilstm_final_fc(gxf, gxb, whh_f, whh_b, fc_w, fc_b, *, batch):
    O = fc_w.shape[1]
    return pl.pallas_call(
        functools.partial(_bilstm_final_fc_kernel, batch=batch),
        out_shape=jax.ShapeDtypeStruct((batch, O), jnp.float32),
    )(gxf, gxb, whh_f, whh_b, fc_w, fc_b.reshape(1, O))


# ------------------------------ parameter setup ------------------------------
def init_params(key, vocab_size, embedding_dim, hidden_dim, output_dim, n_layers):
    params = {}
    key, k_emb = jax.random.split(key)
    params["embedding"] = jax.random.normal(
        k_emb, (vocab_size, embedding_dim), jnp.float32)

    bound = 1.0 / float(hidden_dim) ** 0.5
    layers = []
    for layer in range(n_layers):
        din = embedding_dim if layer == 0 else 2 * hidden_dim
        dirs = []
        for _direction in range(2):  # 0 = forward, 1 = backward
            key, k1, k2, k3, k4 = jax.random.split(key, 5)
            wih = jax.random.uniform(k1, (din, 4 * hidden_dim), jnp.float32,
                                     -bound, bound)               # W_ih^T
            whh = jax.random.uniform(k2, (hidden_dim, 4 * hidden_dim),
                                     jnp.float32, -bound, bound)  # W_hh^T
            bih = jax.random.uniform(k3, (4 * hidden_dim,), jnp.float32,
                                     -bound, bound)
            bhh = jax.random.uniform(k4, (4 * hidden_dim,), jnp.float32,
                                     -bound, bound)
            dirs.append((wih, whh, (bih + bhh).reshape(1, 4 * hidden_dim)))
        layers.append(tuple(dirs))
    params["lstm"] = layers

    fbound = 1.0 / float(2 * hidden_dim) ** 0.5
    key, kf1, kf2 = jax.random.split(key, 3)
    params["fc_w"] = jax.random.uniform(
        kf1, (2 * hidden_dim, output_dim), jnp.float32, -fbound, fbound)  # W^T
    params["fc_b"] = jax.random.uniform(
        kf2, (output_dim,), jnp.float32, -fbound, fbound)
    return params


# --------------------------------- forward -----------------------------------
def lstm_classifier_forward(params, text):
    # Embedding lookup (gather) + inference-mode dropout (identity): plain-JAX glue.
    emb = jnp.take(params["embedding"], text, axis=0)            # (B, T, E)
    B, T, E = emb.shape
    x = jnp.transpose(emb, (1, 0, 2)).reshape(T * B, E)          # time-major, flat

    n_layers = len(params["lstm"])
    logits = None
    for li, (fwd_p, bwd_p) in enumerate(params["lstm"]):
        wih_f, whh_f, b_f = fwd_p
        wih_b, whh_b, b_b = bwd_p
        # Hoisted input projection for the whole sequence, both directions.
        gxf, gxb = input_proj(x, wih_f, wih_b, b_f, b_b)         # (T*B, 4H) each
        if li < n_layers - 1:
            x = bilstm_seq(gxf, gxb, whh_f, whh_b, batch=B)      # (T*B, 2H)
        else:
            logits = bilstm_final_fc(gxf, gxb, whh_f, whh_b,
                                     params["fc_w"], params["fc_b"], batch=B)
    return logits                                                # (B, output_dim)


# ------------------------- pure-JAX reference (check) -------------------------
def _ref_forward(params, text):
    emb = jnp.take(params["embedding"], text, axis=0)
    x = jnp.transpose(emb, (1, 0, 2))                            # (T, B, E)
    Tn, B, _ = x.shape

    def run_dir(x_seq, wih, whh, b):
        H = whh.shape[0]

        def step(carry, xt):
            h, c = carry
            gates = xt @ wih + h @ whh + b[0]
            i = jax.nn.sigmoid(gates[:, 0 * H:1 * H])
            f = jax.nn.sigmoid(gates[:, 1 * H:2 * H])
            g = jnp.tanh(gates[:, 2 * H:3 * H])
            o = jax.nn.sigmoid(gates[:, 3 * H:4 * H])
            c = f * c + i * g
            h = o * jnp.tanh(c)
            return (h, c), h

        init = (jnp.zeros((B, H), jnp.float32), jnp.zeros((B, H), jnp.float32))
        (h_last, _), hs = jax.lax.scan(step, init, x_seq)
        return hs, h_last

    last_f = last_b = None
    for fwd_p, bwd_p in params["lstm"]:
        hs_f, last_f = run_dir(x, *fwd_p)
        hs_b_rev, last_b = run_dir(x[::-1], *bwd_p)
        x = jnp.concatenate([hs_f, hs_b_rev[::-1]], axis=-1)
    hidden = jnp.concatenate([last_f, last_b], axis=1)
    return hidden @ params["fc_w"] + params["fc_b"]


if __name__ == "__main__":
    # Small shapes consistent with the module: spec embedding_dim=100,
    # hidden_dim=128; vocab/output sizes come from pickled artifacts, so pick
    # small stand-ins.
    B, T = 2, 8
    vocab_size, embedding_dim, hidden_dim, output_dim, n_layers = 50, 100, 128, 5, 2

    key = jax.random.PRNGKey(0)
    kp, kt = jax.random.split(key)
    params = init_params(kp, vocab_size, embedding_dim, hidden_dim,
                         output_dim, n_layers)
    text = jax.random.randint(kt, (B, T), 0, vocab_size, dtype=jnp.int32)

    fwd = jax.jit(functools.partial(lstm_classifier_forward, params))
    logits = fwd(text)
    jax.block_until_ready(logits)

    assert logits.shape == (B, output_dim)
    assert logits.dtype == jnp.float32

    ref = _ref_forward(params, text)
    assert jnp.allclose(logits, ref, rtol=2e-4, atol=2e-4), "mismatch vs reference"

    print("KERNEL_OK")
</pallas_src>

<mosaic_0001>
module attributes {stable_mosaic.version = 11 : i64} {
  func.func @_bilstm_seq_kernel(%arg0: memref<16x512xf32, #tpu.memory_space<vmem>>, %arg1: memref<16x512xf32, #tpu.memory_space<vmem>>, %arg2: memref<128x512xf32, #tpu.memory_space<vmem>>, %arg3: memref<128x512xf32, #tpu.memory_space<vmem>>, %arg4: memref<16x256xf32, #tpu.memory_space<vmem>>) attributes {dimension_semantics = [], scalar_prefetch = 0 : i64, scratch_operands = 0 : i64, tpu.core_type = #tpu.core_type<tc>} {
    %cst = arith.constant 0.000000e+00 : f32
    %0 = vector.broadcast %cst : f32 to vector<2x128xf32>
    %c0 = arith.constant 0 : index
    %c0_0 = arith.constant 0 : index
    %1 = vector.load %arg0[%c0, %c0_0] : memref<16x512xf32, #tpu.memory_space<vmem>>, vector<2x512xf32>
    %c0_1 = arith.constant 0 : index
    %c0_2 = arith.constant 0 : index
    %2 = vector.load %arg2[%c0_1, %c0_2] : memref<128x512xf32, #tpu.memory_space<vmem>>, vector<128x512xf32>
    %cst_3 = arith.constant dense<0.000000e+00> : vector<2x512xf32>
    %3 = tpu.matmul %0, %2, %cst_3 {dimension_numbers = #tpu.dot_dimension_numbers<[1], [0], [0], [1], [0, 0, 1, 1], [], []>} : vector<2x128xf32>, vector<128x512xf32>, vector<2x512xf32> -> vector<2x512xf32>
    %4 = arith.addf %1, %3 : vector<2x512xf32>
    %c14 = arith.constant 14 : index
    %c0_4 = arith.constant 0 : index
    %5 = vector.load %arg1[%c14, %c0_4] : memref<16x512xf32, #tpu.memory_space<vmem>>, vector<2x512xf32>
    %c0_5 = arith.constant 0 : index
    %c0_6 = arith.constant 0 : index
    %6 = vector.load %arg3[%c0_5, %c0_6] : memref<128x512xf32, #tpu.memory_space<vmem>>, vector<128x512xf32>
    %cst_7 = arith.constant dense<0.000000e+00> : vector<2x512xf32>
    %7 = tpu.matmul %0, %6, %cst_7 {dimension_numbers = #tpu.dot_dimension_numbers<[1], [0], [0], [1], [0, 0, 1, 1], [], []>} : vector<2x128xf32>, vector<128x512xf32>, vector<2x512xf32> -> vector<2x512xf32>
    %8 = arith.addf %5, %7 : vector<2x512xf32>
    %9 = vector.extract_strided_slice %4 {offsets = [0, 0], sizes = [2, 128], strides = [1, 1]} : vector<2x512xf32> to vector<2x128xf32>
    %10 = arith.negf %9 : vector<2x128xf32>
    %11 = math.exp %10 : vector<2x128xf32>
    %cst_8 = arith.constant 1.000000e+00 : f32
    %12 = vector.broadcast %cst_8 : f32 to vector<2x128xf32>
    %13 = arith.addf %12, %11 : vector<2x128xf32>
    %14 = arith.divf %12, %13 : vector<2x128xf32>
    %15 = vector.extract_strided_slice %4 {offsets = [0, 128], sizes = [2, 128], strides = [1, 1]} : vector<2x512xf32> to vector<2x128xf32>
    %16 = arith.negf %15 : vector<2x128xf32>
    %17 = math.exp %16 : vector<2x128xf32>
    %cst_9 = arith.constant 1.000000e+00 : f32
    %18 = vector.broadcast %cst_9 : f32 to vector<2x128xf32>
    %19 = arith.addf %18, %17 : vector<2x128xf32>
    %20 = arith.divf %18, %19 : vector<2x128xf32>
    %21 = vector.extract_strided_slice %4 {offsets = [0, 256], sizes = [2, 128], strides = [1, 1]} : vector<2x512xf32> to vector<2x128xf32>
    %22 = math.tanh %21 : vector<2x128xf32>
    %23 = vector.extract_strided_slice %4 {offsets = [0, 384], sizes = [2, 128], strides = [1, 1]} : vector<2x512xf32> to vector<2x128xf32>
    %24 = arith.negf %23 : vector<2x128xf32>
    %25 = math.exp %24 : vector<2x128xf32>
    %cst_10 = arith.constant 1.000000e+00 : f32
    %26 = vector.broadcast %cst_10 : f32 to vector<2x128xf32>
    %27 = arith.addf %26, %25 : vector<2x128xf32>
    %28 = arith.divf %26, %27 : vector<2x128xf32>
    %29 = arith.mulf %20, %0 : vector<2x128xf32>
    %30 = arith.mulf %14, %22 : vector<2x128xf32>
    %31 = arith.addf %29, %30 : vector<2x128xf32>
    %32 = math.tanh %31 : vector<2x128xf32>
    %33 = arith.mulf %28, %32 : vector<2x128xf32>
    %34 = vector.extract_strided_slice %8 {offsets = [0, 0], sizes = [2, 128], strides = [1, 1]} : vector<2x512xf32> to vector<2x128xf32>
    %35 = arith.negf %34 : vector<2x128xf32>
    %36 = math.exp %35 : vector<2x128xf32>
    %cst_11 = arith.constant 1.000000e+00 : f32
    %37 = vector.broadcast %cst_11 : f32 to vector<2x128xf32>
    %38 = arith.addf %37, %36 : vector<2x128xf32>
    %39 = arith.divf %37, %38 : vector<2x128xf32>
    %40 = vector.extract_strided_slice %8 {offsets = [0, 128], sizes = [2, 128], strides = [1, 1]} : vector<2x512xf32> to vector<2x128xf32>
    %41 = arith.negf %40 : vector<2x128xf32>
    %42 = math.exp %41 : vector<2x128xf32>
    %cst_12 = arith.constant 1.000000e+00 : f32
    %43 = vector.broadcast %cst_12 : f32 to vector<2x128xf32>
    %44 = arith.addf %43, %42 : vector<2x128xf32>
    %45 = arith.divf %43, %44 : vector<2x128xf32>
    %46 = vector.extract_strided_slice %8 {offsets = [0, 256], sizes = [2, 128], strides = [1, 1]} : vector<2x512xf32> to vector<2x128xf32>
    %47 = math.tanh %46 : vector<2x128xf32>
    %48 = vector.extract_strided_slice %8 {offsets = [0, 384], sizes = [2, 128], strides = [1, 1]} : vector<2x512xf32> to vector<2x128xf32>
    %49 = arith.negf %48 : vector<2x128xf32>
    %50 = math.exp %49 : vector<2x128xf32>
    %cst_13 = arith.constant 1.000000e+00 : f32
    %51 = vector.broadcast %cst_13 : f32 to vector<2x128xf32>
    %52 = arith.addf %51, %50 : vector<2x128xf32>
    %53 = arith.divf %51, %52 : vector<2x128xf32>
    %54 = arith.mulf %45, %0 : vector<2x128xf32>
    %55 = arith.mulf %39, %47 : vector<2x128xf32>
    %56 = arith.addf %54, %55 : vector<2x128xf32>
    %57 = math.tanh %56 : vector<2x128xf32>
    %58 = arith.mulf %53, %57 : vector<2x128xf32>
    %c0_14 = arith.constant 0 : index
    %c0_15 = arith.constant 0 : index
    %59 = vector.load %arg4[%c0_14, %c0_15] : memref<16x256xf32, #tpu.memory_space<vmem>>, vector<2x128xf32>
    tpu.vector_store %arg4[%c0_14, %c0_15], %33 {strides = array<i32>} : memref<16x256xf32, #tpu.memory_space<vmem>>, vector<2x128xf32>,
    %c14_16 = arith.constant 14 : index
    %c128 = arith.constant 128 : index
    %60 = vector.load %arg4[%c14_16, %c128] : memref<16x256xf32, #tpu.memory_space<vmem>>, vector<2x128xf32>
    tpu.vector_store %arg4[%c14_16, %c128], %58 {strides = array<i32>} : memref<16x256xf32, #tpu.memory_space<vmem>>, vector<2x128xf32>,
    %c2 = arith.constant 2 : index
    %c0_17 = arith.constant 0 : index
    %61 = vector.load %arg0[%c2, %c0_17] : memref<16x512xf32, #tpu.memory_space<vmem>>, vector<2x512xf32>
    %c0_18 = arith.constant 0 : index
    %c0_19 = arith.constant 0 : index
    %62 = vector.load %arg2[%c0_18, %c0_19] : memref<128x512xf32, #tpu.memory_space<vmem>>, vector<128x512xf32>
    %cst_20 = arith.constant dense<0.000000e+00> : vector<2x512xf32>
    %63 = tpu.matmul %33, %62, %cst_20 {dimension_numbers = #tpu.dot_dimension_numbers<[1], [0], [0], [1], [0, 0, 1, 1], [], []>} : vector<2x128xf32>, vector<128x512xf32>, vector<2x512xf32> -> vector<2x512xf32>
    %64 = arith.addf %61, %63 : vector<2x512xf32>
    %c12 = arith.constant 12 : index
    %c0_21 = arith.constant 0 : index
    %65 = vector.load %arg1[%c12, %c0_21] : memref<16x512xf32, #tpu.memory_space<vmem>>, vector<2x512xf32>
    %c0_22 = arith.constant 0 : index
    %c0_23 = arith.constant 0 : index
    %66 = vector.load %arg3[%c0_22, %c0_23] : memref<128x512xf32, #tpu.memory_space<vmem>>, vector<128x512xf32>
    %cst_24 = arith.constant dense<0.000000e+00> : vector<2x512xf32>
    %67 = tpu.matmul %58, %66, %cst_24 {dimension_numbers = #tpu.dot_dimension_numbers<[1], [0], [0], [1], [0, 0, 1, 1], [], []>} : vector<2x128xf32>, vector<128x512xf32>, vector<2x512xf32> -> vector<2x512xf32>
    %68 = arith.addf %65, %67 : vector<2x512xf32>
    %69 = vector.extract_strided_slice %64 {offsets = [0, 0], sizes = [2, 128], strides = [1, 1]} : vector<2x512xf32> to vector<2x128xf32>
    %70 = arith.negf %69 : vector<2x128xf32>
    %71 = math.exp %70 : vector<2x128xf32>
    %cst_25 = arith.constant 1.000000e+00 : f32
    %72 = vector.broadcast %cst_25 : f32 to vector<2x128xf32>
    %73 = arith.addf %72, %71 : vector<2x128xf32>
    %74 = arith.divf %72, %73 : vector<2x128xf32>
    %75 = vector.extract_strided_slice %64 {offsets = [0, 128], sizes = [2, 128], strides = [1, 1]} : vector<2x512xf32> to vector<2x128xf32>
    %76 = arith.negf %75 : vector<2x128xf32>
    %77 = math.exp %76 : vector<2x128xf32>
    %cst_26 = arith.constant 1.000000e+00 : f32
    %78 = vector.broadcast %cst_26 : f32 to vector<2x128xf32>
    %79 = arith.addf %78, %77 : vector<2x128xf32>
    %80 = arith.divf %78, %79 : vector<2x128xf32>
    %81 = vector.extract_strided_slice %64 {offsets = [0, 256], sizes = [2, 128], strides = [1, 1]} : vector<2x512xf32> to vector<2x128xf32>
    %82 = math.tanh %81 : vector<2x128xf32>
    %83 = vector.extract_strided_slice %64 {offsets = [0, 384], sizes = [2, 128], strides = [1, 1]} : vector<2x512xf32> to vector<2x128xf32>
    %84 = arith.negf %83 : vector<2x128xf32>
    %85 = math.exp %84 : vector<2x128xf32>
    %cst_27 = arith.constant 1.000000e+00 : f32
    %86 = vector.broadcast %cst_27 : f32 to vector<2x128xf32>
    %87 = arith.addf %86, %85 : vector<2x128xf32>
    %88 = arith.divf %86, %87 : vector<2x128xf32>
    %89 = arith.mulf %80, %31 : vector<2x128xf32>
    %90 = arith.mulf %74, %82 : vector<2x128xf32>
    %91 = arith.addf %89, %90 : vector<2x128xf32>
    %92 = math.tanh %91 : vector<2x128xf32>
    %93 = arith.mulf %88, %92 : vector<2x128xf32>
    %94 = vector.extract_strided_slice %68 {offsets = [0, 0], sizes = [2, 128], strides = [1, 1]} : vector<2x512xf32> to vector<2x128xf32>
    %95 = arith.negf %94 : vector<2x128xf32>
    %96 = math.exp %95 : vector<2x128xf32>
    %cst_28 = arith.constant 1.000000e+00 : f32
    %97 = vector.broadcast %cst_28 : f32 to vector<2x128xf32>
    %98 = arith.addf %97, %96 : vector<2x128xf32>
    %99 = arith.divf %97, %98 : vector<2x128xf32>
    %100 = vector.extract_strided_slice %68 {offsets = [0, 128], sizes = [2, 128], strides = [1, 1]} : vector<2x512xf32> to vector<2x128xf32>
    %101 = arith.negf %100 : vector<2x128xf32>
    %102 = math.exp %101 : vector<2x128xf32>
    %cst_29 = arith.constant 1.000000e+00 : f32
    %103 = vector.broadcast %cst_29 : f32 to vector<2x128xf32>
    %104 = arith.addf %103, %102 : vector<2x128xf32>
    %105 = arith.divf %103, %104 : vector<2x128xf32>
    %106 = vector.extract_strided_slice %68 {offsets = [0, 256], sizes = [2, 128], strides = [1, 1]} : vector<2x512xf32> to vector<2x128xf32>
    %107 = math.tanh %106 : vector<2x128xf32>
    %108 = vector.extract_strided_slice %68 {offsets = [0, 384], sizes = [2, 128], strides = [1, 1]} : vector<2x512xf32> to vector<2x128xf32>
    %109 = arith.negf %108 : vector<2x128xf32>
    %110 = math.exp %109 : vector<2x128xf32>
    %cst_30 = arith.constant 1.000000e+00 : f32
    %111 = vector.broadcast %cst_30 : f32 to vector<2x128xf32>
    %112 = arith.addf %111, %110 : vector<2x128xf32>
    %113 = arith.divf %111, %112 : vector<2x128xf32>
    %114 = arith.mulf %105, %56 : vector<2x128xf32>
    %115 = arith.mulf %99, %107 : vector<2x128xf32>
    %116 = arith.addf %114, %115 : vector<2x128xf32>
    %117 = math.tanh %116 : vector<2x128xf32>
    %118 = arith.mulf %113, %117 : vector<2x128xf32>
    %c2_31 = arith.constant 2 : index
    %c0_32 = arith.constant 0 : index
    %119 = vector.load %arg4[%c2_31, %c0_32] : memref<16x256xf32, #tpu.memory_space<vmem>>, vector<2x128xf32>
    tpu.vector_store %arg4[%c2_31, %c0_32], %93 {strides = array<i32>} : memref<16x256xf32, #tpu.memory_space<vmem>>, vector<2x128xf32>,
    %c12_33 = arith.constant 12 : index
    %c128_34 = arith.constant 128 : index
    %120 = vector.load %arg4[%c12_33, %c128_34] : memref<16x256xf32, #tpu.memory_space<vmem>>, vector<2x128xf32>
    tpu.vector_store %arg4[%c12_33, %c128_34], %118 {strides = array<i32>} : memref<16x256xf32, #tpu.memory_space<vmem>>, vector<2x128xf32>,
    %c4 = arith.constant 4 : index
    %c0_35 = arith.constant 0 : index
    %121 = vector.load %arg0[%c4, %c0_35] : memref<16x512xf32, #tpu.memory_space<vmem>>, vector<2x512xf32>
    %c0_36 = arith.constant 0 : index
    %c0_37 = arith.constant 0 : index
    %122 = vector.load %arg2[%c0_36, %c0_37] : memref<128x512xf32, #tpu.memory_space<vmem>>, vector<128x512xf32>
    %cst_38 = arith.constant dense<0.000000e+00> : vector<2x512xf32>
    %123 = tpu.matmul %93, %122, %cst_38 {dimension_numbers = #tpu.dot_dimension_numbers<[1], [0], [0], [1], [0, 0, 1, 1], [], []>} : vector<2x128xf32>, vector<128x512xf32>, vector<2x512xf32> -> vector<2x512xf32>
    %124 = arith.addf %121, %123 : vector<2x512xf32>
    %c10 = arith.constant 10 : index
    %c0_39 = arith.constant 0 : index
    %125 = vector.load %arg1[%c10, %c0_39] : memref<16x512xf32, #tpu.memory_space<vmem>>, vector<2x512xf32>
    %c0_40 = arith.constant 0 : index
    %c0_41 = arith.constant 0 : index
    %126 = vector.load %arg3[%c0_40, %c0_41] : memref<128x512xf32, #tpu.memory_space<vmem>>, vector<128x512xf32>
    %cst_42 = arith.constant dense<0.000000e+00> : vector<2x512xf32>
    %127 = tpu.matmul %118, %126, %cst_42 {dimension_numbers = #tpu.dot_dimension_numbers<[1], [0], [0], [1], [0, 0, 1, 1], [], []>} : vector<2x128xf32>, vector<128x512xf32>, vector<2x512xf32> -> vector<2x512xf32>
    %128 = arith.addf %125, %127 : vector<2x512xf32>
    %129 = vector.extract_strided_slice %124 {offsets = [0, 0], sizes = [2, 128], strides = [1, 1]} : vector<2x512xf32> to vector<2x128xf32>
    %130 = arith.negf %129 : vector<2x128xf32>
    %131 = math.exp %130 : vector<2x128xf32>
    %cst_43 = arith.constant 1.000000e+00 : f32
    %132 = vector.broadcast %cst_43 : f32 to vector<2x128xf32>
    %133 = arith.addf %132, %131 : vector<2x128xf32>
    %134 = arith.divf %132, %133 : vector<2x128xf32>
    %135 = vector.extract_strided_slice %124 {offsets = [0, 128], sizes = [2, 128], strides = [1, 1]} : vector<2x512xf32> to vector<2x128xf32>
    %136 = arith.negf %135 : vector<2x128xf32>
    %137 = math.exp %136 : vector<2x128xf32>
    %cst_44 = arith.constant 1.000000e+00 : f32
    %138 = vector.broadcast %cst_44 : f32 to vector<2x128xf32>
    %139 = arith.addf %138, %137 : vector<2x128xf32>
    %140 = arith.divf %138, %139 : vector<2x128xf32>
    %141 = vector.extract_strided_slice %124 {offsets = [0, 256], sizes = [2, 128], strides = [1, 1]} : vector<2x512xf32> to vector<2x128xf32>
    %142 = math.tanh %141 : vector<2x128xf32>
    %143 = vector.extract_strided_slice %124 {offsets = [0, 384], sizes = [2, 128], strides = [1, 1]} : vector<2x512xf32> to vector<2x128xf32>
    %144 = arith.negf %143 : vector<2x128xf32>
    %145 = math.exp %144 : vector<2x128xf32>
    %cst_45 = arith.constant 1.000000e+00 : f32
    %146 = vector.broadcast %cst_45 : f32 to vector<2x128xf32>
    %147 = arith.addf %146, %145 : vector<2x128xf32>
    %148 = arith.divf %146, %147 : vector<2x128xf32>
    %149 = arith.mulf %140, %91 : vector<2x128xf32>
    %150 = arith.mulf %134, %142 : vector<2x128xf32>
    %151 = arith.addf %149, %150 : vector<2x128xf32>
    %152 = math.tanh %151 : vector<2x128xf32>
    %153 = arith.mulf %148, %152 : vector<2x128xf32>
    %154 = vector.extract_strided_slice %128 {offsets = [0, 0], sizes = [2, 128], strides = [1, 1]} : vector<2x512xf32> to vector<2x128xf32>
    %155 = arith.negf %154 : vector<2x128xf32>
    %156 = math.exp %155 : vector<2x128xf32>
    %cst_46 = arith.constant 1.000000e+00 : f32
    %157 = vector.broadcast %cst_46 : f32 to vector<2x128xf32>
    %158 = arith.addf %157, %156 : vector<2x128xf32>
    %159 = arith.divf %157, %158 : vector<2x128xf32>
    %160 = vector.extract_strided_slice %128 {offsets = [0, 128], sizes = [2, 128], strides = [1, 1]} : vector<2x512xf32> to vector<2x128xf32>
    %161 = arith.negf %160 : vector<2x128xf32>
    %162 = math.exp %161 : vector<2x128xf32>
    %cst_47 = arith.constant 1.000000e+00 : f32
    %163 = vector.broadcast %cst_47 : f32 to vector<2x128xf32>
    %164 = arith.addf %163, %162 : vector<2x128xf32>
    %165 = arith.divf %163, %164 : vector<2x128xf32>
    %166 = vector.extract_strided_slice %128 {offsets = [0, 256], sizes = [2, 128], strides = [1, 1]} : vector<2x512xf32> to vector<2x128xf32>
    %167 = math.tanh %166 : vector<2x128xf32>
    %168 = vector.extract_strided_slice %128 {offsets = [0, 384], sizes = [2, 128], strides = [1, 1]} : vector<2x512xf32> to vector<2x128xf32>
    %169 = arith.negf %168 : vector<2x128xf32>
    %170 = math.exp %169 : vector<2x128xf32>
    %cst_48 = arith.constant 1.000000e+00 : f32
    %171 = vector.broadcast %cst_48 : f32 to vector<2x128xf32>
    %172 = arith.addf %171, %170 : vector<2x128xf32>
    %173 = arith.divf %171, %172 : vector<2x128xf32>
    %174 = arith.mulf %165, %116 : vector<2x128xf32>
    %175 = arith.mulf %159, %167 : vector<2x128xf32>
    %176 = arith.addf %174, %175 : vector<2x128xf32>
    %177 = math.tanh %176 : vector<2x128xf32>
    %178 = arith.mulf %173, %177 : vector<2x128xf32>
    %c4_49 = arith.constant 4 : index
    %c0_50 = arith.constant 0 : index
    %179 = vector.load %arg4[%c4_49, %c0_50] : memref<16x256xf32, #tpu.memory_space<vmem>>, vector<2x128xf32>
    tpu.vector_store %arg4[%c4_49, %c0_50], %153 {strides = array<i32>} : memref<16x256xf32, #tpu.memory_space<vmem>>, vector<2x128xf32>,
    %c10_51 = arith.constant 10 : index
    %c128_52 = arith.constant 128 : index
    %180 = vector.load %arg4[%c10_51, %c128_52] : memref<16x256xf32, #tpu.memory_space<vmem>>, vector<2x128xf32>
    tpu.vector_store %arg4[%c10_51, %c128_52], %178 {strides = array<i32>} : memref<16x256xf32, #tpu.memory_space<vmem>>, vector<2x128xf32>,
    %c6 = arith.constant 6 : index
    %c0_53 = arith.constant 0 : index
    %181 = vector.load %arg0[%c6, %c0_53] : memref<16x512xf32, #tpu.memory_space<vmem>>, vector<2x512xf32>
    %c0_54 = arith.constant 0 : index
    %c0_55 = arith.constant 0 : index
    %182 = vector.load %arg2[%c0_54, %c0_55] : memref<128x512xf32, #tpu.memory_space<vmem>>, vector<128x512xf32>
    %cst_56 = arith.constant dense<0.000000e+00> : vector<2x512xf32>
    %183 = tpu.matmul %153, %182, %cst_56 {dimension_numbers = #tpu.dot_dimension_numbers<[1], [0], [0], [1], [0, 0, 1, 1], [], []>} : vector<2x128xf32>, vector<128x512xf32>, vector<2x512xf32> -> vector<2x512xf32>
    %184 = arith.addf %181, %183 : vector<2x512xf32>
    %c8 = arith.constant 8 : index
    %c0_57 = arith.constant 0 : index
    %185 = vector.load %arg1[%c8, %c0_57] : memref<16x512xf32, #tpu.memory_space<vmem>>, vector<2x512xf32>
    %c0_58 = arith.constant 0 : index
    %c0_59 = arith.constant 0 : index
    %186 = vector.load %arg3[%c0_58, %c0_59] : memref<128x512xf32, #tpu.memory_space<vmem>>, vector<128x512xf32>
    %cst_60 = arith.constant dense<0.000000e+00> : vector<2x512xf32>
    %187 = tpu.matmul %178, %186, %cst_60 {dimension_numbers = #tpu.dot_dimension_numbers<[1], [0], [0], [1], [0, 0, 1, 1], [], []>} : vector<2x128xf32>, vector<128x512xf32>, vector<2x512xf32> -> vector<2x512xf32>
    %188 = arith.addf %185, %187 : vector<2x512xf32>
    %189 = vector.extract_strided_slice %184 {offsets = [0, 0], sizes = [2, 128], strides = [1, 1]} : vector<2x512xf32> to vector<2x128xf32>
    %190 = arith.negf %189 : vector<2x128xf32>
    %191 = math.exp %190 : vector<2x128xf32>
    %cst_61 = arith.constant 1.000000e+00 : f32
    %192 = vector.broadcast %cst_61 : f32 to vector<2x128xf32>
    %193 = arith.addf %192, %191 : vector<2x128xf32>
    %194 = arith.divf %192, %193 : vector<2x128xf32>
    %195 = vector.extract_strided_slice %184 {offsets = [0, 128], sizes = [2, 128], strides = [1, 1]} : vector<2x512xf32> to vector<2x128xf32>
    %196 = arith.negf %195 : vector<2x128xf32>
    %197 = math.exp %196 : vector<2x128xf32>
    %cst_62 = arith.constant 1.000000e+00 : f32
    %198 = vector.broadcast %cst_62 : f32 to vector<2x128xf32>
    %199 = arith.addf %198, %197 : vector<2x128xf32>
    %200 = arith.divf %198, %199 : vector<2x128xf32>
    %201 = vector.extract_strided_slice %184 {offsets = [0, 256], sizes = [2, 128], strides = [1, 1]} : vector<2x512xf32> to vector<2x128xf32>
    %202 = math.tanh %201 : vector<2x128xf32>
    %203 = vector.extract_strided_slice %184 {offsets = [0, 384], sizes = [2, 128], strides = [1, 1]} : vector<2x512xf32> to vector<2x128xf32>
    %204 = arith.negf %203 : vector<2x128xf32>
    %205 = math.exp %204 : vector<2x128xf32>
    %cst_63 = arith.constant 1.000000e+00 : f32
    %206 = vector.broadcast %cst_63 : f32 to vector<2x128xf32>
    %207 = arith.addf %206, %205 : vector<2x128xf32>
    %208 = arith.divf %206, %207 : vector<2x128xf32>
    %209 = arith.mulf %200, %151 : vector<2x128xf32>
    %210 = arith.mulf %194, %202 : vector<2x128xf32>
    %211 = arith.addf %209, %210 : vector<2x128xf32>
    %212 = math.tanh %211 : vector<2x128xf32>
    %213 = arith.mulf %208, %212 : vector<2x128xf32>
    %214 = vector.extract_strided_slice %188 {offsets = [0, 0], sizes = [2, 128], strides = [1, 1]} : vector<2x512xf32> to vector<2x128xf32>
    %215 = arith.negf %214 : vector<2x128xf32>
    %216 = math.exp %215 : vector<2x128xf32>
    %cst_64 = arith.constant 1.000000e+00 : f32
    %217 = vector.broadcast %cst_64 : f32 to vector<2x128xf32>
    %218 = arith.addf %217, %216 : vector<2x128xf32>
    %219 = arith.divf %217, %218 : vector<2x128xf32>
    %220 = vector.extract_strided_slice %188 {offsets = [0, 128], sizes = [2, 128], strides = [1, 1]} : vector<2x512xf32> to vector<2x128xf32>
    %221 = arith.negf %220 : vector<2x128xf32>
    %222 = math.exp %221 : vector<2x128xf32>
    %cst_65 = arith.constant 1.000000e+00 : f32
    %223 = vector.broadcast %cst_65 : f32 to vector<2x128xf32>
    %224 = arith.addf %223, %222 : vector<2x128xf32>
    %225 = arith.divf %223, %224 : vector<2x128xf32>
    %226 = vector.extract_strided_slice %188 {offsets = [0, 256], sizes = [2, 128], strides = [1, 1]} : vector<2x512xf32> to vector<2x128xf32>
    %227 = math.tanh %226 : vector<2x128xf32>
    %228 = vector.extract_strided_slice %188 {offsets = [0, 384], sizes = [2, 128], strides = [1, 1]} : vector<2x512xf32> to vector<2x128xf32>
    %229 = arith.negf %228 : vector<2x128xf32>
    %230 = math.exp %229 : vector<2x128xf32>
    %cst_66 = arith.constant 1.000000e+00 : f32
    %231 = vector.broadcast %cst_66 : f32 to vector<2x128xf32>
    %232 = arith.addf %231, %230 : vector<2x128xf32>
    %233 = arith.divf %231, %232 : vector<2x128xf32>
    %234 = arith.mulf %225, %176 : vector<2x128xf32>
    %235 = arith.mulf %219, %227 : vector<2x128xf32>
    %236 = arith.addf %234, %235 : vector<2x128xf32>
    %237 = math.tanh %236 : vector<2x128xf32>
    %238 = arith.mulf %233, %237 : vector<2x128xf32>
    %c6_67 = arith.constant 6 : index
    %c0_68 = arith.constant 0 : index
    %239 = vector.load %arg4[%c6_67, %c0_68] : memref<16x256xf32, #tpu.memory_space<vmem>>, vector<2x128xf32>
    tpu.vector_store %arg4[%c6_67, %c0_68], %213 {strides = array<i32>} : memref<16x256xf32, #tpu.memory_space<vmem>>, vector<2x128xf32>,
    %c8_69 = arith.constant 8 : index
    %c128_70 = arith.constant 128 : index
    %240 = vector.load %arg4[%c8_69, %c128_70] : memref<16x256xf32, #tpu.memory_space<vmem>>, vector<2x128xf32>
    tpu.vector_store %arg4[%c8_69, %c128_70], %238 {strides = array<i32>} : memref<16x256xf32, #tpu.memory_space<vmem>>, vector<2x128xf32>,
    %c8_71 = arith.constant 8 : index
    %c0_72 = arith.constant 0 : index
    %241 = vector.load %arg0[%c8_71, %c0_72] : memref<16x512xf32, #tpu.memory_space<vmem>>, vector<2x512xf32>
    %c0_73 = arith.constant 0 : index
    %c0_74 = arith.constant 0 : index
    %242 = vector.load %arg2[%c0_73, %c0_74] : memref<128x512xf32, #tpu.memory_space<vmem>>, vector<128x512xf32>
    %cst_75 = arith.constant dense<0.000000e+00> : vector<2x512xf32>
    %243 = tpu.matmul %213, %242, %cst_75 {dimension_numbers = #tpu.dot_dimension_numbers<[1], [0], [0], [1], [0, 0, 1, 1], [], []>} : vector<2x128xf32>, vector<128x512xf32>, vector<2x512xf32> -> vector<2x512xf32>
    %244 = arith.addf %241, %243 : vector<2x512xf32>
    %c6_76 = arith.constant 6 : index
    %c0_77 = arith.constant 0 : index
    %245 = vector.load %arg1[%c6_76, %c0_77] : memref<16x512xf32, #tpu.memory_space<vmem>>, vector<2x512xf32>
    %c0_78 = arith.constant 0 : index
    %c0_79 = arith.constant 0 : index
    %246 = vector.load %arg3[%c0_78, %c0_79] : memref<128x512xf32, #tpu.memory_space<vmem>>, vector<128x512xf32>
    %cst_80 = arith.constant dense<0.000000e+00> : vector<2x512xf32>
    %247 = tpu.matmul %238, %246, %cst_80 {dimension_numbers = #tpu.dot_dimension_numbers<[1], [0], [0], [1], [0, 0, 1, 1], [], []>} : vector<2x128xf32>, vector<128x512xf32>, vector<2x512xf32> -> vector<2x512xf32>
    %248 = arith.addf %245, %247 : vector<2x512xf32>
    %249 = vector.extract_strided_slice %244 {offsets = [0, 0], sizes = [2, 128], strides = [1, 1]} : vector<2x512xf32> to vector<2x128xf32>
    %250 = arith.negf %249 : vector<2x128xf32>
    %251 = math.exp %250 : vector<2x128xf32>
    %cst_81 = arith.constant 1.000000e+00 : f32
    %252 = vector.broadcast %cst_81 : f32 to vector<2x128xf32>
    %253 = arith.addf %252, %251 : vector<2x128xf32>
    %254 = arith.divf %252, %253 : vector<2x128xf32>
    %255 = vector.extract_strided_slice %244 {offsets = [0, 128], sizes = [2, 128], strides = [1, 1]} : vector<2x512xf32> to vector<2x128xf32>
    %256 = arith.negf %255 : vector<2x128xf32>
    %257 = math.exp %256 : vector<2x128xf32>
    %cst_82 = arith.constant 1.000000e+00 : f32
    %258 = vector.broadcast %cst_82 : f32 to vector<2x128xf32>
    %259 = arith.addf %258, %257 : vector<2x128xf32>
    %260 = arith.divf %258, %259 : vector<2x128xf32>
    %261 = vector.extract_strided_slice %244 {offsets = [0, 256], sizes = [2, 128], strides = [1, 1]} : vector<2x512xf32> to vector<2x128xf32>
    %262 = math.tanh %261 : vector<2x128xf32>
    %263 = vector.extract_strided_slice %244 {offsets = [0, 384], sizes = [2, 128], strides = [1, 1]} : vector<2x512xf32> to vector<2x128xf32>
    %264 = arith.negf %263 : vector<2x128xf32>
    %265 = math.exp %264 : vector<2x128xf32>
    %cst_83 = arith.constant 1.000000e+00 : f32
    %266 = vector.broadcast %cst_83 : f32 to vector<2x128xf32>
    %267 = arith.addf %266, %265 : vector<2x128xf32>
    %268 = arith.divf %266, %267 : vector<2x128xf32>
    %269 = arith.mulf %260, %211 : vector<2x128xf32>
    %270 = arith.mulf %254, %262 : vector<2x128xf32>
    %271 = arith.addf %269, %270 : vector<2x128xf32>
    %272 = math.tanh %271 : vector<2x128xf32>
    %273 = arith.mulf %268, %272 : vector<2x128xf32>
    %274 = vector.extract_strided_slice %248 {offsets = [0, 0], sizes = [2, 128], strides = [1, 1]} : vector<2x512xf32> to vector<2x128xf32>
    %275 = arith.negf %274 : vector<2x128xf32>
    %276 = math.exp %275 : vector<2x128xf32>
    %cst_84 = arith.constant 1.000000e+00 : f32
    %277 = vector.broadcast %cst_84 : f32 to vector<2x128xf32>
    %278 = arith.addf %277, %276 : vector<2x128xf32>
    %279 = arith.divf %277, %278 : vector<2x128xf32>
    %280 = vector.extract_strided_slice %248 {offsets = [0, 128], sizes = [2, 128], strides = [1, 1]} : vector<2x512xf32> to vector<2x128xf32>
    %281 = arith.negf %280 : vector<2x128xf32>
    %282 = math.exp %281 : vector<2x128xf32>
    %cst_85 = arith.constant 1.000000e+00 : f32
    %283 = vector.broadcast %cst_85 : f32 to vector<2x128xf32>
    %284 = arith.addf %283, %282 : vector<2x128xf32>
    %285 = arith.divf %283, %284 : vector<2x128xf32>
    %286 = vector.extract_strided_slice %248 {offsets = [0, 256], sizes = [2, 128], strides = [1, 1]} : vector<2x512xf32> to vector<2x128xf32>
    %287 = math.tanh %286 : vector<2x128xf32>
    %288 = vector.extract_strided_slice %248 {offsets = [0, 384], sizes = [2, 128], strides = [1, 1]} : vector<2x512xf32> to vector<2x128xf32>
    %289 = arith.negf %288 : vector<2x128xf32>
    %290 = math.exp %289 : vector<2x128xf32>
    %cst_86 = arith.constant 1.000000e+00 : f32
    %291 = vector.broadcast %cst_86 : f32 to vector<2x128xf32>
    %292 = arith.addf %291, %290 : vector<2x128xf32>
    %293 = arith.divf %291, %292 : vector<2x128xf32>
    %294 = arith.mulf %285, %236 : vector<2x128xf32>
    %295 = arith.mulf %279, %287 : vector<2x128xf32>
    %296 = arith.addf %294, %295 : vector<2x128xf32>
    %297 = math.tanh %296 : vector<2x128xf32>
    %298 = arith.mulf %293, %297 : vector<2x128xf32>
    %c8_87 = arith.constant 8 : index
    %c0_88 = arith.constant 0 : index
    %299 = vector.load %arg4[%c8_87, %c0_88] : memref<16x256xf32, #tpu.memory_space<vmem>>, vector<2x128xf32>
    tpu.vector_store %arg4[%c8_87, %c0_88], %273 {strides = array<i32>} : memref<16x256xf32, #tpu.memory_space<vmem>>, vector<2x128xf32>,
    %c6_89 = arith.constant 6 : index
    %c128_90 = arith.constant 128 : index
    %300 = vector.load %arg4[%c6_89, %c128_90] : memref<16x256xf32, #tpu.memory_space<vmem>>, vector<2x128xf32>
    tpu.vector_store %arg4[%c6_89, %c128_90], %298 {strides = array<i32>} : memref<16x256xf32, #tpu.memory_space<vmem>>, vector<2x128xf32>,
    %c10_91 = arith.constant 10 : index
    %c0_92 = arith.constant 0 : index
    %301 = vector.load %arg0[%c10_91, %c0_92] : memref<16x512xf32, #tpu.memory_space<vmem>>, vector<2x512xf32>
    %c0_93 = arith.constant 0 : index
    %c0_94 = arith.constant 0 : index
    %302 = vector.load %arg2[%c0_93, %c0_94] : memref<128x512xf32, #tpu.memory_space<vmem>>, vector<128x512xf32>
    %cst_95 = arith.constant dense<0.000000e+00> : vector<2x512xf32>
    %303 = tpu.matmul %273, %302, %cst_95 {dimension_numbers = #tpu.dot_dimension_numbers<[1], [0], [0], [1], [0, 0, 1, 1], [], []>} : vector<2x128xf32>, vector<128x512xf32>, vector<2x512xf32> -> vector<2x512xf32>
    %304 = arith.addf %301, %303 : vector<2x512xf32>
    %c4_96 = arith.constant 4 : index
    %c0_97 = arith.constant 0 : index
    %305 = vector.load %arg1[%c4_96, %c0_97] : memref<16x512xf32, #tpu.memory_space<vmem>>, vector<2x512xf32>
    %c0_98 = arith.constant 0 : index
    %c0_99 = arith.constant 0 : index
    %306 = vector.load %arg3[%c0_98, %c0_99] : memref<128x512xf32, #tpu.memory_space<vmem>>, vector<128x512xf32>
    %cst_100 = arith.constant dense<0.000000e+00> : vector<2x512xf32>
    %307 = tpu.matmul %298, %306, %cst_100 {dimension_numbers = #tpu.dot_dimension_numbers<[1], [0], [0], [1], [0, 0, 1, 1], [], []>} : vector<2x128xf32>, vector<128x512xf32>, vector<2x512xf32> -> vector<2x512xf32>
    %308 = arith.addf %305, %307 : vector<2x512xf32>
    %309 = vector.extract_strided_slice %304 {offsets = [0, 0], sizes = [2, 128], strides = [1, 1]} : vector<2x512xf32> to vector<2x128xf32>
    %310 = arith.negf %309 : vector<2x128xf32>
    %311 = math.exp %310 : vector<2x128xf32>
    %cst_101 = arith.constant 1.000000e+00 : f32
    %312 = vector.broadcast %cst_101 : f32 to vector<2x128xf32>
    %313 = arith.addf %312, %311 : vector<2x128xf32>
    %314 = arith.divf %312, %313 : vector<2x128xf32>
    %315 = vector.extract_strided_slice %304 {offsets = [0, 128], sizes = [2, 128], strides = [1, 1]} : vector<2x512xf32> to vector<2x128xf32>
    %316 = arith.negf %315 : vector<2x128xf32>
    %317 = math.exp %316 : vector<2x128xf32>
    %cst_102 = arith.constant 1.000000e+00 : f32
    %318 = vector.broadcast %cst_102 : f32 to vector<2x128xf32>
    %319 = arith.addf %318, %317 : vector<2x128xf32>
    %320 = arith.divf %318, %319 : vector<2x128xf32>
    %321 = vector.extract_strided_slice %304 {offsets = [0, 256], sizes = [2, 128], strides = [1, 1]} : vector<2x512xf32> to vector<2x128xf32>
    %322 = math.tanh %321 : vector<2x128xf32>
    %323 = vector.extract_strided_slice %304 {offsets = [0, 384], sizes = [2, 128], strides = [1, 1]} : vector<2x512xf32> to vector<2x128xf32>
    %324 = arith.negf %323 : vector<2x128xf32>
    %325 = math.exp %324 : vector<2x128xf32>
    %cst_103 = arith.constant 1.000000e+00 : f32
    %326 = vector.broadcast %cst_103 : f32 to vector<2x128xf32>
    %327 = arith.addf %326, %325 : vector<2x128xf32>
    %328 = arith.divf %326, %327 : vector<2x128xf32>
    %329 = arith.mulf %320, %271 : vector<2x128xf32>
    %330 = arith.mulf %314, %322 : vector<2x128xf32>
    %331 = arith.addf %329, %330 : vector<2x128xf32>
    %332 = math.tanh %331 : vector<2x128xf32>
    %333 = arith.mulf %328, %332 : vector<2x128xf32>
    %334 = vector.extract_strided_slice %308 {offsets = [0, 0], sizes = [2, 128], strides = [1, 1]} : vector<2x512xf32> to vector<2x128xf32>
    %335 = arith.negf %334 : vector<2x128xf32>
    %336 = math.exp %335 : vector<2x128xf32>
    %cst_104 = arith.constant 1.000000e+00 : f32
    %337 = vector.broadcast %cst_104 : f32 to vector<2x128xf32>
    %338 = arith.addf %337, %336 : vector<2x128xf32>
    %339 = arith.divf %337, %338 : vector<2x128xf32>
    %340 = vector.extract_strided_slice %308 {offsets = [0, 128], sizes = [2, 128], strides = [1, 1]} : vector<2x512xf32> to vector<2x128xf32>
    %341 = arith.negf %340 : vector<2x128xf32>
    %342 = math.exp %341 : vector<2x128xf32>
    %cst_105 = arith.constant 1.000000e+00 : f32
    %343 = vector.broadcast %cst_105 : f32 to vector<2x128xf32>
    %344 = arith.addf %343, %342 : vector<2x128xf32>
    %345 = arith.divf %343, %344 : vector<2x128xf32>
    %346 = vector.extract_strided_slice %308 {offsets = [0, 256], sizes = [2, 128], strides = [1, 1]} : vector<2x512xf32> to vector<2x128xf32>
    %347 = math.tanh %346 : vector<2x128xf32>
    %348 = vector.extract_strided_slice %308 {offsets = [0, 384], sizes = [2, 128], strides = [1, 1]} : vector<2x512xf32> to vector<2x128xf32>
    %349 = arith.negf %348 : vector<2x128xf32>
    %350 = math.exp %349 : vector<2x128xf32>
    %cst_106 = arith.constant 1.000000e+00 : f32
    %351 = vector.broadcast %cst_106 : f32 to vector<2x128xf32>
    %352 = arith.addf %351, %350 : vector<2x128xf32>
    %353 = arith.divf %351, %352 : vector<2x128xf32>
    %354 = arith.mulf %345, %296 : vector<2x128xf32>
    %355 = arith.mulf %339, %347 : vector<2x128xf32>
    %356 = arith.addf %354, %355 : vector<2x128xf32>
    %357 = math.tanh %356 : vector<2x128xf32>
    %358 = arith.mulf %353, %357 : vector<2x128xf32>
    %c10_107 = arith.constant 10 : index
    %c0_108 = arith.constant 0 : index
    %359 = vector.load %arg4[%c10_107, %c0_108] : memref<16x256xf32, #tpu.memory_space<vmem>>, vector<2x128xf32>
    tpu.vector_store %arg4[%c10_107, %c0_108], %333 {strides = array<i32>} : memref<16x256xf32, #tpu.memory_space<vmem>>, vector<2x128xf32>,
    %c4_109 = arith.constant 4 : index
    %c128_110 = arith.constant 128 : index
    %360 = vector.load %arg4[%c4_109, %c128_110] : memref<16x256xf32, #tpu.memory_space<vmem>>, vector<2x128xf32>
    tpu.vector_store %arg4[%c4_109, %c128_110], %358 {strides = array<i32>} : memref<16x256xf32, #tpu.memory_space<vmem>>, vector<2x128xf32>,
    %c12_111 = arith.constant 12 : index
    %c0_112 = arith.constant 0 : index
    %361 = vector.load %arg0[%c12_111, %c0_112] : memref<16x512xf32, #tpu.memory_space<vmem>>, vector<2x512xf32>
    %c0_113 = arith.constant 0 : index
    %c0_114 = arith.constant 0 : index
    %362 = vector.load %arg2[%c0_113, %c0_114] : memref<128x512xf32, #tpu.memory_space<vmem>>, vector<128x512xf32>
    %cst_115 = arith.constant dense<0.000000e+00> : vector<2x512xf32>
    %363 = tpu.matmul %333, %362, %cst_115 {dimension_numbers = #tpu.dot_dimension_numbers<[1], [0], [0], [1], [0, 0, 1, 1], [], []>} : vector<2x128xf32>, vector<128x512xf32>, vector<2x512xf32> -> vector<2x512xf32>
    %364 = arith.addf %361, %363 : vector<2x512xf32>
    %c2_116 = arith.constant 2 : index
    %c0_117 = arith.constant 0 : index
    %365 = vector.load %arg1[%c2_116, %c0_117] : memref<16x512xf32, #tpu.memory_space<vmem>>, vector<2x512xf32>
    %c0_118 = arith.constant 0 : index
    %c0_119 = arith.constant 0 : index
    %366 = vector.load %arg3[%c0_118, %c0_119] : memref<128x512xf32, #tpu.memory_space<vmem>>, vector<128x512xf32>
    %cst_120 = arith.constant dense<0.000000e+00> : vector<2x512xf32>
    %367 = tpu.matmul %358, %366, %cst_120 {dimension_numbers = #tpu.dot_dimension_numbers<[1], [0], [0], [1], [0, 0, 1, 1], [], []>} : vector<2x128xf32>, vector<128x512xf32>, vector<2x512xf32> -> vector<2x512xf32>
    %368 = arith.addf %365, %367 : vector<2x512xf32>
    %369 = vector.extract_strided_slice %364 {offsets = [0, 0], sizes = [2, 128], strides = [1, 1]} : vector<2x512xf32> to vector<2x128xf32>
    %370 = arith.negf %369 : vector<2x128xf32>
    %371 = math.exp %370 : vector<2x128xf32>
    %cst_121 = arith.constant 1.000000e+00 : f32
    %372 = vector.broadcast %cst_121 : f32 to vector<2x128xf32>
    %373 = arith.addf %372, %371 : vector<2x128xf32>
    %374 = arith.divf %372, %373 : vector<2x128xf32>
    %375 = vector.extract_strided_slice %364 {offsets = [0, 128], sizes = [2, 128], strides = [1, 1]} : vector<2x512xf32> to vector<2x128xf32>
    %376 = arith.negf %375 : vector<2x128xf32>
    %377 = math.exp %376 : vector<2x128xf32>
    %cst_122 = arith.constant 1.000000e+00 : f32
    %378 = vector.broadcast %cst_122 : f32 to vector<2x128xf32>
    %379 = arith.addf %378, %377 : vector<2x128xf32>
    %380 = arith.divf %378, %379 : vector<2x128xf32>
    %381 = vector.extract_strided_slice %364 {offsets = [0, 256], sizes = [2, 128], strides = [1, 1]} : vector<2x512xf32> to vector<2x128xf32>
    %382 = math.tanh %381 : vector<2x128xf32>
    %383 = vector.extract_strided_slice %364 {offsets = [0, 384], sizes = [2, 128], strides = [1, 1]} : vector<2x512xf32> to vector<2x128xf32>
    %384 = arith.negf %383 : vector<2x128xf32>
    %385 = math.exp %384 : vector<2x128xf32>
    %cst_123 = arith.constant 1.000000e+00 : f32
    %386 = vector.broadcast %cst_123 : f32 to vector<2x128xf32>
    %387 = arith.addf %386, %385 : vector<2x128xf32>
    %388 = arith.divf %386, %387 : vector<2x128xf32>
    %389 = arith.mulf %380, %331 : vector<2x128xf32>
    %390 = arith.mulf %374, %382 : vector<2x128xf32>
    %391 = arith.addf %389, %390 : vector<2x128xf32>
    %392 = math.tanh %391 : vector<2x128xf32>
    %393 = arith.mulf %388, %392 : vector<2x128xf32>
    %394 = vector.extract_strided_slice %368 {offsets = [0, 0], sizes = [2, 128], strides = [1, 1]} : vector<2x512xf32> to vector<2x128xf32>
    %395 = arith.negf %394 : vector<2x128xf32>
    %396 = math.exp %395 : vector<2x128xf32>
    %cst_124 = arith.constant 1.000000e+00 : f32
    %397 = vector.broadcast %cst_124 : f32 to vector<2x128xf32>
    %398 = arith.addf %397, %396 : vector<2x128xf32>
    %399 = arith.divf %397, %398 : vector<2x128xf32>
    %400 = vector.extract_strided_slice %368 {offsets = [0, 128], sizes = [2, 128], strides = [1, 1]} : vector<2x512xf32> to vector<2x128xf32>
    %401 = arith.negf %400 : vector<2x128xf32>
    %402 = math.exp %401 : vector<2x128xf32>
    %cst_125 = arith.constant 1.000000e+00 : f32
    %403 = vector.broadcast %cst_125 : f32 to vector<2x128xf32>
    %404 = arith.addf %403, %402 : vector<2x128xf32>
    %405 = arith.divf %403, %404 : vector<2x128xf32>
    %406 = vector.extract_strided_slice %368 {offsets = [0, 256], sizes = [2, 128], strides = [1, 1]} : vector<2x512xf32> to vector<2x128xf32>
    %407 = math.tanh %406 : vector<2x128xf32>
    %408 = vector.extract_strided_slice %368 {offsets = [0, 384], sizes = [2, 128], strides = [1, 1]} : vector<2x512xf32> to vector<2x128xf32>
    %409 = arith.negf %408 : vector<2x128xf32>
    %410 = math.exp %409 : vector<2x128xf32>
    %cst_126 = arith.constant 1.000000e+00 : f32
    %411 = vector.broadcast %cst_126 : f32 to vector<2x128xf32>
    %412 = arith.addf %411, %410 : vector<2x128xf32>
    %413 = arith.divf %411, %412 : vector<2x128xf32>
    %414 = arith.mulf %405, %356 : vector<2x128xf32>
    %415 = arith.mulf %399, %407 : vector<2x128xf32>
    %416 = arith.addf %414, %415 : vector<2x128xf32>
    %417 = math.tanh %416 : vector<2x128xf32>
    %418 = arith.mulf %413, %417 : vector<2x128xf32>
    %c12_127 = arith.constant 12 : index
    %c0_128 = arith.constant 0 : index
    %419 = vector.load %arg4[%c12_127, %c0_128] : memref<16x256xf32, #tpu.memory_space<vmem>>, vector<2x128xf32>
    tpu.vector_store %arg4[%c12_127, %c0_128], %393 {strides = array<i32>} : memref<16x256xf32, #tpu.memory_space<vmem>>, vector<2x128xf32>,
    %c2_129 = arith.constant 2 : index
    %c128_130 = arith.constant 128 : index
    %420 = vector.load %arg4[%c2_129, %c128_130] : memref<16x256xf32, #tpu.memory_space<vmem>>, vector<2x128xf32>
    tpu.vector_store %arg4[%c2_129, %c128_130], %418 {strides = array<i32>} : memref<16x256xf32, #tpu.memory_space<vmem>>, vector<2x128xf32>,
    %c14_131 = arith.constant 14 : index
    %c0_132 = arith.constant 0 : index
    %421 = vector.load %arg0[%c14_131, %c0_132] : memref<16x512xf32, #tpu.memory_space<vmem>>, vector<2x512xf32>
    %c0_133 = arith.constant 0 : index
    %c0_134 = arith.constant 0 : index
    %422 = vector.load %arg2[%c0_133, %c0_134] : memref<128x512xf32, #tpu.memory_space<vmem>>, vector<128x512xf32>
    %cst_135 = arith.constant dense<0.000000e+00> : vector<2x512xf32>
    %423 = tpu.matmul %393, %422, %cst_135 {dimension_numbers = #tpu.dot_dimension_numbers<[1], [0], [0], [1], [0, 0, 1, 1], [], []>} : vector<2x128xf32>, vector<128x512xf32>, vector<2x512xf32> -> vector<2x512xf32>
    %424 = arith.addf %421, %423 : vector<2x512xf32>
    %c0_136 = arith.constant 0 : index
    %c0_137 = arith.constant 0 : index
    %425 = vector.load %arg1[%c0_136, %c0_137] : memref<16x512xf32, #tpu.memory_space<vmem>>, vector<2x512xf32>
    %c0_138 = arith.constant 0 : index
    %c0_139 = arith.constant 0 : index
    %426 = vector.load %arg3[%c0_138, %c0_139] : memref<128x512xf32, #tpu.memory_space<vmem>>, vector<128x512xf32>
    %cst_140 = arith.constant dense<0.000000e+00> : vector<2x512xf32>
    %427 = tpu.matmul %418, %426, %cst_140 {dimension_numbers = #tpu.dot_dimension_numbers<[1], [0], [0], [1], [0, 0, 1, 1], [], []>} : vector<2x128xf32>, vector<128x512xf32>, vector<2x512xf32> -> vector<2x512xf32>
    %428 = arith.addf %425, %427 : vector<2x512xf32>
    %429 = vector.extract_strided_slice %424 {offsets = [0, 0], sizes = [2, 128], strides = [1, 1]} : vector<2x512xf32> to vector<2x128xf32>
    %430 = arith.negf %429 : vector<2x128xf32>
    %431 = math.exp %430 : vector<2x128xf32>
    %cst_141 = arith.constant 1.000000e+00 : f32
    %432 = vector.broadcast %cst_141 : f32 to vector<2x128xf32>
    %433 = arith.addf %432, %431 : vector<2x128xf32>
    %434 = arith.divf %432, %433 : vector<2x128xf32>
    %435 = vector.extract_strided_slice %424 {offsets = [0, 128], sizes = [2, 128], strides = [1, 1]} : vector<2x512xf32> to vector<2x128xf32>
    %436 = arith.negf %435 : vector<2x128xf32>
    %437 = math.exp %436 : vector<2x128xf32>
    %cst_142 = arith.constant 1.000000e+00 : f32
    %438 = vector.broadcast %cst_142 : f32 to vector<2x128xf32>
    %439 = arith.addf %438, %437 : vector<2x128xf32>
    %440 = arith.divf %438, %439 : vector<2x128xf32>
    %441 = vector.extract_strided_slice %424 {offsets = [0, 256], sizes = [2, 128], strides = [1, 1]} : vector<2x512xf32> to vector<2x128xf32>
    %442 = math.tanh %441 : vector<2x128xf32>
    %443 = vector.extract_strided_slice %424 {offsets = [0, 384], sizes = [2, 128], strides = [1, 1]} : vector<2x512xf32> to vector<2x128xf32>
    %444 = arith.negf %443 : vector<2x128xf32>
    %445 = math.exp %444 : vector<2x128xf32>
    %cst_143 = arith.constant 1.000000e+00 : f32
    %446 = vector.broadcast %cst_143 : f32 to vector<2x128xf32>
    %447 = arith.addf %446, %445 : vector<2x128xf32>
    %448 = arith.divf %446, %447 : vector<2x128xf32>
    %449 = arith.mulf %440, %391 : vector<2x128xf32>
    %450 = arith.mulf %434, %442 : vector<2x128xf32>
    %451 = arith.addf %449, %450 : vector<2x128xf32>
    %452 = math.tanh %451 : vector<2x128xf32>
    %453 = arith.mulf %448, %452 : vector<2x128xf32>
    %454 = vector.extract_strided_slice %428 {offsets = [0, 0], sizes = [2, 128], strides = [1, 1]} : vector<2x512xf32> to vector<2x128xf32>
    %455 = arith.negf %454 : vector<2x128xf32>
    %456 = math.exp %455 : vector<2x128xf32>
    %cst_144 = arith.constant 1.000000e+00 : f32
    %457 = vector.broadcast %cst_144 : f32 to vector<2x128xf32>
    %458 = arith.addf %457, %456 : vector<2x128xf32>
    %459 = arith.divf %457, %458 : vector<2x128xf32>
    %460 = vector.extract_strided_slice %428 {offsets = [0, 128], sizes = [2, 128], strides = [1, 1]} : vector<2x512xf32> to vector<2x128xf32>
    %461 = arith.negf %460 : vector<2x128xf32>
    %462 = math.exp %461 : vector<2x128xf32>
    %cst_145 = arith.constant 1.000000e+00 : f32
    %463 = vector.broadcast %cst_145 : f32 to vector<2x128xf32>
    %464 = arith.addf %463, %462 : vector<2x128xf32>
    %465 = arith.divf %463, %464 : vector<2x128xf32>
    %466 = vector.extract_strided_slice %428 {offsets = [0, 256], sizes = [2, 128], strides = [1, 1]} : vector<2x512xf32> to vector<2x128xf32>
    %467 = math.tanh %466 : vector<2x128xf32>
    %468 = vector.extract_strided_slice %428 {offsets = [0, 384], sizes = [2, 128], strides = [1, 1]} : vector<2x512xf32> to vector<2x128xf32>
    %469 = arith.negf %468 : vector<2x128xf32>
    %470 = math.exp %469 : vector<2x128xf32>
    %cst_146 = arith.constant 1.000000e+00 : f32
    %471 = vector.broadcast %cst_146 : f32 to vector<2x128xf32>
    %472 = arith.addf %471, %470 : vector<2x128xf32>
    %473 = arith.divf %471, %472 : vector<2x128xf32>
    %474 = arith.mulf %465, %416 : vector<2x128xf32>
    %475 = arith.mulf %459, %467 : vector<2x128xf32>
    %476 = arith.addf %474, %475 : vector<2x128xf32>
    %477 = math.tanh %476 : vector<2x128xf32>
    %478 = arith.mulf %473, %477 : vector<2x128xf32>
    %c14_147 = arith.constant 14 : index
    %c0_148 = arith.constant 0 : index
    %479 = vector.load %arg4[%c14_147, %c0_148] : memref<16x256xf32, #tpu.memory_space<vmem>>, vector<2x128xf32>
    tpu.vector_store %arg4[%c14_147, %c0_148], %453 {strides = array<i32>} : memref<16x256xf32, #tpu.memory_space<vmem>>, vector<2x128xf32>,
    %c0_149 = arith.constant 0 : index
    %c128_150 = arith.constant 128 : index
    %480 = vector.load %arg4[%c0_149, %c128_150] : memref<16x256xf32, #tpu.memory_space<vmem>>, vector<2x128xf32>
    tpu.vector_store %arg4[%c0_149, %c128_150], %478 {strides = array<i32>} : memref<16x256xf32, #tpu.memory_space<vmem>>, vector<2x128xf32>,
    return
  }
}

module attributes {stable_mosaic.version = 11 : i64} {
  func.func @_input_proj_kernel(%arg0: memref<16x100xf32, #tpu.memory_space<vmem>>, %arg1: memref<100x512xf32, #tpu.memory_space<vmem>>, %arg2: memref<100x512xf32, #tpu.memory_space<vmem>>, %arg3: memref<1x512xf32, #tpu.memory_space<vmem>>, %arg4: memref<1x512xf32, #tpu.memory_space<vmem>>, %arg5: memref<16x512xf32, #tpu.memory_space<vmem>>, %arg6: memref<16x512xf32, #tpu.memory_space<vmem>>) attributes {dimension_semantics = [], scalar_prefetch = 0 : i64, scratch_operands = 0 : i64, tpu.core_type = #tpu.core_type<tc>} {
    %c0 = arith.constant 0 : index
    %c0_0 = arith.constant 0 : index
    %0 = vector.load %arg0[%c0, %c0_0] : memref<16x100xf32, #tpu.memory_space<vmem>>, vector<16x100xf32>
    %c0_1 = arith.constant 0 : index
    %c0_2 = arith.constant 0 : index
    %1 = vector.load %arg1[%c0_1, %c0_2] : memref<100x512xf32, #tpu.memory_space<vmem>>, vector<100x512xf32>
    %cst = arith.constant dense<0.000000e+00> : vector<16x512xf32>
    %2 = tpu.matmul %0, %1, %cst {dimension_numbers = #tpu.dot_dimension_numbers<[1], [0], [0], [1], [0, 0, 1, 1], [], []>} : vector<16x100xf32>, vector<100x512xf32>, vector<16x512xf32> -> vector<16x512xf32>
    %c0_3 = arith.constant 0 : index
    %c0_4 = arith.constant 0 : index
    %3 = vector.load %arg3[%c0_3, %c0_4] : memref<1x512xf32, #tpu.memory_space<vmem>>, vector<1x512xf32>
    %4 = vector.broadcast %3 : vector<1x512xf32> to vector<16x512xf32>
    %5 = arith.addf %2, %4 : vector<16x512xf32>
    %c0_5 = arith.constant 0 : index
    %c0_6 = arith.constant 0 : index
    %6 = vector.load %arg5[%c0_5, %c0_6] : memref<16x512xf32, #tpu.memory_space<vmem>>, vector<16x512xf32>
    tpu.vector_store %arg5[%c0_5, %c0_6], %5 {strides = array<i32>} : memref<16x512xf32, #tpu.memory_space<vmem>>, vector<16x512xf32>,
    %c0_7 = arith.constant 0 : index
    %c0_8 = arith.constant 0 : index
    %7 = vector.load %arg2[%c0_7, %c0_8] : memref<100x512xf32, #tpu.memory_space<vmem>>, vector<100x512xf32>
    %cst_9 = arith.constant dense<0.000000e+00> : vector<16x512xf32>
    %8 = tpu.matmul %0, %7, %cst_9 {dimension_numbers = #tpu.dot_dimension_numbers<[1], [0], [0], [1], [0, 0, 1, 1], [], []>} : vector<16x100xf32>, vector<100x512xf32>, vector<16x512xf32> -> vector<16x512xf32>
    %c0_10 = arith.constant 0 : index
    %c0_11 = arith.constant 0 : index
    %9 = vector.load %arg4[%c0_10, %c0_11] : memref<1x512xf32, #tpu.memory_space<vmem>>, vector<1x512xf32>
    %10 = vector.broadcast %9 : vector<1x512xf32> to vector<16x512xf32>
    %11 = arith.addf %8, %10 : vector<16x512xf32>
    %c0_12 = arith.constant 0 : index
    %c0_13 = arith.constant 0 : index
    %12 = vector.load %arg6[%c0_12, %c0_13] : memref<16x512xf32, #tpu.memory_space<vmem>>, vector<16x512xf32>
    tpu.vector_store %arg6[%c0_12, %c0_13], %11 {strides = array<i32>} : memref<16x512xf32, #tpu.memory_space<vmem>>, vector<16x512xf32>,
    return
  }
}

module attributes {stable_mosaic.version = 11 : i64} {
  func.func @_input_proj_kernel(%arg0: memref<16x256xf32, #tpu.memory_space<vmem>>, %arg1: memref<256x512xf32, #tpu.memory_space<vmem>>, %arg2: memref<256x512xf32, #tpu.memory_space<vmem>>, %arg3: memref<1x512xf32, #tpu.memory_space<vmem>>, %arg4: memref<1x512xf32, #tpu.memory_space<vmem>>, %arg5: memref<16x512xf32, #tpu.memory_space<vmem>>, %arg6: memref<16x512xf32, #tpu.memory_space<vmem>>) attributes {dimension_semantics = [], scalar_prefetch = 0 : i64, scratch_operands = 0 : i64, tpu.core_type = #tpu.core_type<tc>} {
    %c0 = arith.constant 0 : index
    %c0_0 = arith.constant 0 : index
    %0 = vector.load %arg0[%c0, %c0_0] : memref<16x256xf32, #tpu.memory_space<vmem>>, vector<16x256xf32>
    %c0_1 = arith.constant 0 : index
    %c0_2 = arith.constant 0 : index
    %1 = vector.load %arg1[%c0_1, %c0_2] : memref<256x512xf32, #tpu.memory_space<vmem>>, vector<256x512xf32>
    %cst = arith.constant dense<0.000000e+00> : vector<16x512xf32>
    %2 = tpu.matmul %0, %1, %cst {dimension_numbers = #tpu.dot_dimension_numbers<[1], [0], [0], [1], [0, 0, 1, 1], [], []>} : vector<16x256xf32>, vector<256x512xf32>, vector<16x512xf32> -> vector<16x512xf32>
    %c0_3 = arith.constant 0 : index
    %c0_4 = arith.constant 0 : index
    %3 = vector.load %arg3[%c0_3, %c0_4] : memref<1x512xf32, #tpu.memory_space<vmem>>, vector<1x512xf32>
    %4 = vector.broadcast %3 : vector<1x512xf32> to vector<16x512xf32>
    %5 = arith.addf %2, %4 : vector<16x512xf32>
    %c0_5 = arith.constant 0 : index
    %c0_6 = arith.constant 0 : index
    %6 = vector.load %arg5[%c0_5, %c0_6] : memref<16x512xf32, #tpu.memory_space<vmem>>, vector<16x512xf32>
    tpu.vector_store %arg5[%c0_5, %c0_6], %5 {strides = array<i32>} : memref<16x512xf32, #tpu.memory_space<vmem>>, vector<16x512xf32>,
    %c0_7 = arith.constant 0 : index
    %c0_8 = arith.constant 0 : index
    %7 = vector.load %arg2[%c0_7, %c0_8] : memref<256x512xf32, #tpu.memory_space<vmem>>, vector<256x512xf32>
    %cst_9 = arith.constant dense<0.000000e+00> : vector<16x512xf32>
    %8 = tpu.matmul %0, %7, %cst_9 {dimension_numbers = #tpu.dot_dimension_numbers<[1], [0], [0], [1], [0, 0, 1, 1], [], []>} : vector<16x256xf32>, vector<256x512xf32>, vector<16x512xf32> -> vector<16x512xf32>
    %c0_10 = arith.constant 0 : index
    %c0_11 = arith.constant 0 : index
    %9 = vector.load %arg4[%c0_10, %c0_11] : memref<1x512xf32, #tpu.memory_space<vmem>>, vector<1x512xf32>
    %10 = vector.broadcast %9 : vector<1x512xf32> to vector<16x512xf32>
    %11 = arith.addf %8, %10 : vector<16x512xf32>
    %c0_12 = arith.constant 0 : index
    %c0_13 = arith.constant 0 : index
    %12 = vector.load %arg6[%c0_12, %c0_13] : memref<16x512xf32, #tpu.memory_space<vmem>>, vector<16x512xf32>
    tpu.vector_store %arg6[%c0_12, %c0_13], %11 {strides = array<i32>} : memref<16x512xf32, #tpu.memory_space<vmem>>, vector<16x512xf32>,
    return
  }
}

module attributes {stable_mosaic.version = 11 : i64} {
  func.func @_bilstm_final_fc_kernel(%arg0: memref<16x512xf32, #tpu.memory_space<vmem>>, %arg1: memref<16x512xf32, #tpu.memory_space<vmem>>, %arg2: memref<128x512xf32, #tpu.memory_space<vmem>>, %arg3: memref<128x512xf32, #tpu.memory_space<vmem>>, %arg4: memref<256x5xf32, #tpu.memory_space<vmem>>, %arg5: memref<1x5xf32, #tpu.memory_space<vmem>>, %arg6: memref<2x5xf32, #tpu.memory_space<vmem>>) attributes {dimension_semantics = [], scalar_prefetch = 0 : i64, scratch_operands = 0 : i64, tpu.core_type = #tpu.core_type<tc>} {
    %cst = arith.constant 0.000000e+00 : f32
    %0 = vector.broadcast %cst : f32 to vector<2x128xf32>
    %c0 = arith.constant 0 : index
    %c0_0 = arith.constant 0 : index
    %1 = vector.load %arg0[%c0, %c0_0] : memref<16x512xf32, #tpu.memory_space<vmem>>, vector<2x512xf32>
    %c0_1 = arith.constant 0 : index
    %c0_2 = arith.constant 0 : index
    %2 = vector.load %arg2[%c0_1, %c0_2] : memref<128x512xf32, #tpu.memory_space<vmem>>, vector<128x512xf32>
    %cst_3 = arith.constant dense<0.000000e+00> : vector<2x512xf32>
    %3 = tpu.matmul %0, %2, %cst_3 {dimension_numbers = #tpu.dot_dimension_numbers<[1], [0], [0], [1], [0, 0, 1, 1], [], []>} : vector<2x128xf32>, vector<128x512xf32>, vector<2x512xf32> -> vector<2x512xf32>
    %4 = arith.addf %1, %3 : vector<2x512xf32>
    %c14 = arith.constant 14 : index
    %c0_4 = arith.constant 0 : index
    %5 = vector.load %arg1[%c14, %c0_4] : memref<16x512xf32, #tpu.memory_space<vmem>>, vector<2x512xf32>
    %c0_5 = arith.constant 0 : index
    %c0_6 = arith.constant 0 : index
    %6 = vector.load %arg3[%c0_5, %c0_6] : memref<128x512xf32, #tpu.memory_space<vmem>>, vector<128x512xf32>
    %cst_7 = arith.constant dense<0.000000e+00> : vector<2x512xf32>
    %7 = tpu.matmul %0, %6, %cst_7 {dimension_numbers = #tpu.dot_dimension_numbers<[1], [0], [0], [1], [0, 0, 1, 1], [], []>} : vector<2x128xf32>, vector<128x512xf32>, vector<2x512xf32> -> vector<2x512xf32>
    %8 = arith.addf %5, %7 : vector<2x512xf32>
    %9 = vector.extract_strided_slice %4 {offsets = [0, 0], sizes = [2, 128], strides = [1, 1]} : vector<2x512xf32> to vector<2x128xf32>
    %10 = arith.negf %9 : vector<2x128xf32>
    %11 = math.exp %10 : vector<2x128xf32>
    %cst_8 = arith.constant 1.000000e+00 : f32
    %12 = vector.broadcast %cst_8 : f32 to vector<2x128xf32>
    %13 = arith.addf %12, %11 : vector<2x128xf32>
    %14 = arith.divf %12, %13 : vector<2x128xf32>
    %15 = vector.extract_strided_slice %4 {offsets = [0, 128], sizes = [2, 128], strides = [1, 1]} : vector<2x512xf32> to vector<2x128xf32>
    %16 = arith.negf %15 : vector<2x128xf32>
    %17 = math.exp %16 : vector<2x128xf32>
    %cst_9 = arith.constant 1.000000e+00 : f32
    %18 = vector.broadcast %cst_9 : f32 to vector<2x128xf32>
    %19 = arith.addf %18, %17 : vector<2x128xf32>
    %20 = arith.divf %18, %19 : vector<2x128xf32>
    %21 = vector.extract_strided_slice %4 {offsets = [0, 256], sizes = [2, 128], strides = [1, 1]} : vector<2x512xf32> to vector<2x128xf32>
    %22 = math.tanh %21 : vector<2x128xf32>
    %23 = vector.extract_strided_slice %4 {offsets = [0, 384], sizes = [2, 128], strides = [1, 1]} : vector<2x512xf32> to vector<2x128xf32>
    %24 = arith.negf %23 : vector<2x128xf32>
    %25 = math.exp %24 : vector<2x128xf32>
    %cst_10 = arith.constant 1.000000e+00 : f32
    %26 = vector.broadcast %cst_10 : f32 to vector<2x128xf32>
    %27 = arith.addf %26, %25 : vector<2x128xf32>
    %28 = arith.divf %26, %27 : vector<2x128xf32>
    %29 = arith.mulf %20, %0 : vector<2x128xf32>
    %30 = arith.mulf %14, %22 : vector<2x128xf32>
    %31 = arith.addf %29, %30 : vector<2x128xf32>
    %32 = math.tanh %31 : vector<2x128xf32>
    %33 = arith.mulf %28, %32 : vector<2x128xf32>
    %34 = vector.extract_strided_slice %8 {offsets = [0, 0], sizes = [2, 128], strides = [1, 1]} : vector<2x512xf32> to vector<2x128xf32>
    %35 = arith.negf %34 : vector<2x128xf32>
    %36 = math.exp %35 : vector<2x128xf32>
    %cst_11 = arith.constant 1.000000e+00 : f32
    %37 = vector.broadcast %cst_11 : f32 to vector<2x128xf32>
    %38 = arith.addf %37, %36 : vector<2x128xf32>
    %39 = arith.divf %37, %38 : vector<2x128xf32>
    %40 = vector.extract_strided_slice %8 {offsets = [0, 128], sizes = [2, 128], strides = [1, 1]} : vector<2x512xf32> to vector<2x128xf32>
    %41 = arith.negf %40 : vector<2x128xf32>
    %42 = math.exp %41 : vector<2x128xf32>
    %cst_12 = arith.constant 1.000000e+00 : f32
    %43 = vector.broadcast %cst_12 : f32 to vector<2x128xf32>
    %44 = arith.addf %43, %42 : vector<2x128xf32>
    %45 = arith.divf %43, %44 : vector<2x128xf32>
    %46 = vector.extract_strided_slice %8 {offsets = [0, 256], sizes = [2, 128], strides = [1, 1]} : vector<2x512xf32> to vector<2x128xf32>
    %47 = math.tanh %46 : vector<2x128xf32>
    %48 = vector.extract_strided_slice %8 {offsets = [0, 384], sizes = [2, 128], strides = [1, 1]} : vector<2x512xf32> to vector<2x128xf32>
    %49 = arith.negf %48 : vector<2x128xf32>
    %50 = math.exp %49 : vector<2x128xf32>
    %cst_13 = arith.constant 1.000000e+00 : f32
    %51 = vector.broadcast %cst_13 : f32 to vector<2x128xf32>
    %52 = arith.addf %51, %50 : vector<2x128xf32>
    %53 = arith.divf %51, %52 : vector<2x128xf32>
    %54 = arith.mulf %45, %0 : vector<2x128xf32>
    %55 = arith.mulf %39, %47 : vector<2x128xf32>
    %56 = arith.addf %54, %55 : vector<2x128xf32>
    %57 = math.tanh %56 : vector<2x128xf32>
    %58 = arith.mulf %53, %57 : vector<2x128xf32>
    %c2 = arith.constant 2 : index
    %c0_14 = arith.constant 0 : index
    %59 = vector.load %arg0[%c2, %c0_14] : memref<16x512xf32, #tpu.memory_space<vmem>>, vector<2x512xf32>
    %c0_15 = arith.constant 0 : index
    %c0_16 = arith.constant 0 : index
    %60 = vector.load %arg2[%c0_15, %c0_16] : memref<128x512xf32, #tpu.memory_space<vmem>>, vector<128x512xf32>
    %cst_17 = arith.constant dense<0.000000e+00> : vector<2x512xf32>
    %61 = tpu.matmul %33, %60, %cst_17 {dimension_numbers = #tpu.dot_dimension_numbers<[1], [0], [0], [1], [0, 0, 1, 1], [], []>} : vector<2x128xf32>, vector<128x512xf32>, vector<2x512xf32> -> vector<2x512xf32>
    %62 = arith.addf %59, %61 : vector<2x512xf32>
    %c12 = arith.constant 12 : index
    %c0_18 = arith.constant 0 : index
    %63 = vector.load %arg1[%c12, %c0_18] : memref<16x512xf32, #tpu.memory_space<vmem>>, vector<2x512xf32>
    %c0_19 = arith.constant 0 : index
    %c0_20 = arith.constant 0 : index
    %64 = vector.load %arg3[%c0_19, %c0_20] : memref<128x512xf32, #tpu.memory_space<vmem>>, vector<128x512xf32>
    %cst_21 = arith.constant dense<0.000000e+00> : vector<2x512xf32>
    %65 = tpu.matmul %58, %64, %cst_21 {dimension_numbers = #tpu.dot_dimension_numbers<[1], [0], [0], [1], [0, 0, 1, 1], [], []>} : vector<2x128xf32>, vector<128x512xf32>, vector<2x512xf32> -> vector<2x512xf32>
    %66 = arith.addf %63, %65 : vector<2x512xf32>
    %67 = vector.extract_strided_slice %62 {offsets = [0, 0], sizes = [2, 128], strides = [1, 1]} : vector<2x512xf32> to vector<2x128xf32>
    %68 = arith.negf %67 : vector<2x128xf32>
    %69 = math.exp %68 : vector<2x128xf32>
    %cst_22 = arith.constant 1.000000e+00 : f32
    %70 = vector.broadcast %cst_22 : f32 to vector<2x128xf32>
    %71 = arith.addf %70, %69 : vector<2x128xf32>
    %72 = arith.divf %70, %71 : vector<2x128xf32>
    %73 = vector.extract_strided_slice %62 {offsets = [0, 128], sizes = [2, 128], strides = [1, 1]} : vector<2x512xf32> to vector<2x128xf32>
    %74 = arith.negf %73 : vector<2x128xf32>
    %75 = math.exp %74 : vector<2x128xf32>
    %cst_23 = arith.constant 1.000000e+00 : f32
    %76 = vector.broadcast %cst_23 : f32 to vector<2x128xf32>
    %77 = arith.addf %76, %75 : vector<2x128xf32>
    %78 = arith.divf %76, %77 : vector<2x128xf32>
    %79 = vector.extract_strided_slice %62 {offsets = [0, 256], sizes = [2, 128], strides = [1, 1]} : vector<2x512xf32> to vector<2x128xf32>
    %80 = math.tanh %79 : vector<2x128xf32>
    %81 = vector.extract_strided_slice %62 {offsets = [0, 384], sizes = [2, 128], strides = [1, 1]} : vector<2x512xf32> to vector<2x128xf32>
    %82 = arith.negf %81 : vector<2x128xf32>
    %83 = math.exp %82 : vector<2x128xf32>
    %cst_24 = arith.constant 1.000000e+00 : f32
    %84 = vector.broadcast %cst_24 : f32 to vector<2x128xf32>
    %85 = arith.addf %84, %83 : vector<2x128xf32>
    %86 = arith.divf %84, %85 : vector<2x128xf32>
    %87 = arith.mulf %78, %31 : vector<2x128xf32>
    %88 = arith.mulf %72, %80 : vector<2x128xf32>
    %89 = arith.addf %87, %88 : vector<2x128xf32>
    %90 = math.tanh %89 : vector<2x128xf32>
    %91 = arith.mulf %86, %90 : vector<2x128xf32>
    %92 = vector.extract_strided_slice %66 {offsets = [0, 0], sizes = [2, 128], strides = [1, 1]} : vector<2x512xf32> to vector<2x128xf32>
    %93 = arith.negf %92 : vector<2x128xf32>
    %94 = math.exp %93 : vector<2x128xf32>
    %cst_25 = arith.constant 1.000000e+00 : f32
    %95 = vector.broadcast %cst_25 : f32 to vector<2x128xf32>
    %96 = arith.addf %95, %94 : vector<2x128xf32>
    %97 = arith.divf %95, %96 : vector<2x128xf32>
    %98 = vector.extract_strided_slice %66 {offsets = [0, 128], sizes = [2, 128], strides = [1, 1]} : vector<2x512xf32> to vector<2x128xf32>
    %99 = arith.negf %98 : vector<2x128xf32>
    %100 = math.exp %99 : vector<2x128xf32>
    %cst_26 = arith.constant 1.000000e+00 : f32
    %101 = vector.broadcast %cst_26 : f32 to vector<2x128xf32>
    %102 = arith.addf %101, %100 : vector<2x128xf32>
    %103 = arith.divf %101, %102 : vector<2x128xf32>
    %104 = vector.extract_strided_slice %66 {offsets = [0, 256], sizes = [2, 128], strides = [1, 1]} : vector<2x512xf32> to vector<2x128xf32>
    %105 = math.tanh %104 : vector<2x128xf32>
    %106 = vector.extract_strided_slice %66 {offsets = [0, 384], sizes = [2, 128], strides = [1, 1]} : vector<2x512xf32> to vector<2x128xf32>
    %107 = arith.negf %106 : vector<2x128xf32>
    %108 = math.exp %107 : vector<2x128xf32>
    %cst_27 = arith.constant 1.000000e+00 : f32
    %109 = vector.broadcast %cst_27 : f32 to vector<2x128xf32>
    %110 = arith.addf %109, %108 : vector<2x128xf32>
    %111 = arith.divf %109, %110 : vector<2x128xf32>
    %112 = arith.mulf %103, %56 : vector<2x128xf32>
    %113 = arith.mulf %97, %105 : vector<2x128xf32>
    %114 = arith.addf %112, %113 : vector<2x128xf32>
    %115 = math.tanh %114 : vector<2x128xf32>
    %116 = arith.mulf %111, %115 : vector<2x128xf32>
    %c4 = arith.constant 4 : index
    %c0_28 = arith.constant 0 : index
    %117 = vector.load %arg0[%c4, %c0_28] : memref<16x512xf32, #tpu.memory_space<vmem>>, vector<2x512xf32>
    %c0_29 = arith.constant 0 : index
    %c0_30 = arith.constant 0 : index
    %118 = vector.load %arg2[%c0_29, %c0_30] : memref<128x512xf32, #tpu.memory_space<vmem>>, vector<128x512xf32>
    %cst_31 = arith.constant dense<0.000000e+00> : vector<2x512xf32>
    %119 = tpu.matmul %91, %118, %cst_31 {dimension_numbers = #tpu.dot_dimension_numbers<[1], [0], [0], [1], [0, 0, 1, 1], [], []>} : vector<2x128xf32>, vector<128x512xf32>, vector<2x512xf32> -> vector<2x512xf32>
    %120 = arith.addf %117, %119 : vector<2x512xf32>
    %c10 = arith.constant 10 : index
    %c0_32 = arith.constant 0 : index
    %121 = vector.load %arg1[%c10, %c0_32] : memref<16x512xf32, #tpu.memory_space<vmem>>, vector<2x512xf32>
    %c0_33 = arith.constant 0 : index
    %c0_34 = arith.constant 0 : index
    %122 = vector.load %arg3[%c0_33, %c0_34] : memref<128x512xf32, #tpu.memory_space<vmem>>, vector<128x512xf32>
    %cst_35 = arith.constant dense<0.000000e+00> : vector<2x512xf32>
    %123 = tpu.matmul %116, %122, %cst_35 {dimension_numbers = #tpu.dot_dimension_numbers<[1], [0], [0], [1], [0, 0, 1, 1], [], []>} : vector<2x128xf32>, vector<128x512xf32>, vector<2x512xf32> -> vector<2x512xf32>
    %124 = arith.addf %121, %123 : vector<2x512xf32>
    %125 = vector.extract_strided_slice %120 {offsets = [0, 0], sizes = [2, 128], strides = [1, 1]} : vector<2x512xf32> to vector<2x128xf32>
    %126 = arith.negf %125 : vector<2x128xf32>
    %127 = math.exp %126 : vector<2x128xf32>
    %cst_36 = arith.constant 1.000000e+00 : f32
    %128 = vector.broadcast %cst_36 : f32 to vector<2x128xf32>
    %129 = arith.addf %128, %127 : vector<2x128xf32>
    %130 = arith.divf %128, %129 : vector<2x128xf32>
    %131 = vector.extract_strided_slice %120 {offsets = [0, 128], sizes = [2, 128], strides = [1, 1]} : vector<2x512xf32> to vector<2x128xf32>
    %132 = arith.negf %131 : vector<2x128xf32>
    %133 = math.exp %132 : vector<2x128xf32>
    %cst_37 = arith.constant 1.000000e+00 : f32
    %134 = vector.broadcast %cst_37 : f32 to vector<2x128xf32>
    %135 = arith.addf %134, %133 : vector<2x128xf32>
    %136 = arith.divf %134, %135 : vector<2x128xf32>
    %137 = vector.extract_strided_slice %120 {offsets = [0, 256], sizes = [2, 128], strides = [1, 1]} : vector<2x512xf32> to vector<2x128xf32>
    %138 = math.tanh %137 : vector<2x128xf32>
    %139 = vector.extract_strided_slice %120 {offsets = [0, 384], sizes = [2, 128], strides = [1, 1]} : vector<2x512xf32> to vector<2x128xf32>
    %140 = arith.negf %139 : vector<2x128xf32>
    %141 = math.exp %140 : vector<2x128xf32>
    %cst_38 = arith.constant 1.000000e+00 : f32
    %142 = vector.broadcast %cst_38 : f32 to vector<2x128xf32>
    %143 = arith.addf %142, %141 : vector<2x128xf32>
    %144 = arith.divf %142, %143 : vector<2x128xf32>
    %145 = arith.mulf %136, %89 : vector<2x128xf32>
    %146 = arith.mulf %130, %138 : vector<2x128xf32>
    %147 = arith.addf %145, %146 : vector<2x128xf32>
    %148 = math.tanh %147 : vector<2x128xf32>
    %149 = arith.mulf %144, %148 : vector<2x128xf32>
    %150 = vector.extract_strided_slice %124 {offsets = [0, 0], sizes = [2, 128], strides = [1, 1]} : vector<2x512xf32> to vector<2x128xf32>
    %151 = arith.negf %150 : vector<2x128xf32>
    %152 = math.exp %151 : vector<2x128xf32>
    %cst_39 = arith.constant 1.000000e+00 : f32
    %153 = vector.broadcast %cst_39 : f32 to vector<2x128xf32>
    %154 = arith.addf %153, %152 : vector<2x128xf32>
    %155 = arith.divf %153, %154 : vector<2x128xf32>
    %156 = vector.extract_strided_slice %124 {offsets = [0, 128], sizes = [2, 128], strides = [1, 1]} : vector<2x512xf32> to vector<2x128xf32>
    %157 = arith.negf %156 : vector<2x128xf32>
    %158 = math.exp %157 : vector<2x128xf32>
    %cst_40 = arith.constant 1.000000e+00 : f32
    %159 = vector.broadcast %cst_40 : f32 to vector<2x128xf32>
    %160 = arith.addf %159, %158 : vector<2x128xf32>
    %161 = arith.divf %159, %160 : vector<2x128xf32>
    %162 = vector.extract_strided_slice %124 {offsets = [0, 256], sizes = [2, 128], strides = [1, 1]} : vector<2x512xf32> to vector<2x128xf32>
    %163 = math.tanh %162 : vector<2x128xf32>
    %164 = vector.extract_strided_slice %124 {offsets = [0, 384], sizes = [2, 128], strides = [1, 1]} : vector<2x512xf32> to vector<2x128xf32>
    %165 = arith.negf %164 : vector<2x128xf32>
    %166 = math.exp %165 : vector<2x128xf32>
    %cst_41 = arith.constant 1.000000e+00 : f32
    %167 = vector.broadcast %cst_41 : f32 to vector<2x128xf32>
    %168 = arith.addf %167, %166 : vector<2x128xf32>
    %169 = arith.divf %167, %168 : vector<2x128xf32>
    %170 = arith.mulf %161, %114 : vector<2x128xf32>
    %171 = arith.mulf %155, %163 : vector<2x128xf32>
    %172 = arith.addf %170, %171 : vector<2x128xf32>
    %173 = math.tanh %172 : vector<2x128xf32>
    %174 = arith.mulf %169, %173 : vector<2x128xf32>
    %c6 = arith.constant 6 : index
    %c0_42 = arith.constant 0 : index
    %175 = vector.load %arg0[%c6, %c0_42] : memref<16x512xf32, #tpu.memory_space<vmem>>, vector<2x512xf32>
    %c0_43 = arith.constant 0 : index
    %c0_44 = arith.constant 0 : index
    %176 = vector.load %arg2[%c0_43, %c0_44] : memref<128x512xf32, #tpu.memory_space<vmem>>, vector<128x512xf32>
    %cst_45 = arith.constant dense<0.000000e+00> : vector<2x512xf32>
    %177 = tpu.matmul %149, %176, %cst_45 {dimension_numbers = #tpu.dot_dimension_numbers<[1], [0], [0], [1], [0, 0, 1, 1], [], []>} : vector<2x128xf32>, vector<128x512xf32>, vector<2x512xf32> -> vector<2x512xf32>
    %178 = arith.addf %175, %177 : vector<2x512xf32>
    %c8 = arith.constant 8 : index
    %c0_46 = arith.constant 0 : index
    %179 = vector.load %arg1[%c8, %c0_46] : memref<16x512xf32, #tpu.memory_space<vmem>>, vector<2x512xf32>
    %c0_47 = arith.constant 0 : index
    %c0_48 = arith.constant 0 : index
    %180 = vector.load %arg3[%c0_47, %c0_48] : memref<128x512xf32, #tpu.memory_space<vmem>>, vector<128x512xf32>
    %cst_49 = arith.constant dense<0.000000e+00> : vector<2x512xf32>
    %181 = tpu.matmul %174, %180, %cst_49 {dimension_numbers = #tpu.dot_dimension_numbers<[1], [0], [0], [1], [0, 0, 1, 1], [], []>} : vector<2x128xf32>, vector<128x512xf32>, vector<2x512xf32> -> vector<2x512xf32>
    %182 = arith.addf %179, %181 : vector<2x512xf32>
    %183 = vector.extract_strided_slice %178 {offsets = [0, 0], sizes = [2, 128], strides = [1, 1]} : vector<2x512xf32> to vector<2x128xf32>
    %184 = arith.negf %183 : vector<2x128xf32>
    %185 = math.exp %184 : vector<2x128xf32>
    %cst_50 = arith.constant 1.000000e+00 : f32
    %186 = vector.broadcast %cst_50 : f32 to vector<2x128xf32>
    %187 = arith.addf %186, %185 : vector<2x128xf32>
    %188 = arith.divf %186, %187 : vector<2x128xf32>
    %189 = vector.extract_strided_slice %178 {offsets = [0, 128], sizes = [2, 128], strides = [1, 1]} : vector<2x512xf32> to vector<2x128xf32>
    %190 = arith.negf %189 : vector<2x128xf32>
    %191 = math.exp %190 : vector<2x128xf32>
    %cst_51 = arith.constant 1.000000e+00 : f32
    %192 = vector.broadcast %cst_51 : f32 to vector<2x128xf32>
    %193 = arith.addf %192, %191 : vector<2x128xf32>
    %194 = arith.divf %192, %193 : vector<2x128xf32>
    %195 = vector.extract_strided_slice %178 {offsets = [0, 256], sizes = [2, 128], strides = [1, 1]} : vector<2x512xf32> to vector<2x128xf32>
    %196 = math.tanh %195 : vector<2x128xf32>
    %197 = vector.extract_strided_slice %178 {offsets = [0, 384], sizes = [2, 128], strides = [1, 1]} : vector<2x512xf32> to vector<2x128xf32>
    %198 = arith.negf %197 : vector<2x128xf32>
    %199 = math.exp %198 : vector<2x128xf32>
    %cst_52 = arith.constant 1.000000e+00 : f32
    %200 = vector.broadcast %cst_52 : f32 to vector<2x128xf32>
    %201 = arith.addf %200, %199 : vector<2x128xf32>
    %202 = arith.divf %200, %201 : vector<2x128xf32>
    %203 = arith.mulf %194, %147 : vector<2x128xf32>
    %204 = arith.mulf %188, %196 : vector<2x128xf32>
    %205 = arith.addf %203, %204 : vector<2x128xf32>
    %206 = math.tanh %205 : vector<2x128xf32>
    %207 = arith.mulf %202, %206 : vector<2x128xf32>
    %208 = vector.extract_strided_slice %182 {offsets = [0, 0], sizes = [2, 128], strides = [1, 1]} : vector<2x512xf32> to vector<2x128xf32>
    %209 = arith.negf %208 : vector<2x128xf32>
    %210 = math.exp %209 : vector<2x128xf32>
    %cst_53 = arith.constant 1.000000e+00 : f32
    %211 = vector.broadcast %cst_53 : f32 to vector<2x128xf32>
    %212 = arith.addf %211, %210 : vector<2x128xf32>
    %213 = arith.divf %211, %212 : vector<2x128xf32>
    %214 = vector.extract_strided_slice %182 {offsets = [0, 128], sizes = [2, 128], strides = [1, 1]} : vector<2x512xf32> to vector<2x128xf32>
    %215 = arith.negf %214 : vector<2x128xf32>
    %216 = math.exp %215 : vector<2x128xf32>
    %cst_54 = arith.constant 1.000000e+00 : f32
    %217 = vector.broadcast %cst_54 : f32 to vector<2x128xf32>
    %218 = arith.addf %217, %216 : vector<2x128xf32>
    %219 = arith.divf %217, %218 : vector<2x128xf32>
    %220 = vector.extract_strided_slice %182 {offsets = [0, 256], sizes = [2, 128], strides = [1, 1]} : vector<2x512xf32> to vector<2x128xf32>
    %221 = math.tanh %220 : vector<2x128xf32>
    %222 = vector.extract_strided_slice %182 {offsets = [0, 384], sizes = [2, 128], strides = [1, 1]} : vector<2x512xf32> to vector<2x128xf32>
    %223 = arith.negf %222 : vector<2x128xf32>
    %224 = math.exp %223 : vector<2x128xf32>
    %cst_55 = arith.constant 1.000000e+00 : f32
    %225 = vector.broadcast %cst_55 : f32 to vector<2x128xf32>
    %226 = arith.addf %225, %224 : vector<2x128xf32>
    %227 = arith.divf %225, %226 : vector<2x128xf32>
    %228 = arith.mulf %219, %172 : vector<2x128xf32>
    %229 = arith.mulf %213, %221 : vector<2x128xf32>
    %230 = arith.addf %228, %229 : vector<2x128xf32>
    %231 = math.tanh %230 : vector<2x128xf32>
    %232 = arith.mulf %227, %231 : vector<2x128xf32>
    %c8_56 = arith.constant 8 : index
    %c0_57 = arith.constant 0 : index
    %233 = vector.load %arg0[%c8_56, %c0_57] : memref<16x512xf32, #tpu.memory_space<vmem>>, vector<2x512xf32>
    %c0_58 = arith.constant 0 : index
    %c0_59 = arith.constant 0 : index
    %234 = vector.load %arg2[%c0_58, %c0_59] : memref<128x512xf32, #tpu.memory_space<vmem>>, vector<128x512xf32>
    %cst_60 = arith.constant dense<0.000000e+00> : vector<2x512xf32>
    %235 = tpu.matmul %207, %234, %cst_60 {dimension_numbers = #tpu.dot_dimension_numbers<[1], [0], [0], [1], [0, 0, 1, 1], [], []>} : vector<2x128xf32>, vector<128x512xf32>, vector<2x512xf32> -> vector<2x512xf32>
    %236 = arith.addf %233, %235 : vector<2x512xf32>
    %c6_61 = arith.constant 6 : index
    %c0_62 = arith.constant 0 : index
    %237 = vector.load %arg1[%c6_61, %c0_62] : memref<16x512xf32, #tpu.memory_space<vmem>>, vector<2x512xf32>
    %c0_63 = arith.constant 0 : index
    %c0_64 = arith.constant 0 : index
    %238 = vector.load %arg3[%c0_63, %c0_64] : memref<128x512xf32, #tpu.memory_space<vmem>>, vector<128x512xf32>
    %cst_65 = arith.constant dense<0.000000e+00> : vector<2x512xf32>
    %239 = tpu.matmul %232, %238, %cst_65 {dimension_numbers = #tpu.dot_dimension_numbers<[1], [0], [0], [1], [0, 0, 1, 1], [], []>} : vector<2x128xf32>, vector<128x512xf32>, vector<2x512xf32> -> vector<2x512xf32>
    %240 = arith.addf %237, %239 : vector<2x512xf32>
    %241 = vector.extract_strided_slice %236 {offsets = [0, 0], sizes = [2, 128], strides = [1, 1]} : vector<2x512xf32> to vector<2x128xf32>
    %242 = arith.negf %241 : vector<2x128xf32>
    %243 = math.exp %242 : vector<2x128xf32>
    %cst_66 = arith.constant 1.000000e+00 : f32
    %244 = vector.broadcast %cst_66 : f32 to vector<2x128xf32>
    %245 = arith.addf %244, %243 : vector<2x128xf32>
    %246 = arith.divf %244, %245 : vector<2x128xf32>
    %247 = vector.extract_strided_slice %236 {offsets = [0, 128], sizes = [2, 128], strides = [1, 1]} : vector<2x512xf32> to vector<2x128xf32>
    %248 = arith.negf %247 : vector<2x128xf32>
    %249 = math.exp %248 : vector<2x128xf32>
    %cst_67 = arith.constant 1.000000e+00 : f32
    %250 = vector.broadcast %cst_67 : f32 to vector<2x128xf32>
    %251 = arith.addf %250, %249 : vector<2x128xf32>
    %252 = arith.divf %250, %251 : vector<2x128xf32>
    %253 = vector.extract_strided_slice %236 {offsets = [0, 256], sizes = [2, 128], strides = [1, 1]} : vector<2x512xf32> to vector<2x128xf32>
    %254 = math.tanh %253 : vector<2x128xf32>
    %255 = vector.extract_strided_slice %236 {offsets = [0, 384], sizes = [2, 128], strides = [1, 1]} : vector<2x512xf32> to vector<2x128xf32>
    %256 = arith.negf %255 : vector<2x128xf32>
    %257 = math.exp %256 : vector<2x128xf32>
    %cst_68 = arith.constant 1.000000e+00 : f32
    %258 = vector.broadcast %cst_68 : f32 to vector<2x128xf32>
    %259 = arith.addf %258, %257 : vector<2x128xf32>
    %260 = arith.divf %258, %259 : vector<2x128xf32>
    %261 = arith.mulf %252, %205 : vector<2x128xf32>
    %262 = arith.mulf %246, %254 : vector<2x128xf32>
    %263 = arith.addf %261, %262 : vector<2x128xf32>
    %264 = math.tanh %263 : vector<2x128xf32>
    %265 = arith.mulf %260, %264 : vector<2x128xf32>
    %266 = vector.extract_strided_slice %240 {offsets = [0, 0], sizes = [2, 128], strides = [1, 1]} : vector<2x512xf32> to vector<2x128xf32>
    %267 = arith.negf %266 : vector<2x128xf32>
    %268 = math.exp %267 : vector<2x128xf32>
    %cst_69 = arith.constant 1.000000e+00 : f32
    %269 = vector.broadcast %cst_69 : f32 to vector<2x128xf32>
    %270 = arith.addf %269, %268 : vector<2x128xf32>
    %271 = arith.divf %269, %270 : vector<2x128xf32>
    %272 = vector.extract_strided_slice %240 {offsets = [0, 128], sizes = [2, 128], strides = [1, 1]} : vector<2x512xf32> to vector<2x128xf32>
    %273 = arith.negf %272 : vector<2x128xf32>
    %274 = math.exp %273 : vector<2x128xf32>
    %cst_70 = arith.constant 1.000000e+00 : f32
    %275 = vector.broadcast %cst_70 : f32 to vector<2x128xf32>
    %276 = arith.addf %275, %274 : vector<2x128xf32>
    %277 = arith.divf %275, %276 : vector<2x128xf32>
    %278 = vector.extract_strided_slice %240 {offsets = [0, 256], sizes = [2, 128], strides = [1, 1]} : vector<2x512xf32> to vector<2x128xf32>
    %279 = math.tanh %278 : vector<2x128xf32>
    %280 = vector.extract_strided_slice %240 {offsets = [0, 384], sizes = [2, 128], strides = [1, 1]} : vector<2x512xf32> to vector<2x128xf32>
    %281 = arith.negf %280 : vector<2x128xf32>
    %282 = math.exp %281 : vector<2x128xf32>
    %cst_71 = arith.constant 1.000000e+00 : f32
    %283 = vector.broadcast %cst_71 : f32 to vector<2x128xf32>
    %284 = arith.addf %283, %282 : vector<2x128xf32>
    %285 = arith.divf %283, %284 : vector<2x128xf32>
    %286 = arith.mulf %277, %230 : vector<2x128xf32>
    %287 = arith.mulf %271, %279 : vector<2x128xf32>
    %288 = arith.addf %286, %287 : vector<2x128xf32>
    %289 = math.tanh %288 : vector<2x128xf32>
    %290 = arith.mulf %285, %289 : vector<2x128xf32>
    %c10_72 = arith.constant 10 : index
    %c0_73 = arith.constant 0 : index
    %291 = vector.load %arg0[%c10_72, %c0_73] : memref<16x512xf32, #tpu.memory_space<vmem>>, vector<2x512xf32>
    %c0_74 = arith.constant 0 : index
    %c0_75 = arith.constant 0 : index
    %292 = vector.load %arg2[%c0_74, %c0_75] : memref<128x512xf32, #tpu.memory_space<vmem>>, vector<128x512xf32>
    %cst_76 = arith.constant dense<0.000000e+00> : vector<2x512xf32>
    %293 = tpu.matmul %265, %292, %cst_76 {dimension_numbers = #tpu.dot_dimension_numbers<[1], [0], [0], [1], [0, 0, 1, 1], [], []>} : vector<2x128xf32>, vector<128x512xf32>, vector<2x512xf32> -> vector<2x512xf32>
    %294 = arith.addf %291, %293 : vector<2x512xf32>
    %c4_77 = arith.constant 4 : index
    %c0_78 = arith.constant 0 : index
    %295 = vector.load %arg1[%c4_77, %c0_78] : memref<16x512xf32, #tpu.memory_space<vmem>>, vector<2x512xf32>
    %c0_79 = arith.constant 0 : index
    %c0_80 = arith.constant 0 : index
    %296 = vector.load %arg3[%c0_79, %c0_80] : memref<128x512xf32, #tpu.memory_space<vmem>>, vector<128x512xf32>
    %cst_81 = arith.constant dense<0.000000e+00> : vector<2x512xf32>
    %297 = tpu.matmul %290, %296, %cst_81 {dimension_numbers = #tpu.dot_dimension_numbers<[1], [0], [0], [1], [0, 0, 1, 1], [], []>} : vector<2x128xf32>, vector<128x512xf32>, vector<2x512xf32> -> vector<2x512xf32>
    %298 = arith.addf %295, %297 : vector<2x512xf32>
    %299 = vector.extract_strided_slice %294 {offsets = [0, 0], sizes = [2, 128], strides = [1, 1]} : vector<2x512xf32> to vector<2x128xf32>
    %300 = arith.negf %299 : vector<2x128xf32>
    %301 = math.exp %300 : vector<2x128xf32>
    %cst_82 = arith.constant 1.000000e+00 : f32
    %302 = vector.broadcast %cst_82 : f32 to vector<2x128xf32>
    %303 = arith.addf %302, %301 : vector<2x128xf32>
    %304 = arith.divf %302, %303 : vector<2x128xf32>
    %305 = vector.extract_strided_slice %294 {offsets = [0, 128], sizes = [2, 128], strides = [1, 1]} : vector<2x512xf32> to vector<2x128xf32>
    %306 = arith.negf %305 : vector<2x128xf32>
    %307 = math.exp %306 : vector<2x128xf32>
    %cst_83 = arith.constant 1.000000e+00 : f32
    %308 = vector.broadcast %cst_83 : f32 to vector<2x128xf32>
    %309 = arith.addf %308, %307 : vector<2x128xf32>
    %310 = arith.divf %308, %309 : vector<2x128xf32>
    %311 = vector.extract_strided_slice %294 {offsets = [0, 256], sizes = [2, 128], strides = [1, 1]} : vector<2x512xf32> to vector<2x128xf32>
    %312 = math.tanh %311 : vector<2x128xf32>
    %313 = vector.extract_strided_slice %294 {offsets = [0, 384], sizes = [2, 128], strides = [1, 1]} : vector<2x512xf32> to vector<2x128xf32>
    %314 = arith.negf %313 : vector<2x128xf32>
    %315 = math.exp %314 : vector<2x128xf32>
    %cst_84 = arith.constant 1.000000e+00 : f32
    %316 = vector.broadcast %cst_84 : f32 to vector<2x128xf32>
    %317 = arith.addf %316, %315 : vector<2x128xf32>
    %318 = arith.divf %316, %317 : vector<2x128xf32>
    %319 = arith.mulf %310, %263 : vector<2x128xf32>
    %320 = arith.mulf %304, %312 : vector<2x128xf32>
    %321 = arith.addf %319, %320 : vector<2x128xf32>
    %322 = math.tanh %321 : vector<2x128xf32>
    %323 = arith.mulf %318, %322 : vector<2x128xf32>
    %324 = vector.extract_strided_slice %298 {offsets = [0, 0], sizes = [2, 128], strides = [1, 1]} : vector<2x512xf32> to vector<2x128xf32>
    %325 = arith.negf %324 : vector<2x128xf32>
    %326 = math.exp %325 : vector<2x128xf32>
    %cst_85 = arith.constant 1.000000e+00 : f32
    %327 = vector.broadcast %cst_85 : f32 to vector<2x128xf32>
    %328 = arith.addf %327, %326 : vector<2x128xf32>
    %329 = arith.divf %327, %328 : vector<2x128xf32>
    %330 = vector.extract_strided_slice %298 {offsets = [0, 128], sizes = [2, 128], strides = [1, 1]} : vector<2x512xf32> to vector<2x128xf32>
    %331 = arith.negf %330 : vector<2x128xf32>
    %332 = math.exp %331 : vector<2x128xf32>
    %cst_86 = arith.constant 1.000000e+00 : f32
    %333 = vector.broadcast %cst_86 : f32 to vector<2x128xf32>
    %334 = arith.addf %333, %332 : vector<2x128xf32>
    %335 = arith.divf %333, %334 : vector<2x128xf32>
    %336 = vector.extract_strided_slice %298 {offsets = [0, 256], sizes = [2, 128], strides = [1, 1]} : vector<2x512xf32> to vector<2x128xf32>
    %337 = math.tanh %336 : vector<2x128xf32>
    %338 = vector.extract_strided_slice %298 {offsets = [0, 384], sizes = [2, 128], strides = [1, 1]} : vector<2x512xf32> to vector<2x128xf32>
    %339 = arith.negf %338 : vector<2x128xf32>
    %340 = math.exp %339 : vector<2x128xf32>
    %cst_87 = arith.constant 1.000000e+00 : f32
    %341 = vector.broadcast %cst_87 : f32 to vector<2x128xf32>
    %342 = arith.addf %341, %340 : vector<2x128xf32>
    %343 = arith.divf %341, %342 : vector<2x128xf32>
    %344 = arith.mulf %335, %288 : vector<2x128xf32>
    %345 = arith.mulf %329, %337 : vector<2x128xf32>
    %346 = arith.addf %344, %345 : vector<2x128xf32>
    %347 = math.tanh %346 : vector<2x128xf32>
    %348 = arith.mulf %343, %347 : vector<2x128xf32>
    %c12_88 = arith.constant 12 : index
    %c0_89 = arith.constant 0 : index
    %349 = vector.load %arg0[%c12_88, %c0_89] : memref<16x512xf32, #tpu.memory_space<vmem>>, vector<2x512xf32>
    %c0_90 = arith.constant 0 : index
    %c0_91 = arith.constant 0 : index
    %350 = vector.load %arg2[%c0_90, %c0_91] : memref<128x512xf32, #tpu.memory_space<vmem>>, vector<128x512xf32>
    %cst_92 = arith.constant dense<0.000000e+00> : vector<2x512xf32>
    %351 = tpu.matmul %323, %350, %cst_92 {dimension_numbers = #tpu.dot_dimension_numbers<[1], [0], [0], [1], [0, 0, 1, 1], [], []>} : vector<2x128xf32>, vector<128x512xf32>, vector<2x512xf32> -> vector<2x512xf32>
    %352 = arith.addf %349, %351 : vector<2x512xf32>
    %c2_93 = arith.constant 2 : index
    %c0_94 = arith.constant 0 : index
    %353 = vector.load %arg1[%c2_93, %c0_94] : memref<16x512xf32, #tpu.memory_space<vmem>>, vector<2x512xf32>
    %c0_95 = arith.constant 0 : index
    %c0_96 = arith.constant 0 : index
    %354 = vector.load %arg3[%c0_95, %c0_96] : memref<128x512xf32, #tpu.memory_space<vmem>>, vector<128x512xf32>
    %cst_97 = arith.constant dense<0.000000e+00> : vector<2x512xf32>
    %355 = tpu.matmul %348, %354, %cst_97 {dimension_numbers = #tpu.dot_dimension_numbers<[1], [0], [0], [1], [0, 0, 1, 1], [], []>} : vector<2x128xf32>, vector<128x512xf32>, vector<2x512xf32> -> vector<2x512xf32>
    %356 = arith.addf %353, %355 : vector<2x512xf32>
    %357 = vector.extract_strided_slice %352 {offsets = [0, 0], sizes = [2, 128], strides = [1, 1]} : vector<2x512xf32> to vector<2x128xf32>
    %358 = arith.negf %357 : vector<2x128xf32>
    %359 = math.exp %358 : vector<2x128xf32>
    %cst_98 = arith.constant 1.000000e+00 : f32
    %360 = vector.broadcast %cst_98 : f32 to vector<2x128xf32>
    %361 = arith.addf %360, %359 : vector<2x128xf32>
    %362 = arith.divf %360, %361 : vector<2x128xf32>
    %363 = vector.extract_strided_slice %352 {offsets = [0, 128], sizes = [2, 128], strides = [1, 1]} : vector<2x512xf32> to vector<2x128xf32>
    %364 = arith.negf %363 : vector<2x128xf32>
    %365 = math.exp %364 : vector<2x128xf32>
    %cst_99 = arith.constant 1.000000e+00 : f32
    %366 = vector.broadcast %cst_99 : f32 to vector<2x128xf32>
    %367 = arith.addf %366, %365 : vector<2x128xf32>
    %368 = arith.divf %366, %367 : vector<2x128xf32>
    %369 = vector.extract_strided_slice %352 {offsets = [0, 256], sizes = [2, 128], strides = [1, 1]} : vector<2x512xf32> to vector<2x128xf32>
    %370 = math.tanh %369 : vector<2x128xf32>
    %371 = vector.extract_strided_slice %352 {offsets = [0, 384], sizes = [2, 128], strides = [1, 1]} : vector<2x512xf32> to vector<2x128xf32>
    %372 = arith.negf %371 : vector<2x128xf32>
    %373 = math.exp %372 : vector<2x128xf32>
    %cst_100 = arith.constant 1.000000e+00 : f32
    %374 = vector.broadcast %cst_100 : f32 to vector<2x128xf32>
    %375 = arith.addf %374, %373 : vector<2x128xf32>
    %376 = arith.divf %374, %375 : vector<2x128xf32>
    %377 = arith.mulf %368, %321 : vector<2x128xf32>
    %378 = arith.mulf %362, %370 : vector<2x128xf32>
    %379 = arith.addf %377, %378 : vector<2x128xf32>
    %380 = math.tanh %379 : vector<2x128xf32>
    %381 = arith.mulf %376, %380 : vector<2x128xf32>
    %382 = vector.extract_strided_slice %356 {offsets = [0, 0], sizes = [2, 128], strides = [1, 1]} : vector<2x512xf32> to vector<2x128xf32>
    %383 = arith.negf %382 : vector<2x128xf32>
    %384 = math.exp %383 : vector<2x128xf32>
    %cst_101 = arith.constant 1.000000e+00 : f32
    %385 = vector.broadcast %cst_101 : f32 to vector<2x128xf32>
    %386 = arith.addf %385, %384 : vector<2x128xf32>
    %387 = arith.divf %385, %386 : vector<2x128xf32>
    %388 = vector.extract_strided_slice %356 {offsets = [0, 128], sizes = [2, 128], strides = [1, 1]} : vector<2x512xf32> to vector<2x128xf32>
    %389 = arith.negf %388 : vector<2x128xf32>
    %390 = math.exp %389 : vector<2x128xf32>
    %cst_102 = arith.constant 1.000000e+00 : f32
    %391 = vector.broadcast %cst_102 : f32 to vector<2x128xf32>
    %392 = arith.addf %391, %390 : vector<2x128xf32>
    %393 = arith.divf %391, %392 : vector<2x128xf32>
    %394 = vector.extract_strided_slice %356 {offsets = [0, 256], sizes = [2, 128], strides = [1, 1]} : vector<2x512xf32> to vector<2x128xf32>
    %395 = math.tanh %394 : vector<2x128xf32>
    %396 = vector.extract_strided_slice %356 {offsets = [0, 384], sizes = [2, 128], strides = [1, 1]} : vector<2x512xf32> to vector<2x128xf32>
    %397 = arith.negf %396 : vector<2x128xf32>
    %398 = math.exp %397 : vector<2x128xf32>
    %cst_103 = arith.constant 1.000000e+00 : f32
    %399 = vector.broadcast %cst_103 : f32 to vector<2x128xf32>
    %400 = arith.addf %399, %398 : vector<2x128xf32>
    %401 = arith.divf %399, %400 : vector<2x128xf32>
    %402 = arith.mulf %393, %346 : vector<2x128xf32>
    %403 = arith.mulf %387, %395 : vector<2x128xf32>
    %404 = arith.addf %402, %403 : vector<2x128xf32>
    %405 = math.tanh %404 : vector<2x128xf32>
    %406 = arith.mulf %401, %405 : vector<2x128xf32>
    %c14_104 = arith.constant 14 : index
    %c0_105 = arith.constant 0 : index
    %407 = vector.load %arg0[%c14_104, %c0_105] : memref<16x512xf32, #tpu.memory_space<vmem>>, vector<2x512xf32>
    %c0_106 = arith.constant 0 : index
    %c0_107 = arith.constant 0 : index
    %408 = vector.load %arg2[%c0_106, %c0_107] : memref<128x512xf32, #tpu.memory_space<vmem>>, vector<128x512xf32>
    %cst_108 = arith.constant dense<0.000000e+00> : vector<2x512xf32>
    %409 = tpu.matmul %381, %408, %cst_108 {dimension_numbers = #tpu.dot_dimension_numbers<[1], [0], [0], [1], [0, 0, 1, 1], [], []>} : vector<2x128xf32>, vector<128x512xf32>, vector<2x512xf32> -> vector<2x512xf32>
    %410 = arith.addf %407, %409 : vector<2x512xf32>
    %c0_109 = arith.constant 0 : index
    %c0_110 = arith.constant 0 : index
    %411 = vector.load %arg1[%c0_109, %c0_110] : memref<16x512xf32, #tpu.memory_space<vmem>>, vector<2x512xf32>
    %c0_111 = arith.constant 0 : index
    %c0_112 = arith.constant 0 : index
    %412 = vector.load %arg3[%c0_111, %c0_112] : memref<128x512xf32, #tpu.memory_space<vmem>>, vector<128x512xf32>
    %cst_113 = arith.constant dense<0.000000e+00> : vector<2x512xf32>
    %413 = tpu.matmul %406, %412, %cst_113 {dimension_numbers = #tpu.dot_dimension_numbers<[1], [0], [0], [1], [0, 0, 1, 1], [], []>} : vector<2x128xf32>, vector<128x512xf32>, vector<2x512xf32> -> vector<2x512xf32>
    %414 = arith.addf %411, %413 : vector<2x512xf32>
    %415 = vector.extract_strided_slice %410 {offsets = [0, 0], sizes = [2, 128], strides = [1, 1]} : vector<2x512xf32> to vector<2x128xf32>
    %416 = arith.negf %415 : vector<2x128xf32>
    %417 = math.exp %416 : vector<2x128xf32>
    %cst_114 = arith.constant 1.000000e+00 : f32
    %418 = vector.broadcast %cst_114 : f32 to vector<2x128xf32>
    %419 = arith.addf %418, %417 : vector<2x128xf32>
    %420 = arith.divf %418, %419 : vector<2x128xf32>
    %421 = vector.extract_strided_slice %410 {offsets = [0, 128], sizes = [2, 128], strides = [1, 1]} : vector<2x512xf32> to vector<2x128xf32>
    %422 = arith.negf %421 : vector<2x128xf32>
    %423 = math.exp %422 : vector<2x128xf32>
    %cst_115 = arith.constant 1.000000e+00 : f32
    %424 = vector.broadcast %cst_115 : f32 to vector<2x128xf32>
    %425 = arith.addf %424, %423 : vector<2x128xf32>
    %426 = arith.divf %424, %425 : vector<2x128xf32>
    %427 = vector.extract_strided_slice %410 {offsets = [0, 256], sizes = [2, 128], strides = [1, 1]} : vector<2x512xf32> to vector<2x128xf32>
    %428 = math.tanh %427 : vector<2x128xf32>
    %429 = vector.extract_strided_slice %410 {offsets = [0, 384], sizes = [2, 128], strides = [1, 1]} : vector<2x512xf32> to vector<2x128xf32>
    %430 = arith.negf %429 : vector<2x128xf32>
    %431 = math.exp %430 : vector<2x128xf32>
    %cst_116 = arith.constant 1.000000e+00 : f32
    %432 = vector.broadcast %cst_116 : f32 to vector<2x128xf32>
    %433 = arith.addf %432, %431 : vector<2x128xf32>
    %434 = arith.divf %432, %433 : vector<2x128xf32>
    %435 = arith.mulf %426, %379 : vector<2x128xf32>
    %436 = arith.mulf %420, %428 : vector<2x128xf32>
    %437 = arith.addf %435, %436 : vector<2x128xf32>
    %438 = math.tanh %437 : vector<2x128xf32>
    %439 = arith.mulf %434, %438 : vector<2x128xf32>
    %440 = vector.extract_strided_slice %414 {offsets = [0, 0], sizes = [2, 128], strides = [1, 1]} : vector<2x512xf32> to vector<2x128xf32>
    %441 = arith.negf %440 : vector<2x128xf32>
    %442 = math.exp %441 : vector<2x128xf32>
    %cst_117 = arith.constant 1.000000e+00 : f32
    %443 = vector.broadcast %cst_117 : f32 to vector<2x128xf32>
    %444 = arith.addf %443, %442 : vector<2x128xf32>
    %445 = arith.divf %443, %444 : vector<2x128xf32>
    %446 = vector.extract_strided_slice %414 {offsets = [0, 128], sizes = [2, 128], strides = [1, 1]} : vector<2x512xf32> to vector<2x128xf32>
    %447 = arith.negf %446 : vector<2x128xf32>
    %448 = math.exp %447 : vector<2x128xf32>
    %cst_118 = arith.constant 1.000000e+00 : f32
    %449 = vector.broadcast %cst_118 : f32 to vector<2x128xf32>
    %450 = arith.addf %449, %448 : vector<2x128xf32>
    %451 = arith.divf %449, %450 : vector<2x128xf32>
    %452 = vector.extract_strided_slice %414 {offsets = [0, 256], sizes = [2, 128], strides = [1, 1]} : vector<2x512xf32> to vector<2x128xf32>
    %453 = math.tanh %452 : vector<2x128xf32>
    %454 = vector.extract_strided_slice %414 {offsets = [0, 384], sizes = [2, 128], strides = [1, 1]} : vector<2x512xf32> to vector<2x128xf32>
    %455 = arith.negf %454 : vector<2x128xf32>
    %456 = math.exp %455 : vector<2x128xf32>
    %cst_119 = arith.constant 1.000000e+00 : f32
    %457 = vector.broadcast %cst_119 : f32 to vector<2x128xf32>
    %458 = arith.addf %457, %456 : vector<2x128xf32>
    %459 = arith.divf %457, %458 : vector<2x128xf32>
    %460 = arith.mulf %451, %404 : vector<2x128xf32>
    %461 = arith.mulf %445, %453 : vector<2x128xf32>
    %462 = arith.addf %460, %461 : vector<2x128xf32>
    %463 = math.tanh %462 : vector<2x128xf32>
    %464 = arith.mulf %459, %463 : vector<2x128xf32>
    %c0_120 = arith.constant 0 : index
    %c0_121 = arith.constant 0 : index
    %465 = vector.load %arg4[%c0_120, %c0_121] : memref<256x5xf32, #tpu.memory_space<vmem>>, vector<128x5xf32>
    %cst_122 = arith.constant dense<0.000000e+00> : vector<2x5xf32>
    %466 = tpu.matmul %439, %465, %cst_122 {dimension_numbers = #tpu.dot_dimension_numbers<[1], [0], [0], [1], [0, 0, 1, 1], [], []>} : vector<2x128xf32>, vector<128x5xf32>, vector<2x5xf32> -> vector<2x5xf32>
    %c128 = arith.constant 128 : index
    %c0_123 = arith.constant 0 : index
    %467 = vector.load %arg4[%c128, %c0_123] : memref<256x5xf32, #tpu.memory_space<vmem>>, vector<128x5xf32>
    %cst_124 = arith.constant dense<0.000000e+00> : vector<2x5xf32>
    %468 = tpu.matmul %464, %467, %cst_124 {dimension_numbers = #tpu.dot_dimension_numbers<[1], [0], [0], [1], [0, 0, 1, 1], [], []>} : vector<2x128xf32>, vector<128x5xf32>, vector<2x5xf32> -> vector<2x5xf32>
    %469 = arith.addf %466, %468 : vector<2x5xf32>
    %c0_125 = arith.constant 0 : index
    %c0_126 = arith.constant 0 : index
    %470 = vector.load %arg5[%c0_125, %c0_126] : memref<1x5xf32, #tpu.memory_space<vmem>>, vector<1x5xf32>
    %471 = vector.broadcast %470 : vector<1x5xf32> to vector<2x5xf32>
    %472 = arith.addf %469, %471 : vector<2x5xf32>
    %c0_127 = arith.constant 0 : index
    %c0_128 = arith.constant 0 : index
    %473 = vector.load %arg6[%c0_127, %c0_128] : memref<2x5xf32, #tpu.memory_space<vmem>>, vector<2x5xf32>
    tpu.vector_store %arg6[%c0_127, %c0_128], %472 {strides = array<i32>} : memref<2x5xf32, #tpu.memory_space<vmem>>, vector<2x5xf32>,
    return
  }
}

</mosaic_0001>

<llo_original>
// kernel: lstm_classifier_forward.4
$region0: #{lstm_classifier_forward.4}
  #allocation0 [shape = 'u32[]', space=smem, size = 0x4, offset = 0x4, fixed_abs, tag = 'smem constant byte address 0x4 - core index']
  #allocation1 [shape = 'u32[144,128]{1,0:T(1,128)}', space=vmem, size = 0x12000, scoped, tag = 'internal scratch']
  %s0 = inlined_call_operand.vmem [shape: f32[16,100], index: 0, kind: input, shape index: {}]
  %s1 = inlined_call_operand.hbm [shape: f32[100,512], index: 1, kind: input, shape index: {}]
  %s2 = inlined_call_operand.hbm [shape: f32[100,512], index: 2, kind: input, shape index: {}]
  %s3 = inlined_call_operand.vmem [shape: f32[1,512], index: 3, kind: input, shape index: {}]
  %s4 = inlined_call_operand.vmem [shape: f32[1,512], index: 4, kind: input, shape index: {}]
  %s5 = inlined_call_operand.vmem [shape: f32[16,512], index: 5, kind: output, shape index: {0}]
  %s6 = inlined_call_operand.vmem [shape: f32[16,512], index: 6, kind: output, shape index: {1}]
  %7 = xla_tuple %s5, %s6
  %s8 = sld [smem:[#allocation0]]
  $region46: #{lstm_classifier_forward.4} parent=0
    _
  %s10 = ssub.s32 1, %s8
  %s11 = scalar_select 0, %s10, %s8
  $region1: #{lstm_classifier_forward.4} parent=0
    #allocation2 [shape = 'u8[212992]{0}', space=vmem, size = 0x34000, scoped, tag = 'input window, operand 1, single buffered']
    #allocation3 [shape = 's32[1]{0}', space=sflag, size = 0x4, scoped, tag = 'scoped memory for lstm_classifier_forward.4']
    #allocation4 [shape = 'u8[212992]{0}', space=vmem, size = 0x34000, scoped, tag = 'input window, operand 2, single buffered']
    #allocation5 [shape = 's32[1]{0}', space=sflag, size = 0x4, scoped, tag = 'scoped memory for lstm_classifier_forward.4']
    %12 = vsyncpa [#allocation3], 0
    %13 = vsyncpa [#allocation5], 0
    // Predicated region
    $region2: #{lstm_classifier_forward.4} parent=1 // pred_check
      _
    $region3: #{lstm_classifier_forward.4} parent=1 // pred_check_branch
      %15 = sbr.rel (0) target = $region5
    $region4: #{lstm_classifier_forward.4} parent=1 // pred_region
      _
    $region5: #{lstm_classifier_forward.4} parent=1 // pred_fallthru
      _
    // Predicated region
    $region6: #{lstm_classifier_forward.4} parent=1 // pred_check
      _
    $region7: #{lstm_classifier_forward.4} parent=1 // pred_check_branch
      %17 = sbr.rel (0) target = $region9
    $region8: #{lstm_classifier_forward.4} parent=1 // pred_region
      %s19 = ssub.s32 6656, 6656
      %20 = vsyncadd [#allocation3], %s19
      %s21 = sshll.u32 [#allocation2], 4
      %s22 = int_to_ptr.vmem [resolvable:$true] %s21
      %27 = dma.hbm_to_vmem [thread:$0]  %s1, 6656, %s22, [#allocation3], 512, 512, 32
    $region9: #{lstm_classifier_forward.4} parent=1 // pred_fallthru
      _
    // Predicated region
    $region10: #{lstm_classifier_forward.4} parent=1 // pred_check
      _
    $region11: #{lstm_classifier_forward.4} parent=1 // pred_check_branch
      %29 = sbr.rel (0) target = $region13
    $region12: #{lstm_classifier_forward.4} parent=1 // pred_region
      %s31 = ssub.s32 6656, 6656
      %32 = vsyncadd [#allocation5], %s31
      %s33 = sshll.u32 [#allocation4], 4
      %s34 = int_to_ptr.vmem [resolvable:$true] %s33
      %39 = dma.hbm_to_vmem [thread:$0]  %s2, 6656, %s34, [#allocation5], 512, 512, 32
    $region13: #{lstm_classifier_forward.4} parent=1 // pred_fallthru
      _
    // Predicated region
    $region14: #{lstm_classifier_forward.4} parent=1 // pred_check
      _
    $region15: #{lstm_classifier_forward.4} parent=1 // pred_check_branch
      %41 = sbr.rel (0) target = $region17
    $region16: #{lstm_classifier_forward.4} parent=1 // pred_region
      _
    $region17: #{lstm_classifier_forward.4} parent=1 // pred_fallthru
      _
    // Predicated region
    $region18: #{lstm_classifier_forward.4} parent=1 // pred_check
      _
    $region19: #{lstm_classifier_forward.4} parent=1 // pred_check_branch
      %43 = sbr.rel (0) target = $region21
    $region20: #{lstm_classifier_forward.4} parent=1 // pred_region
      _
    $region21: #{lstm_classifier_forward.4} parent=1 // pred_fallthru
      _
    // Predicated region
    $region22: #{lstm_classifier_forward.4} parent=1 // pred_check
      _
    $region23: #{lstm_classifier_forward.4} parent=1 // pred_check_branch
      %45 = sbr.rel (0) target = $region25
    $region24: #{lstm_classifier_forward.4} parent=1 // pred_region
      %46 = dma.done [#allocation3], 6656
    $region25: #{lstm_classifier_forward.4} parent=1 // pred_fallthru
      _
    // Predicated region
    $region26: #{lstm_classifier_forward.4} parent=1 // pred_check
      _
    $region27: #{lstm_classifier_forward.4} parent=1 // pred_check_branch
      %48 = sbr.rel (0) target = $region29
    $region28: #{lstm_classifier_forward.4} parent=1 // pred_region
      %49 = dma.done [#allocation5], 6656
    $region29: #{lstm_classifier_forward.4} parent=1 // pred_fallthru
      _
    %v50 = vld [vmem:[%s0] sm:$0xff]
    %v51 = vld [vmem:[%s0 + $0x8] sm:$0xff]
    %v52 = vld [vmem:[#allocation2] sm:$0xff]
    %v53 = vld [vmem:[#allocation2 + $0x8] sm:$0xff]
    %v54 = vld [vmem:[#allocation2 + $0x10] sm:$0xff]
    %v55 = vld [vmem:[#allocation2 + $0x18] sm:$0xff]
    %v56 = vld [vmem:[#allocation2 + $0x20] sm:$0xff]
    %v57 = vld [vmem:[#allocation2 + $0x28] sm:$0xff]
    %v58 = vld [vmem:[#allocation2 + $0x30] sm:$0xff]
    %v59 = vld [vmem:[#allocation2 + $0x38] sm:$0xff]
    %v60 = vld [vmem:[#allocation2 + $0x40] sm:$0xff]
    %v61 = vld [vmem:[#allocation2 + $0x48] sm:$0xff]
    %v62 = vld [vmem:[#allocation2 + $0x50] sm:$0xff]
    %v63 = vld [vmem:[#allocation2 + $0x58] sm:$0xff]
    %v64 = vld [vmem:[#allocation2 + $0x60] sm:$0xff]
    %v65 = vld [vmem:[#allocation2 + $0x68] sm:$0xff]
    %v66 = vld [vmem:[#allocation2 + $0x70] sm:$0xff]
    %v67 = vld [vmem:[#allocation2 + $0x78] sm:$0xff]
    %v68 = vld [vmem:[#allocation2 + $0x80] sm:$0xff]
    %v69 = vld [vmem:[#allocation2 + $0x88] sm:$0xff]
    %v70 = vld [vmem:[#allocation2 + $0x90] sm:$0xff]
    %v71 = vld [vmem:[#allocation2 + $0x98] sm:$0xff]
    %v72 = vld [vmem:[#allocation2 + $0xa0] sm:$0xff]
    %v73 = vld [vmem:[#allocation2 + $0xa8] sm:$0xff]
    %v74 = vld [vmem:[#allocation2 + $0xb0] sm:$0xff]
    %v75 = vld [vmem:[#allocation2 + $0xb8] sm:$0xff]
    %v76 = vld [vmem:[#allocation2 + $0xc0] sm:$0xff]
    %v77 = vld [vmem:[#allocation2 + $0xc8] sm:$0xff]
    %v78 = vld [vmem:[#allocation2 + $0xd0] sm:$0xff]
    %v79 = vld [vmem:[#allocation2 + $0xd8] sm:$0xff]
    %v80 = vld [vmem:[#allocation2 + $0xe0] sm:$0xff]
    %v81 = vld [vmem:[#allocation2 + $0xe8] sm:$0xff]
    %v82 = vld [vmem:[#allocation2 + $0xf0] sm:$0xff]
    %v83 = vld [vmem:[#allocation2 + $0xf8] sm:$0xff]
    %v84 = vld [vmem:[#allocation2 + $0x100] sm:$0xff]
    %v85 = vld [vmem:[#allocation2 + $0x108] sm:$0xff]
    %v86 = vld [vmem:[#allocation2 + $0x110] sm:$0xff]
    %v87 = vld [vmem:[#allocation2 + $0x118] sm:$0xff]
    %v88 = vld [vmem:[#allocation2 + $0x120] sm:$0xff]
    %v89 = vld [vmem:[#allocation2 + $0x128] sm:$0xff]
    %v90 = vld [vmem:[#allocation2 + $0x130] sm:$0xff]
    %v91 = vld [vmem:[#allocation2 + $0x138] sm:$0xff]
    %v92 = vld [vmem:[#allocation2 + $0x140] sm:$0xff]
    %v93 = vld [vmem:[#allocation2 + $0x148] sm:$0xff]
    %v94 = vld [vmem:[#allocation2 + $0x150] sm:$0xff]
    %v95 = vld [vmem:[#allocation2 + $0x158] sm:$0xff]
    %v96 = vld [vmem:[#allocation2 + $0x160] sm:$0xff]
    %v97 = vld [vmem:[#allocation2 + $0x168] sm:$0xff]
    %v98 = vld [vmem:[#allocation2 + $0x170] sm:$0xff]
    %v99 = vld [vmem:[#allocation2 + $0x178] sm:$0xff]
    %v100 = vld [vmem:[#allocation2 + $0x180] sm:$0xf]
    %v101 = vld [vmem:[#allocation2 + $0x188] sm:$0xf]
    %v102 = vld [vmem:[#allocation2 + $0x190] sm:$0xf]
    %v103 = vld [vmem:[#allocation2 + $0x198] sm:$0xf]
    %v104 = vld [vmem:[%s3] sm:$0xf]
    %v106 = vlaneseq
    %v107 = vshrl.u32 %v106, 7
    %v108 = vsub.s32 0, %v107
    %v109 = vrot.slane %v104, %v108
    %v110 = vlaneseq
    %v111 = vshrl.u32 %v110, 7
    %v112 = vsub.s32 1, %v111
    %v113 = vrot.slane %v104, %v112
    %v114 = vlaneseq
    %v115 = vshrl.u32 %v114, 7
    %v116 = vsub.s32 2, %v115
    %v117 = vrot.slane %v104, %v116
    %v118 = vlaneseq
    %v119 = vshrl.u32 %v118, 7
    %v120 = vsub.s32 3, %v119
    %v121 = vrot.slane %v104, %v120
    %vm126 = vcmask 818176
    %v128 = vsel %vm126, %v50, 0
    %v131 = vsel %vm126, %v51, 0
    %vm133 = vcmask 1043456
    %v135 = vsel %vm133, %v100, 0
    %v138 = vsel %vm133, %v101, 0
    %v141 = vsel %vm133, %v102, 0
    %v144 = vsel %vm133, %v103, 0
    %146 = vmatprep.subr.mxu0 0.0
    %147 = vmatpush1.msra.mxu0 0.0
    %148 = vmatprep.subr.mxu0 0.0
    %149 = vmatpush1.msra.mxu0 0.0
    %150 = vmatprep.subr.mxu0 0.0
    %151 = vmatpush1.msra.mxu0 0.0
    %152 = vmatprep.subr.mxu0 %v138
    %153 = vmatpush1.msra.mxu0 %v135
    %154 = vmatprep.subr.mxu0 %v97
    %155 = vmatpush1.msra.mxu0 %v96
    %156 = vmatprep.subr.mxu0 %v93
    %157 = vmatpush1.msra.mxu0 %v92
    %158 = vmatprep.subr.mxu0 %v89
    %159 = vmatpush1.msra.mxu0 %v88
    %160 = vmatprep.subr.mxu0 %v85
    %161 = vmatpush1.msra.mxu0 %v84
    %162 = vmatprep.subr.mxu0 %v81
    %163 = vmatpush1.msra.mxu0 %v80
    %164 = vmatprep.subr.mxu0 %v77
    %165 = vmatpush1.msra.mxu0 %v76
    %166 = vmatprep.subr.mxu0 %v73
    %167 = vmatpush1.msra.mxu0 %v72
    %168 = vmatprep.subr.mxu0 %v69
    %169 = vmatpush1.msra.mxu0 %v68
    %170 = vmatprep.subr.mxu0 %v65
    %171 = vmatpush1.msra.mxu0 %v64
    %172 = vmatprep.subr.mxu0 %v61
    %173 = vmatpush1.msra.mxu0 %v60
    %174 = vmatprep.subr.mxu0 %v57
    %175 = vmatpush1.msra.mxu0 %v56
    %176 = vmatprep.subr.mxu0 %v53
    %177 = vmatpush1.msra.mxu0 %v52
    %178 = vmatprep.subr.mxu0 0.0
    %179 = vmatpush2.msra.mxu0 0.0
    %180 = vmatprep.subr.mxu0 0.0
    %181 = vmatpush2.msra.mxu0 0.0
    %182 = vmatprep.subr.mxu0 0.0
    %183 = vmatpush2.msra.mxu0 0.0
    %184 = vmatprep.subr.mxu0 0.0
    %185 = vmatpush2.msra.mxu0 0.0
    %186 = vmatprep.subr.mxu0 0.0
    %187 = vmatpush2.msra.mxu0 0.0
    %188 = vmatprep.subr.mxu0 0.0
    %189 = vmatpush2.msra.mxu0 0.0
    %190 = vmatprep.subr.mxu0 0.0
    %191 = vmatpush2.msra.mxu0 0.0
    %192 = vmatprep.subr.mxu0 0.0
    %193 = vmatpush2.msra.mxu0 0.0
    %194 = vmatprep.subr.mxu0 0.0
    %195 = vmatpush2.msra.mxu0 0.0
    %196 = vmatprep.subr.mxu0 0.0
    %197 = vmatpush2.msra.mxu0 0.0
    %198 = vmatprep.subr.mxu0 0.0
    %199 = vmatpush2.msra.mxu0 0.0
    %200 = vmatprep.subr.mxu0 0.0
    %201 = vmatpush2.msra.mxu0 0.0
    %202 = vmatprep.subr.mxu0 0.0
    %203 = vmatpush2.msra.mxu0 0.0
    %204 = vmatprep.subr.mxu0 0.0
    %205 = vmatpush2.msra.mxu0 0.0
    %206 = vmatprep.subr.mxu0 0.0
    %207 = vmatpush2.msra.mxu0 0.0
    %208 = vmatprep.subr.mxu0 0.0
    %209 = vmatpush2.msra.mxu0 0.0
    %210 = vmatprep.mubr.f32.mxu0 0.0
    %211 = vmatmul.mubr.f32.gmra.mxu0 %v128
    %v212 = vpop.f32.mrf.mxu0
    %v213 = vadd.f32 %v109, %v212
    %v214 = vpop.f32.mrf.mxu0
    %v215 = vadd.f32 %v113, %v214
    %216 = vmatprep.mubr.f32.mxu0 0.0
    %217 = vmatmul.mubr.f32.gmra.mxu0 %v131
    %v218 = vpop.f32.mrf.mxu0
    %v219 = vadd.f32 %v109, %v218
    %v220 = vpop.f32.mrf.mxu0
    %v221 = vadd.f32 %v113, %v220
    %222 = vdwg.mxu0
    %223 = vmatprep.subr.mxu0 0.0
    %224 = vmatpush1.msra.mxu0 0.0
    %225 = vmatprep.subr.mxu0 0.0
    %226 = vmatpush1.msra.mxu0 0.0
    %227 = vmatprep.subr.mxu0 0.0
    %228 = vmatpush1.msra.mxu0 0.0
    %229 = vmatprep.subr.mxu0 %v144
    %230 = vmatpush1.msra.mxu0 %v141
    %231 = vmatprep.subr.mxu0 %v99
    %232 = vmatpush1.msra.mxu0 %v98
    %233 = vmatprep.subr.mxu0 %v95
    %234 = vmatpush1.msra.mxu0 %v94
    %235 = vmatprep.subr.mxu0 %v91
    %236 = vmatpush1.msra.mxu0 %v90
    %237 = vmatprep.subr.mxu0 %v87
    %238 = vmatpush1.msra.mxu0 %v86
    %239 = vmatprep.subr.mxu0 %v83
    %240 = vmatpush1.msra.mxu0 %v82
    %241 = vmatprep.subr.mxu0 %v79
    %242 = vmatpush1.msra.mxu0 %v78
    %243 = vmatprep.subr.mxu0 %v75
    %244 = vmatpush1.msra.mxu0 %v74
    %245 = vmatprep.subr.mxu0 %v71
    %246 = vmatpush1.msra.mxu0 %v70
    %247 = vmatprep.subr.mxu0 %v67
    %248 = vmatpush1.msra.mxu0 %v66
    %249 = vmatprep.subr.mxu0 %v63
    %250 = vmatpush1.msra.mxu0 %v62
    %251 = vmatprep.subr.mxu0 %v59
    %252 = vmatpush1.msra.mxu0 %v58
    %253 = vmatprep.subr.mxu0 %v55
    %254 = vmatpush1.msra.mxu0 %v54
    %255 = vmatprep.subr.mxu0 0.0
    %256 = vmatpush2.msra.mxu0 0.0
    %257 = vmatprep.subr.mxu0 0.0
    %258 = vmatpush2.msra.mxu0 0.0
    %259 = vmatprep.subr.mxu0 0.0
    %260 = vmatpush2.msra.mxu0 0.0
    %261 = vmatprep.subr.mxu0 0.0
    %262 = vmatpush2.msra.mxu0 0.0
    %263 = vmatprep.subr.mxu0 0.0
    %264 = vmatpush2.msra.mxu0 0.0
    %265 = vmatprep.subr.mxu0 0.0
    %266 = vmatpush2.msra.mxu0 0.0
    %267 = vmatprep.subr.mxu0 0.0
    %268 = vmatpush2.msra.mxu0 0.0
    %269 = vmatprep.subr.mxu0 0.0
    %270 = vmatpush2.msra.mxu0 0.0
    %271 = vmatprep.subr.mxu0 0.0
    %272 = vmatpush2.msra.mxu0 0.0
    %273 = vmatprep.subr.mxu0 0.0
    %274 = vmatpush2.msra.mxu0 0.0
    %275 = vmatprep.subr.mxu0 0.0
    %276 = vmatpush2.msra.mxu0 0.0
    %277 = vmatprep.subr.mxu0 0.0
    %278 = vmatpush2.msra.mxu0 0.0
    %279 = vmatprep.subr.mxu0 0.0
    %280 = vmatpush2.msra.mxu0 0.0
    %281 = vmatprep.subr.mxu0 0.0
    %282 = vmatpush2.msra.mxu0 0.0
    %283 = vmatprep.subr.mxu0 0.0
    %284 = vmatpush2.msra.mxu0 0.0
    %285 = vmatprep.subr.mxu0 0.0
    %286 = vmatpush2.msra.mxu0 0.0
    %287 = vmatprep.mubr.f32.mxu0 0.0
    %288 = vmatmul.mubr.f32.gmra.mxu0 %v128
    %v289 = vpop.f32.mrf.mxu0
    %v290 = vadd.f32 %v117, %v289
    %v291 = vpop.f32.mrf.mxu0
    %v292 = vadd.f32 %v121, %v291
    %293 = vmatprep.mubr.f32.mxu0 0.0
    %294 = vmatmul.mubr.f32.gmra.mxu0 %v131
    %v295 = vpop.f32.mrf.mxu0
    %v296 = vadd.f32 %v117, %v295
    %v297 = vpop.f32.mrf.mxu0
    %v298 = vadd.f32 %v121, %v297
    %299 = vdwg.mxu0
    %300 = vst [vmem:[%s5] sm:$0xff] %v213
    %301 = vst [vmem:[%s5 + $0x8] sm:$0xff] %v215
    %302 = vst [vmem:[%s5 + $0x10] sm:$0xff] %v290
    %303 = vst [vmem:[%s5 + $0x18] sm:$0xff] %v292
    %304 = vst [vmem:[%s5 + $0x20] sm:$0xff] %v219
    %305 = vst [vmem:[%s5 + $0x28] sm:$0xff] %v221
    %306 = vst [vmem:[%s5 + $0x30] sm:$0xff] %v296
    %307 = vst [vmem:[%s5 + $0x38] sm:$0xff] %v298
    %v308 = vld [vmem:[#allocation4] sm:$0xff]
    %v309 = vld [vmem:[#allocation4 + $0x8] sm:$0xff]
    %v310 = vld [vmem:[#allocation4 + $0x10] sm:$0xff]
    %v311 = vld [vmem:[#allocation4 + $0x18] sm:$0xff]
    %v312 = vld [vmem:[#allocation4 + $0x20] sm:$0xff]
    %v313 = vld [vmem:[#allocation4 + $0x28] sm:$0xff]
    %v314 = vld [vmem:[#allocation4 + $0x30] sm:$0xff]
    %v315 = vld [vmem:[#allocation4 + $0x38] sm:$0xff]
    %v316 = vld [vmem:[#allocation4 + $0x40] sm:$0xff]
    %v317 = vld [vmem:[#allocation4 + $0x48] sm:$0xff]
    %v318 = vld [vmem:[#allocation4 + $0x50] sm:$0xff]
    %v319 = vld [vmem:[#allocation4 + $0x58] sm:$0xff]
    %v320 = vld [vmem:[#allocation4 + $0x60] sm:$0xff]
    %v321 = vld [vmem:[#allocation4 + $0x68] sm:$0xff]
    %v322 = vld [vmem:[#allocation4 + $0x70] sm:$0xff]
    %v323 = vld [vmem:[#allocation4 + $0x78] sm:$0xff]
    %v324 = vld [vmem:[#allocation4 + $0x80] sm:$0xff]
    %v325 = vld [vmem:[#allocation4 + $0x88] sm:$0xff]
    %v326 = vld [vmem:[#allocation4 + $0x90] sm:$0xff]
    %v327 = vld [vmem:[#allocation4 + $0x98] sm:$0xff]
    %v328 = vld [vmem:[#allocation4 + $0xa0] sm:$0xff]
    %v329 = vld [vmem:[#allocation4 + $0xa8] sm:$0xff]
    %v330 = vld [vmem:[#allocation4 + $0xb0] sm:$0xff]
    %v331 = vld [vmem:[#allocation4 + $0xb8] sm:$0xff]
    %v332 = vld [vmem:[#allocation4 + $0xc0] sm:$0xff]
    %v333 = vld [vmem:[#allocation4 + $0xc8] sm:$0xff]
    %v334 = vld [vmem:[#allocation4 + $0xd0] sm:$0xff]
    %v335 = vld [vmem:[#allocation4 + $0xd8] sm:$0xff]
    %v336 = vld [vmem:[#allocation4 + $0xe0] sm:$0xff]
    %v337 = vld [vmem:[#allocation4 + $0xe8] sm:$0xff]
    %v338 = vld [vmem:[#allocation4 + $0xf0] sm:$0xff]
    %v339 = vld [vmem:[#allocation4 + $0xf8] sm:$0xff]
    %v340 = vld [vmem:[#allocation4 + $0x100] sm:$0xff]
    %v341 = vld [vmem:[#allocation4 + $0x108] sm:$0xff]
    %v342 = vld [vmem:[#allocation4 + $0x110] sm:$0xff]
    %v343 = vld [vmem:[#allocation4 + $0x118] sm:$0xff]
    %v344 = vld [vmem:[#allocation4 + $0x120] sm:$0xff]
    %v345 = vld [vmem:[#allocation4 + $0x128] sm:$0xff]
    %v346 = vld [vmem:[#allocation4 + $0x130] sm:$0xff]
    %v347 = vld [vmem:[#allocation4 + $0x138] sm:$0xff]
    %v348 = vld [vmem:[#allocation4 + $0x140] sm:$0xff]
    %v349 = vld [vmem:[#allocation4 + $0x148] sm:$0xff]
    %v350 = vld [vmem:[#allocation4 + $0x150] sm:$0xff]
    %v351 = vld [vmem:[#allocation4 + $0x158] sm:$0xff]
    %v352 = vld [vmem:[#allocation4 + $0x160] sm:$0xff]
    %v353 = vld [vmem:[#allocation4 + $0x168] sm:$0xff]
    %v354 = vld [vmem:[#allocation4 + $0x170] sm:$0xff]
    %v355 = vld [vmem:[#allocation4 + $0x178] sm:$0xff]
    %v356 = vld [vmem:[#allocation4 + $0x180] sm:$0xf]
    %v357 = vld [vmem:[#allocation4 + $0x188] sm:$0xf]
    %v358 = vld [vmem:[#allocation4 + $0x190] sm:$0xf]
    %v359 = vld [vmem:[#allocation4 + $0x198] sm:$0xf]
    %v360 = vld [vmem:[%s4] sm:$0xf]
    %v362 = vlaneseq
    %v363 = vshrl.u32 %v362, 7
    %v364 = vsub.s32 0, %v363
    %v365 = vrot.slane %v360, %v364
    %v366 = vlaneseq
    %v367 = vshrl.u32 %v366, 7
    %v368 = vsub.s32 1, %v367
    %v369 = vrot.slane %v360, %v368
    %v370 = vlaneseq
    %v371 = vshrl.u32 %v370, 7
    %v372 = vsub.s32 2, %v371
    %v373 = vrot.slane %v360, %v372
    %v374 = vlaneseq
    %v375 = vshrl.u32 %v374, 7
    %v376 = vsub.s32 3, %v375
    %v377 = vrot.slane %v360, %v376
    %v383 = vsel %vm133, %v356, 0
    %v386 = vsel %vm133, %v357, 0
    %v389 = vsel %vm133, %v358, 0
    %v392 = vsel %vm133, %v359, 0
    %394 = vmatprep.subr.mxu0 0.0
    %395 = vmatpush1.msra.mxu0 0.0
    %396 = vmatprep.subr.mxu0 0.0
    %397 = vmatpush1.msra.mxu0 0.0
    %398 = vmatprep.subr.mxu0 0.0
    %399 = vmatpush1.msra.mxu0 0.0
    %400 = vmatprep.subr.mxu0 %v386
    %401 = vmatpush1.msra.mxu0 %v383
    %402 = vmatprep.subr.mxu0 %v353
    %403 = vmatpush1.msra.mxu0 %v352
    %404 = vmatprep.subr.mxu0 %v349
    %405 = vmatpush1.msra.mxu0 %v348
    %406 = vmatprep.subr.mxu0 %v345
    %407 = vmatpush1.msra.mxu0 %v344
    %408 = vmatprep.subr.mxu0 %v341
    %409 = vmatpush1.msra.mxu0 %v340
    %410 = vmatprep.subr.mxu0 %v337
    %411 = vmatpush1.msra.mxu0 %v336
    %412 = vmatprep.subr.mxu0 %v333
    %413 = vmatpush1.msra.mxu0 %v332
    %414 = vmatprep.subr.mxu0 %v329
    %415 = vmatpush1.msra.mxu0 %v328
    %416 = vmatprep.subr.mxu0 %v325
    %417 = vmatpush1.msra.mxu0 %v324
    %418 = vmatprep.subr.mxu0 %v321
    %419 = vmatpush1.msra.mxu0 %v320
    %420 = vmatprep.subr.mxu0 %v317
    %421 = vmatpush1.msra.mxu0 %v316
    %422 = vmatprep.subr.mxu0 %v313
    %423 = vmatpush1.msra.mxu0 %v312
    %424 = vmatprep.subr.mxu0 %v309
    %425 = vmatpush1.msra.mxu0 %v308
    %426 = vmatprep.subr.mxu0 0.0
    %427 = vmatpush2.msra.mxu0 0.0
    %428 = vmatprep.subr.mxu0 0.0
    %429 = vmatpush2.msra.mxu0 0.0
    %430 = vmatprep.subr.mxu0 0.0
    %431 = vmatpush2.msra.mxu0 0.0
    %432 = vmatprep.subr.mxu0 0.0
    %433 = vmatpush2.msra.mxu0 0.0
    %434 = vmatprep.subr.mxu0 0.0
    %435 = vmatpush2.msra.mxu0 0.0
    %436 = vmatprep.subr.mxu0 0.0
    %437 = vmatpush2.msra.mxu0 0.0
    %438 = vmatprep.subr.mxu0 0.0
    %439 = vmatpush2.msra.mxu0 0.0
    %440 = vmatprep.subr.mxu0 0.0
    %441 = vmatpush2.msra.mxu0 0.0
    %442 = vmatprep.subr.mxu0 0.0
    %443 = vmatpush2.msra.mxu0 0.0
    %444 = vmatprep.subr.mxu0 0.0
    %445 = vmatpush2.msra.mxu0 0.0
    %446 = vmatprep.subr.mxu0 0.0
    %447 = vmatpush2.msra.mxu0 0.0
    %448 = vmatprep.subr.mxu0 0.0
    %449 = vmatpush2.msra.mxu0 0.0
    %450 = vmatprep.subr.mxu0 0.0
    %451 = vmatpush2.msra.mxu0 0.0
    %452 = vmatprep.subr.mxu0 0.0
    %453 = vmatpush2.msra.mxu0 0.0
    %454 = vmatprep.subr.mxu0 0.0
    %455 = vmatpush2.msra.mxu0 0.0
    %456 = vmatprep.subr.mxu0 0.0
    %457 = vmatpush2.msra.mxu0 0.0
    %458 = vmatprep.mubr.f32.mxu0 0.0
    %459 = vmatmul.mubr.f32.gmra.mxu0 %v128
    %v460 = vpop.f32.mrf.mxu0
    %v461 = vadd.f32 %v365, %v460
    %v462 = vpop.f32.mrf.mxu0
    %v463 = vadd.f32 %v369, %v462
    %464 = vmatprep.mubr.f32.mxu0 0.0
    %465 = vmatmul.mubr.f32.gmra.mxu0 %v131
    %v466 = vpop.f32.mrf.mxu0
    %v467 = vadd.f32 %v365, %v466
    %v468 = vpop.f32.mrf.mxu0
    %v469 = vadd.f32 %v369, %v468
    %470 = vdwg.mxu0
    %471 = vmatprep.subr.mxu0 0.0
    %472 = vmatpush1.msra.mxu0 0.0
    %473 = vmatprep.subr.mxu0 0.0
    %474 = vmatpush1.msra.mxu0 0.0
    %475 = vmatprep.subr.mxu0 0.0
    %476 = vmatpush1.msra.mxu0 0.0
    %477 = vmatprep.subr.mxu0 %v392
    %478 = vmatpush1.msra.mxu0 %v389
    %479 = vmatprep.subr.mxu0 %v355
    %480 = vmatpush1.msra.mxu0 %v354
    %481 = vmatprep.subr.mxu0 %v351
    %482 = vmatpush1.msra.mxu0 %v350
    %483 = vmatprep.subr.mxu0 %v347
    %484 = vmatpush1.msra.mxu0 %v346
    %485 = vmatprep.subr.mxu0 %v343
    %486 = vmatpush1.msra.mxu0 %v342
    %487 = vmatprep.subr.mxu0 %v339
    %488 = vmatpush1.msra.mxu0 %v338
    %489 = vmatprep.subr.mxu0 %v335
    %490 = vmatpush1.msra.mxu0 %v334
    %491 = vmatprep.subr.mxu0 %v331
    %492 = vmatpush1.msra.mxu0 %v330
    %493 = vmatprep.subr.mxu0 %v327
    %494 = vmatpush1.msra.mxu0 %v326
    %495 = vmatprep.subr.mxu0 %v323
    %496 = vmatpush1.msra.mxu0 %v322
    %497 = vmatprep.subr.mxu0 %v319
    %498 = vmatpush1.msra.mxu0 %v318
    %499 = vmatprep.subr.mxu0 %v315
    %500 = vmatpush1.msra.mxu0 %v314
    %501 = vmatprep.subr.mxu0 %v311
    %502 = vmatpush1.msra.mxu0 %v310
    %503 = vmatprep.subr.mxu0 0.0
    %504 = vmatpush2.msra.mxu0 0.0
    %505 = vmatprep.subr.mxu0 0.0
    %506 = vmatpush2.msra.mxu0 0.0
    %507 = vmatprep.subr.mxu0 0.0
    %508 = vmatpush2.msra.mxu0 0.0
    %509 = vmatprep.subr.mxu0 0.0
    %510 = vmatpush2.msra.mxu0 0.0
    %511 = vmatprep.subr.mxu0 0.0
    %512 = vmatpush2.msra.mxu0 0.0
    %513 = vmatprep.subr.mxu0 0.0
    %514 = vmatpush2.msra.mxu0 0.0
    %515 = vmatprep.subr.mxu0 0.0
    %516 = vmatpush2.msra.mxu0 0.0
    %517 = vmatprep.subr.mxu0 0.0
    %518 = vmatpush2.msra.mxu0 0.0
    %519 = vmatprep.subr.mxu0 0.0
    %520 = vmatpush2.msra.mxu0 0.0
    %521 = vmatprep.subr.mxu0 0.0
    %522 = vmatpush2.msra.mxu0 0.0
    %523 = vmatprep.subr.mxu0 0.0
    %524 = vmatpush2.msra.mxu0 0.0
    %525 = vmatprep.subr.mxu0 0.0
    %526 = vmatpush2.msra.mxu0 0.0
    %527 = vmatprep.subr.mxu0 0.0
    %528 = vmatpush2.msra.mxu0 0.0
    %529 = vmatprep.subr.mxu0 0.0
    %530 = vmatpush2.msra.mxu0 0.0
    %531 = vmatprep.subr.mxu0 0.0
    %532 = vmatpush2.msra.mxu0 0.0
    %533 = vmatprep.subr.mxu0 0.0
    %534 = vmatpush2.msra.mxu0 0.0
    %535 = vmatprep.mubr.f32.mxu0 0.0
    %536 = vmatmul.mubr.f32.gmra.mxu0 %v128
    %v537 = vpop.f32.mrf.mxu0
    %v538 = vadd.f32 %v373, %v537
    %v539 = vpop.f32.mrf.mxu0
    %v540 = vadd.f32 %v377, %v539
    %541 = vmatprep.mubr.f32.mxu0 0.0
    %542 = vmatmul.mubr.f32.gmra.mxu0 %v131
    %v543 = vpop.f32.mrf.mxu0
    %v544 = vadd.f32 %v373, %v543
    %v545 = vpop.f32.mrf.mxu0
    %v546 = vadd.f32 %v377, %v545
    %547 = vdwg.mxu0
    %548 = vst [vmem:[%s6] sm:$0xff] %v461
    %549 = vst [vmem:[%s6 + $0x8] sm:$0xff] %v463
    %550 = vst [vmem:[%s6 + $0x10] sm:$0xff] %v538
    %551 = vst [vmem:[%s6 + $0x18] sm:$0xff] %v540
    %552 = vst [vmem:[%s6 + $0x20] sm:$0xff] %v467
    %553 = vst [vmem:[%s6 + $0x28] sm:$0xff] %v469
    %554 = vst [vmem:[%s6 + $0x30] sm:$0xff] %v544
    %555 = vst [vmem:[%s6 + $0x38] sm:$0xff] %v546
    // Predicated region
    $region30: #{lstm_classifier_forward.4} parent=1 // pred_check
      _
    $region31: #{lstm_classifier_forward.4} parent=1 // pred_check_branch
      %557 = sbr.rel (0) target = $region33
    $region32: #{lstm_classifier_forward.4} parent=1 // pred_region
      _
    $region33: #{lstm_classifier_forward.4} parent=1 // pred_fallthru
      _
    // Predicated region
    $region34: #{lstm_classifier_forward.4} parent=1 // pred_check
      _
    $region35: #{lstm_classifier_forward.4} parent=1 // pred_check_branch
      %559 = sbr.rel (0) target = $region37
    $region36: #{lstm_classifier_forward.4} parent=1 // pred_region
      _
    $region37: #{lstm_classifier_forward.4} parent=1 // pred_fallthru
      _
    // Predicated region
    $region38: #{lstm_classifier_forward.4} parent=1 // pred_check
      _
    $region39: #{lstm_classifier_forward.4} parent=1 // pred_check_branch
      %561 = sbr.rel (0) target = $region41
    $region40: #{lstm_classifier_forward.4} parent=1 // pred_region
      _
    $region41: #{lstm_classifier_forward.4} parent=1 // pred_fallthru
      _
    // Predicated region
    $region42: #{lstm_classifier_forward.4} parent=1 // pred_check
      _
    $region43: #{lstm_classifier_forward.4} parent=1 // pred_check_branch
      %563 = sbr.rel (0) target = $region45
    $region44: #{lstm_classifier_forward.4} parent=1 // pred_region
      _
    $region45: #{lstm_classifier_forward.4} parent=1 // pred_fallthru
      _
    %564 = vsyncpa [#allocation3], 1
    %565 = vsyncpa [#allocation5], 1

// kernel: lstm_classifier_forward.6
$region0: #{lstm_classifier_forward.6}
  #allocation0 [shape = 'u32[]', space=smem, size = 0x4, offset = 0x4, fixed_abs, tag = 'smem constant byte address 0x4 - core index']
  #allocation1 [shape = 'u32[144,128]{1,0:T(1,128)}', space=vmem, size = 0x12000, scoped, tag = 'internal scratch']
  %s0 = inlined_call_operand.vmem [shape: f32[16,256], index: 0, kind: input, shape index: {}]
  %s1 = inlined_call_operand.vmem [shape: f32[256,512], index: 1, kind: input, shape index: {}]
  %s2 = inlined_call_operand.vmem [shape: f32[256,512], index: 2, kind: input, shape index: {}]
  %s3 = inlined_call_operand.vmem [shape: f32[1,512], index: 3, kind: input, shape index: {}]
  %s4 = inlined_call_operand.vmem [shape: f32[1,512], index: 4, kind: input, shape index: {}]
  %s5 = inlined_call_operand.vmem [shape: f32[16,512], index: 5, kind: output, shape index: {0}]
  %s6 = inlined_call_operand.vmem [shape: f32[16,512], index: 6, kind: output, shape index: {1}]
  %7 = xla_tuple %s5, %s6
  %s8 = sld [smem:[#allocation0]]
  $region38: #{lstm_classifier_forward.6} parent=0
    _
  %s10 = ssub.s32 1, %s8
  %s11 = scalar_select 0, %s10, %s8
  // Predicated region
  $region2: #{lstm_classifier_forward.6} parent=0 // pred_check
    _
  $region3: #{lstm_classifier_forward.6} parent=0 // pred_check_branch
    %13 = sbr.rel (0) target = $region5
  $region4: #{lstm_classifier_forward.6} parent=0 // pred_region
    _
  $region5: #{lstm_classifier_forward.6} parent=0 // pred_fallthru
    _
  // Predicated region
  $region6: #{lstm_classifier_forward.6} parent=0 // pred_check
    _
  $region7: #{lstm_classifier_forward.6} parent=0 // pred_check_branch
    %15 = sbr.rel (0) target = $region9
  $region8: #{lstm_classifier_forward.6} parent=0 // pred_region
    _
  $region9: #{lstm_classifier_forward.6} parent=0 // pred_fallthru
    _
  // Predicated region
  $region10: #{lstm_classifier_forward.6} parent=0 // pred_check
    _
  $region11: #{lstm_classifier_forward.6} parent=0 // pred_check_branch
    %17 = sbr.rel (0) target = $region13
  $region12: #{lstm_classifier_forward.6} parent=0 // pred_region
    _
  $region13: #{lstm_classifier_forward.6} parent=0 // pred_fallthru
    _
  // Predicated region
  $region14: #{lstm_classifier_forward.6} parent=0 // pred_check
    _
  $region15: #{lstm_classifier_forward.6} parent=0 // pred_check_branch
    %19 = sbr.rel (0) target = $region17
  $region16: #{lstm_classifier_forward.6} parent=0 // pred_region
    _
  $region17: #{lstm_classifier_forward.6} parent=0 // pred_fallthru
    _
  // Predicated region
  $region18: #{lstm_classifier_forward.6} parent=0 // pred_check
    _
  $region19: #{lstm_classifier_forward.6} parent=0 // pred_check_branch
    %21 = sbr.rel (0) target = $region21
  $region20: #{lstm_classifier_forward.6} parent=0 // pred_region
    _
  $region21: #{lstm_classifier_forward.6} parent=0 // pred_fallthru
    _
  %v22 = vld [vmem:[%s0] sm:$0xff]
  %v23 = vld [vmem:[%s0 + $0x8] sm:$0xff]
  %v24 = vld [vmem:[%s0 + $0x10] sm:$0xff]
  %v25 = vld [vmem:[%s0 + $0x18] sm:$0xff]
  %v26 = vld [vmem:[%s1] sm:$0xff]
  %v27 = vld [vmem:[%s1 + $0x8] sm:$0xff]
  %v28 = vld [vmem:[%s1 + $0x10] sm:$0xff]
  %v29 = vld [vmem:[%s1 + $0x18] sm:$0xff]
  %v30 = vld [vmem:[%s1 + $0x20] sm:$0xff]
  %v31 = vld [vmem:[%s1 + $0x28] sm:$0xff]
  %v32 = vld [vmem:[%s1 + $0x30] sm:$0xff]
  %v33 = vld [vmem:[%s1 + $0x38] sm:$0xff]
  %v34 = vld [vmem:[%s1 + $0x40] sm:$0xff]
  %v35 = vld [vmem:[%s1 + $0x48] sm:$0xff]
  %v36 = vld [vmem:[%s1 + $0x50] sm:$0xff]
  %v37 = vld [vmem:[%s1 + $0x58] sm:$0xff]
  %v38 = vld [vmem:[%s1 + $0x60] sm:$0xff]
  %v39 = vld [vmem:[%s1 + $0x68] sm:$0xff]
  %v40 = vld [vmem:[%s1 + $0x70] sm:$0xff]
  %v41 = vld [vmem:[%s1 + $0x78] sm:$0xff]
  %v42 = vld [vmem:[%s1 + $0x80] sm:$0xff]
  %v43 = vld [vmem:[%s1 + $0x88] sm:$0xff]
  %v44 = vld [vmem:[%s1 + $0x90] sm:$0xff]
  %v45 = vld [vmem:[%s1 + $0x98] sm:$0xff]
  %v46 = vld [vmem:[%s1 + $0xa0] sm:$0xff]
  %v47 = vld [vmem:[%s1 + $0xa8] sm:$0xff]
  %v48 = vld [vmem:[%s1 + $0xb0] sm:$0xff]
  %v49 = vld [vmem:[%s1 + $0xb8] sm:$0xff]
  %v50 = vld [vmem:[%s1 + $0xc0] sm:$0xff]
  %v51 = vld [vmem:[%s1 + $0xc8] sm:$0xff]
  %v52 = vld [vmem:[%s1 + $0xd0] sm:$0xff]
  %v53 = vld [vmem:[%s1 + $0xd8] sm:$0xff]
  %v54 = vld [vmem:[%s1 + $0xe0] sm:$0xff]
  %v55 = vld [vmem:[%s1 + $0xe8] sm:$0xff]
  %v56 = vld [vmem:[%s1 + $0xf0] sm:$0xff]
  %v57 = vld [vmem:[%s1 + $0xf8] sm:$0xff]
  %v58 = vld [vmem:[%s1 + $0x100] sm:$0xff]
  %v59 = vld [vmem:[%s1 + $0x108] sm:$0xff]
  %v60 = vld [vmem:[%s1 + $0x110] sm:$0xff]
  %v61 = vld [vmem:[%s1 + $0x118] sm:$0xff]
  %v62 = vld [vmem:[%s1 + $0x120] sm:$0xff]
  %v63 = vld [vmem:[%s1 + $0x128] sm:$0xff]
  %v64 = vld [vmem:[%s1 + $0x130] sm:$0xff]
  %v65 = vld [vmem:[%s1 + $0x138] sm:$0xff]
  %v66 = vld [vmem:[%s1 + $0x140] sm:$0xff]
  %v67 = vld [vmem:[%s1 + $0x148] sm:$0xff]
  %v68 = vld [vmem:[%s1 + $0x150] sm:$0xff]
  %v69 = vld [vmem:[%s1 + $0x158] sm:$0xff]
  %v70 = vld [vmem:[%s1 + $0x160] sm:$0xff]
  %v71 = vld [vmem:[%s1 + $0x168] sm:$0xff]
  %v72 = vld [vmem:[%s1 + $0x170] sm:$0xff]
  %v73 = vld [vmem:[%s1 + $0x178] sm:$0xff]
  %v74 = vld [vmem:[%s1 + $0x180] sm:$0xff]
  %v75 = vld [vmem:[%s1 + $0x188] sm:$0xff]
  %v76 = vld [vmem:[%s1 + $0x190] sm:$0xff]
  %v77 = vld [vmem:[%s1 + $0x198] sm:$0xff]
  %v78 = vld [vmem:[%s1 + $0x1a0] sm:$0xff]
  %v79 = vld [vmem:[%s1 + $0x1a8] sm:$0xff]
  %v80 = vld [vmem:[%s1 + $0x1b0] sm:$0xff]
  %v81 = vld [vmem:[%s1 + $0x1b8] sm:$0xff]
  %v82 = vld [vmem:[%s1 + $0x1c0] sm:$0xff]
  %v83 = vld [vmem:[%s1 + $0x1c8] sm:$0xff]
  %v84 = vld [vmem:[%s1 + $0x1d0] sm:$0xff]
  %v85 = vld [vmem:[%s1 + $0x1d8] sm:$0xff]
  %v86 = vld [vmem:[%s1 + $0x1e0] sm:$0xff]
  %v87 = vld [vmem:[%s1 + $0x1e8] sm:$0xff]
  %v88 = vld [vmem:[%s1 + $0x1f0] sm:$0xff]
  %v89 = vld [vmem:[%s1 + $0x1f8] sm:$0xff]
  %v90 = vld [vmem:[%s1 + $0x200] sm:$0xff]
  %v91 = vld [vmem:[%s1 + $0x208] sm:$0xff]
  %v92 = vld [vmem:[%s1 + $0x210] sm:$0xff]
  %v93 = vld [vmem:[%s1 + $0x218] sm:$0xff]
  %v94 = vld [vmem:[%s1 + $0x220] sm:$0xff]
  %v95 = vld [vmem:[%s1 + $0x228] sm:$0xff]
  %v96 = vld [vmem:[%s1 + $0x230] sm:$0xff]
  %v97 = vld [vmem:[%s1 + $0x238] sm:$0xff]
  %v98 = vld [vmem:[%s1 + $0x240] sm:$0xff]
  %v99 = vld [vmem:[%s1 + $0x248] sm:$0xff]
  %v100 = vld [vmem:[%s1 + $0x250] sm:$0xff]
  %v101 = vld [vmem:[%s1 + $0x258] sm:$0xff]
  %v102 = vld [vmem:[%s1 + $0x260] sm:$0xff]
  %v103 = vld [vmem:[%s1 + $0x268] sm:$0xff]
  %v104 = vld [vmem:[%s1 + $0x270] sm:$0xff]
  %v105 = vld [vmem:[%s1 + $0x278] sm:$0xff]
  %v106 = vld [vmem:[%s1 + $0x280] sm:$0xff]
  %v107 = vld [vmem:[%s1 + $0x288] sm:$0xff]
  %v108 = vld [vmem:[%s1 + $0x290] sm:$0xff]
  %v109 = vld [vmem:[%s1 + $0x298] sm:$0xff]
  %v110 = vld [vmem:[%s1 + $0x2a0] sm:$0xff]
  %v111 = vld [vmem:[%s1 + $0x2a8] sm:$0xff]
  %v112 = vld [vmem:[%s1 + $0x2b0] sm:$0xff]
  %v113 = vld [vmem:[%s1 + $0x2b8] sm:$0xff]
  %v114 = vld [vmem:[%s1 + $0x2c0] sm:$0xff]
  %v115 = vld [vmem:[%s1 + $0x2c8] sm:$0xff]
  %v116 = vld [vmem:[%s1 + $0x2d0] sm:$0xff]
  %v117 = vld [vmem:[%s1 + $0x2d8] sm:$0xff]
  %v118 = vld [vmem:[%s1 + $0x2e0] sm:$0xff]
  %v119 = vld [vmem:[%s1 + $0x2e8] sm:$0xff]
  %v120 = vld [vmem:[%s1 + $0x2f0] sm:$0xff]
  %v121 = vld [vmem:[%s1 + $0x2f8] sm:$0xff]
  %v122 = vld [vmem:[%s1 + $0x300] sm:$0xff]
  %v123 = vld [vmem:[%s1 + $0x308] sm:$0xff]
  %v124 = vld [vmem:[%s1 + $0x310] sm:$0xff]
  %v125 = vld [vmem:[%s1 + $0x318] sm:$0xff]
  %v126 = vld [vmem:[%s1 + $0x320] sm:$0xff]
  %v127 = vld [vmem:[%s1 + $0x328] sm:$0xff]
  %v128 = vld [vmem:[%s1 + $0x330] sm:$0xff]
  %v129 = vld [vmem:[%s1 + $0x338] sm:$0xff]
  %v130 = vld [vmem:[%s1 + $0x340] sm:$0xff]
  %v131 = vld [vmem:[%s1 + $0x348] sm:$0xff]
  %v132 = vld [vmem:[%s1 + $0x350] sm:$0xff]
  %v133 = vld [vmem:[%s1 + $0x358] sm:$0xff]
  %v134 = vld [vmem:[%s1 + $0x360] sm:$0xff]
  %v135 = vld [vmem:[%s1 + $0x368] sm:$0xff]
  %v136 = vld [vmem:[%s1 + $0x370] sm:$0xff]
  %v137 = vld [vmem:[%s1 + $0x378] sm:$0xff]
  %v138 = vld [vmem:[%s1 + $0x380] sm:$0xff]
  %v139 = vld [vmem:[%s1 + $0x388] sm:$0xff]
  %v140 = vld [vmem:[%s1 + $0x390] sm:$0xff]
  %v141 = vld [vmem:[%s1 + $0x398] sm:$0xff]
  %v142 = vld [vmem:[%s1 + $0x3a0] sm:$0xff]
  %v143 = vld [vmem:[%s1 + $0x3a8] sm:$0xff]
  %v144 = vld [vmem:[%s1 + $0x3b0] sm:$0xff]
  %v145 = vld [vmem:[%s1 + $0x3b8] sm:$0xff]
  %v146 = vld [vmem:[%s1 + $0x3c0] sm:$0xff]
  %v147 = vld [vmem:[%s1 + $0x3c8] sm:$0xff]
  %v148 = vld [vmem:[%s1 + $0x3d0] sm:$0xff]
  %v149 = vld [vmem:[%s1 + $0x3d8] sm:$0xff]
  %v150 = vld [vmem:[%s1 + $0x3e0] sm:$0xff]
  %v151 = vld [vmem:[%s1 + $0x3e8] sm:$0xff]
  %v152 = vld [vmem:[%s1 + $0x3f0] sm:$0xff]
  %v153 = vld [vmem:[%s1 + $0x3f8] sm:$0xff]
  %v154 = vld [vmem:[%s3] sm:$0xf]
  %v156 = vlaneseq
  %v157 = vshrl.u32 %v156, 7
  %v158 = vsub.s32 0, %v157
  %v159 = vrot.slane %v154, %v158
  %v160 = vlaneseq
  %v161 = vshrl.u32 %v160, 7
  %v162 = vsub.s32 1, %v161
  %v163 = vrot.slane %v154, %v162
  %v164 = vlaneseq
  %v165 = vshrl.u32 %v164, 7
  %v166 = vsub.s32 2, %v165
  %v167 = vrot.slane %v154, %v166
  %v168 = vlaneseq
  %v169 = vshrl.u32 %v168, 7
  %v170 = vsub.s32 3, %v169
  %v171 = vrot.slane %v154, %v170
  %176 = vmatprep.subr.mxu0 %v87
  %177 = vmatpush1.msra.mxu0 %v86
  %178 = vmatprep.subr.mxu0 %v83
  %179 = vmatpush1.msra.mxu0 %v82
  %180 = vmatprep.subr.mxu0 %v79
  %181 = vmatpush1.msra.mxu0 %v78
  %182 = vmatprep.subr.mxu0 %v75
  %183 = vmatpush1.msra.mxu0 %v74
  %184 = vmatprep.subr.mxu0 %v71
  %185 = vmatpush1.msra.mxu0 %v70
  %186 = vmatprep.subr.mxu0 %v67
  %187 = vmatpush1.msra.mxu0 %v66
  %188 = vmatprep.subr.mxu0 %v63
  %189 = vmatpush1.msra.mxu0 %v62
  %190 = vmatprep.subr.mxu0 %v59
  %191 = vmatpush1.msra.mxu0 %v58
  %192 = vmatprep.subr.mxu0 %v55
  %193 = vmatpush1.msra.mxu0 %v54
  %194 = vmatprep.subr.mxu0 %v51
  %195 = vmatpush1.msra.mxu0 %v50
  %196 = vmatprep.subr.mxu0 %v47
  %197 = vmatpush1.msra.mxu0 %v46
  %198 = vmatprep.subr.mxu0 %v43
  %199 = vmatpush1.msra.mxu0 %v42
  %200 = vmatprep.subr.mxu0 %v39
  %201 = vmatpush1.msra.mxu0 %v38
  %202 = vmatprep.subr.mxu0 %v35
  %203 = vmatpush1.msra.mxu0 %v34
  %204 = vmatprep.subr.mxu0 %v31
  %205 = vmatpush1.msra.mxu0 %v30
  %206 = vmatprep.subr.mxu0 %v27
  %207 = vmatpush1.msra.mxu0 %v26
  %208 = vmatprep.subr.mxu0 %v151
  %209 = vmatpush2.msra.mxu0 %v150
  %210 = vmatprep.subr.mxu0 %v147
  %211 = vmatpush2.msra.mxu0 %v146
  %212 = vmatprep.subr.mxu0 %v143
  %213 = vmatpush2.msra.mxu0 %v142
  %214 = vmatprep.subr.mxu0 %v139
  %215 = vmatpush2.msra.mxu0 %v138
  %216 = vmatprep.subr.mxu0 %v135
  %217 = vmatpush2.msra.mxu0 %v134
  %218 = vmatprep.subr.mxu0 %v131
  %219 = vmatpush2.msra.mxu0 %v130
  %220 = vmatprep.subr.mxu0 %v127
  %221 = vmatpush2.msra.mxu0 %v126
  %222 = vmatprep.subr.mxu0 %v123
  %223 = vmatpush2.msra.mxu0 %v122
  %224 = vmatprep.subr.mxu0 %v119
  %225 = vmatpush2.msra.mxu0 %v118
  %226 = vmatprep.subr.mxu0 %v115
  %227 = vmatpush2.msra.mxu0 %v114
  %228 = vmatprep.subr.mxu0 %v111
  %229 = vmatpush2.msra.mxu0 %v110
  %230 = vmatprep.subr.mxu0 %v107
  %231 = vmatpush2.msra.mxu0 %v106
  %232 = vmatprep.subr.mxu0 %v103
  %233 = vmatpush2.msra.mxu0 %v102
  %234 = vmatprep.subr.mxu0 %v99
  %235 = vmatpush2.msra.mxu0 %v98
  %236 = vmatprep.subr.mxu0 %v95
  %237 = vmatpush2.msra.mxu0 %v94
  %238 = vmatprep.subr.mxu0 %v91
  %239 = vmatpush2.msra.mxu0 %v90
  %240 = vmatprep.mubr.f32.mxu0 %v23
  %241 = vmatmul.mubr.f32.gmra.mxu0 %v22
  %v242 = vpop.f32.mrf.mxu0
  %v243 = vadd.f32 %v159, %v242
  %v244 = vpop.f32.mrf.mxu0
  %v245 = vadd.f32 %v163, %v244
  %246 = vmatprep.mubr.f32.mxu0 %v25
  %247 = vmatmul.mubr.f32.gmra.mxu0 %v24
  %v248 = vpop.f32.mrf.mxu0
  %v249 = vadd.f32 %v159, %v248
  %v250 = vpop.f32.mrf.mxu0
  %v251 = vadd.f32 %v163, %v250
  %252 = vdwg.mxu0
  %253 = vmatprep.subr.mxu0 %v89
  %254 = vmatpush1.msra.mxu0 %v88
  %255 = vmatprep.subr.mxu0 %v85
  %256 = vmatpush1.msra.mxu0 %v84
  %257 = vmatprep.subr.mxu0 %v81
  %258 = vmatpush1.msra.mxu0 %v80
  %259 = vmatprep.subr.mxu0 %v77
  %260 = vmatpush1.msra.mxu0 %v76
  %261 = vmatprep.subr.mxu0 %v73
  %262 = vmatpush1.msra.mxu0 %v72
  %263 = vmatprep.subr.mxu0 %v69
  %264 = vmatpush1.msra.mxu0 %v68
  %265 = vmatprep.subr.mxu0 %v65
  %266 = vmatpush1.msra.mxu0 %v64
  %267 = vmatprep.subr.mxu0 %v61
  %268 = vmatpush1.msra.mxu0 %v60
  %269 = vmatprep.subr.mxu0 %v57
  %270 = vmatpush1.msra.mxu0 %v56
  %271 = vmatprep.subr.mxu0 %v53
  %272 = vmatpush1.msra.mxu0 %v52
  %273 = vmatprep.subr.mxu0 %v49
  %274 = vmatpush1.msra.mxu0 %v48
  %275 = vmatprep.subr.mxu0 %v45
  %276 = vmatpush1.msra.mxu0 %v44
  %277 = vmatprep.subr.mxu0 %v41
  %278 = vmatpush1.msra.mxu0 %v40
  %279 = vmatprep.subr.mxu0 %v37
  %280 = vmatpush1.msra.mxu0 %v36
  %281 = vmatprep.subr.mxu0 %v33
  %282 = vmatpush1.msra.mxu0 %v32
  %283 = vmatprep.subr.mxu0 %v29
  %284 = vmatpush1.msra.mxu0 %v28
  %285 = vmatprep.subr.mxu0 %v153
  %286 = vmatpush2.msra.mxu0 %v152
  %287 = vmatprep.subr.mxu0 %v149
  %288 = vmatpush2.msra.mxu0 %v148
  %289 = vmatprep.subr.mxu0 %v145
  %290 = vmatpush2.msra.mxu0 %v144
  %291 = vmatprep.subr.mxu0 %v141
  %292 = vmatpush2.msra.mxu0 %v140
  %293 = vmatprep.subr.mxu0 %v137
  %294 = vmatpush2.msra.mxu0 %v136
  %295 = vmatprep.subr.mxu0 %v133
  %296 = vmatpush2.msra.mxu0 %v132
  %297 = vmatprep.subr.mxu0 %v129
  %298 = vmatpush2.msra.mxu0 %v128
  %299 = vmatprep.subr.mxu0 %v125
  %300 = vmatpush2.msra.mxu0 %v124
  %301 = vmatprep.subr.mxu0 %v121
  %302 = vmatpush2.msra.mxu0 %v120
  %303 = vmatprep.subr.mxu0 %v117
  %304 = vmatpush2.msra.mxu0 %v116
  %305 = vmatprep.subr.mxu0 %v113
  %306 = vmatpush2.msra.mxu0 %v112
  %307 = vmatprep.subr.mxu0 %v109
  %308 = vmatpush2.msra.mxu0 %v108
  %309 = vmatprep.subr.mxu0 %v105
  %310 = vmatpush2.msra.mxu0 %v104
  %311 = vmatprep.subr.mxu0 %v101
  %312 = vmatpush2.msra.mxu0 %v100
  %313 = vmatprep.subr.mxu0 %v97
  %314 = vmatpush2.msra.mxu0 %v96
  %315 = vmatprep.subr.mxu0 %v93
  %316 = vmatpush2.msra.mxu0 %v92
  %317 = vmatprep.mubr.f32.mxu0 %v23
  %318 = vmatmul.mubr.f32.gmra.mxu0 %v22
  %v319 = vpop.f32.mrf.mxu0
  %v320 = vadd.f32 %v167, %v319
  %v321 = vpop.f32.mrf.mxu0
  %v322 = vadd.f32 %v171, %v321
  %323 = vmatprep.mubr.f32.mxu0 %v25
  %324 = vmatmul.mubr.f32.gmra.mxu0 %v24
  %v325 = vpop.f32.mrf.mxu0
  %v326 = vadd.f32 %v167, %v325
  %v327 = vpop.f32.mrf.mxu0
  %v328 = vadd.f32 %v171, %v327
  %329 = vdwg.mxu0
  %330 = vst [vmem:[%s5] sm:$0xff] %v243
  %331 = vst [vmem:[%s5 + $0x8] sm:$0xff] %v245
  %332 = vst [vmem:[%s5 + $0x10] sm:$0xff] %v320
  %333 = vst [vmem:[%s5 + $0x18] sm:$0xff] %v322
  %334 = vst [vmem:[%s5 + $0x20] sm:$0xff] %v249
  %335 = vst [vmem:[%s5 + $0x28] sm:$0xff] %v251
  %336 = vst [vmem:[%s5 + $0x30] sm:$0xff] %v326
  %337 = vst [vmem:[%s5 + $0x38] sm:$0xff] %v328
  %v338 = vld [vmem:[%s2] sm:$0xff]
  %v339 = vld [vmem:[%s2 + $0x8] sm:$0xff]
  %v340 = vld [vmem:[%s2 + $0x10] sm:$0xff]
  %v341 = vld [vmem:[%s2 + $0x18] sm:$0xff]
  %v342 = vld [vmem:[%s2 + $0x20] sm:$0xff]
  %v343 = vld [vmem:[%s2 + $0x28] sm:$0xff]
  %v344 = vld [vmem:[%s2 + $0x30] sm:$0xff]
  %v345 = vld [vmem:[%s2 + $0x38] sm:$0xff]
  %v346 = vld [vmem:[%s2 + $0x40] sm:$0xff]
  %v347 = vld [vmem:[%s2 + $0x48] sm:$0xff]
  %v348 = vld [vmem:[%s2 + $0x50] sm:$0xff]
  %v349 = vld [vmem:[%s2 + $0x58] sm:$0xff]
  %v350 = vld [vmem:[%s2 + $0x60] sm:$0xff]
  %v351 = vld [vmem:[%s2 + $0x68] sm:$0xff]
  %v352 = vld [vmem:[%s2 + $0x70] sm:$0xff]
  %v353 = vld [vmem:[%s2 + $0x78] sm:$0xff]
  %v354 = vld [vmem:[%s2 + $0x80] sm:$0xff]
  %v355 = vld [vmem:[%s2 + $0x88] sm:$0xff]
  %v356 = vld [vmem:[%s2 + $0x90] sm:$0xff]
  %v357 = vld [vmem:[%s2 + $0x98] sm:$0xff]
  %v358 = vld [vmem:[%s2 + $0xa0] sm:$0xff]
  %v359 = vld [vmem:[%s2 + $0xa8] sm:$0xff]
  %v360 = vld [vmem:[%s2 + $0xb0] sm:$0xff]
  %v361 = vld [vmem:[%s2 + $0xb8] sm:$0xff]
  %v362 = vld [vmem:[%s2 + $0xc0] sm:$0xff]
  %v363 = vld [vmem:[%s2 + $0xc8] sm:$0xff]
  %v364 = vld [vmem:[%s2 + $0xd0] sm:$0xff]
  %v365 = vld [vmem:[%s2 + $0xd8] sm:$0xff]
  %v366 = vld [vmem:[%s2 + $0xe0] sm:$0xff]
  %v367 = vld [vmem:[%s2 + $0xe8] sm:$0xff]
  %v368 = vld [vmem:[%s2 + $0xf0] sm:$0xff]
  %v369 = vld [vmem:[%s2 + $0xf8] sm:$0xff]
  %v370 = vld [vmem:[%s2 + $0x100] sm:$0xff]
  %v371 = vld [vmem:[%s2 + $0x108] sm:$0xff]
  %v372 = vld [vmem:[%s2 + $0x110] sm:$0xff]
  %v373 = vld [vmem:[%s2 + $0x118] sm:$0xff]
  %v374 = vld [vmem:[%s2 + $0x120] sm:$0xff]
  %v375 = vld [vmem:[%s2 + $0x128] sm:$0xff]
  %v376 = vld [vmem:[%s2 + $0x130] sm:$0xff]
  %v377 = vld [vmem:[%s2 + $0x138] sm:$0xff]
  %v378 = vld [vmem:[%s2 + $0x140] sm:$0xff]
  %v379 = vld [vmem:[%s2 + $0x148] sm:$0xff]
  %v380 = vld [vmem:[%s2 + $0x150] sm:$0xff]
  %v381 = vld [vmem:[%s2 + $0x158] sm:$0xff]
  %v382 = vld [vmem:[%s2 + $0x160] sm:$0xff]
  %v383 = vld [vmem:[%s2 + $0x168] sm:$0xff]
  %v384 = vld [vmem:[%s2 + $0x170] sm:$0xff]
  %v385 = vld [vmem:[%s2 + $0x178] sm:$0xff]
  %v386 = vld [vmem:[%s2 + $0x180] sm:$0xff]
  %v387 = vld [vmem:[%s2 + $0x188] sm:$0xff]
  %v388 = vld [vmem:[%s2 + $0x190] sm:$0xff]
  %v389 = vld [vmem:[%s2 + $0x198] sm:$0xff]
  %v390 = vld [vmem:[%s2 + $0x1a0] sm:$0xff]
  %v391 = vld [vmem:[%s2 + $0x1a8] sm:$0xff]
  %v392 = vld [vmem:[%s2 + $0x1b0] sm:$0xff]
  %v393 = vld [vmem:[%s2 + $0x1b8] sm:$0xff]
  %v394 = vld [vmem:[%s2 + $0x1c0] sm:$0xff]
  %v395 = vld [vmem:[%s2 + $0x1c8] sm:$0xff]
  %v396 = vld [vmem:[%s2 + $0x1d0] sm:$0xff]
  %v397 = vld [vmem:[%s2 + $0x1d8] sm:$0xff]
  %v398 = vld [vmem:[%s2 + $0x1e0] sm:$0xff]
  %v399 = vld [vmem:[%s2 + $0x1e8] sm:$0xff]
  %v400 = vld [vmem:[%s2 + $0x1f0] sm:$0xff]
  %v401 = vld [vmem:[%s2 + $0x1f8] sm:$0xff]
  %v402 = vld [vmem:[%s2 + $0x200] sm:$0xff]
  %v403 = vld [vmem:[%s2 + $0x208] sm:$0xff]
  %v404 = vld [vmem:[%s2 + $0x210] sm:$0xff]
  %v405 = vld [vmem:[%s2 + $0x218] sm:$0xff]
  %v406 = vld [vmem:[%s2 + $0x220] sm:$0xff]
  %v407 = vld [vmem:[%s2 + $0x228] sm:$0xff]
  %v408 = vld [vmem:[%s2 + $0x230] sm:$0xff]
  %v409 = vld [vmem:[%s2 + $0x238] sm:$0xff]
  %v410 = vld [vmem:[%s2 + $0x240] sm:$0xff]
  %v411 = vld [vmem:[%s2 + $0x248] sm:$0xff]
  %v412 = vld [vmem:[%s2 + $0x250] sm:$0xff]
  %v413 = vld [vmem:[%s2 + $0x258] sm:$0xff]
  %v414 = vld [vmem:[%s2 + $0x260] sm:$0xff]
  %v415 = vld [vmem:[%s2 + $0x268] sm:$0xff]
  %v416 = vld [vmem:[%s2 + $0x270] sm:$0xff]
  %v417 = vld [vmem:[%s2 + $0x278] sm:$0xff]
  %v418 = vld [vmem:[%s2 + $0x280] sm:$0xff]
  %v419 = vld [vmem:[%s2 + $0x288] sm:$0xff]
  %v420 = vld [vmem:[%s2 + $0x290] sm:$0xff]
  %v421 = vld [vmem:[%s2 + $0x298] sm:$0xff]
  %v422 = vld [vmem:[%s2 + $0x2a0] sm:$0xff]
  %v423 = vld [vmem:[%s2 + $0x2a8] sm:$0xff]
  %v424 = vld [vmem:[%s2 + $0x2b0] sm:$0xff]
  %v425 = vld [vmem:[%s2 + $0x2b8] sm:$0xff]
  %v426 = vld [vmem:[%s2 + $0x2c0] sm:$0xff]
  %v427 = vld [vmem:[%s2 + $0x2c8] sm:$0xff]
  %v428 = vld [vmem:[%s2 + $0x2d0] sm:$0xff]
  %v429 = vld [vmem:[%s2 + $0x2d8] sm:$0xff]
  %v430 = vld [vmem:[%s2 + $0x2e0] sm:$0xff]
  %v431 = vld [vmem:[%s2 + $0x2e8] sm:$0xff]
  %v432 = vld [vmem:[%s2 + $0x2f0] sm:$0xff]
  %v433 = vld [vmem:[%s2 + $0x2f8] sm:$0xff]
  %v434 = vld [vmem:[%s2 + $0x300] sm:$0xff]
  %v435 = vld [vmem:[%s2 + $0x308] sm:$0xff]
  %v436 = vld [vmem:[%s2 + $0x310] sm:$0xff]
  %v437 = vld [vmem:[%s2 + $0x318] sm:$0xff]
  %v438 = vld [vmem:[%s2 + $0x320] sm:$0xff]
  %v439 = vld [vmem:[%s2 + $0x328] sm:$0xff]
  %v440 = vld [vmem:[%s2 + $0x330] sm:$0xff]
  %v441 = vld [vmem:[%s2 + $0x338] sm:$0xff]
  %v442 = vld [vmem:[%s2 + $0x340] sm:$0xff]
  %v443 = vld [vmem:[%s2 + $0x348] sm:$0xff]
  %v444 = vld [vmem:[%s2 + $0x350] sm:$0xff]
  %v445 = vld [vmem:[%s2 + $0x358] sm:$0xff]
  %v446 = vld [vmem:[%s2 + $0x360] sm:$0xff]
  %v447 = vld [vmem:[%s2 + $0x368] sm:$0xff]
  %v448 = vld [vmem:[%s2 + $0x370] sm:$0xff]
  %v449 = vld [vmem:[%s2 + $0x378] sm:$0xff]
  %v450 = vld [vmem:[%s2 + $0x380] sm:$0xff]
  %v451 = vld [vmem:[%s2 + $0x388] sm:$0xff]
  %v452 = vld [vmem:[%s2 + $0x390] sm:$0xff]
  %v453 = vld [vmem:[%s2 + $0x398] sm:$0xff]
  %v454 = vld [vmem:[%s2 + $0x3a0] sm:$0xff]
  %v455 = vld [vmem:[%s2 + $0x3a8] sm:$0xff]
  %v456 = vld [vmem:[%s2 + $0x3b0] sm:$0xff]
  %v457 = vld [vmem:[%s2 + $0x3b8] sm:$0xff]
  %v458 = vld [vmem:[%s2 + $0x3c0] sm:$0xff]
  %v459 = vld [vmem:[%s2 + $0x3c8] sm:$0xff]
  %v460 = vld [vmem:[%s2 + $0x3d0] sm:$0xff]
  %v461 = vld [vmem:[%s2 + $0x3d8] sm:$0xff]
  %v462 = vld [vmem:[%s2 + $0x3e0] sm:$0xff]
  %v463 = vld [vmem:[%s2 + $0x3e8] sm:$0xff]
  %v464 = vld [vmem:[%s2 + $0x3f0] sm:$0xff]
  %v465 = vld [vmem:[%s2 + $0x3f8] sm:$0xff]
  %v466 = vld [vmem:[%s4] sm:$0xf]
  %v468 = vlaneseq
  %v469 = vshrl.u32 %v468, 7
  %v470 = vsub.s32 0, %v469
  %v471 = vrot.slane %v466, %v470
  %v472 = vlaneseq
  %v473 = vshrl.u32 %v472, 7
  %v474 = vsub.s32 1, %v473
  %v475 = vrot.slane %v466, %v474
  %v476 = vlaneseq
  %v477 = vshrl.u32 %v476, 7
  %v478 = vsub.s32 2, %v477
  %v479 = vrot.slane %v466, %v478
  %v480 = vlaneseq
  %v481 = vshrl.u32 %v480, 7
  %v482 = vsub.s32 3, %v481
  %v483 = vrot.slane %v466, %v482
  %488 = vmatprep.subr.mxu0 %v399
  %489 = vmatpush1.msra.mxu0 %v398
  %490 = vmatprep.subr.mxu0 %v395
  %491 = vmatpush1.msra.mxu0 %v394
  %492 = vmatprep.subr.mxu0 %v391
  %493 = vmatpush1.msra.mxu0 %v390
  %494 = vmatprep.subr.mxu0 %v387
  %495 = vmatpush1.msra.mxu0 %v386
  %496 = vmatprep.subr.mxu0 %v383
  %497 = vmatpush1.msra.mxu0 %v382
  %498 = vmatprep.subr.mxu0 %v379
  %499 = vmatpush1.msra.mxu0 %v378
  %500 = vmatprep.subr.mxu0 %v375
  %501 = vmatpush1.msra.mxu0 %v374
  %502 = vmatprep.subr.mxu0 %v371
  %503 = vmatpush1.msra.mxu0 %v370
  %504 = vmatprep.subr.mxu0 %v367
  %505 = vmatpush1.msra.mxu0 %v366
  %506 = vmatprep.subr.mxu0 %v363
  %507 = vmatpush1.msra.mxu0 %v362
  %508 = vmatprep.subr.mxu0 %v359
  %509 = vmatpush1.msra.mxu0 %v358
  %510 = vmatprep.subr.mxu0 %v355
  %511 = vmatpush1.msra.mxu0 %v354
  %512 = vmatprep.subr.mxu0 %v351
  %513 = vmatpush1.msra.mxu0 %v350
  %514 = vmatprep.subr.mxu0 %v347
  %515 = vmatpush1.msra.mxu0 %v346
  %516 = vmatprep.subr.mxu0 %v343
  %517 = vmatpush1.msra.mxu0 %v342
  %518 = vmatprep.subr.mxu0 %v339
  %519 = vmatpush1.msra.mxu0 %v338
  %520 = vmatprep.subr.mxu0 %v463
  %521 = vmatpush2.msra.mxu0 %v462
  %522 = vmatprep.subr.mxu0 %v459
  %523 = vmatpush2.msra.mxu0 %v458
  %524 = vmatprep.subr.mxu0 %v455
  %525 = vmatpush2.msra.mxu0 %v454
  %526 = vmatprep.subr.mxu0 %v451
  %527 = vmatpush2.msra.mxu0 %v450
  %528 = vmatprep.subr.mxu0 %v447
  %529 = vmatpush2.msra.mxu0 %v446
  %530 = vmatprep.subr.mxu0 %v443
  %531 = vmatpush2.msra.mxu0 %v442
  %532 = vmatprep.subr.mxu0 %v439
  %533 = vmatpush2.msra.mxu0 %v438
  %534 = vmatprep.subr.mxu0 %v435
  %535 = vmatpush2.msra.mxu0 %v434
  %536 = vmatprep.subr.mxu0 %v431
  %537 = vmatpush2.msra.mxu0 %v430
  %538 = vmatprep.subr.mxu0 %v427
  %539 = vmatpush2.msra.mxu0 %v426
  %540 = vmatprep.subr.mxu0 %v423
  %541 = vmatpush2.msra.mxu0 %v422
  %542 = vmatprep.subr.mxu0 %v419
  %543 = vmatpush2.msra.mxu0 %v418
  %544 = vmatprep.subr.mxu0 %v415
  %545 = vmatpush2.msra.mxu0 %v414
  %546 = vmatprep.subr.mxu0 %v411
  %547 = vmatpush2.msra.mxu0 %v410
  %548 = vmatprep.subr.mxu0 %v407
  %549 = vmatpush2.msra.mxu0 %v406
  %550 = vmatprep.subr.mxu0 %v403
  %551 = vmatpush2.msra.mxu0 %v402
  %552 = vmatprep.mubr.f32.mxu0 %v23
  %553 = vmatmul.mubr.f32.gmra.mxu0 %v22
  %v554 = vpop.f32.mrf.mxu0
  %v555 = vadd.f32 %v471, %v554
  %v556 = vpop.f32.mrf.mxu0
  %v557 = vadd.f32 %v475, %v556
  %558 = vmatprep.mubr.f32.mxu0 %v25
  %559 = vmatmul.mubr.f32.gmra.mxu0 %v24
  %v560 = vpop.f32.mrf.mxu0
  %v561 = vadd.f32 %v471, %v560
  %v562 = vpop.f32.mrf.mxu0
  %v563 = vadd.f32 %v475, %v562
  %564 = vdwg.mxu0
  %565 = vmatprep.subr.mxu0 %v401
  %566 = vmatpush1.msra.mxu0 %v400
  %567 = vmatprep.subr.mxu0 %v397
  %568 = vmatpush1.msra.mxu0 %v396
  %569 = vmatprep.subr.mxu0 %v393
  %570 = vmatpush1.msra.mxu0 %v392
  %571 = vmatprep.subr.mxu0 %v389
  %572 = vmatpush1.msra.mxu0 %v388
  %573 = vmatprep.subr.mxu0 %v385
  %574 = vmatpush1.msra.mxu0 %v384
  %575 = vmatprep.subr.mxu0 %v381
  %576 = vmatpush1.msra.mxu0 %v380
  %577 = vmatprep.subr.mxu0 %v377
  %578 = vmatpush1.msra.mxu0 %v376
  %579 = vmatprep.subr.mxu0 %v373
  %580 = vmatpush1.msra.mxu0 %v372
  %581 = vmatprep.subr.mxu0 %v369
  %582 = vmatpush1.msra.mxu0 %v368
  %583 = vmatprep.subr.mxu0 %v365
  %584 = vmatpush1.msra.mxu0 %v364
  %585 = vmatprep.subr.mxu0 %v361
  %586 = vmatpush1.msra.mxu0 %v360
  %587 = vmatprep.subr.mxu0 %v357
  %588 = vmatpush1.msra.mxu0 %v356
  %589 = vmatprep.subr.mxu0 %v353
  %590 = vmatpush1.msra.mxu0 %v352
  %591 = vmatprep.subr.mxu0 %v349
  %592 = vmatpush1.msra.mxu0 %v348
  %593 = vmatprep.subr.mxu0 %v345
  %594 = vmatpush1.msra.mxu0 %v344
  %595 = vmatprep.subr.mxu0 %v341
  %596 = vmatpush1.msra.mxu0 %v340
  %597 = vmatprep.subr.mxu0 %v465
  %598 = vmatpush2.msra.mxu0 %v464
  %599 = vmatprep.subr.mxu0 %v461
  %600 = vmatpush2.msra.mxu0 %v460
  %601 = vmatprep.subr.mxu0 %v457
  %602 = vmatpush2.msra.mxu0 %v456
  %603 = vmatprep.subr.mxu0 %v453
  %604 = vmatpush2.msra.mxu0 %v452
  %605 = vmatprep.subr.mxu0 %v449
  %606 = vmatpush2.msra.mxu0 %v448
  %607 = vmatprep.subr.mxu0 %v445
  %608 = vmatpush2.msra.mxu0 %v444
  %609 = vmatprep.subr.mxu0 %v441
  %610 = vmatpush2.msra.mxu0 %v440
  %611 = vmatprep.subr.mxu0 %v437
  %612 = vmatpush2.msra.mxu0 %v436
  %613 = vmatprep.subr.mxu0 %v433
  %614 = vmatpush2.msra.mxu0 %v432
  %615 = vmatprep.subr.mxu0 %v429
  %616 = vmatpush2.msra.mxu0 %v428
  %617 = vmatprep.subr.mxu0 %v425
  %618 = vmatpush2.msra.mxu0 %v424
  %619 = vmatprep.subr.mxu0 %v421
  %620 = vmatpush2.msra.mxu0 %v420
  %621 = vmatprep.subr.mxu0 %v417
  %622 = vmatpush2.msra.mxu0 %v416
  %623 = vmatprep.subr.mxu0 %v413
  %624 = vmatpush2.msra.mxu0 %v412
  %625 = vmatprep.subr.mxu0 %v409
  %626 = vmatpush2.msra.mxu0 %v408
  %627 = vmatprep.subr.mxu0 %v405
  %628 = vmatpush2.msra.mxu0 %v404
  %629 = vmatprep.mubr.f32.mxu0 %v23
  %630 = vmatmul.mubr.f32.gmra.mxu0 %v22
  %v631 = vpop.f32.mrf.mxu0
  %v632 = vadd.f32 %v479, %v631
  %v633 = vpop.f32.mrf.mxu0
  %v634 = vadd.f32 %v483, %v633
  %635 = vmatprep.mubr.f32.mxu0 %v25
  %636 = vmatmul.mubr.f32.gmra.mxu0 %v24
  %v637 = vpop.f32.mrf.mxu0
  %v638 = vadd.f32 %v479, %v637
  %v639 = vpop.f32.mrf.mxu0
  %v640 = vadd.f32 %v483, %v639
  %641 = vdwg.mxu0
  %642 = vst [vmem:[%s6] sm:$0xff] %v555
  %643 = vst [vmem:[%s6 + $0x8] sm:$0xff] %v557
  %644 = vst [vmem:[%s6 + $0x10] sm:$0xff] %v632
  %645 = vst [vmem:[%s6 + $0x18] sm:$0xff] %v634
  %646 = vst [vmem:[%s6 + $0x20] sm:$0xff] %v561
  %647 = vst [vmem:[%s6 + $0x28] sm:$0xff] %v563
  %648 = vst [vmem:[%s6 + $0x30] sm:$0xff] %v638
  %649 = vst [vmem:[%s6 + $0x38] sm:$0xff] %v640
  // Predicated region
  $region22: #{lstm_classifier_forward.6} parent=0 // pred_check
    _
  $region23: #{lstm_classifier_forward.6} parent=0 // pred_check_branch
    %651 = sbr.rel (0) target = $region25
  $region24: #{lstm_classifier_forward.6} parent=0 // pred_region
    _
  $region25: #{lstm_classifier_forward.6} parent=0 // pred_fallthru
    _
  // Predicated region
  $region26: #{lstm_classifier_forward.6} parent=0 // pred_check
    _
  $region27: #{lstm_classifier_forward.6} parent=0 // pred_check_branch
    %653 = sbr.rel (0) target = $region29
  $region28: #{lstm_classifier_forward.6} parent=0 // pred_region
    _
  $region29: #{lstm_classifier_forward.6} parent=0 // pred_fallthru
    _
  // Predicated region
  $region30: #{lstm_classifier_forward.6} parent=0 // pred_check
    _
  $region31: #{lstm_classifier_forward.6} parent=0 // pred_check_branch
    %655 = sbr.rel (0) target = $region33
  $region32: #{lstm_classifier_forward.6} parent=0 // pred_region
    _
  $region33: #{lstm_classifier_forward.6} parent=0 // pred_fallthru
    _
  // Predicated region
  $region34: #{lstm_classifier_forward.6} parent=0 // pred_check
    _
  $region35: #{lstm_classifier_forward.6} parent=0 // pred_check_branch
    %657 = sbr.rel (0) target = $region37
  $region36: #{lstm_classifier_forward.6} parent=0 // pred_region
    _
  $region37: #{lstm_classifier_forward.6} parent=0 // pred_fallthru
    _

// kernel: lstm_classifier_forward.7
$region0: #{lstm_classifier_forward.7}
  #allocation0 [shape = 'u32[]', space=smem, size = 0x4, offset = 0x4, fixed_abs, tag = 'smem constant byte address 0x4 - core index']
  #allocation1 [shape = 'u32[144,128]{1,0:T(1,128)}', space=vmem, size = 0x12000, scoped, tag = 'internal scratch']
  %s0 = inlined_call_operand.vmem [shape: f32[16,512], index: 0, kind: input, shape index: {}]
  %s1 = inlined_call_operand.vmem [shape: f32[16,512], index: 1, kind: input, shape index: {}]
  %s2 = inlined_call_operand.vmem [shape: f32[128,512], index: 2, kind: input, shape index: {}]
  %s3 = inlined_call_operand.vmem [shape: f32[128,512], index: 3, kind: input, shape index: {}]
  %s4 = inlined_call_operand.vmem [shape: f32[256,5], index: 4, kind: input, shape index: {}]
  %s5 = inlined_call_operand.vmem [shape: f32[1,5], index: 5, kind: input, shape index: {}]
  %s6 = inlined_call_operand.hbm [shape: f32[2,5], index: 6, kind: output, shape index: {}]
  %s7 = sld [smem:[#allocation0]]
  $region34: #{lstm_classifier_forward.7} parent=0
    _
  %s9 = ssub.s32 1, %s7
  %s10 = scalar_select 0, %s9, %s7
  $region1: #{lstm_classifier_forward.7} parent=0
    #allocation2 [shape = 'u8[1024]{0}', space=vmem, size = 0x400, scoped, tag = 'output window, operand 0, single buffered']
    #allocation3 [shape = 's32[1]{0}', space=sflag, size = 0x4, scoped, tag = 'scoped memory for lstm_classifier_forward.7']
    %11 = vsyncpa [#allocation3], 0
    // Predicated region
    $region2: #{lstm_classifier_forward.7} parent=1 // pred_check
      _
    $region3: #{lstm_classifier_forward.7} parent=1 // pred_check_branch
      %13 = sbr.rel (0) target = $region5
    $region4: #{lstm_classifier_forward.7} parent=1 // pred_region
      _
    $region5: #{lstm_classifier_forward.7} parent=1 // pred_fallthru
      _
    // Predicated region
    $region6: #{lstm_classifier_forward.7} parent=1 // pred_check
      _
    $region7: #{lstm_classifier_forward.7} parent=1 // pred_check_branch
      %15 = sbr.rel (0) target = $region9
    $region8: #{lstm_classifier_forward.7} parent=1 // pred_region
      _
    $region9: #{lstm_classifier_forward.7} parent=1 // pred_fallthru
      _
    // Predicated region
    $region10: #{lstm_classifier_forward.7} parent=1 // pred_check
      _
    $region11: #{lstm_classifier_forward.7} parent=1 // pred_check_branch
      %17 = sbr.rel (0) target = $region13
    $region12: #{lstm_classifier_forward.7} parent=1 // pred_region
      _
    $region13: #{lstm_classifier_forward.7} parent=1 // pred_fallthru
      _
    // Predicated region
    $region14: #{lstm_classifier_forward.7} parent=1 // pred_check
      _
    $region15: #{lstm_classifier_forward.7} parent=1 // pred_check_branch
      %19 = sbr.rel (0) target = $region17
    $region16: #{lstm_classifier_forward.7} parent=1 // pred_region
      _
    $region17: #{lstm_classifier_forward.7} parent=1 // pred_fallthru
      _
    // Predicated region
    $region18: #{lstm_classifier_forward.7} parent=1 // pred_check
      _
    $region19: #{lstm_classifier_forward.7} parent=1 // pred_check_branch
      %21 = sbr.rel (0) target = $region21
    $region20: #{lstm_classifier_forward.7} parent=1 // pred_region
      _
    $region21: #{lstm_classifier_forward.7} parent=1 // pred_fallthru
      _
    // Predicated region
    $region22: #{lstm_classifier_forward.7} parent=1 // pred_check
      _
    $region23: #{lstm_classifier_forward.7} parent=1 // pred_check_branch
      %23 = sbr.rel (0) target = $region25
    $region24: #{lstm_classifier_forward.7} parent=1 // pred_region
      _
    $region25: #{lstm_classifier_forward.7} parent=1 // pred_fallthru
      _
    %v24 = vld [vmem:[%s0] sm:$0x3]
    %v25 = vld [vmem:[%s0 + $0x8] sm:$0x3]
    %v26 = vld [vmem:[%s0 + $0x10] sm:$0x3]
    %v27 = vld [vmem:[%s0 + $0x18] sm:$0x3]
    %v28 = vld [vmem:[%s2] sm:$0xff]
    %v29 = vld [vmem:[%s2 + $0x8] sm:$0xff]
    %v30 = vld [vmem:[%s2 + $0x10] sm:$0xff]
    %v31 = vld [vmem:[%s2 + $0x18] sm:$0xff]
    %v32 = vld [vmem:[%s2 + $0x20] sm:$0xff]
    %v33 = vld [vmem:[%s2 + $0x28] sm:$0xff]
    %v34 = vld [vmem:[%s2 + $0x30] sm:$0xff]
    %v35 = vld [vmem:[%s2 + $0x38] sm:$0xff]
    %v36 = vld [vmem:[%s2 + $0x40] sm:$0xff]
    %v37 = vld [vmem:[%s2 + $0x48] sm:$0xff]
    %v38 = vld [vmem:[%s2 + $0x50] sm:$0xff]
    %v39 = vld [vmem:[%s2 + $0x58] sm:$0xff]
    %v40 = vld [vmem:[%s2 + $0x60] sm:$0xff]
    %v41 = vld [vmem:[%s2 + $0x68] sm:$0xff]
    %v42 = vld [vmem:[%s2 + $0x70] sm:$0xff]
    %v43 = vld [vmem:[%s2 + $0x78] sm:$0xff]
    %v44 = vld [vmem:[%s2 + $0x80] sm:$0xff]
    %v45 = vld [vmem:[%s2 + $0x88] sm:$0xff]
    %v46 = vld [vmem:[%s2 + $0x90] sm:$0xff]
    %v47 = vld [vmem:[%s2 + $0x98] sm:$0xff]
    %v48 = vld [vmem:[%s2 + $0xa0] sm:$0xff]
    %v49 = vld [vmem:[%s2 + $0xa8] sm:$0xff]
    %v50 = vld [vmem:[%s2 + $0xb0] sm:$0xff]
    %v51 = vld [vmem:[%s2 + $0xb8] sm:$0xff]
    %v52 = vld [vmem:[%s2 + $0xc0] sm:$0xff]
    %v53 = vld [vmem:[%s2 + $0xc8] sm:$0xff]
    %v54 = vld [vmem:[%s2 + $0xd0] sm:$0xff]
    %v55 = vld [vmem:[%s2 + $0xd8] sm:$0xff]
    %v56 = vld [vmem:[%s2 + $0xe0] sm:$0xff]
    %v57 = vld [vmem:[%s2 + $0xe8] sm:$0xff]
    %v58 = vld [vmem:[%s2 + $0xf0] sm:$0xff]
    %v59 = vld [vmem:[%s2 + $0xf8] sm:$0xff]
    %v60 = vld [vmem:[%s2 + $0x100] sm:$0xff]
    %v61 = vld [vmem:[%s2 + $0x108] sm:$0xff]
    %v62 = vld [vmem:[%s2 + $0x110] sm:$0xff]
    %v63 = vld [vmem:[%s2 + $0x118] sm:$0xff]
    %v64 = vld [vmem:[%s2 + $0x120] sm:$0xff]
    %v65 = vld [vmem:[%s2 + $0x128] sm:$0xff]
    %v66 = vld [vmem:[%s2 + $0x130] sm:$0xff]
    %v67 = vld [vmem:[%s2 + $0x138] sm:$0xff]
    %v68 = vld [vmem:[%s2 + $0x140] sm:$0xff]
    %v69 = vld [vmem:[%s2 + $0x148] sm:$0xff]
    %v70 = vld [vmem:[%s2 + $0x150] sm:$0xff]
    %v71 = vld [vmem:[%s2 + $0x158] sm:$0xff]
    %v72 = vld [vmem:[%s2 + $0x160] sm:$0xff]
    %v73 = vld [vmem:[%s2 + $0x168] sm:$0xff]
    %v74 = vld [vmem:[%s2 + $0x170] sm:$0xff]
    %v75 = vld [vmem:[%s2 + $0x178] sm:$0xff]
    %v76 = vld [vmem:[%s2 + $0x180] sm:$0xff]
    %v77 = vld [vmem:[%s2 + $0x188] sm:$0xff]
    %v78 = vld [vmem:[%s2 + $0x190] sm:$0xff]
    %v79 = vld [vmem:[%s2 + $0x198] sm:$0xff]
    %v80 = vld [vmem:[%s2 + $0x1a0] sm:$0xff]
    %v81 = vld [vmem:[%s2 + $0x1a8] sm:$0xff]
    %v82 = vld [vmem:[%s2 + $0x1b0] sm:$0xff]
    %v83 = vld [vmem:[%s2 + $0x1b8] sm:$0xff]
    %v84 = vld [vmem:[%s2 + $0x1c0] sm:$0xff]
    %v85 = vld [vmem:[%s2 + $0x1c8] sm:$0xff]
    %v86 = vld [vmem:[%s2 + $0x1d0] sm:$0xff]
    %v87 = vld [vmem:[%s2 + $0x1d8] sm:$0xff]
    %v88 = vld [vmem:[%s2 + $0x1e0] sm:$0xff]
    %v89 = vld [vmem:[%s2 + $0x1e8] sm:$0xff]
    %v90 = vld [vmem:[%s2 + $0x1f0] sm:$0xff]
    %v91 = vld [vmem:[%s2 + $0x1f8] sm:$0xff]
    %92 = vmatprep.subr.mxu0 %v89
    %93 = vmatpush1.msra.mxu0 %v88
    %94 = vmatprep.subr.mxu0 %v85
    %95 = vmatpush1.msra.mxu0 %v84
    %96 = vmatprep.subr.mxu0 %v81
    %97 = vmatpush1.msra.mxu0 %v80
    %98 = vmatprep.subr.mxu0 %v77
    %99 = vmatpush1.msra.mxu0 %v76
    %100 = vmatprep.subr.mxu0 %v73
    %101 = vmatpush1.msra.mxu0 %v72
    %102 = vmatprep.subr.mxu0 %v69
    %103 = vmatpush1.msra.mxu0 %v68
    %104 = vmatprep.subr.mxu0 %v65
    %105 = vmatpush1.msra.mxu0 %v64
    %106 = vmatprep.subr.mxu0 %v61
    %107 = vmatpush1.msra.mxu0 %v60
    %108 = vmatprep.subr.mxu0 %v57
    %109 = vmatpush1.msra.mxu0 %v56
    %110 = vmatprep.subr.mxu0 %v53
    %111 = vmatpush1.msra.mxu0 %v52
    %112 = vmatprep.subr.mxu0 %v49
    %113 = vmatpush1.msra.mxu0 %v48
    %114 = vmatprep.subr.mxu0 %v45
    %115 = vmatpush1.msra.mxu0 %v44
    %116 = vmatprep.subr.mxu0 %v41
    %117 = vmatpush1.msra.mxu0 %v40
    %118 = vmatprep.subr.mxu0 %v37
    %119 = vmatpush1.msra.mxu0 %v36
    %120 = vmatprep.subr.mxu0 %v33
    %121 = vmatpush1.msra.mxu0 %v32
    %122 = vmatprep.subr.mxu0 %v29
    %123 = vmatpush1.msra.mxu0 %v28
    %124 = vmatprep.subr.mxu0 0.0
    %125 = vmatpush2.msra.mxu0 0.0
    %126 = vmatprep.subr.mxu0 0.0
    %127 = vmatpush2.msra.mxu0 0.0
    %128 = vmatprep.subr.mxu0 0.0
    %129 = vmatpush2.msra.mxu0 0.0
    %130 = vmatprep.subr.mxu0 0.0
    %131 = vmatpush2.msra.mxu0 0.0
    %132 = vmatprep.subr.mxu0 0.0
    %133 = vmatpush2.msra.mxu0 0.0
    %134 = vmatprep.subr.mxu0 0.0
    %135 = vmatpush2.msra.mxu0 0.0
    %136 = vmatprep.subr.mxu0 0.0
    %137 = vmatpush2.msra.mxu0 0.0
    %138 = vmatprep.subr.mxu0 0.0
    %139 = vmatpush2.msra.mxu0 0.0
    %140 = vmatprep.subr.mxu0 0.0
    %141 = vmatpush2.msra.mxu0 0.0
    %142 = vmatprep.subr.mxu0 0.0
    %143 = vmatpush2.msra.mxu0 0.0
    %144 = vmatprep.subr.mxu0 0.0
    %145 = vmatpush2.msra.mxu0 0.0
    %146 = vmatprep.subr.mxu0 0.0
    %147 = vmatpush2.msra.mxu0 0.0
    %148 = vmatprep.subr.mxu0 0.0
    %149 = vmatpush2.msra.mxu0 0.0
    %150 = vmatprep.subr.mxu0 0.0
    %151 = vmatpush2.msra.mxu0 0.0
    %152 = vmatprep.subr.mxu0 0.0
    %153 = vmatpush2.msra.mxu0 0.0
    %154 = vmatprep.subr.mxu0 0.0
    %155 = vmatpush2.msra.mxu0 0.0
    %156 = vmatprep.mubr.f32.mxu0 0.0
    %157 = vmatmul.mubr.f32.gmra.mxu0 0.0
    %v158 = vpop.f32.mrf.mxu0
    %v159 = vadd.f32 0.0, %v158
    %v160 = vpop.f32.mrf.mxu0
    %v161 = vadd.f32 0.0, %v160
    %162 = vdwg.mxu0
    %163 = vmatprep.subr.mxu0 %v91
    %164 = vmatpush1.msra.mxu0 %v90
    %165 = vmatprep.subr.mxu0 %v87
    %166 = vmatpush1.msra.mxu0 %v86
    %167 = vmatprep.subr.mxu0 %v83
    %168 = vmatpush1.msra.mxu0 %v82
    %169 = vmatprep.subr.mxu0 %v79
    %170 = vmatpush1.msra.mxu0 %v78
    %171 = vmatprep.subr.mxu0 %v75
    %172 = vmatpush1.msra.mxu0 %v74
    %173 = vmatprep.subr.mxu0 %v71
    %174 = vmatpush1.msra.mxu0 %v70
    %175 = vmatprep.subr.mxu0 %v67
    %176 = vmatpush1.msra.mxu0 %v66
    %177 = vmatprep.subr.mxu0 %v63
    %178 = vmatpush1.msra.mxu0 %v62
    %179 = vmatprep.subr.mxu0 %v59
    %180 = vmatpush1.msra.mxu0 %v58
    %181 = vmatprep.subr.mxu0 %v55
    %182 = vmatpush1.msra.mxu0 %v54
    %183 = vmatprep.subr.mxu0 %v51
    %184 = vmatpush1.msra.mxu0 %v50
    %185 = vmatprep.subr.mxu0 %v47
    %186 = vmatpush1.msra.mxu0 %v46
    %187 = vmatprep.subr.mxu0 %v43
    %188 = vmatpush1.msra.mxu0 %v42
    %189 = vmatprep.subr.mxu0 %v39
    %190 = vmatpush1.msra.mxu0 %v38
    %191 = vmatprep.subr.mxu0 %v35
    %192 = vmatpush1.msra.mxu0 %v34
    %193 = vmatprep.subr.mxu0 %v31
    %194 = vmatpush1.msra.mxu0 %v30
    %195 = vmatprep.subr.mxu0 0.0
    %196 = vmatpush2.msra.mxu0 0.0
    %197 = vmatprep.subr.mxu0 0.0
    %198 = vmatpush2.msra.mxu0 0.0
    %199 = vmatprep.subr.mxu0 0.0
    %200 = vmatpush2.msra.mxu0 0.0
    %201 = vmatprep.subr.mxu0 0.0
    %202 = vmatpush2.msra.mxu0 0.0
    %203 = vmatprep.subr.mxu0 0.0
    %204 = vmatpush2.msra.mxu0 0.0
    %205 = vmatprep.subr.mxu0 0.0
    %206 = vmatpush2.msra.mxu0 0.0
    %207 = vmatprep.subr.mxu0 0.0
    %208 = vmatpush2.msra.mxu0 0.0
    %209 = vmatprep.subr.mxu0 0.0
    %210 = vmatpush2.msra.mxu0 0.0
    %211 = vmatprep.subr.mxu0 0.0
    %212 = vmatpush2.msra.mxu0 0.0
    %213 = vmatprep.subr.mxu0 0.0
    %214 = vmatpush2.msra.mxu0 0.0
    %215 = vmatprep.subr.mxu0 0.0
    %216 = vmatpush2.msra.mxu0 0.0
    %217 = vmatprep.subr.mxu0 0.0
    %218 = vmatpush2.msra.mxu0 0.0
    %219 = vmatprep.subr.mxu0 0.0
    %220 = vmatpush2.msra.mxu0 0.0
    %221 = vmatprep.subr.mxu0 0.0
    %222 = vmatpush2.msra.mxu0 0.0
    %223 = vmatprep.subr.mxu0 0.0
    %224 = vmatpush2.msra.mxu0 0.0
    %225 = vmatprep.subr.mxu0 0.0
    %226 = vmatpush2.msra.mxu0 0.0
    %227 = vmatprep.mubr.f32.mxu0 0.0
    %228 = vmatmul.mubr.f32.gmra.mxu0 0.0
    %v229 = vpop.f32.mrf.mxu0
    %v230 = vadd.f32 0.0, %v229
    %v231 = vpop.f32.mrf.mxu0
    %v232 = vadd.f32 0.0, %v231
    %233 = vdwg.mxu0
    %v234 = vadd.f32 %v24, %v159
    %v235 = vadd.f32 %v25, %v161
    %v236 = vadd.f32 %v26, %v230
    %v237 = vadd.f32 %v27, %v232
    %v238 = vld [vmem:[%s1 + $0x20] sm:$0xc0]
    %v239 = vld [vmem:[%s1 + $0x28] sm:$0xc0]
    %v240 = vld [vmem:[%s1 + $0x30] sm:$0xc0]
    %v241 = vld [vmem:[%s1 + $0x38] sm:$0xc0]
    %v242 = vld [vmem:[%s3] sm:$0xff]
    %v243 = vld [vmem:[%s3 + $0x8] sm:$0xff]
    %v244 = vld [vmem:[%s3 + $0x10] sm:$0xff]
    %v245 = vld [vmem:[%s3 + $0x18] sm:$0xff]
    %v246 = vld [vmem:[%s3 + $0x20] sm:$0xff]
    %v247 = vld [vmem:[%s3 + $0x28] sm:$0xff]
    %v248 = vld [vmem:[%s3 + $0x30] sm:$0xff]
    %v249 = vld [vmem:[%s3 + $0x38] sm:$0xff]
    %v250 = vld [vmem:[%s3 + $0x40] sm:$0xff]
    %v251 = vld [vmem:[%s3 + $0x48] sm:$0xff]
    %v252 = vld [vmem:[%s3 + $0x50] sm:$0xff]
    %v253 = vld [vmem:[%s3 + $0x58] sm:$0xff]
    %v254 = vld [vmem:[%s3 + $0x60] sm:$0xff]
    %v255 = vld [vmem:[%s3 + $0x68] sm:$0xff]
    %v256 = vld [vmem:[%s3 + $0x70] sm:$0xff]
    %v257 = vld [vmem:[%s3 + $0x78] sm:$0xff]
    %v258 = vld [vmem:[%s3 + $0x80] sm:$0xff]
    %v259 = vld [vmem:[%s3 + $0x88] sm:$0xff]
    %v260 = vld [vmem:[%s3 + $0x90] sm:$0xff]
    %v261 = vld [vmem:[%s3 + $0x98] sm:$0xff]
    %v262 = vld [vmem:[%s3 + $0xa0] sm:$0xff]
    %v263 = vld [vmem:[%s3 + $0xa8] sm:$0xff]
    %v264 = vld [vmem:[%s3 + $0xb0] sm:$0xff]
    %v265 = vld [vmem:[%s3 + $0xb8] sm:$0xff]
    %v266 = vld [vmem:[%s3 + $0xc0] sm:$0xff]
    %v267 = vld [vmem:[%s3 + $0xc8] sm:$0xff]
    %v268 = vld [vmem:[%s3 + $0xd0] sm:$0xff]
    %v269 = vld [vmem:[%s3 + $0xd8] sm:$0xff]
    %v270 = vld [vmem:[%s3 + $0xe0] sm:$0xff]
    %v271 = vld [vmem:[%s3 + $0xe8] sm:$0xff]
    %v272 = vld [vmem:[%s3 + $0xf0] sm:$0xff]
    %v273 = vld [vmem:[%s3 + $0xf8] sm:$0xff]
    %v274 = vld [vmem:[%s3 + $0x100] sm:$0xff]
    %v275 = vld [vmem:[%s3 + $0x108] sm:$0xff]
    %v276 = vld [vmem:[%s3 + $0x110] sm:$0xff]
    %v277 = vld [vmem:[%s3 + $0x118] sm:$0xff]
    %v278 = vld [vmem:[%s3 + $0x120] sm:$0xff]
    %v279 = vld [vmem:[%s3 + $0x128] sm:$0xff]
    %v280 = vld [vmem:[%s3 + $0x130] sm:$0xff]
    %v281 = vld [vmem:[%s3 + $0x138] sm:$0xff]
    %v282 = vld [vmem:[%s3 + $0x140] sm:$0xff]
    %v283 = vld [vmem:[%s3 + $0x148] sm:$0xff]
    %v284 = vld [vmem:[%s3 + $0x150] sm:$0xff]
    %v285 = vld [vmem:[%s3 + $0x158] sm:$0xff]
    %v286 = vld [vmem:[%s3 + $0x160] sm:$0xff]
    %v287 = vld [vmem:[%s3 + $0x168] sm:$0xff]
    %v288 = vld [vmem:[%s3 + $0x170] sm:$0xff]
    %v289 = vld [vmem:[%s3 + $0x178] sm:$0xff]
    %v290 = vld [vmem:[%s3 + $0x180] sm:$0xff]
    %v291 = vld [vmem:[%s3 + $0x188] sm:$0xff]
    %v292 = vld [vmem:[%s3 + $0x190] sm:$0xff]
    %v293 = vld [vmem:[%s3 + $0x198] sm:$0xff]
    %v294 = vld [vmem:[%s3 + $0x1a0] sm:$0xff]
    %v295 = vld [vmem:[%s3 + $0x1a8] sm:$0xff]
    %v296 = vld [vmem:[%s3 + $0x1b0] sm:$0xff]
    %v297 = vld [vmem:[%s3 + $0x1b8] sm:$0xff]
    %v298 = vld [vmem:[%s3 + $0x1c0] sm:$0xff]
    %v299 = vld [vmem:[%s3 + $0x1c8] sm:$0xff]
    %v300 = vld [vmem:[%s3 + $0x1d0] sm:$0xff]
    %v301 = vld [vmem:[%s3 + $0x1d8] sm:$0xff]
    %v302 = vld [vmem:[%s3 + $0x1e0] sm:$0xff]
    %v303 = vld [vmem:[%s3 + $0x1e8] sm:$0xff]
    %v304 = vld [vmem:[%s3 + $0x1f0] sm:$0xff]
    %v305 = vld [vmem:[%s3 + $0x1f8] sm:$0xff]
    %306 = vmatprep.subr.mxu0 %v303
    %307 = vmatpush1.msra.mxu0 %v302
    %308 = vmatprep.subr.mxu0 %v299
    %309 = vmatpush1.msra.mxu0 %v298
    %310 = vmatprep.subr.mxu0 %v295
    %311 = vmatpush1.msra.mxu0 %v294
    %312 = vmatprep.subr.mxu0 %v291
    %313 = vmatpush1.msra.mxu0 %v290
    %314 = vmatprep.subr.mxu0 %v287
    %315 = vmatpush1.msra.mxu0 %v286
    %316 = vmatprep.subr.mxu0 %v283
    %317 = vmatpush1.msra.mxu0 %v282
    %318 = vmatprep.subr.mxu0 %v279
    %319 = vmatpush1.msra.mxu0 %v278
    %320 = vmatprep.subr.mxu0 %v275
    %321 = vmatpush1.msra.mxu0 %v274
    %322 = vmatprep.subr.mxu0 %v271
    %323 = vmatpush1.msra.mxu0 %v270
    %324 = vmatprep.subr.mxu0 %v267
    %325 = vmatpush1.msra.mxu0 %v266
    %326 = vmatprep.subr.mxu0 %v263
    %327 = vmatpush1.msra.mxu0 %v262
    %328 = vmatprep.subr.mxu0 %v259
    %329 = vmatpush1.msra.mxu0 %v258
    %330 = vmatprep.subr.mxu0 %v255
    %331 = vmatpush1.msra.mxu0 %v254
    %332 = vmatprep.subr.mxu0 %v251
    %333 = vmatpush1.msra.mxu0 %v250
    %334 = vmatprep.subr.mxu0 %v247
    %335 = vmatpush1.msra.mxu0 %v246
    %336 = vmatprep.subr.mxu0 %v243
    %337 = vmatpush1.msra.mxu0 %v242
    %338 = vmatprep.subr.mxu0 0.0
    %339 = vmatpush2.msra.mxu0 0.0
    %340 = vmatprep.subr.mxu0 0.0
    %341 = vmatpush2.msra.mxu0 0.0
    %342 = vmatprep.subr.mxu0 0.0
    %343 = vmatpush2.msra.mxu0 0.0
    %344 = vmatprep.subr.mxu0 0.0
    %345 = vmatpush2.msra.mxu0 0.0
    %346 = vmatprep.subr.mxu0 0.0
    %347 = vmatpush2.msra.mxu0 0.0
    %348 = vmatprep.subr.mxu0 0.0
    %349 = vmatpush2.msra.mxu0 0.0
    %350 = vmatprep.subr.mxu0 0.0
    %351 = vmatpush2.msra.mxu0 0.0
    %352 = vmatprep.subr.mxu0 0.0
    %353 = vmatpush2.msra.mxu0 0.0
    %354 = vmatprep.subr.mxu0 0.0
    %355 = vmatpush2.msra.mxu0 0.0
    %356 = vmatprep.subr.mxu0 0.0
    %357 = vmatpush2.msra.mxu0 0.0
    %358 = vmatprep.subr.mxu0 0.0
    %359 = vmatpush2.msra.mxu0 0.0
    %360 = vmatprep.subr.mxu0 0.0
    %361 = vmatpush2.msra.mxu0 0.0
    %362 = vmatprep.subr.mxu0 0.0
    %363 = vmatpush2.msra.mxu0 0.0
    %364 = vmatprep.subr.mxu0 0.0
    %365 = vmatpush2.msra.mxu0 0.0
    %366 = vmatprep.subr.mxu0 0.0
    %367 = vmatpush2.msra.mxu0 0.0
    %368 = vmatprep.subr.mxu0 0.0
    %369 = vmatpush2.msra.mxu0 0.0
    %370 = vmatprep.mubr.f32.mxu0 0.0
    %371 = vmatmul.mubr.f32.gmra.mxu0 0.0
    %v372 = vpop.f32.mrf.mxu0
    %v373 = vadd.f32 0.0, %v372
    %v374 = vpop.f32.mrf.mxu0
    %v375 = vadd.f32 0.0, %v374
    %376 = vdwg.mxu0
    %377 = vmatprep.subr.mxu0 %v305
    %378 = vmatpush1.msra.mxu0 %v304
    %379 = vmatprep.subr.mxu0 %v301
    %380 = vmatpush1.msra.mxu0 %v300
    %381 = vmatprep.subr.mxu0 %v297
    %382 = vmatpush1.msra.mxu0 %v296
    %383 = vmatprep.subr.mxu0 %v293
    %384 = vmatpush1.msra.mxu0 %v292
    %385 = vmatprep.subr.mxu0 %v289
    %386 = vmatpush1.msra.mxu0 %v288
    %387 = vmatprep.subr.mxu0 %v285
    %388 = vmatpush1.msra.mxu0 %v284
    %389 = vmatprep.subr.mxu0 %v281
    %390 = vmatpush1.msra.mxu0 %v280
    %391 = vmatprep.subr.mxu0 %v277
    %392 = vmatpush1.msra.mxu0 %v276
    %393 = vmatprep.subr.mxu0 %v273
    %394 = vmatpush1.msra.mxu0 %v272
    %395 = vmatprep.subr.mxu0 %v269
    %396 = vmatpush1.msra.mxu0 %v268
    %397 = vmatprep.subr.mxu0 %v265
    %398 = vmatpush1.msra.mxu0 %v264
    %399 = vmatprep.subr.mxu0 %v261
    %400 = vmatpush1.msra.mxu0 %v260
    %401 = vmatprep.subr.mxu0 %v257
    %402 = vmatpush1.msra.mxu0 %v256
    %403 = vmatprep.subr.mxu0 %v253
    %404 = vmatpush1.msra.mxu0 %v252
    %405 = vmatprep.subr.mxu0 %v249
    %406 = vmatpush1.msra.mxu0 %v248
    %407 = vmatprep.subr.mxu0 %v245
    %408 = vmatpush1.msra.mxu0 %v244
    %409 = vmatprep.subr.mxu0 0.0
    %410 = vmatpush2.msra.mxu0 0.0
    %411 = vmatprep.subr.mxu0 0.0
    %412 = vmatpush2.msra.mxu0 0.0
    %413 = vmatprep.subr.mxu0 0.0
    %414 = vmatpush2.msra.mxu0 0.0
    %415 = vmatprep.subr.mxu0 0.0
    %416 = vmatpush2.msra.mxu0 0.0
    %417 = vmatprep.subr.mxu0 0.0
    %418 = vmatpush2.msra.mxu0 0.0
    %419 = vmatprep.subr.mxu0 0.0
    %420 = vmatpush2.msra.mxu0 0.0
    %421 = vmatprep.subr.mxu0 0.0
    %422 = vmatpush2.msra.mxu0 0.0
    %423 = vmatprep.subr.mxu0 0.0
    %424 = vmatpush2.msra.mxu0 0.0
    %425 = vmatprep.subr.mxu0 0.0
    %426 = vmatpush2.msra.mxu0 0.0
    %427 = vmatprep.subr.mxu0 0.0
    %428 = vmatpush2.msra.mxu0 0.0
    %429 = vmatprep.subr.mxu0 0.0
    %430 = vmatpush2.msra.mxu0 0.0
    %431 = vmatprep.subr.mxu0 0.0
    %432 = vmatpush2.msra.mxu0 0.0
    %433 = vmatprep.subr.mxu0 0.0
    %434 = vmatpush2.msra.mxu0 0.0
    %435 = vmatprep.subr.mxu0 0.0
    %436 = vmatpush2.msra.mxu0 0.0
    %437 = vmatprep.subr.mxu0 0.0
    %438 = vmatpush2.msra.mxu0 0.0
    %439 = vmatprep.subr.mxu0 0.0
    %440 = vmatpush2.msra.mxu0 0.0
    %441 = vmatprep.mubr.f32.mxu0 0.0
    %442 = vmatmul.mubr.f32.gmra.mxu0 0.0
    %v443 = vpop.f32.mrf.mxu0
    %v444 = vadd.f32 0.0, %v443
    %v445 = vpop.f32.mrf.mxu0
    %v446 = vadd.f32 0.0, %v445
    %447 = vdwg.mxu0
    %v452 = vrot.slane %v373, 2
    %v453 = vrot.slane %v375, 2
    %v454 = vrot.slane %v444, 2
    %v455 = vrot.slane %v446, 2
    %v460 = vadd.f32 %v238, %v452
    %v461 = vadd.f32 %v239, %v453
    %v462 = vadd.f32 %v240, %v454
    %v463 = vadd.f32 %v241, %v455
    %v464 = vxor.u32 %v234, 2147483648
    %v465 = vmul.f32 %v464, 1.442695
    %v466 = vpow.pop %v465
    %v467 = vadd.f32 %v466, 1.0
    %v468 = vrcp.pop %v467
    %v469 = vmul.f32 1.0, %v468
    %v470 = vxor.u32 %v235, 2147483648
    %v471 = vmul.f32 %v470, 1.442695
    %v472 = vpow.pop %v471
    %v473 = vadd.f32 %v472, 1.0
    %v474 = vrcp.pop %v473
    %v475 = vmul.f32 1.0, %v474
    %v476 = vtanh.pop %v236
    %v477 = vxor.u32 %v237, 2147483648
    %v478 = vmul.f32 %v477, 1.442695
    %v479 = vpow.pop %v478
    %v480 = vadd.f32 %v479, 1.0
    %v481 = vrcp.pop %v480
    %v482 = vmul.f32 1.0, %v481
    %v483 = vmul.f32 %v475, 0.0
    %v484 = vmul.f32 %v469, %v476
    %v485 = vadd.f32 %v483, %v484
    %v486 = vtanh.pop %v485
    %v487 = vmul.f32 %v482, %v486
    %v488 = vxor.u32 %v460, 2147483648
    %v489 = vmul.f32 %v488, 1.442695
    %v490 = vpow.pop %v489
    %v491 = vadd.f32 %v490, 1.0
    %v492 = vrcp.pop %v491
    %v493 = vmul.f32 1.0, %v492
    %v494 = vxor.u32 %v461, 2147483648
    %v495 = vmul.f32 %v494, 1.442695
    %v496 = vpow.pop %v495
    %v497 = vadd.f32 %v496, 1.0
    %v498 = vrcp.pop %v497
    %v499 = vmul.f32 1.0, %v498
    %v500 = vtanh.pop %v462
    %v501 = vxor.u32 %v463, 2147483648
    %v502 = vmul.f32 %v501, 1.442695
    %v503 = vpow.pop %v502
    %v504 = vadd.f32 %v503, 1.0
    %v505 = vrcp.pop %v504
    %v506 = vmul.f32 1.0, %v505
    %v507 = vmul.f32 %v499, 0.0
    %v508 = vmul.f32 %v493, %v500
    %v509 = vadd.f32 %v507, %v508
    %v510 = vtanh.pop %v509
    %v511 = vmul.f32 %v506, %v510
    %v512 = vld [vmem:[%s0] sm:$0xc]
    %v513 = vld [vmem:[%s0 + $0x8] sm:$0xc]
    %v514 = vld [vmem:[%s0 + $0x10] sm:$0xc]
    %v515 = vld [vmem:[%s0 + $0x18] sm:$0xc]
    %516 = vmatprep.subr.mxu0 %v89
    %517 = vmatpush1.msra.mxu0 %v88
    %518 = vmatprep.subr.mxu0 %v85
    %519 = vmatpush1.msra.mxu0 %v84
    %520 = vmatprep.subr.mxu0 %v81
    %521 = vmatpush1.msra.mxu0 %v80
    %522 = vmatprep.subr.mxu0 %v77
    %523 = vmatpush1.msra.mxu0 %v76
    %524 = vmatprep.subr.mxu0 %v73
    %525 = vmatpush1.msra.mxu0 %v72
    %526 = vmatprep.subr.mxu0 %v69
    %527 = vmatpush1.msra.mxu0 %v68
    %528 = vmatprep.subr.mxu0 %v65
    %529 = vmatpush1.msra.mxu0 %v64
    %530 = vmatprep.subr.mxu0 %v61
    %531 = vmatpush1.msra.mxu0 %v60
    %532 = vmatprep.subr.mxu0 %v57
    %533 = vmatpush1.msra.mxu0 %v56
    %534 = vmatprep.subr.mxu0 %v53
    %535 = vmatpush1.msra.mxu0 %v52
    %536 = vmatprep.subr.mxu0 %v49
    %537 = vmatpush1.msra.mxu0 %v48
    %538 = vmatprep.subr.mxu0 %v45
    %539 = vmatpush1.msra.mxu0 %v44
    %540 = vmatprep.subr.mxu0 %v41
    %541 = vmatpush1.msra.mxu0 %v40
    %542 = vmatprep.subr.mxu0 %v37
    %543 = vmatpush1.msra.mxu0 %v36
    %544 = vmatprep.subr.mxu0 %v33
    %545 = vmatpush1.msra.mxu0 %v32
    %546 = vmatprep.subr.mxu0 %v29
    %547 = vmatpush1.msra.mxu0 %v28
    %548 = vmatprep.subr.mxu0 0.0
    %549 = vmatpush2.msra.mxu0 0.0
    %550 = vmatprep.subr.mxu0 0.0
    %551 = vmatpush2.msra.mxu0 0.0
    %552 = vmatprep.subr.mxu0 0.0
    %553 = vmatpush2.msra.mxu0 0.0
    %554 = vmatprep.subr.mxu0 0.0
    %555 = vmatpush2.msra.mxu0 0.0
    %556 = vmatprep.subr.mxu0 0.0
    %557 = vmatpush2.msra.mxu0 0.0
    %558 = vmatprep.subr.mxu0 0.0
    %559 = vmatpush2.msra.mxu0 0.0
    %560 = vmatprep.subr.mxu0 0.0
    %561 = vmatpush2.msra.mxu0 0.0
    %562 = vmatprep.subr.mxu0 0.0
    %563 = vmatpush2.msra.mxu0 0.0
    %564 = vmatprep.subr.mxu0 0.0
    %565 = vmatpush2.msra.mxu0 0.0
    %566 = vmatprep.subr.mxu0 0.0
    %567 = vmatpush2.msra.mxu0 0.0
    %568 = vmatprep.subr.mxu0 0.0
    %569 = vmatpush2.msra.mxu0 0.0
    %570 = vmatprep.subr.mxu0 0.0
    %571 = vmatpush2.msra.mxu0 0.0
    %572 = vmatprep.subr.mxu0 0.0
    %573 = vmatpush2.msra.mxu0 0.0
    %574 = vmatprep.subr.mxu0 0.0
    %575 = vmatpush2.msra.mxu0 0.0
    %576 = vmatprep.subr.mxu0 0.0
    %577 = vmatpush2.msra.mxu0 0.0
    %578 = vmatprep.subr.mxu0 0.0
    %579 = vmatpush2.msra.mxu0 0.0
    %580 = vmatprep.mubr.f32.mxu0 0.0
    %581 = vmatmul.mubr.f32.gmra.mxu0 %v487
    %v582 = vpop.f32.mrf.mxu0
    %v583 = vadd.f32 0.0, %v582
    %v584 = vpop.f32.mrf.mxu0
    %v585 = vadd.f32 0.0, %v584
    %586 = vdwg.mxu0
    %587 = vmatprep.subr.mxu0 %v91
    %588 = vmatpush1.msra.mxu0 %v90
    %589 = vmatprep.subr.mxu0 %v87
    %590 = vmatpush1.msra.mxu0 %v86
    %591 = vmatprep.subr.mxu0 %v83
    %592 = vmatpush1.msra.mxu0 %v82
    %593 = vmatprep.subr.mxu0 %v79
    %594 = vmatpush1.msra.mxu0 %v78
    %595 = vmatprep.subr.mxu0 %v75
    %596 = vmatpush1.msra.mxu0 %v74
    %597 = vmatprep.subr.mxu0 %v71
    %598 = vmatpush1.msra.mxu0 %v70
    %599 = vmatprep.subr.mxu0 %v67
    %600 = vmatpush1.msra.mxu0 %v66
    %601 = vmatprep.subr.mxu0 %v63
    %602 = vmatpush1.msra.mxu0 %v62
    %603 = vmatprep.subr.mxu0 %v59
    %604 = vmatpush1.msra.mxu0 %v58
    %605 = vmatprep.subr.mxu0 %v55
    %606 = vmatpush1.msra.mxu0 %v54
    %607 = vmatprep.subr.mxu0 %v51
    %608 = vmatpush1.msra.mxu0 %v50
    %609 = vmatprep.subr.mxu0 %v47
    %610 = vmatpush1.msra.mxu0 %v46
    %611 = vmatprep.subr.mxu0 %v43
    %612 = vmatpush1.msra.mxu0 %v42
    %613 = vmatprep.subr.mxu0 %v39
    %614 = vmatpush1.msra.mxu0 %v38
    %615 = vmatprep.subr.mxu0 %v35
    %616 = vmatpush1.msra.mxu0 %v34
    %617 = vmatprep.subr.mxu0 %v31
    %618 = vmatpush1.msra.mxu0 %v30
    %619 = vmatprep.subr.mxu0 0.0
    %620 = vmatpush2.msra.mxu0 0.0
    %621 = vmatprep.subr.mxu0 0.0
    %622 = vmatpush2.msra.mxu0 0.0
    %623 = vmatprep.subr.mxu0 0.0
    %624 = vmatpush2.msra.mxu0 0.0
    %625 = vmatprep.subr.mxu0 0.0
    %626 = vmatpush2.msra.mxu0 0.0
    %627 = vmatprep.subr.mxu0 0.0
    %628 = vmatpush2.msra.mxu0 0.0
    %629 = vmatprep.subr.mxu0 0.0
    %630 = vmatpush2.msra.mxu0 0.0
    %631 = vmatprep.subr.mxu0 0.0
    %632 = vmatpush2.msra.mxu0 0.0
    %633 = vmatprep.subr.mxu0 0.0
    %634 = vmatpush2.msra.mxu0 0.0
    %635 = vmatprep.subr.mxu0 0.0
    %636 = vmatpush2.msra.mxu0 0.0
    %637 = vmatprep.subr.mxu0 0.0
    %638 = vmatpush2.msra.mxu0 0.0
    %639 = vmatprep.subr.mxu0 0.0
    %640 = vmatpush2.msra.mxu0 0.0
    %641 = vmatprep.subr.mxu0 0.0
    %642 = vmatpush2.msra.mxu0 0.0
    %643 = vmatprep.subr.mxu0 0.0
    %644 = vmatpush2.msra.mxu0 0.0
    %645 = vmatprep.subr.mxu0 0.0
    %646 = vmatpush2.msra.mxu0 0.0
    %647 = vmatprep.subr.mxu0 0.0
    %648 = vmatpush2.msra.mxu0 0.0
    %649 = vmatprep.subr.mxu0 0.0
    %650 = vmatpush2.msra.mxu0 0.0
    %651 = vmatprep.mubr.f32.mxu0 0.0
    %652 = vmatmul.mubr.f32.gmra.mxu0 %v487
    %v653 = vpop.f32.mrf.mxu0
    %v654 = vadd.f32 0.0, %v653
    %v655 = vpop.f32.mrf.mxu0
    %v656 = vadd.f32 0.0, %v655
    %657 = vdwg.mxu0
    %v662 = vrot.slane %v583, 6
    %v663 = vrot.slane %v585, 6
    %v664 = vrot.slane %v654, 6
    %v665 = vrot.slane %v656, 6
    %v670 = vadd.f32 %v512, %v662
    %v671 = vadd.f32 %v513, %v663
    %v672 = vadd.f32 %v514, %v664
    %v673 = vadd.f32 %v515, %v665
    %v674 = vld [vmem:[%s1 + $0x20] sm:$0x30]
    %v675 = vld [vmem:[%s1 + $0x28] sm:$0x30]
    %v676 = vld [vmem:[%s1 + $0x30] sm:$0x30]
    %v677 = vld [vmem:[%s1 + $0x38] sm:$0x30]
    %v679 = vrot.slane %v511, 6
    %681 = vmatprep.subr.mxu0 %v303
    %682 = vmatpush1.msra.mxu0 %v302
    %683 = vmatprep.subr.mxu0 %v299
    %684 = vmatpush1.msra.mxu0 %v298
    %685 = vmatprep.subr.mxu0 %v295
    %686 = vmatpush1.msra.mxu0 %v294
    %687 = vmatprep.subr.mxu0 %v291
    %688 = vmatpush1.msra.mxu0 %v290
    %689 = vmatprep.subr.mxu0 %v287
    %690 = vmatpush1.msra.mxu0 %v286
    %691 = vmatprep.subr.mxu0 %v283
    %692 = vmatpush1.msra.mxu0 %v282
    %693 = vmatprep.subr.mxu0 %v279
    %694 = vmatpush1.msra.mxu0 %v278
    %695 = vmatprep.subr.mxu0 %v275
    %696 = vmatpush1.msra.mxu0 %v274
    %697 = vmatprep.subr.mxu0 %v271
    %698 = vmatpush1.msra.mxu0 %v270
    %699 = vmatprep.subr.mxu0 %v267
    %700 = vmatpush1.msra.mxu0 %v266
    %701 = vmatprep.subr.mxu0 %v263
    %702 = vmatpush1.msra.mxu0 %v262
    %703 = vmatprep.subr.mxu0 %v259
    %704 = vmatpush1.msra.mxu0 %v258
    %705 = vmatprep.subr.mxu0 %v255
    %706 = vmatpush1.msra.mxu0 %v254
    %707 = vmatprep.subr.mxu0 %v251
    %708 = vmatpush1.msra.mxu0 %v250
    %709 = vmatprep.subr.mxu0 %v247
    %710 = vmatpush1.msra.mxu0 %v246
    %711 = vmatprep.subr.mxu0 %v243
    %712 = vmatpush1.msra.mxu0 %v242
    %713 = vmatprep.subr.mxu0 0.0
    %714 = vmatpush2.msra.mxu0 0.0
    %715 = vmatprep.subr.mxu0 0.0
    %716 = vmatpush2.msra.mxu0 0.0
    %717 = vmatprep.subr.mxu0 0.0
    %718 = vmatpush2.msra.mxu0 0.0
    %719 = vmatprep.subr.mxu0 0.0
    %720 = vmatpush2.msra.mxu0 0.0
    %721 = vmatprep.subr.mxu0 0.0
    %722 = vmatpush2.msra.mxu0 0.0
    %723 = vmatprep.subr.mxu0 0.0
    %724 = vmatpush2.msra.mxu0 0.0
    %725 = vmatprep.subr.mxu0 0.0
    %726 = vmatpush2.msra.mxu0 0.0
    %727 = vmatprep.subr.mxu0 0.0
    %728 = vmatpush2.msra.mxu0 0.0
    %729 = vmatprep.subr.mxu0 0.0
    %730 = vmatpush2.msra.mxu0 0.0
    %731 = vmatprep.subr.mxu0 0.0
    %732 = vmatpush2.msra.mxu0 0.0
    %733 = vmatprep.subr.mxu0 0.0
    %734 = vmatpush2.msra.mxu0 0.0
    %735 = vmatprep.subr.mxu0 0.0
    %736 = vmatpush2.msra.mxu0 0.0
    %737 = vmatprep.subr.mxu0 0.0
    %738 = vmatpush2.msra.mxu0 0.0
    %739 = vmatprep.subr.mxu0 0.0
    %740 = vmatpush2.msra.mxu0 0.0
    %741 = vmatprep.subr.mxu0 0.0
    %742 = vmatpush2.msra.mxu0 0.0
    %743 = vmatprep.subr.mxu0 0.0
    %744 = vmatpush2.msra.mxu0 0.0
    %745 = vmatprep.mubr.f32.mxu0 0.0
    %746 = vmatmul.mubr.f32.gmra.mxu0 %v679
    %v747 = vpop.f32.mrf.mxu0
    %v748 = vadd.f32 0.0, %v747
    %v749 = vpop.f32.mrf.mxu0
    %v750 = vadd.f32 0.0, %v749
    %751 = vdwg.mxu0
    %752 = vmatprep.subr.mxu0 %v305
    %753 = vmatpush1.msra.mxu0 %v304
    %754 = vmatprep.subr.mxu0 %v301
    %755 = vmatpush1.msra.mxu0 %v300
    %756 = vmatprep.subr.mxu0 %v297
    %757 = vmatpush1.msra.mxu0 %v296
    %758 = vmatprep.subr.mxu0 %v293
    %759 = vmatpush1.msra.mxu0 %v292
    %760 = vmatprep.subr.mxu0 %v289
    %761 = vmatpush1.msra.mxu0 %v288
    %762 = vmatprep.subr.mxu0 %v285
    %763 = vmatpush1.msra.mxu0 %v284
    %764 = vmatprep.subr.mxu0 %v281
    %765 = vmatpush1.msra.mxu0 %v280
    %766 = vmatprep.subr.mxu0 %v277
    %767 = vmatpush1.msra.mxu0 %v276
    %768 = vmatprep.subr.mxu0 %v273
    %769 = vmatpush1.msra.mxu0 %v272
    %770 = vmatprep.subr.mxu0 %v269
    %771 = vmatpush1.msra.mxu0 %v268
    %772 = vmatprep.subr.mxu0 %v265
    %773 = vmatpush1.msra.mxu0 %v264
    %774 = vmatprep.subr.mxu0 %v261
    %775 = vmatpush1.msra.mxu0 %v260
    %776 = vmatprep.subr.mxu0 %v257
    %777 = vmatpush1.msra.mxu0 %v256
    %778 = vmatprep.subr.mxu0 %v253
    %779 = vmatpush1.msra.mxu0 %v252
    %780 = vmatprep.subr.mxu0 %v249
    %781 = vmatpush1.msra.mxu0 %v248
    %782 = vmatprep.subr.mxu0 %v245
    %783 = vmatpush1.msra.mxu0 %v244
    %784 = vmatprep.subr.mxu0 0.0
    %785 = vmatpush2.msra.mxu0 0.0
    %786 = vmatprep.subr.mxu0 0.0
    %787 = vmatpush2.msra.mxu0 0.0
    %788 = vmatprep.subr.mxu0 0.0
    %789 = vmatpush2.msra.mxu0 0.0
    %790 = vmatprep.subr.mxu0 0.0
    %791 = vmatpush2.msra.mxu0 0.0
    %792 = vmatprep.subr.mxu0 0.0
    %793 = vmatpush2.msra.mxu0 0.0
    %794 = vmatprep.subr.mxu0 0.0
    %795 = vmatpush2.msra.mxu0 0.0
    %796 = vmatprep.subr.mxu0 0.0
    %797 = vmatpush2.msra.mxu0 0.0
    %798 = vmatprep.subr.mxu0 0.0
    %799 = vmatpush2.msra.mxu0 0.0
    %800 = vmatprep.subr.mxu0 0.0
    %801 = vmatpush2.msra.mxu0 0.0
    %802 = vmatprep.subr.mxu0 0.0
    %803 = vmatpush2.msra.mxu0 0.0
    %804 = vmatprep.subr.mxu0 0.0
    %805 = vmatpush2.msra.mxu0 0.0
    %806 = vmatprep.subr.mxu0 0.0
    %807 = vmatpush2.msra.mxu0 0.0
    %808 = vmatprep.subr.mxu0 0.0
    %809 = vmatpush2.msra.mxu0 0.0
    %810 = vmatprep.subr.mxu0 0.0
    %811 = vmatpush2.msra.mxu0 0.0
    %812 = vmatprep.subr.mxu0 0.0
    %813 = vmatpush2.msra.mxu0 0.0
    %814 = vmatprep.subr.mxu0 0.0
    %815 = vmatpush2.msra.mxu0 0.0
    %816 = vmatprep.mubr.f32.mxu0 0.0
    %817 = vmatmul.mubr.f32.gmra.mxu0 %v679
    %v818 = vpop.f32.mrf.mxu0
    %v819 = vadd.f32 0.0, %v818
    %v820 = vpop.f32.mrf.mxu0
    %v821 = vadd.f32 0.0, %v820
    %822 = vdwg.mxu0
    %v827 = vrot.slane %v748, 4
    %v828 = vrot.slane %v750, 4
    %v829 = vrot.slane %v819, 4
    %v830 = vrot.slane %v821, 4
    %v835 = vadd.f32 %v674, %v827
    %v836 = vadd.f32 %v675, %v828
    %v837 = vadd.f32 %v676, %v829
    %v838 = vadd.f32 %v677, %v830
    %v839 = vxor.u32 %v670, 2147483648
    %v840 = vmul.f32 %v839, 1.442695
    %v841 = vpow.pop %v840
    %v842 = vadd.f32 %v841, 1.0
    %v843 = vrcp.pop %v842
    %v844 = vmul.f32 1.0, %v843
    %v845 = vxor.u32 %v671, 2147483648
    %v846 = vmul.f32 %v845, 1.442695
    %v847 = vpow.pop %v846
    %v848 = vadd.f32 %v847, 1.0
    %v849 = vrcp.pop %v848
    %v850 = vmul.f32 1.0, %v849
    %v851 = vtanh.pop %v672
    %v852 = vxor.u32 %v673, 2147483648
    %v853 = vmul.f32 %v852, 1.442695
    %v854 = vpow.pop %v853
    %v855 = vadd.f32 %v854, 1.0
    %v856 = vrcp.pop %v855
    %v857 = vmul.f32 1.0, %v856
    %v859 = vrot.slane %v485, 6
    %v861 = vmul.f32 %v850, %v859
    %v862 = vmul.f32 %v844, %v851
    %v863 = vadd.f32 %v861, %v862
    %v864 = vtanh.pop %v863
    %v865 = vmul.f32 %v857, %v864
    %v866 = vxor.u32 %v835, 2147483648
    %v867 = vmul.f32 %v866, 1.442695
    %v868 = vpow.pop %v867
    %v869 = vadd.f32 %v868, 1.0
    %v870 = vrcp.pop %v869
    %v871 = vmul.f32 1.0, %v870
    %v872 = vxor.u32 %v836, 2147483648
    %v873 = vmul.f32 %v872, 1.442695
    %v874 = vpow.pop %v873
    %v875 = vadd.f32 %v874, 1.0
    %v876 = vrcp.pop %v875
    %v877 = vmul.f32 1.0, %v876
    %v878 = vtanh.pop %v837
    %v879 = vxor.u32 %v838, 2147483648
    %v880 = vmul.f32 %v879, 1.442695
    %v881 = vpow.pop %v880
    %v882 = vadd.f32 %v881, 1.0
    %v883 = vrcp.pop %v882
    %v884 = vmul.f32 1.0, %v883
    %v886 = vrot.slane %v509, 2
    %v888 = vmul.f32 %v877, %v886
    %v889 = vmul.f32 %v871, %v878
    %v890 = vadd.f32 %v888, %v889
    %v891 = vtanh.pop %v890
    %v892 = vmul.f32 %v884, %v891
    %v893 = vld [vmem:[%s0] sm:$0x30]
    %v894 = vld [vmem:[%s0 + $0x8] sm:$0x30]
    %v895 = vld [vmem:[%s0 + $0x10] sm:$0x30]
    %v896 = vld [vmem:[%s0 + $0x18] sm:$0x30]
    %v898 = vrot.slane %v865, 2
    %900 = vmatprep.subr.mxu0 %v89
    %901 = vmatpush1.msra.mxu0 %v88
    %902 = vmatprep.subr.mxu0 %v85
    %903 = vmatpush1.msra.mxu0 %v84
    %904 = vmatprep.subr.mxu0 %v81
    %905 = vmatpush1.msra.mxu0 %v80
    %906 = vmatprep.subr.mxu0 %v77
    %907 = vmatpush1.msra.mxu0 %v76
    %908 = vmatprep.subr.mxu0 %v73
    %909 = vmatpush1.msra.mxu0 %v72
    %910 = vmatprep.subr.mxu0 %v69
    %911 = vmatpush1.msra.mxu0 %v68
    %912 = vmatprep.subr.mxu0 %v65
    %913 = vmatpush1.msra.mxu0 %v64
    %914 = vmatprep.subr.mxu0 %v61
    %915 = vmatpush1.msra.mxu0 %v60
    %916 = vmatprep.subr.mxu0 %v57
    %917 = vmatpush1.msra.mxu0 %v56
    %918 = vmatprep.subr.mxu0 %v53
    %919 = vmatpush1.msra.mxu0 %v52
    %920 = vmatprep.subr.mxu0 %v49
    %921 = vmatpush1.msra.mxu0 %v48
    %922 = vmatprep.subr.mxu0 %v45
    %923 = vmatpush1.msra.mxu0 %v44
    %924 = vmatprep.subr.mxu0 %v41
    %925 = vmatpush1.msra.mxu0 %v40
    %926 = vmatprep.subr.mxu0 %v37
    %927 = vmatpush1.msra.mxu0 %v36
    %928 = vmatprep.subr.mxu0 %v33
    %929 = vmatpush1.msra.mxu0 %v32
    %930 = vmatprep.subr.mxu0 %v29
    %931 = vmatpush1.msra.mxu0 %v28
    %932 = vmatprep.subr.mxu0 0.0
    %933 = vmatpush2.msra.mxu0 0.0
    %934 = vmatprep.subr.mxu0 0.0
    %935 = vmatpush2.msra.mxu0 0.0
    %936 = vmatprep.subr.mxu0 0.0
    %937 = vmatpush2.msra.mxu0 0.0
    %938 = vmatprep.subr.mxu0 0.0
    %939 = vmatpush2.msra.mxu0 0.0
    %940 = vmatprep.subr.mxu0 0.0
    %941 = vmatpush2.msra.mxu0 0.0
    %942 = vmatprep.subr.mxu0 0.0
    %943 = vmatpush2.msra.mxu0 0.0
    %944 = vmatprep.subr.mxu0 0.0
    %945 = vmatpush2.msra.mxu0 0.0
    %946 = vmatprep.subr.mxu0 0.0
    %947 = vmatpush2.msra.mxu0 0.0
    %948 = vmatprep.subr.mxu0 0.0
    %949 = vmatpush2.msra.mxu0 0.0
    %950 = vmatprep.subr.mxu0 0.0
    %951 = vmatpush2.msra.mxu0 0.0
    %952 = vmatprep.subr.mxu0 0.0
    %953 = vmatpush2.msra.mxu0 0.0
    %954 = vmatprep.subr.mxu0 0.0
    %955 = vmatpush2.msra.mxu0 0.0
    %956 = vmatprep.subr.mxu0 0.0
    %957 = vmatpush2.msra.mxu0 0.0
    %958 = vmatprep.subr.mxu0 0.0
    %959 = vmatpush2.msra.mxu0 0.0
    %960 = vmatprep.subr.mxu0 0.0
    %961 = vmatpush2.msra.mxu0 0.0
    %962 = vmatprep.subr.mxu0 0.0
    %963 = vmatpush2.msra.mxu0 0.0
    %964 = vmatprep.mubr.f32.mxu0 0.0
    %965 = vmatmul.mubr.f32.gmra.mxu0 %v898
    %v966 = vpop.f32.mrf.mxu0
    %v967 = vadd.f32 0.0, %v966
    %v968 = vpop.f32.mrf.mxu0
    %v969 = vadd.f32 0.0, %v968
    %970 = vdwg.mxu0
    %971 = vmatprep.subr.mxu0 %v91
    %972 = vmatpush1.msra.mxu0 %v90
    %973 = vmatprep.subr.mxu0 %v87
    %974 = vmatpush1.msra.mxu0 %v86
    %975 = vmatprep.subr.mxu0 %v83
    %976 = vmatpush1.msra.mxu0 %v82
    %977 = vmatprep.subr.mxu0 %v79
    %978 = vmatpush1.msra.mxu0 %v78
    %979 = vmatprep.subr.mxu0 %v75
    %980 = vmatpush1.msra.mxu0 %v74
    %981 = vmatprep.subr.mxu0 %v71
    %982 = vmatpush1.msra.mxu0 %v70
    %983 = vmatprep.subr.mxu0 %v67
    %984 = vmatpush1.msra.mxu0 %v66
    %985 = vmatprep.subr.mxu0 %v63
    %986 = vmatpush1.msra.mxu0 %v62
    %987 = vmatprep.subr.mxu0 %v59
    %988 = vmatpush1.msra.mxu0 %v58
    %989 = vmatprep.subr.mxu0 %v55
    %990 = vmatpush1.msra.mxu0 %v54
    %991 = vmatprep.subr.mxu0 %v51
    %992 = vmatpush1.msra.mxu0 %v50
    %993 = vmatprep.subr.mxu0 %v47
    %994 = vmatpush1.msra.mxu0 %v46
    %995 = vmatprep.subr.mxu0 %v43
    %996 = vmatpush1.msra.mxu0 %v42
    %997 = vmatprep.subr.mxu0 %v39
    %998 = vmatpush1.msra.mxu0 %v38
    %999 = vmatprep.subr.mxu0 %v35
    %1000 = vmatpush1.msra.mxu0 %v34
    %1001 = vmatprep.subr.mxu0 %v31
    %1002 = vmatpush1.msra.mxu0 %v30
    %1003 = vmatprep.subr.mxu0 0.0
    %1004 = vmatpush2.msra.mxu0 0.0
    %1005 = vmatprep.subr.mxu0 0.0
    %1006 = vmatpush2.msra.mxu0 0.0
    %1007 = vmatprep.subr.mxu0 0.0
    %1008 = vmatpush2.msra.mxu0 0.0
    %1009 = vmatprep.subr.mxu0 0.0
    %1010 = vmatpush2.msra.mxu0 0.0
    %1011 = vmatprep.subr.mxu0 0.0
    %1012 = vmatpush2.msra.mxu0 0.0
    %1013 = vmatprep.subr.mxu0 0.0
    %1014 = vmatpush2.msra.mxu0 0.0
    %1015 = vmatprep.subr.mxu0 0.0
    %1016 = vmatpush2.msra.mxu0 0.0
    %1017 = vmatprep.subr.mxu0 0.0
    %1018 = vmatpush2.msra.mxu0 0.0
    %1019 = vmatprep.subr.mxu0 0.0
    %1020 = vmatpush2.msra.mxu0 0.0
    %1021 = vmatprep.subr.mxu0 0.0
    %1022 = vmatpush2.msra.mxu0 0.0
    %1023 = vmatprep.subr.mxu0 0.0
    %1024 = vmatpush2.msra.mxu0 0.0
    %1025 = vmatprep.subr.mxu0 0.0
    %1026 = vmatpush2.msra.mxu0 0.0
    %1027 = vmatprep.subr.mxu0 0.0
    %1028 = vmatpush2.msra.mxu0 0.0
    %1029 = vmatprep.subr.mxu0 0.0
    %1030 = vmatpush2.msra.mxu0 0.0
    %1031 = vmatprep.subr.mxu0 0.0
    %1032 = vmatpush2.msra.mxu0 0.0
    %1033 = vmatprep.subr.mxu0 0.0
    %1034 = vmatpush2.msra.mxu0 0.0
    %1035 = vmatprep.mubr.f32.mxu0 0.0
    %1036 = vmatmul.mubr.f32.gmra.mxu0 %v898
    %v1037 = vpop.f32.mrf.mxu0
    %v1038 = vadd.f32 0.0, %v1037
    %v1039 = vpop.f32.mrf.mxu0
    %v1040 = vadd.f32 0.0, %v1039
    %1041 = vdwg.mxu0
    %v1046 = vrot.slane %v967, 4
    %v1047 = vrot.slane %v969, 4
    %v1048 = vrot.slane %v1038, 4
    %v1049 = vrot.slane %v1040, 4
    %v1054 = vadd.f32 %v893, %v1046
    %v1055 = vadd.f32 %v894, %v1047
    %v1056 = vadd.f32 %v895, %v1048
    %v1057 = vadd.f32 %v896, %v1049
    %v1058 = vld [vmem:[%s1 + $0x20] sm:$0xc]
    %v1059 = vld [vmem:[%s1 + $0x28] sm:$0xc]
    %v1060 = vld [vmem:[%s1 + $0x30] sm:$0xc]
    %v1061 = vld [vmem:[%s1 + $0x38] sm:$0xc]
    %v1063 = vrot.slane %v892, 4
    %1065 = vmatprep.subr.mxu0 %v303
    %1066 = vmatpush1.msra.mxu0 %v302
    %1067 = vmatprep.subr.mxu0 %v299
    %1068 = vmatpush1.msra.mxu0 %v298
    %1069 = vmatprep.subr.mxu0 %v295
    %1070 = vmatpush1.msra.mxu0 %v294
    %1071 = vmatprep.subr.mxu0 %v291
    %1072 = vmatpush1.msra.mxu0 %v290
    %1073 = vmatprep.subr.mxu0 %v287
    %1074 = vmatpush1.msra.mxu0 %v286
    %1075 = vmatprep.subr.mxu0 %v283
    %1076 = vmatpush1.msra.mxu0 %v282
    %1077 = vmatprep.subr.mxu0 %v279
    %1078 = vmatpush1.msra.mxu0 %v278
    %1079 = vmatprep.subr.mxu0 %v275
    %1080 = vmatpush1.msra.mxu0 %v274
    %1081 = vmatprep.subr.mxu0 %v271
    %1082 = vmatpush1.msra.mxu0 %v270
    %1083 = vmatprep.subr.mxu0 %v267
    %1084 = vmatpush1.msra.mxu0 %v266
    %1085 = vmatprep.subr.mxu0 %v263
    %1086 = vmatpush1.msra.mxu0 %v262
    %1087 = vmatprep.subr.mxu0 %v259
    %1088 = vmatpush1.msra.mxu0 %v258
    %1089 = vmatprep.subr.mxu0 %v255
    %1090 = vmatpush1.msra.mxu0 %v254
    %1091 = vmatprep.subr.mxu0 %v251
    %1092 = vmatpush1.msra.mxu0 %v250
    %1093 = vmatprep.subr.mxu0 %v247
    %1094 = vmatpush1.msra.mxu0 %v246
    %1095 = vmatprep.subr.mxu0 %v243
    %1096 = vmatpush1.msra.mxu0 %v242
    %1097 = vmatprep.subr.mxu0 0.0
    %1098 = vmatpush2.msra.mxu0 0.0
    %1099 = vmatprep.subr.mxu0 0.0
    %1100 = vmatpush2.msra.mxu0 0.0
    %1101 = vmatprep.subr.mxu0 0.0
    %1102 = vmatpush2.msra.mxu0 0.0
    %1103 = vmatprep.subr.mxu0 0.0
    %1104 = vmatpush2.msra.mxu0 0.0
    %1105 = vmatprep.subr.mxu0 0.0
    %1106 = vmatpush2.msra.mxu0 0.0
    %1107 = vmatprep.subr.mxu0 0.0
    %1108 = vmatpush2.msra.mxu0 0.0
    %1109 = vmatprep.subr.mxu0 0.0
    %1110 = vmatpush2.msra.mxu0 0.0
    %1111 = vmatprep.subr.mxu0 0.0
    %1112 = vmatpush2.msra.mxu0 0.0
    %1113 = vmatprep.subr.mxu0 0.0
    %1114 = vmatpush2.msra.mxu0 0.0
    %1115 = vmatprep.subr.mxu0 0.0
    %1116 = vmatpush2.msra.mxu0 0.0
    %1117 = vmatprep.subr.mxu0 0.0
    %1118 = vmatpush2.msra.mxu0 0.0
    %1119 = vmatprep.subr.mxu0 0.0
    %1120 = vmatpush2.msra.mxu0 0.0
    %1121 = vmatprep.subr.mxu0 0.0
    %1122 = vmatpush2.msra.mxu0 0.0
    %1123 = vmatprep.subr.mxu0 0.0
    %1124 = vmatpush2.msra.mxu0 0.0
    %1125 = vmatprep.subr.mxu0 0.0
    %1126 = vmatpush2.msra.mxu0 0.0
    %1127 = vmatprep.subr.mxu0 0.0
    %1128 = vmatpush2.msra.mxu0 0.0
    %1129 = vmatprep.mubr.f32.mxu0 0.0
    %1130 = vmatmul.mubr.f32.gmra.mxu0 %v1063
    %v1131 = vpop.f32.mrf.mxu0
    %v1132 = vadd.f32 0.0, %v1131
    %v1133 = vpop.f32.mrf.mxu0
    %v1134 = vadd.f32 0.0, %v1133
    %1135 = vdwg.mxu0
    %1136 = vmatprep.subr.mxu0 %v305
    %1137 = vmatpush1.msra.mxu0 %v304
    %1138 = vmatprep.subr.mxu0 %v301
    %1139 = vmatpush1.msra.mxu0 %v300
    %1140 = vmatprep.subr.mxu0 %v297
    %1141 = vmatpush1.msra.mxu0 %v296
    %1142 = vmatprep.subr.mxu0 %v293
    %1143 = vmatpush1.msra.mxu0 %v292
    %1144 = vmatprep.subr.mxu0 %v289
    %1145 = vmatpush1.msra.mxu0 %v288
    %1146 = vmatprep.subr.mxu0 %v285
    %1147 = vmatpush1.msra.mxu0 %v284
    %1148 = vmatprep.subr.mxu0 %v281
    %1149 = vmatpush1.msra.mxu0 %v280
    %1150 = vmatprep.subr.mxu0 %v277
    %1151 = vmatpush1.msra.mxu0 %v276
    %1152 = vmatprep.subr.mxu0 %v273
    %1153 = vmatpush1.msra.mxu0 %v272
    %1154 = vmatprep.subr.mxu0 %v269
    %1155 = vmatpush1.msra.mxu0 %v268
    %1156 = vmatprep.subr.mxu0 %v265
    %1157 = vmatpush1.msra.mxu0 %v264
    %1158 = vmatprep.subr.mxu0 %v261
    %1159 = vmatpush1.msra.mxu0 %v260
    %1160 = vmatprep.subr.mxu0 %v257
    %1161 = vmatpush1.msra.mxu0 %v256
    %1162 = vmatprep.subr.mxu0 %v253
    %1163 = vmatpush1.msra.mxu0 %v252
    %1164 = vmatprep.subr.mxu0 %v249
    %1165 = vmatpush1.msra.mxu0 %v248
    %1166 = vmatprep.subr.mxu0 %v245
    %1167 = vmatpush1.msra.mxu0 %v244
    %1168 = vmatprep.subr.mxu0 0.0
    %1169 = vmatpush2.msra.mxu0 0.0
    %1170 = vmatprep.subr.mxu0 0.0
    %1171 = vmatpush2.msra.mxu0 0.0
    %1172 = vmatprep.subr.mxu0 0.0
    %1173 = vmatpush2.msra.mxu0 0.0
    %1174 = vmatprep.subr.mxu0 0.0
    %1175 = vmatpush2.msra.mxu0 0.0
    %1176 = vmatprep.subr.mxu0 0.0
    %1177 = vmatpush2.msra.mxu0 0.0
    %1178 = vmatprep.subr.mxu0 0.0
    %1179 = vmatpush2.msra.mxu0 0.0
    %1180 = vmatprep.subr.mxu0 0.0
    %1181 = vmatpush2.msra.mxu0 0.0
    %1182 = vmatprep.subr.mxu0 0.0
    %1183 = vmatpush2.msra.mxu0 0.0
    %1184 = vmatprep.subr.mxu0 0.0
    %1185 = vmatpush2.msra.mxu0 0.0
    %1186 = vmatprep.subr.mxu0 0.0
    %1187 = vmatpush2.msra.mxu0 0.0
    %1188 = vmatprep.subr.mxu0 0.0
    %1189 = vmatpush2.msra.mxu0 0.0
    %1190 = vmatprep.subr.mxu0 0.0
    %1191 = vmatpush2.msra.mxu0 0.0
    %1192 = vmatprep.subr.mxu0 0.0
    %1193 = vmatpush2.msra.mxu0 0.0
    %1194 = vmatprep.subr.mxu0 0.0
    %1195 = vmatpush2.msra.mxu0 0.0
    %1196 = vmatprep.subr.mxu0 0.0
    %1197 = vmatpush2.msra.mxu0 0.0
    %1198 = vmatprep.subr.mxu0 0.0
    %1199 = vmatpush2.msra.mxu0 0.0
    %1200 = vmatprep.mubr.f32.mxu0 0.0
    %1201 = vmatmul.mubr.f32.gmra.mxu0 %v1063
    %v1202 = vpop.f32.mrf.mxu0
    %v1203 = vadd.f32 0.0, %v1202
    %v1204 = vpop.f32.mrf.mxu0
    %v1205 = vadd.f32 0.0, %v1204
    %1206 = vdwg.mxu0
    %v1211 = vrot.slane %v1132, 6
    %v1212 = vrot.slane %v1134, 6
    %v1213 = vrot.slane %v1203, 6
    %v1214 = vrot.slane %v1205, 6
    %v1219 = vadd.f32 %v1058, %v1211
    %v1220 = vadd.f32 %v1059, %v1212
    %v1221 = vadd.f32 %v1060, %v1213
    %v1222 = vadd.f32 %v1061, %v1214
    %v1223 = vxor.u32 %v1054, 2147483648
    %v1224 = vmul.f32 %v1223, 1.442695
    %v1225 = vpow.pop %v1224
    %v1226 = vadd.f32 %v1225, 1.0
    %v1227 = vrcp.pop %v1226
    %v1228 = vmul.f32 1.0, %v1227
    %v1229 = vxor.u32 %v1055, 2147483648
    %v1230 = vmul.f32 %v1229, 1.442695
    %v1231 = vpow.pop %v1230
    %v1232 = vadd.f32 %v1231, 1.0
    %v1233 = vrcp.pop %v1232
    %v1234 = vmul.f32 1.0, %v1233
    %v1235 = vtanh.pop %v1056
    %v1236 = vxor.u32 %v1057, 2147483648
    %v1237 = vmul.f32 %v1236, 1.442695
    %v1238 = vpow.pop %v1237
    %v1239 = vadd.f32 %v1238, 1.0
    %v1240 = vrcp.pop %v1239
    %v1241 = vmul.f32 1.0, %v1240
    %v1243 = vrot.slane %v863, 6
    %v1245 = vmul.f32 %v1234, %v1243
    %v1246 = vmul.f32 %v1228, %v1235
    %v1247 = vadd.f32 %v1245, %v1246
    %v1248 = vtanh.pop %v1247
    %v1249 = vmul.f32 %v1241, %v1248
    %v1250 = vxor.u32 %v1219, 2147483648
    %v1251 = vmul.f32 %v1250, 1.442695
    %v1252 = vpow.pop %v1251
    %v1253 = vadd.f32 %v1252, 1.0
    %v1254 = vrcp.pop %v1253
    %v1255 = vmul.f32 1.0, %v1254
    %v1256 = vxor.u32 %v1220, 2147483648
    %v1257 = vmul.f32 %v1256, 1.442695
    %v1258 = vpow.pop %v1257
    %v1259 = vadd.f32 %v1258, 1.0
    %v1260 = vrcp.pop %v1259
    %v1261 = vmul.f32 1.0, %v1260
    %v1262 = vtanh.pop %v1221
    %v1263 = vxor.u32 %v1222, 2147483648
    %v1264 = vmul.f32 %v1263, 1.442695
    %v1265 = vpow.pop %v1264
    %v1266 = vadd.f32 %v1265, 1.0
    %v1267 = vrcp.pop %v1266
    %v1268 = vmul.f32 1.0, %v1267
    %v1270 = vrot.slane %v890, 2
    %v1272 = vmul.f32 %v1261, %v1270
    %v1273 = vmul.f32 %v1255, %v1262
    %v1274 = vadd.f32 %v1272, %v1273
    %v1275 = vtanh.pop %v1274
    %v1276 = vmul.f32 %v1268, %v1275
    %v1277 = vld [vmem:[%s0] sm:$0xc0]
    %v1278 = vld [vmem:[%s0 + $0x8] sm:$0xc0]
    %v1279 = vld [vmem:[%s0 + $0x10] sm:$0xc0]
    %v1280 = vld [vmem:[%s0 + $0x18] sm:$0xc0]
    %v1282 = vrot.slane %v1249, 4
    %1284 = vmatprep.subr.mxu0 %v89
    %1285 = vmatpush1.msra.mxu0 %v88
    %1286 = vmatprep.subr.mxu0 %v85
    %1287 = vmatpush1.msra.mxu0 %v84
    %1288 = vmatprep.subr.mxu0 %v81
    %1289 = vmatpush1.msra.mxu0 %v80
    %1290 = vmatprep.subr.mxu0 %v77
    %1291 = vmatpush1.msra.mxu0 %v76
    %1292 = vmatprep.subr.mxu0 %v73
    %1293 = vmatpush1.msra.mxu0 %v72
    %1294 = vmatprep.subr.mxu0 %v69
    %1295 = vmatpush1.msra.mxu0 %v68
    %1296 = vmatprep.subr.mxu0 %v65
    %1297 = vmatpush1.msra.mxu0 %v64
    %1298 = vmatprep.subr.mxu0 %v61
    %1299 = vmatpush1.msra.mxu0 %v60
    %1300 = vmatprep.subr.mxu0 %v57
    %1301 = vmatpush1.msra.mxu0 %v56
    %1302 = vmatprep.subr.mxu0 %v53
    %1303 = vmatpush1.msra.mxu0 %v52
    %1304 = vmatprep.subr.mxu0 %v49
    %1305 = vmatpush1.msra.mxu0 %v48
    %1306 = vmatprep.subr.mxu0 %v45
    %1307 = vmatpush1.msra.mxu0 %v44
    %1308 = vmatprep.subr.mxu0 %v41
    %1309 = vmatpush1.msra.mxu0 %v40
    %1310 = vmatprep.subr.mxu0 %v37
    %1311 = vmatpush1.msra.mxu0 %v36
    %1312 = vmatprep.subr.mxu0 %v33
    %1313 = vmatpush1.msra.mxu0 %v32
    %1314 = vmatprep.subr.mxu0 %v29
    %1315 = vmatpush1.msra.mxu0 %v28
    %1316 = vmatprep.subr.mxu0 0.0
    %1317 = vmatpush2.msra.mxu0 0.0
    %1318 = vmatprep.subr.mxu0 0.0
    %1319 = vmatpush2.msra.mxu0 0.0
    %1320 = vmatprep.subr.mxu0 0.0
    %1321 = vmatpush2.msra.mxu0 0.0
    %1322 = vmatprep.subr.mxu0 0.0
    %1323 = vmatpush2.msra.mxu0 0.0
    %1324 = vmatprep.subr.mxu0 0.0
    %1325 = vmatpush2.msra.mxu0 0.0
    %1326 = vmatprep.subr.mxu0 0.0
    %1327 = vmatpush2.msra.mxu0 0.0
    %1328 = vmatprep.subr.mxu0 0.0
    %1329 = vmatpush2.msra.mxu0 0.0
    %1330 = vmatprep.subr.mxu0 0.0
    %1331 = vmatpush2.msra.mxu0 0.0
    %1332 = vmatprep.subr.mxu0 0.0
    %1333 = vmatpush2.msra.mxu0 0.0
    %1334 = vmatprep.subr.mxu0 0.0
    %1335 = vmatpush2.msra.mxu0 0.0
    %1336 = vmatprep.subr.mxu0 0.0
    %1337 = vmatpush2.msra.mxu0 0.0
    %1338 = vmatprep.subr.mxu0 0.0
    %1339 = vmatpush2.msra.mxu0 0.0
    %1340 = vmatprep.subr.mxu0 0.0
    %1341 = vmatpush2.msra.mxu0 0.0
    %1342 = vmatprep.subr.mxu0 0.0
    %1343 = vmatpush2.msra.mxu0 0.0
    %1344 = vmatprep.subr.mxu0 0.0
    %1345 = vmatpush2.msra.mxu0 0.0
    %1346 = vmatprep.subr.mxu0 0.0
    %1347 = vmatpush2.msra.mxu0 0.0
    %1348 = vmatprep.mubr.f32.mxu0 0.0
    %1349 = vmatmul.mubr.f32.gmra.mxu0 %v1282
    %v1350 = vpop.f32.mrf.mxu0
    %v1351 = vadd.f32 0.0, %v1350
    %v1352 = vpop.f32.mrf.mxu0
    %v1353 = vadd.f32 0.0, %v1352
    %1354 = vdwg.mxu0
    %1355 = vmatprep.subr.mxu0 %v91
    %1356 = vmatpush1.msra.mxu0 %v90
    %1357 = vmatprep.subr.mxu0 %v87
    %1358 = vmatpush1.msra.mxu0 %v86
    %1359 = vmatprep.subr.mxu0 %v83
    %1360 = vmatpush1.msra.mxu0 %v82
    %1361 = vmatprep.subr.mxu0 %v79
    %1362 = vmatpush1.msra.mxu0 %v78
    %1363 = vmatprep.subr.mxu0 %v75
    %1364 = vmatpush1.msra.mxu0 %v74
    %1365 = vmatprep.subr.mxu0 %v71
    %1366 = vmatpush1.msra.mxu0 %v70
    %1367 = vmatprep.subr.mxu0 %v67
    %1368 = vmatpush1.msra.mxu0 %v66
    %1369 = vmatprep.subr.mxu0 %v63
    %1370 = vmatpush1.msra.mxu0 %v62
    %1371 = vmatprep.subr.mxu0 %v59
    %1372 = vmatpush1.msra.mxu0 %v58
    %1373 = vmatprep.subr.mxu0 %v55
    %1374 = vmatpush1.msra.mxu0 %v54
    %1375 = vmatprep.subr.mxu0 %v51
    %1376 = vmatpush1.msra.mxu0 %v50
    %1377 = vmatprep.subr.mxu0 %v47
    %1378 = vmatpush1.msra.mxu0 %v46
    %1379 = vmatprep.subr.mxu0 %v43
    %1380 = vmatpush1.msra.mxu0 %v42
    %1381 = vmatprep.subr.mxu0 %v39
    %1382 = vmatpush1.msra.mxu0 %v38
    %1383 = vmatprep.subr.mxu0 %v35
    %1384 = vmatpush1.msra.mxu0 %v34
    %1385 = vmatprep.subr.mxu0 %v31
    %1386 = vmatpush1.msra.mxu0 %v30
    %1387 = vmatprep.subr.mxu0 0.0
    %1388 = vmatpush2.msra.mxu0 0.0
    %1389 = vmatprep.subr.mxu0 0.0
    %1390 = vmatpush2.msra.mxu0 0.0
    %1391 = vmatprep.subr.mxu0 0.0
    %1392 = vmatpush2.msra.mxu0 0.0
    %1393 = vmatprep.subr.mxu0 0.0
    %1394 = vmatpush2.msra.mxu0 0.0
    %1395 = vmatprep.subr.mxu0 0.0
    %1396 = vmatpush2.msra.mxu0 0.0
    %1397 = vmatprep.subr.mxu0 0.0
    %1398 = vmatpush2.msra.mxu0 0.0
    %1399 = vmatprep.subr.mxu0 0.0
    %1400 = vmatpush2.msra.mxu0 0.0
    %1401 = vmatprep.subr.mxu0 0.0
    %1402 = vmatpush2.msra.mxu0 0.0
    %1403 = vmatprep.subr.mxu0 0.0
    %1404 = vmatpush2.msra.mxu0 0.0
    %1405 = vmatprep.subr.mxu0 0.0
    %1406 = vmatpush2.msra.mxu0 0.0
    %1407 = vmatprep.subr.mxu0 0.0
    %1408 = vmatpush2.msra.mxu0 0.0
    %1409 = vmatprep.subr.mxu0 0.0
    %1410 = vmatpush2.msra.mxu0 0.0
    %1411 = vmatprep.subr.mxu0 0.0
    %1412 = vmatpush2.msra.mxu0 0.0
    %1413 = vmatprep.subr.mxu0 0.0
    %1414 = vmatpush2.msra.mxu0 0.0
    %1415 = vmatprep.subr.mxu0 0.0
    %1416 = vmatpush2.msra.mxu0 0.0
    %1417 = vmatprep.subr.mxu0 0.0
    %1418 = vmatpush2.msra.mxu0 0.0
    %1419 = vmatprep.mubr.f32.mxu0 0.0
    %1420 = vmatmul.mubr.f32.gmra.mxu0 %v1282
    %v1421 = vpop.f32.mrf.mxu0
    %v1422 = vadd.f32 0.0, %v1421
    %v1423 = vpop.f32.mrf.mxu0
    %v1424 = vadd.f32 0.0, %v1423
    %1425 = vdwg.mxu0
    %v1430 = vrot.slane %v1351, 2
    %v1431 = vrot.slane %v1353, 2
    %v1432 = vrot.slane %v1422, 2
    %v1433 = vrot.slane %v1424, 2
    %v1438 = vadd.f32 %v1277, %v1430
    %v1439 = vadd.f32 %v1278, %v1431
    %v1440 = vadd.f32 %v1279, %v1432
    %v1441 = vadd.f32 %v1280, %v1433
    %v1442 = vld [vmem:[%s1 + $0x20] sm:$0x3]
    %v1443 = vld [vmem:[%s1 + $0x28] sm:$0x3]
    %v1444 = vld [vmem:[%s1 + $0x30] sm:$0x3]
    %v1445 = vld [vmem:[%s1 + $0x38] sm:$0x3]
    %v1447 = vrot.slane %v1276, 2
    %1449 = vmatprep.subr.mxu0 %v303
    %1450 = vmatpush1.msra.mxu0 %v302
    %1451 = vmatprep.subr.mxu0 %v299
    %1452 = vmatpush1.msra.mxu0 %v298
    %1453 = vmatprep.subr.mxu0 %v295
    %1454 = vmatpush1.msra.mxu0 %v294
    %1455 = vmatprep.subr.mxu0 %v291
    %1456 = vmatpush1.msra.mxu0 %v290
    %1457 = vmatprep.subr.mxu0 %v287
    %1458 = vmatpush1.msra.mxu0 %v286
    %1459 = vmatprep.subr.mxu0 %v283
    %1460 = vmatpush1.msra.mxu0 %v282
    %1461 = vmatprep.subr.mxu0 %v279
    %1462 = vmatpush1.msra.mxu0 %v278
    %1463 = vmatprep.subr.mxu0 %v275
    %1464 = vmatpush1.msra.mxu0 %v274
    %1465 = vmatprep.subr.mxu0 %v271
    %1466 = vmatpush1.msra.mxu0 %v270
    %1467 = vmatprep.subr.mxu0 %v267
    %1468 = vmatpush1.msra.mxu0 %v266
    %1469 = vmatprep.subr.mxu0 %v263
    %1470 = vmatpush1.msra.mxu0 %v262
    %1471 = vmatprep.subr.mxu0 %v259
    %1472 = vmatpush1.msra.mxu0 %v258
    %1473 = vmatprep.subr.mxu0 %v255
    %1474 = vmatpush1.msra.mxu0 %v254
    %1475 = vmatprep.subr.mxu0 %v251
    %1476 = vmatpush1.msra.mxu0 %v250
    %1477 = vmatprep.subr.mxu0 %v247
    %1478 = vmatpush1.msra.mxu0 %v246
    %1479 = vmatprep.subr.mxu0 %v243
    %1480 = vmatpush1.msra.mxu0 %v242
    %1481 = vmatprep.subr.mxu0 0.0
    %1482 = vmatpush2.msra.mxu0 0.0
    %1483 = vmatprep.subr.mxu0 0.0
    %1484 = vmatpush2.msra.mxu0 0.0
    %1485 = vmatprep.subr.mxu0 0.0
    %1486 = vmatpush2.msra.mxu0 0.0
    %1487 = vmatprep.subr.mxu0 0.0
    %1488 = vmatpush2.msra.mxu0 0.0
    %1489 = vmatprep.subr.mxu0 0.0
    %1490 = vmatpush2.msra.mxu0 0.0
    %1491 = vmatprep.subr.mxu0 0.0
    %1492 = vmatpush2.msra.mxu0 0.0
    %1493 = vmatprep.subr.mxu0 0.0
    %1494 = vmatpush2.msra.mxu0 0.0
    %1495 = vmatprep.subr.mxu0 0.0
    %1496 = vmatpush2.msra.mxu0 0.0
    %1497 = vmatprep.subr.mxu0 0.0
    %1498 = vmatpush2.msra.mxu0 0.0
    %1499 = vmatprep.subr.mxu0 0.0
    %1500 = vmatpush2.msra.mxu0 0.0
    %1501 = vmatprep.subr.mxu0 0.0
    %1502 = vmatpush2.msra.mxu0 0.0
    %1503 = vmatprep.subr.mxu0 0.0
    %1504 = vmatpush2.msra.mxu0 0.0
    %1505 = vmatprep.subr.mxu0 0.0
    %1506 = vmatpush2.msra.mxu0 0.0
    %1507 = vmatprep.subr.mxu0 0.0
    %1508 = vmatpush2.msra.mxu0 0.0
    %1509 = vmatprep.subr.mxu0 0.0
    %1510 = vmatpush2.msra.mxu0 0.0
    %1511 = vmatprep.subr.mxu0 0.0
    %1512 = vmatpush2.msra.mxu0 0.0
    %1513 = vmatprep.mubr.f32.mxu0 0.0
    %1514 = vmatmul.mubr.f32.gmra.mxu0 %v1447
    %v1515 = vpop.f32.mrf.mxu0
    %v1516 = vadd.f32 0.0, %v1515
    %v1517 = vpop.f32.mrf.mxu0
    %v1518 = vadd.f32 0.0, %v1517
    %1519 = vdwg.mxu0
    %1520 = vmatprep.subr.mxu0 %v305
    %1521 = vmatpush1.msra.mxu0 %v304
    %1522 = vmatprep.subr.mxu0 %v301
    %1523 = vmatpush1.msra.mxu0 %v300
    %1524 = vmatprep.subr.mxu0 %v297
    %1525 = vmatpush1.msra.mxu0 %v296
    %1526 = vmatprep.subr.mxu0 %v293
    %1527 = vmatpush1.msra.mxu0 %v292
    %1528 = vmatprep.subr.mxu0 %v289
    %1529 = vmatpush1.msra.mxu0 %v288
    %1530 = vmatprep.subr.mxu0 %v285
    %1531 = vmatpush1.msra.mxu0 %v284
    %1532 = vmatprep.subr.mxu0 %v281
    %1533 = vmatpush1.msra.mxu0 %v280
    %1534 = vmatprep.subr.mxu0 %v277
    %1535 = vmatpush1.msra.mxu0 %v276
    %1536 = vmatprep.subr.mxu0 %v273
    %1537 = vmatpush1.msra.mxu0 %v272
    %1538 = vmatprep.subr.mxu0 %v269
    %1539 = vmatpush1.msra.mxu0 %v268
    %1540 = vmatprep.subr.mxu0 %v265
    %1541 = vmatpush1.msra.mxu0 %v264
    %1542 = vmatprep.subr.mxu0 %v261
    %1543 = vmatpush1.msra.mxu0 %v260
    %1544 = vmatprep.subr.mxu0 %v257
    %1545 = vmatpush1.msra.mxu0 %v256
    %1546 = vmatprep.subr.mxu0 %v253
    %1547 = vmatpush1.msra.mxu0 %v252
    %1548 = vmatprep.subr.mxu0 %v249
    %1549 = vmatpush1.msra.mxu0 %v248
    %1550 = vmatprep.subr.mxu0 %v245
    %1551 = vmatpush1.msra.mxu0 %v244
    %1552 = vmatprep.subr.mxu0 0.0
    %1553 = vmatpush2.msra.mxu0 0.0
    %1554 = vmatprep.subr.mxu0 0.0
    %1555 = vmatpush2.msra.mxu0 0.0
    %1556 = vmatprep.subr.mxu0 0.0
    %1557 = vmatpush2.msra.mxu0 0.0
    %1558 = vmatprep.subr.mxu0 0.0
    %1559 = vmatpush2.msra.mxu0 0.0
    %1560 = vmatprep.subr.mxu0 0.0
    %1561 = vmatpush2.msra.mxu0 0.0
    %1562 = vmatprep.subr.mxu0 0.0
    %1563 = vmatpush2.msra.mxu0 0.0
    %1564 = vmatprep.subr.mxu0 0.0
    %1565 = vmatpush2.msra.mxu0 0.0
    %1566 = vmatprep.subr.mxu0 0.0
    %1567 = vmatpush2.msra.mxu0 0.0
    %1568 = vmatprep.subr.mxu0 0.0
    %1569 = vmatpush2.msra.mxu0 0.0
    %1570 = vmatprep.subr.mxu0 0.0
    %1571 = vmatpush2.msra.mxu0 0.0
    %1572 = vmatprep.subr.mxu0 0.0
    %1573 = vmatpush2.msra.mxu0 0.0
    %1574 = vmatprep.subr.mxu0 0.0
    %1575 = vmatpush2.msra.mxu0 0.0
    %1576 = vmatprep.subr.mxu0 0.0
    %1577 = vmatpush2.msra.mxu0 0.0
    %1578 = vmatprep.subr.mxu0 0.0
    %1579 = vmatpush2.msra.mxu0 0.0
    %1580 = vmatprep.subr.mxu0 0.0
    %1581 = vmatpush2.msra.mxu0 0.0
    %1582 = vmatprep.subr.mxu0 0.0
    %1583 = vmatpush2.msra.mxu0 0.0
    %1584 = vmatprep.mubr.f32.mxu0 0.0
    %1585 = vmatmul.mubr.f32.gmra.mxu0 %v1447
    %v1586 = vpop.f32.mrf.mxu0
    %v1587 = vadd.f32 0.0, %v1586
    %v1588 = vpop.f32.mrf.mxu0
    %v1589 = vadd.f32 0.0, %v1588
    %1590 = vdwg.mxu0
    %v1591 = vadd.f32 %v1442, %v1516
    %v1592 = vadd.f32 %v1443, %v1518
    %v1593 = vadd.f32 %v1444, %v1587
    %v1594 = vadd.f32 %v1445, %v1589
    %v1595 = vxor.u32 %v1438, 2147483648
    %v1596 = vmul.f32 %v1595, 1.442695
    %v1597 = vpow.pop %v1596
    %v1598 = vadd.f32 %v1597, 1.0
    %v1599 = vrcp.pop %v1598
    %v1600 = vmul.f32 1.0, %v1599
    %v1601 = vxor.u32 %v1439, 2147483648
    %v1602 = vmul.f32 %v1601, 1.442695
    %v1603 = vpow.pop %v1602
    %v1604 = vadd.f32 %v1603, 1.0
    %v1605 = vrcp.pop %v1604
    %v1606 = vmul.f32 1.0, %v1605
    %v1607 = vtanh.pop %v1440
    %v1608 = vxor.u32 %v1441, 2147483648
    %v1609 = vmul.f32 %v1608, 1.442695
    %v1610 = vpow.pop %v1609
    %v1611 = vadd.f32 %v1610, 1.0
    %v1612 = vrcp.pop %v1611
    %v1613 = vmul.f32 1.0, %v1612
    %v1615 = vrot.slane %v1247, 6
    %v1617 = vmul.f32 %v1606, %v1615
    %v1618 = vmul.f32 %v1600, %v1607
    %v1619 = vadd.f32 %v1617, %v1618
    %v1620 = vtanh.pop %v1619
    %v1621 = vmul.f32 %v1613, %v1620
    %v1622 = vxor.u32 %v1591, 2147483648
    %v1623 = vmul.f32 %v1622, 1.442695
    %v1624 = vpow.pop %v1623
    %v1625 = vadd.f32 %v1624, 1.0
    %v1626 = vrcp.pop %v1625
    %v1627 = vmul.f32 1.0, %v1626
    %v1628 = vxor.u32 %v1592, 2147483648
    %v1629 = vmul.f32 %v1628, 1.442695
    %v1630 = vpow.pop %v1629
    %v1631 = vadd.f32 %v1630, 1.0
    %v1632 = vrcp.pop %v1631
    %v1633 = vmul.f32 1.0, %v1632
    %v1634 = vtanh.pop %v1593
    %v1635 = vxor.u32 %v1594, 2147483648
    %v1636 = vmul.f32 %v1635, 1.442695
    %v1637 = vpow.pop %v1636
    %v1638 = vadd.f32 %v1637, 1.0
    %v1639 = vrcp.pop %v1638
    %v1640 = vmul.f32 1.0, %v1639
    %v1642 = vrot.slane %v1274, 2
    %v1644 = vmul.f32 %v1633, %v1642
    %v1645 = vmul.f32 %v1627, %v1634
    %v1646 = vadd.f32 %v1644, %v1645
    %v1647 = vtanh.pop %v1646
    %v1648 = vmul.f32 %v1640, %v1647
    %v1649 = vld [vmem:[%s0 + $0x20] sm:$0x3]
    %v1650 = vld [vmem:[%s0 + $0x28] sm:$0x3]
    %v1651 = vld [vmem:[%s0 + $0x30] sm:$0x3]
    %v1652 = vld [vmem:[%s0 + $0x38] sm:$0x3]
    %v1654 = vrot.slane %v1621, 6
    %1656 = vmatprep.subr.mxu0 %v89
    %1657 = vmatpush1.msra.mxu0 %v88
    %1658 = vmatprep.subr.mxu0 %v85
    %1659 = vmatpush1.msra.mxu0 %v84
    %1660 = vmatprep.subr.mxu0 %v81
    %1661 = vmatpush1.msra.mxu0 %v80
    %1662 = vmatprep.subr.mxu0 %v77
    %1663 = vmatpush1.msra.mxu0 %v76
    %1664 = vmatprep.subr.mxu0 %v73
    %1665 = vmatpush1.msra.mxu0 %v72
    %1666 = vmatprep.subr.mxu0 %v69
    %1667 = vmatpush1.msra.mxu0 %v68
    %1668 = vmatprep.subr.mxu0 %v65
    %1669 = vmatpush1.msra.mxu0 %v64
    %1670 = vmatprep.subr.mxu0 %v61
    %1671 = vmatpush1.msra.mxu0 %v60
    %1672 = vmatprep.subr.mxu0 %v57
    %1673 = vmatpush1.msra.mxu0 %v56
    %1674 = vmatprep.subr.mxu0 %v53
    %1675 = vmatpush1.msra.mxu0 %v52
    %1676 = vmatprep.subr.mxu0 %v49
    %1677 = vmatpush1.msra.mxu0 %v48
    %1678 = vmatprep.subr.mxu0 %v45
    %1679 = vmatpush1.msra.mxu0 %v44
    %1680 = vmatprep.subr.mxu0 %v41
    %1681 = vmatpush1.msra.mxu0 %v40
    %1682 = vmatprep.subr.mxu0 %v37
    %1683 = vmatpush1.msra.mxu0 %v36
    %1684 = vmatprep.subr.mxu0 %v33
    %1685 = vmatpush1.msra.mxu0 %v32
    %1686 = vmatprep.subr.mxu0 %v29
    %1687 = vmatpush1.msra.mxu0 %v28
    %1688 = vmatprep.subr.mxu0 0.0
    %1689 = vmatpush2.msra.mxu0 0.0
    %1690 = vmatprep.subr.mxu0 0.0
    %1691 = vmatpush2.msra.mxu0 0.0
    %1692 = vmatprep.subr.mxu0 0.0
    %1693 = vmatpush2.msra.mxu0 0.0
    %1694 = vmatprep.subr.mxu0 0.0
    %1695 = vmatpush2.msra.mxu0 0.0
    %1696 = vmatprep.subr.mxu0 0.0
    %1697 = vmatpush2.msra.mxu0 0.0
    %1698 = vmatprep.subr.mxu0 0.0
    %1699 = vmatpush2.msra.mxu0 0.0
    %1700 = vmatprep.subr.mxu0 0.0
    %1701 = vmatpush2.msra.mxu0 0.0
    %1702 = vmatprep.subr.mxu0 0.0
    %1703 = vmatpush2.msra.mxu0 0.0
    %1704 = vmatprep.subr.mxu0 0.0
    %1705 = vmatpush2.msra.mxu0 0.0
    %1706 = vmatprep.subr.mxu0 0.0
    %1707 = vmatpush2.msra.mxu0 0.0
    %1708 = vmatprep.subr.mxu0 0.0
    %1709 = vmatpush2.msra.mxu0 0.0
    %1710 = vmatprep.subr.mxu0 0.0
    %1711 = vmatpush2.msra.mxu0 0.0
    %1712 = vmatprep.subr.mxu0 0.0
    %1713 = vmatpush2.msra.mxu0 0.0
    %1714 = vmatprep.subr.mxu0 0.0
    %1715 = vmatpush2.msra.mxu0 0.0
    %1716 = vmatprep.subr.mxu0 0.0
    %1717 = vmatpush2.msra.mxu0 0.0
    %1718 = vmatprep.subr.mxu0 0.0
    %1719 = vmatpush2.msra.mxu0 0.0
    %1720 = vmatprep.mubr.f32.mxu0 0.0
    %1721 = vmatmul.mubr.f32.gmra.mxu0 %v1654
    %v1722 = vpop.f32.mrf.mxu0
    %v1723 = vadd.f32 0.0, %v1722
    %v1724 = vpop.f32.mrf.mxu0
    %v1725 = vadd.f32 0.0, %v1724
    %1726 = vdwg.mxu0
    %1727 = vmatprep.subr.mxu0 %v91
    %1728 = vmatpush1.msra.mxu0 %v90
    %1729 = vmatprep.subr.mxu0 %v87
    %1730 = vmatpush1.msra.mxu0 %v86
    %1731 = vmatprep.subr.mxu0 %v83
    %1732 = vmatpush1.msra.mxu0 %v82
    %1733 = vmatprep.subr.mxu0 %v79
    %1734 = vmatpush1.msra.mxu0 %v78
    %1735 = vmatprep.subr.mxu0 %v75
    %1736 = vmatpush1.msra.mxu0 %v74
    %1737 = vmatprep.subr.mxu0 %v71
    %1738 = vmatpush1.msra.mxu0 %v70
    %1739 = vmatprep.subr.mxu0 %v67
    %1740 = vmatpush1.msra.mxu0 %v66
    %1741 = vmatprep.subr.mxu0 %v63
    %1742 = vmatpush1.msra.mxu0 %v62
    %1743 = vmatprep.subr.mxu0 %v59
    %1744 = vmatpush1.msra.mxu0 %v58
    %1745 = vmatprep.subr.mxu0 %v55
    %1746 = vmatpush1.msra.mxu0 %v54
    %1747 = vmatprep.subr.mxu0 %v51
    %1748 = vmatpush1.msra.mxu0 %v50
    %1749 = vmatprep.subr.mxu0 %v47
    %1750 = vmatpush1.msra.mxu0 %v46
    %1751 = vmatprep.subr.mxu0 %v43
    %1752 = vmatpush1.msra.mxu0 %v42
    %1753 = vmatprep.subr.mxu0 %v39
    %1754 = vmatpush1.msra.mxu0 %v38
    %1755 = vmatprep.subr.mxu0 %v35
    %1756 = vmatpush1.msra.mxu0 %v34
    %1757 = vmatprep.subr.mxu0 %v31
    %1758 = vmatpush1.msra.mxu0 %v30
    %1759 = vmatprep.subr.mxu0 0.0
    %1760 = vmatpush2.msra.mxu0 0.0
    %1761 = vmatprep.subr.mxu0 0.0
    %1762 = vmatpush2.msra.mxu0 0.0
    %1763 = vmatprep.subr.mxu0 0.0
    %1764 = vmatpush2.msra.mxu0 0.0
    %1765 = vmatprep.subr.mxu0 0.0
    %1766 = vmatpush2.msra.mxu0 0.0
    %1767 = vmatprep.subr.mxu0 0.0
    %1768 = vmatpush2.msra.mxu0 0.0
    %1769 = vmatprep.subr.mxu0 0.0
    %1770 = vmatpush2.msra.mxu0 0.0
    %1771 = vmatprep.subr.mxu0 0.0
    %1772 = vmatpush2.msra.mxu0 0.0
    %1773 = vmatprep.subr.mxu0 0.0
    %1774 = vmatpush2.msra.mxu0 0.0
    %1775 = vmatprep.subr.mxu0 0.0
    %1776 = vmatpush2.msra.mxu0 0.0
    %1777 = vmatprep.subr.mxu0 0.0
    %1778 = vmatpush2.msra.mxu0 0.0
    %1779 = vmatprep.subr.mxu0 0.0
    %1780 = vmatpush2.msra.mxu0 0.0
    %1781 = vmatprep.subr.mxu0 0.0
    %1782 = vmatpush2.msra.mxu0 0.0
    %1783 = vmatprep.subr.mxu0 0.0
    %1784 = vmatpush2.msra.mxu0 0.0
    %1785 = vmatprep.subr.mxu0 0.0
    %1786 = vmatpush2.msra.mxu0 0.0
    %1787 = vmatprep.subr.mxu0 0.0
    %1788 = vmatpush2.msra.mxu0 0.0
    %1789 = vmatprep.subr.mxu0 0.0
    %1790 = vmatpush2.msra.mxu0 0.0
    %1791 = vmatprep.mubr.f32.mxu0 0.0
    %1792 = vmatmul.mubr.f32.gmra.mxu0 %v1654
    %v1793 = vpop.f32.mrf.mxu0
    %v1794 = vadd.f32 0.0, %v1793
    %v1795 = vpop.f32.mrf.mxu0
    %v1796 = vadd.f32 0.0, %v1795
    %1797 = vdwg.mxu0
    %v1798 = vadd.f32 %v1649, %v1723
    %v1799 = vadd.f32 %v1650, %v1725
    %v1800 = vadd.f32 %v1651, %v1794
    %v1801 = vadd.f32 %v1652, %v1796
    %v1802 = vld [vmem:[%s1] sm:$0xc0]
    %v1803 = vld [vmem:[%s1 + $0x8] sm:$0xc0]
    %v1804 = vld [vmem:[%s1 + $0x10] sm:$0xc0]
    %v1805 = vld [vmem:[%s1 + $0x18] sm:$0xc0]
    %1806 = vmatprep.subr.mxu0 %v303
    %1807 = vmatpush1.msra.mxu0 %v302
    %1808 = vmatprep.subr.mxu0 %v299
    %1809 = vmatpush1.msra.mxu0 %v298
    %1810 = vmatprep.subr.mxu0 %v295
    %1811 = vmatpush1.msra.mxu0 %v294
    %1812 = vmatprep.subr.mxu0 %v291
    %1813 = vmatpush1.msra.mxu0 %v290
    %1814 = vmatprep.subr.mxu0 %v287
    %1815 = vmatpush1.msra.mxu0 %v286
    %1816 = vmatprep.subr.mxu0 %v283
    %1817 = vmatpush1.msra.mxu0 %v282
    %1818 = vmatprep.subr.mxu0 %v279
    %1819 = vmatpush1.msra.mxu0 %v278
    %1820 = vmatprep.subr.mxu0 %v275
    %1821 = vmatpush1.msra.mxu0 %v274
    %1822 = vmatprep.subr.mxu0 %v271
    %1823 = vmatpush1.msra.mxu0 %v270
    %1824 = vmatprep.subr.mxu0 %v267
    %1825 = vmatpush1.msra.mxu0 %v266
    %1826 = vmatprep.subr.mxu0 %v263
    %1827 = vmatpush1.msra.mxu0 %v262
    %1828 = vmatprep.subr.mxu0 %v259
    %1829 = vmatpush1.msra.mxu0 %v258
    %1830 = vmatprep.subr.mxu0 %v255
    %1831 = vmatpush1.msra.mxu0 %v254
    %1832 = vmatprep.subr.mxu0 %v251
    %1833 = vmatpush1.msra.mxu0 %v250
    %1834 = vmatprep.subr.mxu0 %v247
    %1835 = vmatpush1.msra.mxu0 %v246
    %1836 = vmatprep.subr.mxu0 %v243
    %1837 = vmatpush1.msra.mxu0 %v242
    %1838 = vmatprep.subr.mxu0 0.0
    %1839 = vmatpush2.msra.mxu0 0.0
    %1840 = vmatprep.subr.mxu0 0.0
    %1841 = vmatpush2.msra.mxu0 0.0
    %1842 = vmatprep.subr.mxu0 0.0
    %1843 = vmatpush2.msra.mxu0 0.0
    %1844 = vmatprep.subr.mxu0 0.0
    %1845 = vmatpush2.msra.mxu0 0.0
    %1846 = vmatprep.subr.mxu0 0.0
    %1847 = vmatpush2.msra.mxu0 0.0
    %1848 = vmatprep.subr.mxu0 0.0
    %1849 = vmatpush2.msra.mxu0 0.0
    %1850 = vmatprep.subr.mxu0 0.0
    %1851 = vmatpush2.msra.mxu0 0.0
    %1852 = vmatprep.subr.mxu0 0.0
    %1853 = vmatpush2.msra.mxu0 0.0
    %1854 = vmatprep.subr.mxu0 0.0
    %1855 = vmatpush2.msra.mxu0 0.0
    %1856 = vmatprep.subr.mxu0 0.0
    %1857 = vmatpush2.msra.mxu0 0.0
    %1858 = vmatprep.subr.mxu0 0.0
    %1859 = vmatpush2.msra.mxu0 0.0
    %1860 = vmatprep.subr.mxu0 0.0
    %1861 = vmatpush2.msra.mxu0 0.0
    %1862 = vmatprep.subr.mxu0 0.0
    %1863 = vmatpush2.msra.mxu0 0.0
    %1864 = vmatprep.subr.mxu0 0.0
    %1865 = vmatpush2.msra.mxu0 0.0
    %1866 = vmatprep.subr.mxu0 0.0
    %1867 = vmatpush2.msra.mxu0 0.0
    %1868 = vmatprep.subr.mxu0 0.0
    %1869 = vmatpush2.msra.mxu0 0.0
    %1870 = vmatprep.mubr.f32.mxu0 0.0
    %1871 = vmatmul.mubr.f32.gmra.mxu0 %v1648
    %v1872 = vpop.f32.mrf.mxu0
    %v1873 = vadd.f32 0.0, %v1872
    %v1874 = vpop.f32.mrf.mxu0
    %v1875 = vadd.f32 0.0, %v1874
    %1876 = vdwg.mxu0
    %1877 = vmatprep.subr.mxu0 %v305
    %1878 = vmatpush1.msra.mxu0 %v304
    %1879 = vmatprep.subr.mxu0 %v301
    %1880 = vmatpush1.msra.mxu0 %v300
    %1881 = vmatprep.subr.mxu0 %v297
    %1882 = vmatpush1.msra.mxu0 %v296
    %1883 = vmatprep.subr.mxu0 %v293
    %1884 = vmatpush1.msra.mxu0 %v292
    %1885 = vmatprep.subr.mxu0 %v289
    %1886 = vmatpush1.msra.mxu0 %v288
    %1887 = vmatprep.subr.mxu0 %v285
    %1888 = vmatpush1.msra.mxu0 %v284
    %1889 = vmatprep.subr.mxu0 %v281
    %1890 = vmatpush1.msra.mxu0 %v280
    %1891 = vmatprep.subr.mxu0 %v277
    %1892 = vmatpush1.msra.mxu0 %v276
    %1893 = vmatprep.subr.mxu0 %v273
    %1894 = vmatpush1.msra.mxu0 %v272
    %1895 = vmatprep.subr.mxu0 %v269
    %1896 = vmatpush1.msra.mxu0 %v268
    %1897 = vmatprep.subr.mxu0 %v265
    %1898 = vmatpush1.msra.mxu0 %v264
    %1899 = vmatprep.subr.mxu0 %v261
    %1900 = vmatpush1.msra.mxu0 %v260
    %1901 = vmatprep.subr.mxu0 %v257
    %1902 = vmatpush1.msra.mxu0 %v256
    %1903 = vmatprep.subr.mxu0 %v253
    %1904 = vmatpush1.msra.mxu0 %v252
    %1905 = vmatprep.subr.mxu0 %v249
    %1906 = vmatpush1.msra.mxu0 %v248
    %1907 = vmatprep.subr.mxu0 %v245
    %1908 = vmatpush1.msra.mxu0 %v244
    %1909 = vmatprep.subr.mxu0 0.0
    %1910 = vmatpush2.msra.mxu0 0.0
    %1911 = vmatprep.subr.mxu0 0.0
    %1912 = vmatpush2.msra.mxu0 0.0
    %1913 = vmatprep.subr.mxu0 0.0
    %1914 = vmatpush2.msra.mxu0 0.0
    %1915 = vmatprep.subr.mxu0 0.0
    %1916 = vmatpush2.msra.mxu0 0.0
    %1917 = vmatprep.subr.mxu0 0.0
    %1918 = vmatpush2.msra.mxu0 0.0
    %1919 = vmatprep.subr.mxu0 0.0
    %1920 = vmatpush2.msra.mxu0 0.0
    %1921 = vmatprep.subr.mxu0 0.0
    %1922 = vmatpush2.msra.mxu0 0.0
    %1923 = vmatprep.subr.mxu0 0.0
    %1924 = vmatpush2.msra.mxu0 0.0
    %1925 = vmatprep.subr.mxu0 0.0
    %1926 = vmatpush2.msra.mxu0 0.0
    %1927 = vmatprep.subr.mxu0 0.0
    %1928 = vmatpush2.msra.mxu0 0.0
    %1929 = vmatprep.subr.mxu0 0.0
    %1930 = vmatpush2.msra.mxu0 0.0
    %1931 = vmatprep.subr.mxu0 0.0
    %1932 = vmatpush2.msra.mxu0 0.0
    %1933 = vmatprep.subr.mxu0 0.0
    %1934 = vmatpush2.msra.mxu0 0.0
    %1935 = vmatprep.subr.mxu0 0.0
    %1936 = vmatpush2.msra.mxu0 0.0
    %1937 = vmatprep.subr.mxu0 0.0
    %1938 = vmatpush2.msra.mxu0 0.0
    %1939 = vmatprep.subr.mxu0 0.0
    %1940 = vmatpush2.msra.mxu0 0.0
    %1941 = vmatprep.mubr.f32.mxu0 0.0
    %1942 = vmatmul.mubr.f32.gmra.mxu0 %v1648
    %v1943 = vpop.f32.mrf.mxu0
    %v1944 = vadd.f32 0.0, %v1943
    %v1945 = vpop.f32.mrf.mxu0
    %v1946 = vadd.f32 0.0, %v1945
    %1947 = vdwg.mxu0
    %v1952 = vrot.slane %v1873, 2
    %v1953 = vrot.slane %v1875, 2
    %v1954 = vrot.slane %v1944, 2
    %v1955 = vrot.slane %v1946, 2
    %v1960 = vadd.f32 %v1802, %v1952
    %v1961 = vadd.f32 %v1803, %v1953
    %v1962 = vadd.f32 %v1804, %v1954
    %v1963 = vadd.f32 %v1805, %v1955
    %v1964 = vxor.u32 %v1798, 2147483648
    %v1965 = vmul.f32 %v1964, 1.442695
    %v1966 = vpow.pop %v1965
    %v1967 = vadd.f32 %v1966, 1.0
    %v1968 = vrcp.pop %v1967
    %v1969 = vmul.f32 1.0, %v1968
    %v1970 = vxor.u32 %v1799, 2147483648
    %v1971 = vmul.f32 %v1970, 1.442695
    %v1972 = vpow.pop %v1971
    %v1973 = vadd.f32 %v1972, 1.0
    %v1974 = vrcp.pop %v1973
    %v1975 = vmul.f32 1.0, %v1974
    %v1976 = vtanh.pop %v1800
    %v1977 = vxor.u32 %v1801, 2147483648
    %v1978 = vmul.f32 %v1977, 1.442695
    %v1979 = vpow.pop %v1978
    %v1980 = vadd.f32 %v1979, 1.0
    %v1981 = vrcp.pop %v1980
    %v1982 = vmul.f32 1.0, %v1981
    %v1984 = vrot.slane %v1619, 6
    %v1986 = vmul.f32 %v1975, %v1984
    %v1987 = vmul.f32 %v1969, %v1976
    %v1988 = vadd.f32 %v1986, %v1987
    %v1989 = vtanh.pop %v1988
    %v1990 = vmul.f32 %v1982, %v1989
    %v1991 = vxor.u32 %v1960, 2147483648
    %v1992 = vmul.f32 %v1991, 1.442695
    %v1993 = vpow.pop %v1992
    %v1994 = vadd.f32 %v1993, 1.0
    %v1995 = vrcp.pop %v1994
    %v1996 = vmul.f32 1.0, %v1995
    %v1997 = vxor.u32 %v1961, 2147483648
    %v1998 = vmul.f32 %v1997, 1.442695
    %v1999 = vpow.pop %v1998
    %v2000 = vadd.f32 %v1999, 1.0
    %v2001 = vrcp.pop %v2000
    %v2002 = vmul.f32 1.0, %v2001
    %v2003 = vtanh.pop %v1962
    %v2004 = vxor.u32 %v1963, 2147483648
    %v2005 = vmul.f32 %v2004, 1.442695
    %v2006 = vpow.pop %v2005
    %v2007 = vadd.f32 %v2006, 1.0
    %v2008 = vrcp.pop %v2007
    %v2009 = vmul.f32 1.0, %v2008
    %v2011 = vrot.slane %v1646, 2
    %v2013 = vmul.f32 %v2002, %v2011
    %v2014 = vmul.f32 %v1996, %v2003
    %v2015 = vadd.f32 %v2013, %v2014
    %v2016 = vtanh.pop %v2015
    %v2017 = vmul.f32 %v2009, %v2016
    %v2018 = vld [vmem:[%s0 + $0x20] sm:$0xc]
    %v2019 = vld [vmem:[%s0 + $0x28] sm:$0xc]
    %v2020 = vld [vmem:[%s0 + $0x30] sm:$0xc]
    %v2021 = vld [vmem:[%s0 + $0x38] sm:$0xc]
    %2022 = vmatprep.subr.mxu0 %v89
    %2023 = vmatpush1.msra.mxu0 %v88
    %2024 = vmatprep.subr.mxu0 %v85
    %2025 = vmatpush1.msra.mxu0 %v84
    %2026 = vmatprep.subr.mxu0 %v81
    %2027 = vmatpush1.msra.mxu0 %v80
    %2028 = vmatprep.subr.mxu0 %v77
    %2029 = vmatpush1.msra.mxu0 %v76
    %2030 = vmatprep.subr.mxu0 %v73
    %2031 = vmatpush1.msra.mxu0 %v72
    %2032 = vmatprep.subr.mxu0 %v69
    %2033 = vmatpush1.msra.mxu0 %v68
    %2034 = vmatprep.subr.mxu0 %v65
    %2035 = vmatpush1.msra.mxu0 %v64
    %2036 = vmatprep.subr.mxu0 %v61
    %2037 = vmatpush1.msra.mxu0 %v60
    %2038 = vmatprep.subr.mxu0 %v57
    %2039 = vmatpush1.msra.mxu0 %v56
    %2040 = vmatprep.subr.mxu0 %v53
    %2041 = vmatpush1.msra.mxu0 %v52
    %2042 = vmatprep.subr.mxu0 %v49
    %2043 = vmatpush1.msra.mxu0 %v48
    %2044 = vmatprep.subr.mxu0 %v45
    %2045 = vmatpush1.msra.mxu0 %v44
    %2046 = vmatprep.subr.mxu0 %v41
    %2047 = vmatpush1.msra.mxu0 %v40
    %2048 = vmatprep.subr.mxu0 %v37
    %2049 = vmatpush1.msra.mxu0 %v36
    %2050 = vmatprep.subr.mxu0 %v33
    %2051 = vmatpush1.msra.mxu0 %v32
    %2052 = vmatprep.subr.mxu0 %v29
    %2053 = vmatpush1.msra.mxu0 %v28
    %2054 = vmatprep.subr.mxu0 0.0
    %2055 = vmatpush2.msra.mxu0 0.0
    %2056 = vmatprep.subr.mxu0 0.0
    %2057 = vmatpush2.msra.mxu0 0.0
    %2058 = vmatprep.subr.mxu0 0.0
    %2059 = vmatpush2.msra.mxu0 0.0
    %2060 = vmatprep.subr.mxu0 0.0
    %2061 = vmatpush2.msra.mxu0 0.0
    %2062 = vmatprep.subr.mxu0 0.0
    %2063 = vmatpush2.msra.mxu0 0.0
    %2064 = vmatprep.subr.mxu0 0.0
    %2065 = vmatpush2.msra.mxu0 0.0
    %2066 = vmatprep.subr.mxu0 0.0
    %2067 = vmatpush2.msra.mxu0 0.0
    %2068 = vmatprep.subr.mxu0 0.0
    %2069 = vmatpush2.msra.mxu0 0.0
    %2070 = vmatprep.subr.mxu0 0.0
    %2071 = vmatpush2.msra.mxu0 0.0
    %2072 = vmatprep.subr.mxu0 0.0
    %2073 = vmatpush2.msra.mxu0 0.0
    %2074 = vmatprep.subr.mxu0 0.0
    %2075 = vmatpush2.msra.mxu0 0.0
    %2076 = vmatprep.subr.mxu0 0.0
    %2077 = vmatpush2.msra.mxu0 0.0
    %2078 = vmatprep.subr.mxu0 0.0
    %2079 = vmatpush2.msra.mxu0 0.0
    %2080 = vmatprep.subr.mxu0 0.0
    %2081 = vmatpush2.msra.mxu0 0.0
    %2082 = vmatprep.subr.mxu0 0.0
    %2083 = vmatpush2.msra.mxu0 0.0
    %2084 = vmatprep.subr.mxu0 0.0
    %2085 = vmatpush2.msra.mxu0 0.0
    %2086 = vmatprep.mubr.f32.mxu0 0.0
    %2087 = vmatmul.mubr.f32.gmra.mxu0 %v1990
    %v2088 = vpop.f32.mrf.mxu0
    %v2089 = vadd.f32 0.0, %v2088
    %v2090 = vpop.f32.mrf.mxu0
    %v2091 = vadd.f32 0.0, %v2090
    %2092 = vdwg.mxu0
    %2093 = vmatprep.subr.mxu0 %v91
    %2094 = vmatpush1.msra.mxu0 %v90
    %2095 = vmatprep.subr.mxu0 %v87
    %2096 = vmatpush1.msra.mxu0 %v86
    %2097 = vmatprep.subr.mxu0 %v83
    %2098 = vmatpush1.msra.mxu0 %v82
    %2099 = vmatprep.subr.mxu0 %v79
    %2100 = vmatpush1.msra.mxu0 %v78
    %2101 = vmatprep.subr.mxu0 %v75
    %2102 = vmatpush1.msra.mxu0 %v74
    %2103 = vmatprep.subr.mxu0 %v71
    %2104 = vmatpush1.msra.mxu0 %v70
    %2105 = vmatprep.subr.mxu0 %v67
    %2106 = vmatpush1.msra.mxu0 %v66
    %2107 = vmatprep.subr.mxu0 %v63
    %2108 = vmatpush1.msra.mxu0 %v62
    %2109 = vmatprep.subr.mxu0 %v59
    %2110 = vmatpush1.msra.mxu0 %v58
    %2111 = vmatprep.subr.mxu0 %v55
    %2112 = vmatpush1.msra.mxu0 %v54
    %2113 = vmatprep.subr.mxu0 %v51
    %2114 = vmatpush1.msra.mxu0 %v50
    %2115 = vmatprep.subr.mxu0 %v47
    %2116 = vmatpush1.msra.mxu0 %v46
    %2117 = vmatprep.subr.mxu0 %v43
    %2118 = vmatpush1.msra.mxu0 %v42
    %2119 = vmatprep.subr.mxu0 %v39
    %2120 = vmatpush1.msra.mxu0 %v38
    %2121 = vmatprep.subr.mxu0 %v35
    %2122 = vmatpush1.msra.mxu0 %v34
    %2123 = vmatprep.subr.mxu0 %v31
    %2124 = vmatpush1.msra.mxu0 %v30
    %2125 = vmatprep.subr.mxu0 0.0
    %2126 = vmatpush2.msra.mxu0 0.0
    %2127 = vmatprep.subr.mxu0 0.0
    %2128 = vmatpush2.msra.mxu0 0.0
    %2129 = vmatprep.subr.mxu0 0.0
    %2130 = vmatpush2.msra.mxu0 0.0
    %2131 = vmatprep.subr.mxu0 0.0
    %2132 = vmatpush2.msra.mxu0 0.0
    %2133 = vmatprep.subr.mxu0 0.0
    %2134 = vmatpush2.msra.mxu0 0.0
    %2135 = vmatprep.subr.mxu0 0.0
    %2136 = vmatpush2.msra.mxu0 0.0
    %2137 = vmatprep.subr.mxu0 0.0
    %2138 = vmatpush2.msra.mxu0 0.0
    %2139 = vmatprep.subr.mxu0 0.0
    %2140 = vmatpush2.msra.mxu0 0.0
    %2141 = vmatprep.subr.mxu0 0.0
    %2142 = vmatpush2.msra.mxu0 0.0
    %2143 = vmatprep.subr.mxu0 0.0
    %2144 = vmatpush2.msra.mxu0 0.0
    %2145 = vmatprep.subr.mxu0 0.0
    %2146 = vmatpush2.msra.mxu0 0.0
    %2147 = vmatprep.subr.mxu0 0.0
    %2148 = vmatpush2.msra.mxu0 0.0
    %2149 = vmatprep.subr.mxu0 0.0
    %2150 = vmatpush2.msra.mxu0 0.0
    %2151 = vmatprep.subr.mxu0 0.0
    %2152 = vmatpush2.msra.mxu0 0.0
    %2153 = vmatprep.subr.mxu0 0.0
    %2154 = vmatpush2.msra.mxu0 0.0
    %2155 = vmatprep.subr.mxu0 0.0
    %2156 = vmatpush2.msra.mxu0 0.0
    %2157 = vmatprep.mubr.f32.mxu0 0.0
    %2158 = vmatmul.mubr.f32.gmra.mxu0 %v1990
    %v2159 = vpop.f32.mrf.mxu0
    %v2160 = vadd.f32 0.0, %v2159
    %v2161 = vpop.f32.mrf.mxu0
    %v2162 = vadd.f32 0.0, %v2161
    %2163 = vdwg.mxu0
    %v2168 = vrot.slane %v2089, 6
    %v2169 = vrot.slane %v2091, 6
    %v2170 = vrot.slane %v2160, 6
    %v2171 = vrot.slane %v2162, 6
    %v2176 = vadd.f32 %v2018, %v2168
    %v2177 = vadd.f32 %v2019, %v2169
    %v2178 = vadd.f32 %v2020, %v2170
    %v2179 = vadd.f32 %v2021, %v2171
    %v2180 = vld [vmem:[%s1] sm:$0x30]
    %v2181 = vld [vmem:[%s1 + $0x8] sm:$0x30]
    %v2182 = vld [vmem:[%s1 + $0x10] sm:$0x30]
    %v2183 = vld [vmem:[%s1 + $0x18] sm:$0x30]
    %v2185 = vrot.slane %v2017, 6
    %2187 = vmatprep.subr.mxu0 %v303
    %2188 = vmatpush1.msra.mxu0 %v302
    %2189 = vmatprep.subr.mxu0 %v299
    %2190 = vmatpush1.msra.mxu0 %v298
    %2191 = vmatprep.subr.mxu0 %v295
    %2192 = vmatpush1.msra.mxu0 %v294
    %2193 = vmatprep.subr.mxu0 %v291
    %2194 = vmatpush1.msra.mxu0 %v290
    %2195 = vmatprep.subr.mxu0 %v287
    %2196 = vmatpush1.msra.mxu0 %v286
    %2197 = vmatprep.subr.mxu0 %v283
    %2198 = vmatpush1.msra.mxu0 %v282
    %2199 = vmatprep.subr.mxu0 %v279
    %2200 = vmatpush1.msra.mxu0 %v278
    %2201 = vmatprep.subr.mxu0 %v275
    %2202 = vmatpush1.msra.mxu0 %v274
    %2203 = vmatprep.subr.mxu0 %v271
    %2204 = vmatpush1.msra.mxu0 %v270
    %2205 = vmatprep.subr.mxu0 %v267
    %2206 = vmatpush1.msra.mxu0 %v266
    %2207 = vmatprep.subr.mxu0 %v263
    %2208 = vmatpush1.msra.mxu0 %v262
    %2209 = vmatprep.subr.mxu0 %v259
    %2210 = vmatpush1.msra.mxu0 %v258
    %2211 = vmatprep.subr.mxu0 %v255
    %2212 = vmatpush1.msra.mxu0 %v254
    %2213 = vmatprep.subr.mxu0 %v251
    %2214 = vmatpush1.msra.mxu0 %v250
    %2215 = vmatprep.subr.mxu0 %v247
    %2216 = vmatpush1.msra.mxu0 %v246
    %2217 = vmatprep.subr.mxu0 %v243
    %2218 = vmatpush1.msra.mxu0 %v242
    %2219 = vmatprep.subr.mxu0 0.0
    %2220 = vmatpush2.msra.mxu0 0.0
    %2221 = vmatprep.subr.mxu0 0.0
    %2222 = vmatpush2.msra.mxu0 0.0
    %2223 = vmatprep.subr.mxu0 0.0
    %2224 = vmatpush2.msra.mxu0 0.0
    %2225 = vmatprep.subr.mxu0 0.0
    %2226 = vmatpush2.msra.mxu0 0.0
    %2227 = vmatprep.subr.mxu0 0.0
    %2228 = vmatpush2.msra.mxu0 0.0
    %2229 = vmatprep.subr.mxu0 0.0
    %2230 = vmatpush2.msra.mxu0 0.0
    %2231 = vmatprep.subr.mxu0 0.0
    %2232 = vmatpush2.msra.mxu0 0.0
    %2233 = vmatprep.subr.mxu0 0.0
    %2234 = vmatpush2.msra.mxu0 0.0
    %2235 = vmatprep.subr.mxu0 0.0
    %2236 = vmatpush2.msra.mxu0 0.0
    %2237 = vmatprep.subr.mxu0 0.0
    %2238 = vmatpush2.msra.mxu0 0.0
    %2239 = vmatprep.subr.mxu0 0.0
    %2240 = vmatpush2.msra.mxu0 0.0
    %2241 = vmatprep.subr.mxu0 0.0
    %2242 = vmatpush2.msra.mxu0 0.0
    %2243 = vmatprep.subr.mxu0 0.0
    %2244 = vmatpush2.msra.mxu0 0.0
    %2245 = vmatprep.subr.mxu0 0.0
    %2246 = vmatpush2.msra.mxu0 0.0
    %2247 = vmatprep.subr.mxu0 0.0
    %2248 = vmatpush2.msra.mxu0 0.0
    %2249 = vmatprep.subr.mxu0 0.0
    %2250 = vmatpush2.msra.mxu0 0.0
    %2251 = vmatprep.mubr.f32.mxu0 0.0
    %2252 = vmatmul.mubr.f32.gmra.mxu0 %v2185
    %v2253 = vpop.f32.mrf.mxu0
    %v2254 = vadd.f32 0.0, %v2253
    %v2255 = vpop.f32.mrf.mxu0
    %v2256 = vadd.f32 0.0, %v2255
    %2257 = vdwg.mxu0
    %2258 = vmatprep.subr.mxu0 %v305
    %2259 = vmatpush1.msra.mxu0 %v304
    %2260 = vmatprep.subr.mxu0 %v301
    %2261 = vmatpush1.msra.mxu0 %v300
    %2262 = vmatprep.subr.mxu0 %v297
    %2263 = vmatpush1.msra.mxu0 %v296
    %2264 = vmatprep.subr.mxu0 %v293
    %2265 = vmatpush1.msra.mxu0 %v292
    %2266 = vmatprep.subr.mxu0 %v289
    %2267 = vmatpush1.msra.mxu0 %v288
    %2268 = vmatprep.subr.mxu0 %v285
    %2269 = vmatpush1.msra.mxu0 %v284
    %2270 = vmatprep.subr.mxu0 %v281
    %2271 = vmatpush1.msra.mxu0 %v280
    %2272 = vmatprep.subr.mxu0 %v277
    %2273 = vmatpush1.msra.mxu0 %v276
    %2274 = vmatprep.subr.mxu0 %v273
    %2275 = vmatpush1.msra.mxu0 %v272
    %2276 = vmatprep.subr.mxu0 %v269
    %2277 = vmatpush1.msra.mxu0 %v268
    %2278 = vmatprep.subr.mxu0 %v265
    %2279 = vmatpush1.msra.mxu0 %v264
    %2280 = vmatprep.subr.mxu0 %v261
    %2281 = vmatpush1.msra.mxu0 %v260
    %2282 = vmatprep.subr.mxu0 %v257
    %2283 = vmatpush1.msra.mxu0 %v256
    %2284 = vmatprep.subr.mxu0 %v253
    %2285 = vmatpush1.msra.mxu0 %v252
    %2286 = vmatprep.subr.mxu0 %v249
    %2287 = vmatpush1.msra.mxu0 %v248
    %2288 = vmatprep.subr.mxu0 %v245
    %2289 = vmatpush1.msra.mxu0 %v244
    %2290 = vmatprep.subr.mxu0 0.0
    %2291 = vmatpush2.msra.mxu0 0.0
    %2292 = vmatprep.subr.mxu0 0.0
    %2293 = vmatpush2.msra.mxu0 0.0
    %2294 = vmatprep.subr.mxu0 0.0
    %2295 = vmatpush2.msra.mxu0 0.0
    %2296 = vmatprep.subr.mxu0 0.0
    %2297 = vmatpush2.msra.mxu0 0.0
    %2298 = vmatprep.subr.mxu0 0.0
    %2299 = vmatpush2.msra.mxu0 0.0
    %2300 = vmatprep.subr.mxu0 0.0
    %2301 = vmatpush2.msra.mxu0 0.0
    %2302 = vmatprep.subr.mxu0 0.0
    %2303 = vmatpush2.msra.mxu0 0.0
    %2304 = vmatprep.subr.mxu0 0.0
    %2305 = vmatpush2.msra.mxu0 0.0
    %2306 = vmatprep.subr.mxu0 0.0
    %2307 = vmatpush2.msra.mxu0 0.0
    %2308 = vmatprep.subr.mxu0 0.0
    %2309 = vmatpush2.msra.mxu0 0.0
    %2310 = vmatprep.subr.mxu0 0.0
    %2311 = vmatpush2.msra.mxu0 0.0
    %2312 = vmatprep.subr.mxu0 0.0
    %2313 = vmatpush2.msra.mxu0 0.0
    %2314 = vmatprep.subr.mxu0 0.0
    %2315 = vmatpush2.msra.mxu0 0.0
    %2316 = vmatprep.subr.mxu0 0.0
    %2317 = vmatpush2.msra.mxu0 0.0
    %2318 = vmatprep.subr.mxu0 0.0
    %2319 = vmatpush2.msra.mxu0 0.0
    %2320 = vmatprep.subr.mxu0 0.0
    %2321 = vmatpush2.msra.mxu0 0.0
    %2322 = vmatprep.mubr.f32.mxu0 0.0
    %2323 = vmatmul.mubr.f32.gmra.mxu0 %v2185
    %v2324 = vpop.f32.mrf.mxu0
    %v2325 = vadd.f32 0.0, %v2324
    %v2326 = vpop.f32.mrf.mxu0
    %v2327 = vadd.f32 0.0, %v2326
    %2328 = vdwg.mxu0
    %v2333 = vrot.slane %v2254, 4
    %v2334 = vrot.slane %v2256, 4
    %v2335 = vrot.slane %v2325, 4
    %v2336 = vrot.slane %v2327, 4
    %v2341 = vadd.f32 %v2180, %v2333
    %v2342 = vadd.f32 %v2181, %v2334
    %v2343 = vadd.f32 %v2182, %v2335
    %v2344 = vadd.f32 %v2183, %v2336
    %v2345 = vxor.u32 %v2176, 2147483648
    %v2346 = vmul.f32 %v2345, 1.442695
    %v2347 = vpow.pop %v2346
    %v2348 = vadd.f32 %v2347, 1.0
    %v2349 = vrcp.pop %v2348
    %v2350 = vmul.f32 1.0, %v2349
    %v2351 = vxor.u32 %v2177, 2147483648
    %v2352 = vmul.f32 %v2351, 1.442695
    %v2353 = vpow.pop %v2352
    %v2354 = vadd.f32 %v2353, 1.0
    %v2355 = vrcp.pop %v2354
    %v2356 = vmul.f32 1.0, %v2355
    %v2357 = vtanh.pop %v2178
    %v2358 = vxor.u32 %v2179, 2147483648
    %v2359 = vmul.f32 %v2358, 1.442695
    %v2360 = vpow.pop %v2359
    %v2361 = vadd.f32 %v2360, 1.0
    %v2362 = vrcp.pop %v2361
    %v2363 = vmul.f32 1.0, %v2362
    %v2365 = vrot.slane %v1988, 6
    %v2367 = vmul.f32 %v2356, %v2365
    %v2368 = vmul.f32 %v2350, %v2357
    %v2369 = vadd.f32 %v2367, %v2368
    %v2370 = vtanh.pop %v2369
    %v2371 = vmul.f32 %v2363, %v2370
    %v2372 = vxor.u32 %v2341, 2147483648
    %v2373 = vmul.f32 %v2372, 1.442695
    %v2374 = vpow.pop %v2373
    %v2375 = vadd.f32 %v2374, 1.0
    %v2376 = vrcp.pop %v2375
    %v2377 = vmul.f32 1.0, %v2376
    %v2378 = vxor.u32 %v2342, 2147483648
    %v2379 = vmul.f32 %v2378, 1.442695
    %v2380 = vpow.pop %v2379
    %v2381 = vadd.f32 %v2380, 1.0
    %v2382 = vrcp.pop %v2381
    %v2383 = vmul.f32 1.0, %v2382
    %v2384 = vtanh.pop %v2343
    %v2385 = vxor.u32 %v2344, 2147483648
    %v2386 = vmul.f32 %v2385, 1.442695
    %v2387 = vpow.pop %v2386
    %v2388 = vadd.f32 %v2387, 1.0
    %v2389 = vrcp.pop %v2388
    %v2390 = vmul.f32 1.0, %v2389
    %v2392 = vrot.slane %v2015, 2
    %v2394 = vmul.f32 %v2383, %v2392
    %v2395 = vmul.f32 %v2377, %v2384
    %v2396 = vadd.f32 %v2394, %v2395
    %v2397 = vtanh.pop %v2396
    %v2398 = vmul.f32 %v2390, %v2397
    %v2399 = vld [vmem:[%s0 + $0x20] sm:$0x30]
    %v2400 = vld [vmem:[%s0 + $0x28] sm:$0x30]
    %v2401 = vld [vmem:[%s0 + $0x30] sm:$0x30]
    %v2402 = vld [vmem:[%s0 + $0x38] sm:$0x30]
    %v2404 = vrot.slane %v2371, 2
    %2406 = vmatprep.subr.mxu0 %v89
    %2407 = vmatpush1.msra.mxu0 %v88
    %2408 = vmatprep.subr.mxu0 %v85
    %2409 = vmatpush1.msra.mxu0 %v84
    %2410 = vmatprep.subr.mxu0 %v81
    %2411 = vmatpush1.msra.mxu0 %v80
    %2412 = vmatprep.subr.mxu0 %v77
    %2413 = vmatpush1.msra.mxu0 %v76
    %2414 = vmatprep.subr.mxu0 %v73
    %2415 = vmatpush1.msra.mxu0 %v72
    %2416 = vmatprep.subr.mxu0 %v69
    %2417 = vmatpush1.msra.mxu0 %v68
    %2418 = vmatprep.subr.mxu0 %v65
    %2419 = vmatpush1.msra.mxu0 %v64
    %2420 = vmatprep.subr.mxu0 %v61
    %2421 = vmatpush1.msra.mxu0 %v60
    %2422 = vmatprep.subr.mxu0 %v57
    %2423 = vmatpush1.msra.mxu0 %v56
    %2424 = vmatprep.subr.mxu0 %v53
    %2425 = vmatpush1.msra.mxu0 %v52
    %2426 = vmatprep.subr.mxu0 %v49
    %2427 = vmatpush1.msra.mxu0 %v48
    %2428 = vmatprep.subr.mxu0 %v45
    %2429 = vmatpush1.msra.mxu0 %v44
    %2430 = vmatprep.subr.mxu0 %v41
    %2431 = vmatpush1.msra.mxu0 %v40
    %2432 = vmatprep.subr.mxu0 %v37
    %2433 = vmatpush1.msra.mxu0 %v36
    %2434 = vmatprep.subr.mxu0 %v33
    %2435 = vmatpush1.msra.mxu0 %v32
    %2436 = vmatprep.subr.mxu0 %v29
    %2437 = vmatpush1.msra.mxu0 %v28
    %2438 = vmatprep.subr.mxu0 0.0
    %2439 = vmatpush2.msra.mxu0 0.0
    %2440 = vmatprep.subr.mxu0 0.0
    %2441 = vmatpush2.msra.mxu0 0.0
    %2442 = vmatprep.subr.mxu0 0.0
    %2443 = vmatpush2.msra.mxu0 0.0
    %2444 = vmatprep.subr.mxu0 0.0
    %2445 = vmatpush2.msra.mxu0 0.0
    %2446 = vmatprep.subr.mxu0 0.0
    %2447 = vmatpush2.msra.mxu0 0.0
    %2448 = vmatprep.subr.mxu0 0.0
    %2449 = vmatpush2.msra.mxu0 0.0
    %2450 = vmatprep.subr.mxu0 0.0
    %2451 = vmatpush2.msra.mxu0 0.0
    %2452 = vmatprep.subr.mxu0 0.0
    %2453 = vmatpush2.msra.mxu0 0.0
    %2454 = vmatprep.subr.mxu0 0.0
    %2455 = vmatpush2.msra.mxu0 0.0
    %2456 = vmatprep.subr.mxu0 0.0
    %2457 = vmatpush2.msra.mxu0 0.0
    %2458 = vmatprep.subr.mxu0 0.0
    %2459 = vmatpush2.msra.mxu0 0.0
    %2460 = vmatprep.subr.mxu0 0.0
    %2461 = vmatpush2.msra.mxu0 0.0
    %2462 = vmatprep.subr.mxu0 0.0
    %2463 = vmatpush2.msra.mxu0 0.0
    %2464 = vmatprep.subr.mxu0 0.0
    %2465 = vmatpush2.msra.mxu0 0.0
    %2466 = vmatprep.subr.mxu0 0.0
    %2467 = vmatpush2.msra.mxu0 0.0
    %2468 = vmatprep.subr.mxu0 0.0
    %2469 = vmatpush2.msra.mxu0 0.0
    %2470 = vmatprep.mubr.f32.mxu0 0.0
    %2471 = vmatmul.mubr.f32.gmra.mxu0 %v2404
    %v2472 = vpop.f32.mrf.mxu0
    %v2473 = vadd.f32 0.0, %v2472
    %v2474 = vpop.f32.mrf.mxu0
    %v2475 = vadd.f32 0.0, %v2474
    %2476 = vdwg.mxu0
    %2477 = vmatprep.subr.mxu0 %v91
    %2478 = vmatpush1.msra.mxu0 %v90
    %2479 = vmatprep.subr.mxu0 %v87
    %2480 = vmatpush1.msra.mxu0 %v86
    %2481 = vmatprep.subr.mxu0 %v83
    %2482 = vmatpush1.msra.mxu0 %v82
    %2483 = vmatprep.subr.mxu0 %v79
    %2484 = vmatpush1.msra.mxu0 %v78
    %2485 = vmatprep.subr.mxu0 %v75
    %2486 = vmatpush1.msra.mxu0 %v74
    %2487 = vmatprep.subr.mxu0 %v71
    %2488 = vmatpush1.msra.mxu0 %v70
    %2489 = vmatprep.subr.mxu0 %v67
    %2490 = vmatpush1.msra.mxu0 %v66
    %2491 = vmatprep.subr.mxu0 %v63
    %2492 = vmatpush1.msra.mxu0 %v62
    %2493 = vmatprep.subr.mxu0 %v59
    %2494 = vmatpush1.msra.mxu0 %v58
    %2495 = vmatprep.subr.mxu0 %v55
    %2496 = vmatpush1.msra.mxu0 %v54
    %2497 = vmatprep.subr.mxu0 %v51
    %2498 = vmatpush1.msra.mxu0 %v50
    %2499 = vmatprep.subr.mxu0 %v47
    %2500 = vmatpush1.msra.mxu0 %v46
    %2501 = vmatprep.subr.mxu0 %v43
    %2502 = vmatpush1.msra.mxu0 %v42
    %2503 = vmatprep.subr.mxu0 %v39
    %2504 = vmatpush1.msra.mxu0 %v38
    %2505 = vmatprep.subr.mxu0 %v35
    %2506 = vmatpush1.msra.mxu0 %v34
    %2507 = vmatprep.subr.mxu0 %v31
    %2508 = vmatpush1.msra.mxu0 %v30
    %2509 = vmatprep.subr.mxu0 0.0
    %2510 = vmatpush2.msra.mxu0 0.0
    %2511 = vmatprep.subr.mxu0 0.0
    %2512 = vmatpush2.msra.mxu0 0.0
    %2513 = vmatprep.subr.mxu0 0.0
    %2514 = vmatpush2.msra.mxu0 0.0
    %2515 = vmatprep.subr.mxu0 0.0
    %2516 = vmatpush2.msra.mxu0 0.0
    %2517 = vmatprep.subr.mxu0 0.0
    %2518 = vmatpush2.msra.mxu0 0.0
    %2519 = vmatprep.subr.mxu0 0.0
    %2520 = vmatpush2.msra.mxu0 0.0
    %2521 = vmatprep.subr.mxu0 0.0
    %2522 = vmatpush2.msra.mxu0 0.0
    %2523 = vmatprep.subr.mxu0 0.0
    %2524 = vmatpush2.msra.mxu0 0.0
    %2525 = vmatprep.subr.mxu0 0.0
    %2526 = vmatpush2.msra.mxu0 0.0
    %2527 = vmatprep.subr.mxu0 0.0
    %2528 = vmatpush2.msra.mxu0 0.0
    %2529 = vmatprep.subr.mxu0 0.0
    %2530 = vmatpush2.msra.mxu0 0.0
    %2531 = vmatprep.subr.mxu0 0.0
    %2532 = vmatpush2.msra.mxu0 0.0
    %2533 = vmatprep.subr.mxu0 0.0
    %2534 = vmatpush2.msra.mxu0 0.0
    %2535 = vmatprep.subr.mxu0 0.0
    %2536 = vmatpush2.msra.mxu0 0.0
    %2537 = vmatprep.subr.mxu0 0.0
    %2538 = vmatpush2.msra.mxu0 0.0
    %2539 = vmatprep.subr.mxu0 0.0
    %2540 = vmatpush2.msra.mxu0 0.0
    %2541 = vmatprep.mubr.f32.mxu0 0.0
    %2542 = vmatmul.mubr.f32.gmra.mxu0 %v2404
    %v2543 = vpop.f32.mrf.mxu0
    %v2544 = vadd.f32 0.0, %v2543
    %v2545 = vpop.f32.mrf.mxu0
    %v2546 = vadd.f32 0.0, %v2545
    %2547 = vdwg.mxu0
    %v2552 = vrot.slane %v2473, 4
    %v2553 = vrot.slane %v2475, 4
    %v2554 = vrot.slane %v2544, 4
    %v2555 = vrot.slane %v2546, 4
    %v2560 = vadd.f32 %v2399, %v2552
    %v2561 = vadd.f32 %v2400, %v2553
    %v2562 = vadd.f32 %v2401, %v2554
    %v2563 = vadd.f32 %v2402, %v2555
    %v2564 = vld [vmem:[%s1] sm:$0xc]
    %v2565 = vld [vmem:[%s1 + $0x8] sm:$0xc]
    %v2566 = vld [vmem:[%s1 + $0x10] sm:$0xc]
    %v2567 = vld [vmem:[%s1 + $0x18] sm:$0xc]
    %v2569 = vrot.slane %v2398, 4
    %2571 = vmatprep.subr.mxu0 %v303
    %2572 = vmatpush1.msra.mxu0 %v302
    %2573 = vmatprep.subr.mxu0 %v299
    %2574 = vmatpush1.msra.mxu0 %v298
    %2575 = vmatprep.subr.mxu0 %v295
    %2576 = vmatpush1.msra.mxu0 %v294
    %2577 = vmatprep.subr.mxu0 %v291
    %2578 = vmatpush1.msra.mxu0 %v290
    %2579 = vmatprep.subr.mxu0 %v287
    %2580 = vmatpush1.msra.mxu0 %v286
    %2581 = vmatprep.subr.mxu0 %v283
    %2582 = vmatpush1.msra.mxu0 %v282
    %2583 = vmatprep.subr.mxu0 %v279
    %2584 = vmatpush1.msra.mxu0 %v278
    %2585 = vmatprep.subr.mxu0 %v275
    %2586 = vmatpush1.msra.mxu0 %v274
    %2587 = vmatprep.subr.mxu0 %v271
    %2588 = vmatpush1.msra.mxu0 %v270
    %2589 = vmatprep.subr.mxu0 %v267
    %2590 = vmatpush1.msra.mxu0 %v266
    %2591 = vmatprep.subr.mxu0 %v263
    %2592 = vmatpush1.msra.mxu0 %v262
    %2593 = vmatprep.subr.mxu0 %v259
    %2594 = vmatpush1.msra.mxu0 %v258
    %2595 = vmatprep.subr.mxu0 %v255
    %2596 = vmatpush1.msra.mxu0 %v254
    %2597 = vmatprep.subr.mxu0 %v251
    %2598 = vmatpush1.msra.mxu0 %v250
    %2599 = vmatprep.subr.mxu0 %v247
    %2600 = vmatpush1.msra.mxu0 %v246
    %2601 = vmatprep.subr.mxu0 %v243
    %2602 = vmatpush1.msra.mxu0 %v242
    %2603 = vmatprep.subr.mxu0 0.0
    %2604 = vmatpush2.msra.mxu0 0.0
    %2605 = vmatprep.subr.mxu0 0.0
    %2606 = vmatpush2.msra.mxu0 0.0
    %2607 = vmatprep.subr.mxu0 0.0
    %2608 = vmatpush2.msra.mxu0 0.0
    %2609 = vmatprep.subr.mxu0 0.0
    %2610 = vmatpush2.msra.mxu0 0.0
    %2611 = vmatprep.subr.mxu0 0.0
    %2612 = vmatpush2.msra.mxu0 0.0
    %2613 = vmatprep.subr.mxu0 0.0
    %2614 = vmatpush2.msra.mxu0 0.0
    %2615 = vmatprep.subr.mxu0 0.0
    %2616 = vmatpush2.msra.mxu0 0.0
    %2617 = vmatprep.subr.mxu0 0.0
    %2618 = vmatpush2.msra.mxu0 0.0
    %2619 = vmatprep.subr.mxu0 0.0
    %2620 = vmatpush2.msra.mxu0 0.0
    %2621 = vmatprep.subr.mxu0 0.0
    %2622 = vmatpush2.msra.mxu0 0.0
    %2623 = vmatprep.subr.mxu0 0.0
    %2624 = vmatpush2.msra.mxu0 0.0
    %2625 = vmatprep.subr.mxu0 0.0
    %2626 = vmatpush2.msra.mxu0 0.0
    %2627 = vmatprep.subr.mxu0 0.0
    %2628 = vmatpush2.msra.mxu0 0.0
    %2629 = vmatprep.subr.mxu0 0.0
    %2630 = vmatpush2.msra.mxu0 0.0
    %2631 = vmatprep.subr.mxu0 0.0
    %2632 = vmatpush2.msra.mxu0 0.0
    %2633 = vmatprep.subr.mxu0 0.0
    %2634 = vmatpush2.msra.mxu0 0.0
    %2635 = vmatprep.mubr.f32.mxu0 0.0
    %2636 = vmatmul.mubr.f32.gmra.mxu0 %v2569
    %v2637 = vpop.f32.mrf.mxu0
    %v2638 = vadd.f32 0.0, %v2637
    %v2639 = vpop.f32.mrf.mxu0
    %v2640 = vadd.f32 0.0, %v2639
    %2641 = vdwg.mxu0
    %2642 = vmatprep.subr.mxu0 %v305
    %2643 = vmatpush1.msra.mxu0 %v304
    %2644 = vmatprep.subr.mxu0 %v301
    %2645 = vmatpush1.msra.mxu0 %v300
    %2646 = vmatprep.subr.mxu0 %v297
    %2647 = vmatpush1.msra.mxu0 %v296
    %2648 = vmatprep.subr.mxu0 %v293
    %2649 = vmatpush1.msra.mxu0 %v292
    %2650 = vmatprep.subr.mxu0 %v289
    %2651 = vmatpush1.msra.mxu0 %v288
    %2652 = vmatprep.subr.mxu0 %v285
    %2653 = vmatpush1.msra.mxu0 %v284
    %2654 = vmatprep.subr.mxu0 %v281
    %2655 = vmatpush1.msra.mxu0 %v280
    %2656 = vmatprep.subr.mxu0 %v277
    %2657 = vmatpush1.msra.mxu0 %v276
    %2658 = vmatprep.subr.mxu0 %v273
    %2659 = vmatpush1.msra.mxu0 %v272
    %2660 = vmatprep.subr.mxu0 %v269
    %2661 = vmatpush1.msra.mxu0 %v268
    %2662 = vmatprep.subr.mxu0 %v265
    %2663 = vmatpush1.msra.mxu0 %v264
    %2664 = vmatprep.subr.mxu0 %v261
    %2665 = vmatpush1.msra.mxu0 %v260
    %2666 = vmatprep.subr.mxu0 %v257
    %2667 = vmatpush1.msra.mxu0 %v256
    %2668 = vmatprep.subr.mxu0 %v253
    %2669 = vmatpush1.msra.mxu0 %v252
    %2670 = vmatprep.subr.mxu0 %v249
    %2671 = vmatpush1.msra.mxu0 %v248
    %2672 = vmatprep.subr.mxu0 %v245
    %2673 = vmatpush1.msra.mxu0 %v244
    %2674 = vmatprep.subr.mxu0 0.0
    %2675 = vmatpush2.msra.mxu0 0.0
    %2676 = vmatprep.subr.mxu0 0.0
    %2677 = vmatpush2.msra.mxu0 0.0
    %2678 = vmatprep.subr.mxu0 0.0
    %2679 = vmatpush2.msra.mxu0 0.0
    %2680 = vmatprep.subr.mxu0 0.0
    %2681 = vmatpush2.msra.mxu0 0.0
    %2682 = vmatprep.subr.mxu0 0.0
    %2683 = vmatpush2.msra.mxu0 0.0
    %2684 = vmatprep.subr.mxu0 0.0
    %2685 = vmatpush2.msra.mxu0 0.0
    %2686 = vmatprep.subr.mxu0 0.0
    %2687 = vmatpush2.msra.mxu0 0.0
    %2688 = vmatprep.subr.mxu0 0.0
    %2689 = vmatpush2.msra.mxu0 0.0
    %2690 = vmatprep.subr.mxu0 0.0
    %2691 = vmatpush2.msra.mxu0 0.0
    %2692 = vmatprep.subr.mxu0 0.0
    %2693 = vmatpush2.msra.mxu0 0.0
    %2694 = vmatprep.subr.mxu0 0.0
    %2695 = vmatpush2.msra.mxu0 0.0
    %2696 = vmatprep.subr.mxu0 0.0
    %2697 = vmatpush2.msra.mxu0 0.0
    %2698 = vmatprep.subr.mxu0 0.0
    %2699 = vmatpush2.msra.mxu0 0.0
    %2700 = vmatprep.subr.mxu0 0.0
    %2701 = vmatpush2.msra.mxu0 0.0
    %2702 = vmatprep.subr.mxu0 0.0
    %2703 = vmatpush2.msra.mxu0 0.0
    %2704 = vmatprep.subr.mxu0 0.0
    %2705 = vmatpush2.msra.mxu0 0.0
    %2706 = vmatprep.mubr.f32.mxu0 0.0
    %2707 = vmatmul.mubr.f32.gmra.mxu0 %v2569
    %v2708 = vpop.f32.mrf.mxu0
    %v2709 = vadd.f32 0.0, %v2708
    %v2710 = vpop.f32.mrf.mxu0
    %v2711 = vadd.f32 0.0, %v2710
    %2712 = vdwg.mxu0
    %v2717 = vrot.slane %v2638, 6
    %v2718 = vrot.slane %v2640, 6
    %v2719 = vrot.slane %v2709, 6
    %v2720 = vrot.slane %v2711, 6
    %v2725 = vadd.f32 %v2564, %v2717
    %v2726 = vadd.f32 %v2565, %v2718
    %v2727 = vadd.f32 %v2566, %v2719
    %v2728 = vadd.f32 %v2567, %v2720
    %v2729 = vxor.u32 %v2560, 2147483648
    %v2730 = vmul.f32 %v2729, 1.442695
    %v2731 = vpow.pop %v2730
    %v2732 = vadd.f32 %v2731, 1.0
    %v2733 = vrcp.pop %v2732
    %v2734 = vmul.f32 1.0, %v2733
    %v2735 = vxor.u32 %v2561, 2147483648
    %v2736 = vmul.f32 %v2735, 1.442695
    %v2737 = vpow.pop %v2736
    %v2738 = vadd.f32 %v2737, 1.0
    %v2739 = vrcp.pop %v2738
    %v2740 = vmul.f32 1.0, %v2739
    %v2741 = vtanh.pop %v2562
    %v2742 = vxor.u32 %v2563, 2147483648
    %v2743 = vmul.f32 %v2742, 1.442695
    %v2744 = vpow.pop %v2743
    %v2745 = vadd.f32 %v2744, 1.0
    %v2746 = vrcp.pop %v2745
    %v2747 = vmul.f32 1.0, %v2746
    %v2749 = vrot.slane %v2369, 6
    %v2751 = vmul.f32 %v2740, %v2749
    %v2752 = vmul.f32 %v2734, %v2741
    %v2753 = vadd.f32 %v2751, %v2752
    %v2754 = vtanh.pop %v2753
    %v2755 = vmul.f32 %v2747, %v2754
    %v2756 = vxor.u32 %v2725, 2147483648
    %v2757 = vmul.f32 %v2756, 1.442695
    %v2758 = vpow.pop %v2757
    %v2759 = vadd.f32 %v2758, 1.0
    %v2760 = vrcp.pop %v2759
    %v2761 = vmul.f32 1.0, %v2760
    %v2762 = vxor.u32 %v2726, 2147483648
    %v2763 = vmul.f32 %v2762, 1.442695
    %v2764 = vpow.pop %v2763
    %v2765 = vadd.f32 %v2764, 1.0
    %v2766 = vrcp.pop %v2765
    %v2767 = vmul.f32 1.0, %v2766
    %v2768 = vtanh.pop %v2727
    %v2769 = vxor.u32 %v2728, 2147483648
    %v2770 = vmul.f32 %v2769, 1.442695
    %v2771 = vpow.pop %v2770
    %v2772 = vadd.f32 %v2771, 1.0
    %v2773 = vrcp.pop %v2772
    %v2774 = vmul.f32 1.0, %v2773
    %v2776 = vrot.slane %v2396, 2
    %v2778 = vmul.f32 %v2767, %v2776
    %v2779 = vmul.f32 %v2761, %v2768
    %v2780 = vadd.f32 %v2778, %v2779
    %v2781 = vtanh.pop %v2780
    %v2782 = vmul.f32 %v2774, %v2781
    %v2783 = vld [vmem:[%s0 + $0x20] sm:$0xc0]
    %v2784 = vld [vmem:[%s0 + $0x28] sm:$0xc0]
    %v2785 = vld [vmem:[%s0 + $0x30] sm:$0xc0]
    %v2786 = vld [vmem:[%s0 + $0x38] sm:$0xc0]
    %v2788 = vrot.slane %v2755, 4
    %2790 = vmatprep.subr.mxu0 %v89
    %2791 = vmatpush1.msra.mxu0 %v88
    %2792 = vmatprep.subr.mxu0 %v85
    %2793 = vmatpush1.msra.mxu0 %v84
    %2794 = vmatprep.subr.mxu0 %v81
    %2795 = vmatpush1.msra.mxu0 %v80
    %2796 = vmatprep.subr.mxu0 %v77
    %2797 = vmatpush1.msra.mxu0 %v76
    %2798 = vmatprep.subr.mxu0 %v73
    %2799 = vmatpush1.msra.mxu0 %v72
    %2800 = vmatprep.subr.mxu0 %v69
    %2801 = vmatpush1.msra.mxu0 %v68
    %2802 = vmatprep.subr.mxu0 %v65
    %2803 = vmatpush1.msra.mxu0 %v64
    %2804 = vmatprep.subr.mxu0 %v61
    %2805 = vmatpush1.msra.mxu0 %v60
    %2806 = vmatprep.subr.mxu0 %v57
    %2807 = vmatpush1.msra.mxu0 %v56
    %2808 = vmatprep.subr.mxu0 %v53
    %2809 = vmatpush1.msra.mxu0 %v52
    %2810 = vmatprep.subr.mxu0 %v49
    %2811 = vmatpush1.msra.mxu0 %v48
    %2812 = vmatprep.subr.mxu0 %v45
    %2813 = vmatpush1.msra.mxu0 %v44
    %2814 = vmatprep.subr.mxu0 %v41
    %2815 = vmatpush1.msra.mxu0 %v40
    %2816 = vmatprep.subr.mxu0 %v37
    %2817 = vmatpush1.msra.mxu0 %v36
    %2818 = vmatprep.subr.mxu0 %v33
    %2819 = vmatpush1.msra.mxu0 %v32
    %2820 = vmatprep.subr.mxu0 %v29
    %2821 = vmatpush1.msra.mxu0 %v28
    %2822 = vmatprep.subr.mxu0 0.0
    %2823 = vmatpush2.msra.mxu0 0.0
    %2824 = vmatprep.subr.mxu0 0.0
    %2825 = vmatpush2.msra.mxu0 0.0
    %2826 = vmatprep.subr.mxu0 0.0
    %2827 = vmatpush2.msra.mxu0 0.0
    %2828 = vmatprep.subr.mxu0 0.0
    %2829 = vmatpush2.msra.mxu0 0.0
    %2830 = vmatprep.subr.mxu0 0.0
    %2831 = vmatpush2.msra.mxu0 0.0
    %2832 = vmatprep.subr.mxu0 0.0
    %2833 = vmatpush2.msra.mxu0 0.0
    %2834 = vmatprep.subr.mxu0 0.0
    %2835 = vmatpush2.msra.mxu0 0.0
    %2836 = vmatprep.subr.mxu0 0.0
    %2837 = vmatpush2.msra.mxu0 0.0
    %2838 = vmatprep.subr.mxu0 0.0
    %2839 = vmatpush2.msra.mxu0 0.0
    %2840 = vmatprep.subr.mxu0 0.0
    %2841 = vmatpush2.msra.mxu0 0.0
    %2842 = vmatprep.subr.mxu0 0.0
    %2843 = vmatpush2.msra.mxu0 0.0
    %2844 = vmatprep.subr.mxu0 0.0
    %2845 = vmatpush2.msra.mxu0 0.0
    %2846 = vmatprep.subr.mxu0 0.0
    %2847 = vmatpush2.msra.mxu0 0.0
    %2848 = vmatprep.subr.mxu0 0.0
    %2849 = vmatpush2.msra.mxu0 0.0
    %2850 = vmatprep.subr.mxu0 0.0
    %2851 = vmatpush2.msra.mxu0 0.0
    %2852 = vmatprep.subr.mxu0 0.0
    %2853 = vmatpush2.msra.mxu0 0.0
    %2854 = vmatprep.mubr.f32.mxu0 0.0
    %2855 = vmatmul.mubr.f32.gmra.mxu0 %v2788
    %v2856 = vpop.f32.mrf.mxu0
    %v2857 = vadd.f32 0.0, %v2856
    %v2858 = vpop.f32.mrf.mxu0
    %v2859 = vadd.f32 0.0, %v2858
    %2860 = vdwg.mxu0
    %2861 = vmatprep.subr.mxu0 %v91
    %2862 = vmatpush1.msra.mxu0 %v90
    %2863 = vmatprep.subr.mxu0 %v87
    %2864 = vmatpush1.msra.mxu0 %v86
    %2865 = vmatprep.subr.mxu0 %v83
    %2866 = vmatpush1.msra.mxu0 %v82
    %2867 = vmatprep.subr.mxu0 %v79
    %2868 = vmatpush1.msra.mxu0 %v78
    %2869 = vmatprep.subr.mxu0 %v75
    %2870 = vmatpush1.msra.mxu0 %v74
    %2871 = vmatprep.subr.mxu0 %v71
    %2872 = vmatpush1.msra.mxu0 %v70
    %2873 = vmatprep.subr.mxu0 %v67
    %2874 = vmatpush1.msra.mxu0 %v66
    %2875 = vmatprep.subr.mxu0 %v63
    %2876 = vmatpush1.msra.mxu0 %v62
    %2877 = vmatprep.subr.mxu0 %v59
    %2878 = vmatpush1.msra.mxu0 %v58
    %2879 = vmatprep.subr.mxu0 %v55
    %2880 = vmatpush1.msra.mxu0 %v54
    %2881 = vmatprep.subr.mxu0 %v51
    %2882 = vmatpush1.msra.mxu0 %v50
    %2883 = vmatprep.subr.mxu0 %v47
    %2884 = vmatpush1.msra.mxu0 %v46
    %2885 = vmatprep.subr.mxu0 %v43
    %2886 = vmatpush1.msra.mxu0 %v42
    %2887 = vmatprep.subr.mxu0 %v39
    %2888 = vmatpush1.msra.mxu0 %v38
    %2889 = vmatprep.subr.mxu0 %v35
    %2890 = vmatpush1.msra.mxu0 %v34
    %2891 = vmatprep.subr.mxu0 %v31
    %2892 = vmatpush1.msra.mxu0 %v30
    %2893 = vmatprep.subr.mxu0 0.0
    %2894 = vmatpush2.msra.mxu0 0.0
    %2895 = vmatprep.subr.mxu0 0.0
    %2896 = vmatpush2.msra.mxu0 0.0
    %2897 = vmatprep.subr.mxu0 0.0
    %2898 = vmatpush2.msra.mxu0 0.0
    %2899 = vmatprep.subr.mxu0 0.0
    %2900 = vmatpush2.msra.mxu0 0.0
    %2901 = vmatprep.subr.mxu0 0.0
    %2902 = vmatpush2.msra.mxu0 0.0
    %2903 = vmatprep.subr.mxu0 0.0
    %2904 = vmatpush2.msra.mxu0 0.0
    %2905 = vmatprep.subr.mxu0 0.0
    %2906 = vmatpush2.msra.mxu0 0.0
    %2907 = vmatprep.subr.mxu0 0.0
    %2908 = vmatpush2.msra.mxu0 0.0
    %2909 = vmatprep.subr.mxu0 0.0
    %2910 = vmatpush2.msra.mxu0 0.0
    %2911 = vmatprep.subr.mxu0 0.0
    %2912 = vmatpush2.msra.mxu0 0.0
    %2913 = vmatprep.subr.mxu0 0.0
    %2914 = vmatpush2.msra.mxu0 0.0
    %2915 = vmatprep.subr.mxu0 0.0
    %2916 = vmatpush2.msra.mxu0 0.0
    %2917 = vmatprep.subr.mxu0 0.0
    %2918 = vmatpush2.msra.mxu0 0.0
    %2919 = vmatprep.subr.mxu0 0.0
    %2920 = vmatpush2.msra.mxu0 0.0
    %2921 = vmatprep.subr.mxu0 0.0
    %2922 = vmatpush2.msra.mxu0 0.0
    %2923 = vmatprep.subr.mxu0 0.0
    %2924 = vmatpush2.msra.mxu0 0.0
    %2925 = vmatprep.mubr.f32.mxu0 0.0
    %2926 = vmatmul.mubr.f32.gmra.mxu0 %v2788
    %v2927 = vpop.f32.mrf.mxu0
    %v2928 = vadd.f32 0.0, %v2927
    %v2929 = vpop.f32.mrf.mxu0
    %v2930 = vadd.f32 0.0, %v2929
    %2931 = vdwg.mxu0
    %v2936 = vrot.slane %v2857, 2
    %v2937 = vrot.slane %v2859, 2
    %v2938 = vrot.slane %v2928, 2
    %v2939 = vrot.slane %v2930, 2
    %v2944 = vadd.f32 %v2783, %v2936
    %v2945 = vadd.f32 %v2784, %v2937
    %v2946 = vadd.f32 %v2785, %v2938
    %v2947 = vadd.f32 %v2786, %v2939
    %v2948 = vld [vmem:[%s1] sm:$0x3]
    %v2949 = vld [vmem:[%s1 + $0x8] sm:$0x3]
    %v2950 = vld [vmem:[%s1 + $0x10] sm:$0x3]
    %v2951 = vld [vmem:[%s1 + $0x18] sm:$0x3]
    %v2953 = vrot.slane %v2782, 2
    %2955 = vmatprep.subr.mxu0 %v303
    %2956 = vmatpush1.msra.mxu0 %v302
    %2957 = vmatprep.subr.mxu0 %v299
    %2958 = vmatpush1.msra.mxu0 %v298
    %2959 = vmatprep.subr.mxu0 %v295
    %2960 = vmatpush1.msra.mxu0 %v294
    %2961 = vmatprep.subr.mxu0 %v291
    %2962 = vmatpush1.msra.mxu0 %v290
    %2963 = vmatprep.subr.mxu0 %v287
    %2964 = vmatpush1.msra.mxu0 %v286
    %2965 = vmatprep.subr.mxu0 %v283
    %2966 = vmatpush1.msra.mxu0 %v282
    %2967 = vmatprep.subr.mxu0 %v279
    %2968 = vmatpush1.msra.mxu0 %v278
    %2969 = vmatprep.subr.mxu0 %v275
    %2970 = vmatpush1.msra.mxu0 %v274
    %2971 = vmatprep.subr.mxu0 %v271
    %2972 = vmatpush1.msra.mxu0 %v270
    %2973 = vmatprep.subr.mxu0 %v267
    %2974 = vmatpush1.msra.mxu0 %v266
    %2975 = vmatprep.subr.mxu0 %v263
    %2976 = vmatpush1.msra.mxu0 %v262
    %2977 = vmatprep.subr.mxu0 %v259
    %2978 = vmatpush1.msra.mxu0 %v258
    %2979 = vmatprep.subr.mxu0 %v255
    %2980 = vmatpush1.msra.mxu0 %v254
    %2981 = vmatprep.subr.mxu0 %v251
    %2982 = vmatpush1.msra.mxu0 %v250
    %2983 = vmatprep.subr.mxu0 %v247
    %2984 = vmatpush1.msra.mxu0 %v246
    %2985 = vmatprep.subr.mxu0 %v243
    %2986 = vmatpush1.msra.mxu0 %v242
    %2987 = vmatprep.subr.mxu0 0.0
    %2988 = vmatpush2.msra.mxu0 0.0
    %2989 = vmatprep.subr.mxu0 0.0
    %2990 = vmatpush2.msra.mxu0 0.0
    %2991 = vmatprep.subr.mxu0 0.0
    %2992 = vmatpush2.msra.mxu0 0.0
    %2993 = vmatprep.subr.mxu0 0.0
    %2994 = vmatpush2.msra.mxu0 0.0
    %2995 = vmatprep.subr.mxu0 0.0
    %2996 = vmatpush2.msra.mxu0 0.0
    %2997 = vmatprep.subr.mxu0 0.0
    %2998 = vmatpush2.msra.mxu0 0.0
    %2999 = vmatprep.subr.mxu0 0.0
    %3000 = vmatpush2.msra.mxu0 0.0
    %3001 = vmatprep.subr.mxu0 0.0
    %3002 = vmatpush2.msra.mxu0 0.0
    %3003 = vmatprep.subr.mxu0 0.0
    %3004 = vmatpush2.msra.mxu0 0.0
    %3005 = vmatprep.subr.mxu0 0.0
    %3006 = vmatpush2.msra.mxu0 0.0
    %3007 = vmatprep.subr.mxu0 0.0
    %3008 = vmatpush2.msra.mxu0 0.0
    %3009 = vmatprep.subr.mxu0 0.0
    %3010 = vmatpush2.msra.mxu0 0.0
    %3011 = vmatprep.subr.mxu0 0.0
    %3012 = vmatpush2.msra.mxu0 0.0
    %3013 = vmatprep.subr.mxu0 0.0
    %3014 = vmatpush2.msra.mxu0 0.0
    %3015 = vmatprep.subr.mxu0 0.0
    %3016 = vmatpush2.msra.mxu0 0.0
    %3017 = vmatprep.subr.mxu0 0.0
    %3018 = vmatpush2.msra.mxu0 0.0
    %3019 = vmatprep.mubr.f32.mxu0 0.0
    %3020 = vmatmul.mubr.f32.gmra.mxu0 %v2953
    %v3021 = vpop.f32.mrf.mxu0
    %v3022 = vadd.f32 0.0, %v3021
    %v3023 = vpop.f32.mrf.mxu0
    %v3024 = vadd.f32 0.0, %v3023
    %3025 = vdwg.mxu0
    %3026 = vmatprep.subr.mxu0 %v305
    %3027 = vmatpush1.msra.mxu0 %v304
    %3028 = vmatprep.subr.mxu0 %v301
    %3029 = vmatpush1.msra.mxu0 %v300
    %3030 = vmatprep.subr.mxu0 %v297
    %3031 = vmatpush1.msra.mxu0 %v296
    %3032 = vmatprep.subr.mxu0 %v293
    %3033 = vmatpush1.msra.mxu0 %v292
    %3034 = vmatprep.subr.mxu0 %v289
    %3035 = vmatpush1.msra.mxu0 %v288
    %3036 = vmatprep.subr.mxu0 %v285
    %3037 = vmatpush1.msra.mxu0 %v284
    %3038 = vmatprep.subr.mxu0 %v281
    %3039 = vmatpush1.msra.mxu0 %v280
    %3040 = vmatprep.subr.mxu0 %v277
    %3041 = vmatpush1.msra.mxu0 %v276
    %3042 = vmatprep.subr.mxu0 %v273
    %3043 = vmatpush1.msra.mxu0 %v272
    %3044 = vmatprep.subr.mxu0 %v269
    %3045 = vmatpush1.msra.mxu0 %v268
    %3046 = vmatprep.subr.mxu0 %v265
    %3047 = vmatpush1.msra.mxu0 %v264
    %3048 = vmatprep.subr.mxu0 %v261
    %3049 = vmatpush1.msra.mxu0 %v260
    %3050 = vmatprep.subr.mxu0 %v257
    %3051 = vmatpush1.msra.mxu0 %v256
    %3052 = vmatprep.subr.mxu0 %v253
    %3053 = vmatpush1.msra.mxu0 %v252
    %3054 = vmatprep.subr.mxu0 %v249
    %3055 = vmatpush1.msra.mxu0 %v248
    %3056 = vmatprep.subr.mxu0 %v245
    %3057 = vmatpush1.msra.mxu0 %v244
    %3058 = vmatprep.subr.mxu0 0.0
    %3059 = vmatpush2.msra.mxu0 0.0
    %3060 = vmatprep.subr.mxu0 0.0
    %3061 = vmatpush2.msra.mxu0 0.0
    %3062 = vmatprep.subr.mxu0 0.0
    %3063 = vmatpush2.msra.mxu0 0.0
    %3064 = vmatprep.subr.mxu0 0.0
    %3065 = vmatpush2.msra.mxu0 0.0
    %3066 = vmatprep.subr.mxu0 0.0
    %3067 = vmatpush2.msra.mxu0 0.0
    %3068 = vmatprep.subr.mxu0 0.0
    %3069 = vmatpush2.msra.mxu0 0.0
    %3070 = vmatprep.subr.mxu0 0.0
    %3071 = vmatpush2.msra.mxu0 0.0
    %3072 = vmatprep.subr.mxu0 0.0
    %3073 = vmatpush2.msra.mxu0 0.0
    %3074 = vmatprep.subr.mxu0 0.0
    %3075 = vmatpush2.msra.mxu0 0.0
    %3076 = vmatprep.subr.mxu0 0.0
    %3077 = vmatpush2.msra.mxu0 0.0
    %3078 = vmatprep.subr.mxu0 0.0
    %3079 = vmatpush2.msra.mxu0 0.0
    %3080 = vmatprep.subr.mxu0 0.0
    %3081 = vmatpush2.msra.mxu0 0.0
    %3082 = vmatprep.subr.mxu0 0.0
    %3083 = vmatpush2.msra.mxu0 0.0
    %3084 = vmatprep.subr.mxu0 0.0
    %3085 = vmatpush2.msra.mxu0 0.0
    %3086 = vmatprep.subr.mxu0 0.0
    %3087 = vmatpush2.msra.mxu0 0.0
    %3088 = vmatprep.subr.mxu0 0.0
    %3089 = vmatpush2.msra.mxu0 0.0
    %3090 = vmatprep.mubr.f32.mxu0 0.0
    %3091 = vmatmul.mubr.f32.gmra.mxu0 %v2953
    %v3092 = vpop.f32.mrf.mxu0
    %v3093 = vadd.f32 0.0, %v3092
    %v3094 = vpop.f32.mrf.mxu0
    %v3095 = vadd.f32 0.0, %v3094
    %3096 = vdwg.mxu0
    %v3097 = vadd.f32 %v2948, %v3022
    %v3098 = vadd.f32 %v2949, %v3024
    %v3099 = vadd.f32 %v2950, %v3093
    %v3100 = vadd.f32 %v2951, %v3095
    %v3101 = vxor.u32 %v2944, 2147483648
    %v3102 = vmul.f32 %v3101, 1.442695
    %v3103 = vpow.pop %v3102
    %v3104 = vadd.f32 %v3103, 1.0
    %v3105 = vrcp.pop %v3104
    %v3106 = vmul.f32 1.0, %v3105
    %v3107 = vxor.u32 %v2945, 2147483648
    %v3108 = vmul.f32 %v3107, 1.442695
    %v3109 = vpow.pop %v3108
    %v3110 = vadd.f32 %v3109, 1.0
    %v3111 = vrcp.pop %v3110
    %v3112 = vmul.f32 1.0, %v3111
    %v3113 = vtanh.pop %v2946
    %v3114 = vxor.u32 %v2947, 2147483648
    %v3115 = vmul.f32 %v3114, 1.442695
    %v3116 = vpow.pop %v3115
    %v3117 = vadd.f32 %v3116, 1.0
    %v3118 = vrcp.pop %v3117
    %v3119 = vmul.f32 1.0, %v3118
    %v3121 = vrot.slane %v2753, 6
    %v3123 = vmul.f32 %v3112, %v3121
    %v3124 = vmul.f32 %v3106, %v3113
    %v3125 = vadd.f32 %v3123, %v3124
    %v3126 = vtanh.pop %v3125
    %v3127 = vmul.f32 %v3119, %v3126
    %v3128 = vxor.u32 %v3097, 2147483648
    %v3129 = vmul.f32 %v3128, 1.442695
    %v3130 = vpow.pop %v3129
    %v3131 = vadd.f32 %v3130, 1.0
    %v3132 = vrcp.pop %v3131
    %v3133 = vmul.f32 1.0, %v3132
    %v3134 = vxor.u32 %v3098, 2147483648
    %v3135 = vmul.f32 %v3134, 1.442695
    %v3136 = vpow.pop %v3135
    %v3137 = vadd.f32 %v3136, 1.0
    %v3138 = vrcp.pop %v3137
    %v3139 = vmul.f32 1.0, %v3138
    %v3140 = vtanh.pop %v3099
    %v3141 = vxor.u32 %v3100, 2147483648
    %v3142 = vmul.f32 %v3141, 1.442695
    %v3143 = vpow.pop %v3142
    %v3144 = vadd.f32 %v3143, 1.0
    %v3145 = vrcp.pop %v3144
    %v3146 = vmul.f32 1.0, %v3145
    %v3148 = vrot.slane %v2780, 2
    %v3150 = vmul.f32 %v3139, %v3148
    %v3151 = vmul.f32 %v3133, %v3140
    %v3152 = vadd.f32 %v3150, %v3151
    %v3153 = vtanh.pop %v3152
    %v3154 = vmul.f32 %v3146, %v3153
    %v3155 = vld [vmem:[%s4] sm:$0xff]
    %v3156 = vld [vmem:[%s4 + $0x8] sm:$0xff]
    %v3157 = vld [vmem:[%s4 + $0x10] sm:$0xff]
    %v3158 = vld [vmem:[%s4 + $0x18] sm:$0xff]
    %v3159 = vld [vmem:[%s4 + $0x20] sm:$0xff]
    %v3160 = vld [vmem:[%s4 + $0x28] sm:$0xff]
    %v3161 = vld [vmem:[%s4 + $0x30] sm:$0xff]
    %v3162 = vld [vmem:[%s4 + $0x38] sm:$0xff]
    %v3163 = vld [vmem:[%s4 + $0x40] sm:$0xff]
    %v3164 = vld [vmem:[%s4 + $0x48] sm:$0xff]
    %v3165 = vld [vmem:[%s4 + $0x50] sm:$0xff]
    %v3166 = vld [vmem:[%s4 + $0x58] sm:$0xff]
    %v3167 = vld [vmem:[%s4 + $0x60] sm:$0xff]
    %v3168 = vld [vmem:[%s4 + $0x68] sm:$0xff]
    %v3169 = vld [vmem:[%s4 + $0x70] sm:$0xff]
    %v3170 = vld [vmem:[%s4 + $0x78] sm:$0xff]
    %v3171 = vld [vmem:[%s4 + $0x80] sm:$0xff]
    %v3172 = vld [vmem:[%s4 + $0x88] sm:$0xff]
    %v3173 = vld [vmem:[%s4 + $0x90] sm:$0xff]
    %v3174 = vld [vmem:[%s4 + $0x98] sm:$0xff]
    %v3175 = vld [vmem:[%s4 + $0xa0] sm:$0xff]
    %v3176 = vld [vmem:[%s4 + $0xa8] sm:$0xff]
    %v3177 = vld [vmem:[%s4 + $0xb0] sm:$0xff]
    %v3178 = vld [vmem:[%s4 + $0xb8] sm:$0xff]
    %v3179 = vld [vmem:[%s4 + $0xc0] sm:$0xff]
    %v3180 = vld [vmem:[%s4 + $0xc8] sm:$0xff]
    %v3181 = vld [vmem:[%s4 + $0xd0] sm:$0xff]
    %v3182 = vld [vmem:[%s4 + $0xd8] sm:$0xff]
    %v3183 = vld [vmem:[%s4 + $0xe0] sm:$0xff]
    %v3184 = vld [vmem:[%s4 + $0xe8] sm:$0xff]
    %v3185 = vld [vmem:[%s4 + $0xf0] sm:$0xff]
    %v3186 = vld [vmem:[%s4 + $0xf8] sm:$0xff]
    %3187 = vmatprep.subr.mxu0 0.0
    %3188 = vmatpush1.msra.mxu0 %v3186
    %3189 = vmatprep.subr.mxu0 0.0
    %3190 = vmatpush1.msra.mxu0 %v3185
    %3191 = vmatprep.subr.mxu0 0.0
    %3192 = vmatpush1.msra.mxu0 %v3184
    %3193 = vmatprep.subr.mxu0 0.0
    %3194 = vmatpush1.msra.mxu0 %v3183
    %3195 = vmatprep.subr.mxu0 0.0
    %3196 = vmatpush1.msra.mxu0 %v3182
    %3197 = vmatprep.subr.mxu0 0.0
    %3198 = vmatpush1.msra.mxu0 %v3181
    %3199 = vmatprep.subr.mxu0 0.0
    %3200 = vmatpush1.msra.mxu0 %v3180
    %3201 = vmatprep.subr.mxu0 0.0
    %3202 = vmatpush1.msra.mxu0 %v3179
    %3203 = vmatprep.subr.mxu0 0.0
    %3204 = vmatpush1.msra.mxu0 %v3178
    %3205 = vmatprep.subr.mxu0 0.0
    %3206 = vmatpush1.msra.mxu0 %v3177
    %3207 = vmatprep.subr.mxu0 0.0
    %3208 = vmatpush1.msra.mxu0 %v3176
    %3209 = vmatprep.subr.mxu0 0.0
    %3210 = vmatpush1.msra.mxu0 %v3175
    %3211 = vmatprep.subr.mxu0 0.0
    %3212 = vmatpush1.msra.mxu0 %v3174
    %3213 = vmatprep.subr.mxu0 0.0
    %3214 = vmatpush1.msra.mxu0 %v3173
    %3215 = vmatprep.subr.mxu0 0.0
    %3216 = vmatpush1.msra.mxu0 %v3172
    %3217 = vmatprep.subr.mxu0 0.0
    %3218 = vmatpush1.msra.mxu0 %v3171
    %3219 = vmatprep.subr.mxu0 0.0
    %3220 = vmatpush2.msra.mxu0 0.0
    %3221 = vmatprep.subr.mxu0 0.0
    %3222 = vmatpush2.msra.mxu0 0.0
    %3223 = vmatprep.subr.mxu0 0.0
    %3224 = vmatpush2.msra.mxu0 0.0
    %3225 = vmatprep.subr.mxu0 0.0
    %3226 = vmatpush2.msra.mxu0 0.0
    %3227 = vmatprep.subr.mxu0 0.0
    %3228 = vmatpush2.msra.mxu0 0.0
    %3229 = vmatprep.subr.mxu0 0.0
    %3230 = vmatpush2.msra.mxu0 0.0
    %3231 = vmatprep.subr.mxu0 0.0
    %3232 = vmatpush2.msra.mxu0 0.0
    %3233 = vmatprep.subr.mxu0 0.0
    %3234 = vmatpush2.msra.mxu0 0.0
    %3235 = vmatprep.subr.mxu0 0.0
    %3236 = vmatpush2.msra.mxu0 0.0
    %3237 = vmatprep.subr.mxu0 0.0
    %3238 = vmatpush2.msra.mxu0 0.0
    %3239 = vmatprep.subr.mxu0 0.0
    %3240 = vmatpush2.msra.mxu0 0.0
    %3241 = vmatprep.subr.mxu0 0.0
    %3242 = vmatpush2.msra.mxu0 0.0
    %3243 = vmatprep.subr.mxu0 0.0
    %3244 = vmatpush2.msra.mxu0 0.0
    %3245 = vmatprep.subr.mxu0 0.0
    %3246 = vmatpush2.msra.mxu0 0.0
    %3247 = vmatprep.subr.mxu0 0.0
    %3248 = vmatpush2.msra.mxu0 0.0
    %3249 = vmatprep.subr.mxu0 0.0
    %3250 = vmatpush2.msra.mxu0 0.0
    %3251 = vmatprep.mubr.f32.mxu0 0.0
    %3252 = vmatmul.mubr.f32.gmra.mxu0 %v3154
    %v3253 = vpop.f32.mrf.mxu0
    %v3254 = vadd.f32 0.0, %v3253
    %v3255 = vpop.f32.mrf.mxu0
    %3256 = vdwg.mxu0
    %v3258 = vrot.slane %v3127, 6
    %3260 = vmatprep.subr.mxu0 0.0
    %3261 = vmatpush1.msra.mxu0 %v3170
    %3262 = vmatprep.subr.mxu0 0.0
    %3263 = vmatpush1.msra.mxu0 %v3169
    %3264 = vmatprep.subr.mxu0 0.0
    %3265 = vmatpush1.msra.mxu0 %v3168
    %3266 = vmatprep.subr.mxu0 0.0
    %3267 = vmatpush1.msra.mxu0 %v3167
    %3268 = vmatprep.subr.mxu0 0.0
    %3269 = vmatpush1.msra.mxu0 %v3166
    %3270 = vmatprep.subr.mxu0 0.0
    %3271 = vmatpush1.msra.mxu0 %v3165
    %3272 = vmatprep.subr.mxu0 0.0
    %3273 = vmatpush1.msra.mxu0 %v3164
    %3274 = vmatprep.subr.mxu0 0.0
    %3275 = vmatpush1.msra.mxu0 %v3163
    %3276 = vmatprep.subr.mxu0 0.0
    %3277 = vmatpush1.msra.mxu0 %v3162
    %3278 = vmatprep.subr.mxu0 0.0
    %3279 = vmatpush1.msra.mxu0 %v3161
    %3280 = vmatprep.subr.mxu0 0.0
    %3281 = vmatpush1.msra.mxu0 %v3160
    %3282 = vmatprep.subr.mxu0 0.0
    %3283 = vmatpush1.msra.mxu0 %v3159
    %3284 = vmatprep.subr.mxu0 0.0
    %3285 = vmatpush1.msra.mxu0 %v3158
    %3286 = vmatprep.subr.mxu0 0.0
    %3287 = vmatpush1.msra.mxu0 %v3157
    %3288 = vmatprep.subr.mxu0 0.0
    %3289 = vmatpush1.msra.mxu0 %v3156
    %3290 = vmatprep.subr.mxu0 0.0
    %3291 = vmatpush1.msra.mxu0 %v3155
    %3292 = vmatprep.subr.mxu0 0.0
    %3293 = vmatpush2.msra.mxu0 0.0
    %3294 = vmatprep.subr.mxu0 0.0
    %3295 = vmatpush2.msra.mxu0 0.0
    %3296 = vmatprep.subr.mxu0 0.0
    %3297 = vmatpush2.msra.mxu0 0.0
    %3298 = vmatprep.subr.mxu0 0.0
    %3299 = vmatpush2.msra.mxu0 0.0
    %3300 = vmatprep.subr.mxu0 0.0
    %3301 = vmatpush2.msra.mxu0 0.0
    %3302 = vmatprep.subr.mxu0 0.0
    %3303 = vmatpush2.msra.mxu0 0.0
    %3304 = vmatprep.subr.mxu0 0.0
    %3305 = vmatpush2.msra.mxu0 0.0
    %3306 = vmatprep.subr.mxu0 0.0
    %3307 = vmatpush2.msra.mxu0 0.0
    %3308 = vmatprep.subr.mxu0 0.0
    %3309 = vmatpush2.msra.mxu0 0.0
    %3310 = vmatprep.subr.mxu0 0.0
    %3311 = vmatpush2.msra.mxu0 0.0
    %3312 = vmatprep.subr.mxu0 0.0
    %3313 = vmatpush2.msra.mxu0 0.0
    %3314 = vmatprep.subr.mxu0 0.0
    %3315 = vmatpush2.msra.mxu0 0.0
    %3316 = vmatprep.subr.mxu0 0.0
    %3317 = vmatpush2.msra.mxu0 0.0
    %3318 = vmatprep.subr.mxu0 0.0
    %3319 = vmatpush2.msra.mxu0 0.0
    %3320 = vmatprep.subr.mxu0 0.0
    %3321 = vmatpush2.msra.mxu0 0.0
    %3322 = vmatprep.subr.mxu0 0.0
    %3323 = vmatpush2.msra.mxu0 0.0
    %3324 = vmatprep.mubr.f32.mxu0 0.0
    %3325 = vmatmul.mubr.f32.gmra.mxu0 %v3258
    %v3326 = vpop.f32.mrf.mxu0
    %v3327 = vadd.f32 %v3254, %v3326
    %v3328 = vpop.f32.mrf.mxu0
    %3329 = vdwg.mxu0
    %v3330 = vld [vmem:[%s5] sm:$0x1]
    %v3332 = vlaneseq
    %v3333 = vshrl.u32 %v3332, 7
    %v3334 = vsub.s32 0, %v3333
    %v3335 = vrot.slane %v3330, %v3334
    %v3337 = vadd.f32 %v3327, %v3335
    %vm3338 = vcmask 33792
    %3339 = vst.msk [vmem:[#allocation2] sm:$0x3] %vm3338, %v3337
    // Predicated region
    $region26: #{lstm_classifier_forward.7} parent=1 // pred_check
      _
    $region27: #{lstm_classifier_forward.7} parent=1 // pred_check_branch
      %3341 = sbr.rel (0) target = $region29
    $region28: #{lstm_classifier_forward.7} parent=1 // pred_region
      %s3343 = ssub.s32 32, 32
      %3344 = vsyncadd [#allocation3], %s3343
      %s3346 = sshll.u32 [#allocation2], 4
      %s3347 = int_to_ptr.vmem [resolvable:$true] %s3346
      %3349 = dma.vmem_to_hbm [thread:$0]  %s3347, 32, %s6, [#allocation3]
    $region29: #{lstm_classifier_forward.7} parent=1 // pred_fallthru
      _
    // Predicated region
    $region30: #{lstm_classifier_forward.7} parent=1 // pred_check
      _
    $region31: #{lstm_classifier_forward.7} parent=1 // pred_check_branch
      %3351 = sbr.rel (0) target = $region33
    $region32: #{lstm_classifier_forward.7} parent=1 // pred_region
      %3352 = dma.done [#allocation3], 32
    $region33: #{lstm_classifier_forward.7} parent=1 // pred_fallthru
      _
    %3353 = vsyncpa [#allocation3], 1

// kernel: lstm_classifier_forward.5
$region0: #{lstm_classifier_forward.5}
  #allocation0 [shape = 'u32[]', space=smem, size = 0x4, offset = 0x4, fixed_abs, tag = 'smem constant byte address 0x4 - core index']
  #allocation1 [shape = 'u32[144,128]{1,0:T(1,128)}', space=vmem, size = 0x12000, scoped, tag = 'internal scratch']
  %s0 = inlined_call_operand.vmem [shape: f32[16,512], index: 0, kind: input, shape index: {}]
  %s1 = inlined_call_operand.vmem [shape: f32[16,512], index: 1, kind: input, shape index: {}]
  %s2 = inlined_call_operand.hbm [shape: f32[128,512], index: 2, kind: input, shape index: {}]
  %s3 = inlined_call_operand.hbm [shape: f32[128,512], index: 3, kind: input, shape index: {}]
  %s4 = inlined_call_operand.vmem [shape: f32[16,256], index: 4, kind: output, shape index: {}]
  %s5 = sld [smem:[#allocation0]]
  $region34: #{lstm_classifier_forward.5} parent=0
    _
  %s7 = ssub.s32 1, %s5
  %s8 = scalar_select 0, %s7, %s5
  $region1: #{lstm_classifier_forward.5} parent=0
    #allocation2 [shape = 'u8[262144]{0}', space=vmem, size = 0x40000, scoped, tag = 'input window, operand 2, single buffered']
    #allocation3 [shape = 's32[1]{0}', space=sflag, size = 0x4, scoped, tag = 'scoped memory for lstm_classifier_forward.5']
    #allocation4 [shape = 'u8[262144]{0}', space=vmem, size = 0x40000, scoped, tag = 'input window, operand 3, single buffered']
    #allocation5 [shape = 's32[1]{0}', space=sflag, size = 0x4, scoped, tag = 'scoped memory for lstm_classifier_forward.5']
    %9 = vsyncpa [#allocation3], 0
    %10 = vsyncpa [#allocation5], 0
    // Predicated region
    $region2: #{lstm_classifier_forward.5} parent=1 // pred_check
      _
    $region3: #{lstm_classifier_forward.5} parent=1 // pred_check_branch
      %12 = sbr.rel (0) target = $region5
    $region4: #{lstm_classifier_forward.5} parent=1 // pred_region
      _
    $region5: #{lstm_classifier_forward.5} parent=1 // pred_fallthru
      _
    // Predicated region
    $region6: #{lstm_classifier_forward.5} parent=1 // pred_check
      _
    $region7: #{lstm_classifier_forward.5} parent=1 // pred_check_branch
      %14 = sbr.rel (0) target = $region9
    $region8: #{lstm_classifier_forward.5} parent=1 // pred_region
      _
    $region9: #{lstm_classifier_forward.5} parent=1 // pred_fallthru
      _
    // Predicated region
    $region10: #{lstm_classifier_forward.5} parent=1 // pred_check
      _
    $region11: #{lstm_classifier_forward.5} parent=1 // pred_check_branch
      %16 = sbr.rel (0) target = $region13
    $region12: #{lstm_classifier_forward.5} parent=1 // pred_region
      %s18 = ssub.s32 8192, 8192
      %19 = vsyncadd [#allocation3], %s18
      %s20 = sshll.u32 [#allocation2], 4
      %s21 = int_to_ptr.vmem [resolvable:$true] %s20
      %26 = dma.hbm_to_vmem [thread:$0]  %s2, 8192, %s21, [#allocation3], 512, 512, 32
    $region13: #{lstm_classifier_forward.5} parent=1 // pred_fallthru
      _
    // Predicated region
    $region14: #{lstm_classifier_forward.5} parent=1 // pred_check
      _
    $region15: #{lstm_classifier_forward.5} parent=1 // pred_check_branch
      %28 = sbr.rel (0) target = $region17
    $region16: #{lstm_classifier_forward.5} parent=1 // pred_region
      %s30 = ssub.s32 8192, 8192
      %31 = vsyncadd [#allocation5], %s30
      %s32 = sshll.u32 [#allocation4], 4
      %s33 = int_to_ptr.vmem [resolvable:$true] %s32
      %38 = dma.hbm_to_vmem [thread:$0]  %s3, 8192, %s33, [#allocation5], 512, 512, 32
    $region17: #{lstm_classifier_forward.5} parent=1 // pred_fallthru
      _
    // Predicated region
    $region18: #{lstm_classifier_forward.5} parent=1 // pred_check
      _
    $region19: #{lstm_classifier_forward.5} parent=1 // pred_check_branch
      %40 = sbr.rel (0) target = $region21
    $region20: #{lstm_classifier_forward.5} parent=1 // pred_region
      %41 = dma.done [#allocation3], 8192
    $region21: #{lstm_classifier_forward.5} parent=1 // pred_fallthru
      _
    // Predicated region
    $region22: #{lstm_classifier_forward.5} parent=1 // pred_check
      _
    $region23: #{lstm_classifier_forward.5} parent=1 // pred_check_branch
      %43 = sbr.rel (0) target = $region25
    $region24: #{lstm_classifier_forward.5} parent=1 // pred_region
      %44 = dma.done [#allocation5], 8192
    $region25: #{lstm_classifier_forward.5} parent=1 // pred_fallthru
      _
    %v45 = vld [vmem:[%s0] sm:$0x3]
    %v46 = vld [vmem:[%s0 + $0x8] sm:$0x3]
    %v47 = vld [vmem:[%s0 + $0x10] sm:$0x3]
    %v48 = vld [vmem:[%s0 + $0x18] sm:$0x3]
    %v49 = vld [vmem:[#allocation2] sm:$0xff]
    %v50 = vld [vmem:[#allocation2 + $0x8] sm:$0xff]
    %v51 = vld [vmem:[#allocation2 + $0x10] sm:$0xff]
    %v52 = vld [vmem:[#allocation2 + $0x18] sm:$0xff]
    %v53 = vld [vmem:[#allocation2 + $0x20] sm:$0xff]
    %v54 = vld [vmem:[#allocation2 + $0x28] sm:$0xff]
    %v55 = vld [vmem:[#allocation2 + $0x30] sm:$0xff]
    %v56 = vld [vmem:[#allocation2 + $0x38] sm:$0xff]
    %v57 = vld [vmem:[#allocation2 + $0x40] sm:$0xff]
    %v58 = vld [vmem:[#allocation2 + $0x48] sm:$0xff]
    %v59 = vld [vmem:[#allocation2 + $0x50] sm:$0xff]
    %v60 = vld [vmem:[#allocation2 + $0x58] sm:$0xff]
    %v61 = vld [vmem:[#allocation2 + $0x60] sm:$0xff]
    %v62 = vld [vmem:[#allocation2 + $0x68] sm:$0xff]
    %v63 = vld [vmem:[#allocation2 + $0x70] sm:$0xff]
    %v64 = vld [vmem:[#allocation2 + $0x78] sm:$0xff]
    %v65 = vld [vmem:[#allocation2 + $0x80] sm:$0xff]
    %v66 = vld [vmem:[#allocation2 + $0x88] sm:$0xff]
    %v67 = vld [vmem:[#allocation2 + $0x90] sm:$0xff]
    %v68 = vld [vmem:[#allocation2 + $0x98] sm:$0xff]
    %v69 = vld [vmem:[#allocation2 + $0xa0] sm:$0xff]
    %v70 = vld [vmem:[#allocation2 + $0xa8] sm:$0xff]
    %v71 = vld [vmem:[#allocation2 + $0xb0] sm:$0xff]
    %v72 = vld [vmem:[#allocation2 + $0xb8] sm:$0xff]
    %v73 = vld [vmem:[#allocation2 + $0xc0] sm:$0xff]
    %v74 = vld [vmem:[#allocation2 + $0xc8] sm:$0xff]
    %v75 = vld [vmem:[#allocation2 + $0xd0] sm:$0xff]
    %v76 = vld [vmem:[#allocation2 + $0xd8] sm:$0xff]
    %v77 = vld [vmem:[#allocation2 + $0xe0] sm:$0xff]
    %v78 = vld [vmem:[#allocation2 + $0xe8] sm:$0xff]
    %v79 = vld [vmem:[#allocation2 + $0xf0] sm:$0xff]
    %v80 = vld [vmem:[#allocation2 + $0xf8] sm:$0xff]
    %v81 = vld [vmem:[#allocation2 + $0x100] sm:$0xff]
    %v82 = vld [vmem:[#allocation2 + $0x108] sm:$0xff]
    %v83 = vld [vmem:[#allocation2 + $0x110] sm:$0xff]
    %v84 = vld [vmem:[#allocation2 + $0x118] sm:$0xff]
    %v85 = vld [vmem:[#allocation2 + $0x120] sm:$0xff]
    %v86 = vld [vmem:[#allocation2 + $0x128] sm:$0xff]
    %v87 = vld [vmem:[#allocation2 + $0x130] sm:$0xff]
    %v88 = vld [vmem:[#allocation2 + $0x138] sm:$0xff]
    %v89 = vld [vmem:[#allocation2 + $0x140] sm:$0xff]
    %v90 = vld [vmem:[#allocation2 + $0x148] sm:$0xff]
    %v91 = vld [vmem:[#allocation2 + $0x150] sm:$0xff]
    %v92 = vld [vmem:[#allocation2 + $0x158] sm:$0xff]
    %v93 = vld [vmem:[#allocation2 + $0x160] sm:$0xff]
    %v94 = vld [vmem:[#allocation2 + $0x168] sm:$0xff]
    %v95 = vld [vmem:[#allocation2 + $0x170] sm:$0xff]
    %v96 = vld [vmem:[#allocation2 + $0x178] sm:$0xff]
    %v97 = vld [vmem:[#allocation2 + $0x180] sm:$0xff]
    %v98 = vld [vmem:[#allocation2 + $0x188] sm:$0xff]
    %v99 = vld [vmem:[#allocation2 + $0x190] sm:$0xff]
    %v100 = vld [vmem:[#allocation2 + $0x198] sm:$0xff]
    %v101 = vld [vmem:[#allocation2 + $0x1a0] sm:$0xff]
    %v102 = vld [vmem:[#allocation2 + $0x1a8] sm:$0xff]
    %v103 = vld [vmem:[#allocation2 + $0x1b0] sm:$0xff]
    %v104 = vld [vmem:[#allocation2 + $0x1b8] sm:$0xff]
    %v105 = vld [vmem:[#allocation2 + $0x1c0] sm:$0xff]
    %v106 = vld [vmem:[#allocation2 + $0x1c8] sm:$0xff]
    %v107 = vld [vmem:[#allocation2 + $0x1d0] sm:$0xff]
    %v108 = vld [vmem:[#allocation2 + $0x1d8] sm:$0xff]
    %v109 = vld [vmem:[#allocation2 + $0x1e0] sm:$0xff]
    %v110 = vld [vmem:[#allocation2 + $0x1e8] sm:$0xff]
    %v111 = vld [vmem:[#allocation2 + $0x1f0] sm:$0xff]
    %v112 = vld [vmem:[#allocation2 + $0x1f8] sm:$0xff]
    %113 = vmatprep.subr.mxu0 %v110
    %114 = vmatpush1.msra.mxu0 %v109
    %115 = vmatprep.subr.mxu0 %v106
    %116 = vmatpush1.msra.mxu0 %v105
    %117 = vmatprep.subr.mxu0 %v102
    %118 = vmatpush1.msra.mxu0 %v101
    %119 = vmatprep.subr.mxu0 %v98
    %120 = vmatpush1.msra.mxu0 %v97
    %121 = vmatprep.subr.mxu0 %v94
    %122 = vmatpush1.msra.mxu0 %v93
    %123 = vmatprep.subr.mxu0 %v90
    %124 = vmatpush1.msra.mxu0 %v89
    %125 = vmatprep.subr.mxu0 %v86
    %126 = vmatpush1.msra.mxu0 %v85
    %127 = vmatprep.subr.mxu0 %v82
    %128 = vmatpush1.msra.mxu0 %v81
    %129 = vmatprep.subr.mxu0 %v78
    %130 = vmatpush1.msra.mxu0 %v77
    %131 = vmatprep.subr.mxu0 %v74
    %132 = vmatpush1.msra.mxu0 %v73
    %133 = vmatprep.subr.mxu0 %v70
    %134 = vmatpush1.msra.mxu0 %v69
    %135 = vmatprep.subr.mxu0 %v66
    %136 = vmatpush1.msra.mxu0 %v65
    %137 = vmatprep.subr.mxu0 %v62
    %138 = vmatpush1.msra.mxu0 %v61
    %139 = vmatprep.subr.mxu0 %v58
    %140 = vmatpush1.msra.mxu0 %v57
    %141 = vmatprep.subr.mxu0 %v54
    %142 = vmatpush1.msra.mxu0 %v53
    %143 = vmatprep.subr.mxu0 %v50
    %144 = vmatpush1.msra.mxu0 %v49
    %145 = vmatprep.subr.mxu0 0.0
    %146 = vmatpush2.msra.mxu0 0.0
    %147 = vmatprep.subr.mxu0 0.0
    %148 = vmatpush2.msra.mxu0 0.0
    %149 = vmatprep.subr.mxu0 0.0
    %150 = vmatpush2.msra.mxu0 0.0
    %151 = vmatprep.subr.mxu0 0.0
    %152 = vmatpush2.msra.mxu0 0.0
    %153 = vmatprep.subr.mxu0 0.0
    %154 = vmatpush2.msra.mxu0 0.0
    %155 = vmatprep.subr.mxu0 0.0
    %156 = vmatpush2.msra.mxu0 0.0
    %157 = vmatprep.subr.mxu0 0.0
    %158 = vmatpush2.msra.mxu0 0.0
    %159 = vmatprep.subr.mxu0 0.0
    %160 = vmatpush2.msra.mxu0 0.0
    %161 = vmatprep.subr.mxu0 0.0
    %162 = vmatpush2.msra.mxu0 0.0
    %163 = vmatprep.subr.mxu0 0.0
    %164 = vmatpush2.msra.mxu0 0.0
    %165 = vmatprep.subr.mxu0 0.0
    %166 = vmatpush2.msra.mxu0 0.0
    %167 = vmatprep.subr.mxu0 0.0
    %168 = vmatpush2.msra.mxu0 0.0
    %169 = vmatprep.subr.mxu0 0.0
    %170 = vmatpush2.msra.mxu0 0.0
    %171 = vmatprep.subr.mxu0 0.0
    %172 = vmatpush2.msra.mxu0 0.0
    %173 = vmatprep.subr.mxu0 0.0
    %174 = vmatpush2.msra.mxu0 0.0
    %175 = vmatprep.subr.mxu0 0.0
    %176 = vmatpush2.msra.mxu0 0.0
    %177 = vmatprep.mubr.f32.mxu0 0.0
    %178 = vmatmul.mubr.f32.gmra.mxu0 0.0
    %v179 = vpop.f32.mrf.mxu0
    %v180 = vadd.f32 0.0, %v179
    %v181 = vpop.f32.mrf.mxu0
    %v182 = vadd.f32 0.0, %v181
    %183 = vdwg.mxu0
    %184 = vmatprep.subr.mxu0 %v112
    %185 = vmatpush1.msra.mxu0 %v111
    %186 = vmatprep.subr.mxu0 %v108
    %187 = vmatpush1.msra.mxu0 %v107
    %188 = vmatprep.subr.mxu0 %v104
    %189 = vmatpush1.msra.mxu0 %v103
    %190 = vmatprep.subr.mxu0 %v100
    %191 = vmatpush1.msra.mxu0 %v99
    %192 = vmatprep.subr.mxu0 %v96
    %193 = vmatpush1.msra.mxu0 %v95
    %194 = vmatprep.subr.mxu0 %v92
    %195 = vmatpush1.msra.mxu0 %v91
    %196 = vmatprep.subr.mxu0 %v88
    %197 = vmatpush1.msra.mxu0 %v87
    %198 = vmatprep.subr.mxu0 %v84
    %199 = vmatpush1.msra.mxu0 %v83
    %200 = vmatprep.subr.mxu0 %v80
    %201 = vmatpush1.msra.mxu0 %v79
    %202 = vmatprep.subr.mxu0 %v76
    %203 = vmatpush1.msra.mxu0 %v75
    %204 = vmatprep.subr.mxu0 %v72
    %205 = vmatpush1.msra.mxu0 %v71
    %206 = vmatprep.subr.mxu0 %v68
    %207 = vmatpush1.msra.mxu0 %v67
    %208 = vmatprep.subr.mxu0 %v64
    %209 = vmatpush1.msra.mxu0 %v63
    %210 = vmatprep.subr.mxu0 %v60
    %211 = vmatpush1.msra.mxu0 %v59
    %212 = vmatprep.subr.mxu0 %v56
    %213 = vmatpush1.msra.mxu0 %v55
    %214 = vmatprep.subr.mxu0 %v52
    %215 = vmatpush1.msra.mxu0 %v51
    %216 = vmatprep.subr.mxu0 0.0
    %217 = vmatpush2.msra.mxu0 0.0
    %218 = vmatprep.subr.mxu0 0.0
    %219 = vmatpush2.msra.mxu0 0.0
    %220 = vmatprep.subr.mxu0 0.0
    %221 = vmatpush2.msra.mxu0 0.0
    %222 = vmatprep.subr.mxu0 0.0
    %223 = vmatpush2.msra.mxu0 0.0
    %224 = vmatprep.subr.mxu0 0.0
    %225 = vmatpush2.msra.mxu0 0.0
    %226 = vmatprep.subr.mxu0 0.0
    %227 = vmatpush2.msra.mxu0 0.0
    %228 = vmatprep.subr.mxu0 0.0
    %229 = vmatpush2.msra.mxu0 0.0
    %230 = vmatprep.subr.mxu0 0.0
    %231 = vmatpush2.msra.mxu0 0.0
    %232 = vmatprep.subr.mxu0 0.0
    %233 = vmatpush2.msra.mxu0 0.0
    %234 = vmatprep.subr.mxu0 0.0
    %235 = vmatpush2.msra.mxu0 0.0
    %236 = vmatprep.subr.mxu0 0.0
    %237 = vmatpush2.msra.mxu0 0.0
    %238 = vmatprep.subr.mxu0 0.0
    %239 = vmatpush2.msra.mxu0 0.0
    %240 = vmatprep.subr.mxu0 0.0
    %241 = vmatpush2.msra.mxu0 0.0
    %242 = vmatprep.subr.mxu0 0.0
    %243 = vmatpush2.msra.mxu0 0.0
    %244 = vmatprep.subr.mxu0 0.0
    %245 = vmatpush2.msra.mxu0 0.0
    %246 = vmatprep.subr.mxu0 0.0
    %247 = vmatpush2.msra.mxu0 0.0
    %248 = vmatprep.mubr.f32.mxu0 0.0
    %249 = vmatmul.mubr.f32.gmra.mxu0 0.0
    %v250 = vpop.f32.mrf.mxu0
    %v251 = vadd.f32 0.0, %v250
    %v252 = vpop.f32.mrf.mxu0
    %v253 = vadd.f32 0.0, %v252
    %254 = vdwg.mxu0
    %v255 = vadd.f32 %v45, %v180
    %v256 = vadd.f32 %v46, %v182
    %v257 = vadd.f32 %v47, %v251
    %v258 = vadd.f32 %v48, %v253
    %v259 = vld [vmem:[%s1 + $0x20] sm:$0xc0]
    %v260 = vld [vmem:[%s1 + $0x28] sm:$0xc0]
    %v261 = vld [vmem:[%s1 + $0x30] sm:$0xc0]
    %v262 = vld [vmem:[%s1 + $0x38] sm:$0xc0]
    %v263 = vld [vmem:[#allocation4] sm:$0xff]
    %v264 = vld [vmem:[#allocation4 + $0x8] sm:$0xff]
    %v265 = vld [vmem:[#allocation4 + $0x10] sm:$0xff]
    %v266 = vld [vmem:[#allocation4 + $0x18] sm:$0xff]
    %v267 = vld [vmem:[#allocation4 + $0x20] sm:$0xff]
    %v268 = vld [vmem:[#allocation4 + $0x28] sm:$0xff]
    %v269 = vld [vmem:[#allocation4 + $0x30] sm:$0xff]
    %v270 = vld [vmem:[#allocation4 + $0x38] sm:$0xff]
    %v271 = vld [vmem:[#allocation4 + $0x40] sm:$0xff]
    %v272 = vld [vmem:[#allocation4 + $0x48] sm:$0xff]
    %v273 = vld [vmem:[#allocation4 + $0x50] sm:$0xff]
    %v274 = vld [vmem:[#allocation4 + $0x58] sm:$0xff]
    %v275 = vld [vmem:[#allocation4 + $0x60] sm:$0xff]
    %v276 = vld [vmem:[#allocation4 + $0x68] sm:$0xff]
    %v277 = vld [vmem:[#allocation4 + $0x70] sm:$0xff]
    %v278 = vld [vmem:[#allocation4 + $0x78] sm:$0xff]
    %v279 = vld [vmem:[#allocation4 + $0x80] sm:$0xff]
    %v280 = vld [vmem:[#allocation4 + $0x88] sm:$0xff]
    %v281 = vld [vmem:[#allocation4 + $0x90] sm:$0xff]
    %v282 = vld [vmem:[#allocation4 + $0x98] sm:$0xff]
    %v283 = vld [vmem:[#allocation4 + $0xa0] sm:$0xff]
    %v284 = vld [vmem:[#allocation4 + $0xa8] sm:$0xff]
    %v285 = vld [vmem:[#allocation4 + $0xb0] sm:$0xff]
    %v286 = vld [vmem:[#allocation4 + $0xb8] sm:$0xff]
    %v287 = vld [vmem:[#allocation4 + $0xc0] sm:$0xff]
    %v288 = vld [vmem:[#allocation4 + $0xc8] sm:$0xff]
    %v289 = vld [vmem:[#allocation4 + $0xd0] sm:$0xff]
    %v290 = vld [vmem:[#allocation4 + $0xd8] sm:$0xff]
    %v291 = vld [vmem:[#allocation4 + $0xe0] sm:$0xff]
    %v292 = vld [vmem:[#allocation4 + $0xe8] sm:$0xff]
    %v293 = vld [vmem:[#allocation4 + $0xf0] sm:$0xff]
    %v294 = vld [vmem:[#allocation4 + $0xf8] sm:$0xff]
    %v295 = vld [vmem:[#allocation4 + $0x100] sm:$0xff]
    %v296 = vld [vmem:[#allocation4 + $0x108] sm:$0xff]
    %v297 = vld [vmem:[#allocation4 + $0x110] sm:$0xff]
    %v298 = vld [vmem:[#allocation4 + $0x118] sm:$0xff]
    %v299 = vld [vmem:[#allocation4 + $0x120] sm:$0xff]
    %v300 = vld [vmem:[#allocation4 + $0x128] sm:$0xff]
    %v301 = vld [vmem:[#allocation4 + $0x130] sm:$0xff]
    %v302 = vld [vmem:[#allocation4 + $0x138] sm:$0xff]
    %v303 = vld [vmem:[#allocation4 + $0x140] sm:$0xff]
    %v304 = vld [vmem:[#allocation4 + $0x148] sm:$0xff]
    %v305 = vld [vmem:[#allocation4 + $0x150] sm:$0xff]
    %v306 = vld [vmem:[#allocation4 + $0x158] sm:$0xff]
    %v307 = vld [vmem:[#allocation4 + $0x160] sm:$0xff]
    %v308 = vld [vmem:[#allocation4 + $0x168] sm:$0xff]
    %v309 = vld [vmem:[#allocation4 + $0x170] sm:$0xff]
    %v310 = vld [vmem:[#allocation4 + $0x178] sm:$0xff]
    %v311 = vld [vmem:[#allocation4 + $0x180] sm:$0xff]
    %v312 = vld [vmem:[#allocation4 + $0x188] sm:$0xff]
    %v313 = vld [vmem:[#allocation4 + $0x190] sm:$0xff]
    %v314 = vld [vmem:[#allocation4 + $0x198] sm:$0xff]
    %v315 = vld [vmem:[#allocation4 + $0x1a0] sm:$0xff]
    %v316 = vld [vmem:[#allocation4 + $0x1a8] sm:$0xff]
    %v317 = vld [vmem:[#allocation4 + $0x1b0] sm:$0xff]
    %v318 = vld [vmem:[#allocation4 + $0x1b8] sm:$0xff]
    %v319 = vld [vmem:[#allocation4 + $0x1c0] sm:$0xff]
    %v320 = vld [vmem:[#allocation4 + $0x1c8] sm:$0xff]
    %v321 = vld [vmem:[#allocation4 + $0x1d0] sm:$0xff]
    %v322 = vld [vmem:[#allocation4 + $0x1d8] sm:$0xff]
    %v323 = vld [vmem:[#allocation4 + $0x1e0] sm:$0xff]
    %v324 = vld [vmem:[#allocation4 + $0x1e8] sm:$0xff]
    %v325 = vld [vmem:[#allocation4 + $0x1f0] sm:$0xff]
    %v326 = vld [vmem:[#allocation4 + $0x1f8] sm:$0xff]
    %327 = vmatprep.subr.mxu0 %v324
    %328 = vmatpush1.msra.mxu0 %v323
    %329 = vmatprep.subr.mxu0 %v320
    %330 = vmatpush1.msra.mxu0 %v319
    %331 = vmatprep.subr.mxu0 %v316
    %332 = vmatpush1.msra.mxu0 %v315
    %333 = vmatprep.subr.mxu0 %v312
    %334 = vmatpush1.msra.mxu0 %v311
    %335 = vmatprep.subr.mxu0 %v308
    %336 = vmatpush1.msra.mxu0 %v307
    %337 = vmatprep.subr.mxu0 %v304
    %338 = vmatpush1.msra.mxu0 %v303
    %339 = vmatprep.subr.mxu0 %v300
    %340 = vmatpush1.msra.mxu0 %v299
    %341 = vmatprep.subr.mxu0 %v296
    %342 = vmatpush1.msra.mxu0 %v295
    %343 = vmatprep.subr.mxu0 %v292
    %344 = vmatpush1.msra.mxu0 %v291
    %345 = vmatprep.subr.mxu0 %v288
    %346 = vmatpush1.msra.mxu0 %v287
    %347 = vmatprep.subr.mxu0 %v284
    %348 = vmatpush1.msra.mxu0 %v283
    %349 = vmatprep.subr.mxu0 %v280
    %350 = vmatpush1.msra.mxu0 %v279
    %351 = vmatprep.subr.mxu0 %v276
    %352 = vmatpush1.msra.mxu0 %v275
    %353 = vmatprep.subr.mxu0 %v272
    %354 = vmatpush1.msra.mxu0 %v271
    %355 = vmatprep.subr.mxu0 %v268
    %356 = vmatpush1.msra.mxu0 %v267
    %357 = vmatprep.subr.mxu0 %v264
    %358 = vmatpush1.msra.mxu0 %v263
    %359 = vmatprep.subr.mxu0 0.0
    %360 = vmatpush2.msra.mxu0 0.0
    %361 = vmatprep.subr.mxu0 0.0
    %362 = vmatpush2.msra.mxu0 0.0
    %363 = vmatprep.subr.mxu0 0.0
    %364 = vmatpush2.msra.mxu0 0.0
    %365 = vmatprep.subr.mxu0 0.0
    %366 = vmatpush2.msra.mxu0 0.0
    %367 = vmatprep.subr.mxu0 0.0
    %368 = vmatpush2.msra.mxu0 0.0
    %369 = vmatprep.subr.mxu0 0.0
    %370 = vmatpush2.msra.mxu0 0.0
    %371 = vmatprep.subr.mxu0 0.0
    %372 = vmatpush2.msra.mxu0 0.0
    %373 = vmatprep.subr.mxu0 0.0
    %374 = vmatpush2.msra.mxu0 0.0
    %375 = vmatprep.subr.mxu0 0.0
    %376 = vmatpush2.msra.mxu0 0.0
    %377 = vmatprep.subr.mxu0 0.0
    %378 = vmatpush2.msra.mxu0 0.0
    %379 = vmatprep.subr.mxu0 0.0
    %380 = vmatpush2.msra.mxu0 0.0
    %381 = vmatprep.subr.mxu0 0.0
    %382 = vmatpush2.msra.mxu0 0.0
    %383 = vmatprep.subr.mxu0 0.0
    %384 = vmatpush2.msra.mxu0 0.0
    %385 = vmatprep.subr.mxu0 0.0
    %386 = vmatpush2.msra.mxu0 0.0
    %387 = vmatprep.subr.mxu0 0.0
    %388 = vmatpush2.msra.mxu0 0.0
    %389 = vmatprep.subr.mxu0 0.0
    %390 = vmatpush2.msra.mxu0 0.0
    %391 = vmatprep.mubr.f32.mxu0 0.0
    %392 = vmatmul.mubr.f32.gmra.mxu0 0.0
    %v393 = vpop.f32.mrf.mxu0
    %v394 = vadd.f32 0.0, %v393
    %v395 = vpop.f32.mrf.mxu0
    %v396 = vadd.f32 0.0, %v395
    %397 = vdwg.mxu0
    %398 = vmatprep.subr.mxu0 %v326
    %399 = vmatpush1.msra.mxu0 %v325
    %400 = vmatprep.subr.mxu0 %v322
    %401 = vmatpush1.msra.mxu0 %v321
    %402 = vmatprep.subr.mxu0 %v318
    %403 = vmatpush1.msra.mxu0 %v317
    %404 = vmatprep.subr.mxu0 %v314
    %405 = vmatpush1.msra.mxu0 %v313
    %406 = vmatprep.subr.mxu0 %v310
    %407 = vmatpush1.msra.mxu0 %v309
    %408 = vmatprep.subr.mxu0 %v306
    %409 = vmatpush1.msra.mxu0 %v305
    %410 = vmatprep.subr.mxu0 %v302
    %411 = vmatpush1.msra.mxu0 %v301
    %412 = vmatprep.subr.mxu0 %v298
    %413 = vmatpush1.msra.mxu0 %v297
    %414 = vmatprep.subr.mxu0 %v294
    %415 = vmatpush1.msra.mxu0 %v293
    %416 = vmatprep.subr.mxu0 %v290
    %417 = vmatpush1.msra.mxu0 %v289
    %418 = vmatprep.subr.mxu0 %v286
    %419 = vmatpush1.msra.mxu0 %v285
    %420 = vmatprep.subr.mxu0 %v282
    %421 = vmatpush1.msra.mxu0 %v281
    %422 = vmatprep.subr.mxu0 %v278
    %423 = vmatpush1.msra.mxu0 %v277
    %424 = vmatprep.subr.mxu0 %v274
    %425 = vmatpush1.msra.mxu0 %v273
    %426 = vmatprep.subr.mxu0 %v270
    %427 = vmatpush1.msra.mxu0 %v269
    %428 = vmatprep.subr.mxu0 %v266
    %429 = vmatpush1.msra.mxu0 %v265
    %430 = vmatprep.subr.mxu0 0.0
    %431 = vmatpush2.msra.mxu0 0.0
    %432 = vmatprep.subr.mxu0 0.0
    %433 = vmatpush2.msra.mxu0 0.0
    %434 = vmatprep.subr.mxu0 0.0
    %435 = vmatpush2.msra.mxu0 0.0
    %436 = vmatprep.subr.mxu0 0.0
    %437 = vmatpush2.msra.mxu0 0.0
    %438 = vmatprep.subr.mxu0 0.0
    %439 = vmatpush2.msra.mxu0 0.0
    %440 = vmatprep.subr.mxu0 0.0
    %441 = vmatpush2.msra.mxu0 0.0
    %442 = vmatprep.subr.mxu0 0.0
    %443 = vmatpush2.msra.mxu0 0.0
    %444 = vmatprep.subr.mxu0 0.0
    %445 = vmatpush2.msra.mxu0 0.0
    %446 = vmatprep.subr.mxu0 0.0
    %447 = vmatpush2.msra.mxu0 0.0
    %448 = vmatprep.subr.mxu0 0.0
    %449 = vmatpush2.msra.mxu0 0.0
    %450 = vmatprep.subr.mxu0 0.0
    %451 = vmatpush2.msra.mxu0 0.0
    %452 = vmatprep.subr.mxu0 0.0
    %453 = vmatpush2.msra.mxu0 0.0
    %454 = vmatprep.subr.mxu0 0.0
    %455 = vmatpush2.msra.mxu0 0.0
    %456 = vmatprep.subr.mxu0 0.0
    %457 = vmatpush2.msra.mxu0 0.0
    %458 = vmatprep.subr.mxu0 0.0
    %459 = vmatpush2.msra.mxu0 0.0
    %460 = vmatprep.subr.mxu0 0.0
    %461 = vmatpush2.msra.mxu0 0.0
    %462 = vmatprep.mubr.f32.mxu0 0.0
    %463 = vmatmul.mubr.f32.gmra.mxu0 0.0
    %v464 = vpop.f32.mrf.mxu0
    %v465 = vadd.f32 0.0, %v464
    %v466 = vpop.f32.mrf.mxu0
    %v467 = vadd.f32 0.0, %v466
    %468 = vdwg.mxu0
    %v473 = vrot.slane %v394, 2
    %v474 = vrot.slane %v396, 2
    %v475 = vrot.slane %v465, 2
    %v476 = vrot.slane %v467, 2
    %v481 = vadd.f32 %v259, %v473
    %v482 = vadd.f32 %v260, %v474
    %v483 = vadd.f32 %v261, %v475
    %v484 = vadd.f32 %v262, %v476
    %v485 = vxor.u32 %v255, 2147483648
    %v486 = vmul.f32 %v485, 1.442695
    %v487 = vpow.pop %v486
    %v488 = vadd.f32 %v487, 1.0
    %v489 = vrcp.pop %v488
    %v490 = vmul.f32 1.0, %v489
    %v491 = vxor.u32 %v256, 2147483648
    %v492 = vmul.f32 %v491, 1.442695
    %v493 = vpow.pop %v492
    %v494 = vadd.f32 %v493, 1.0
    %v495 = vrcp.pop %v494
    %v496 = vmul.f32 1.0, %v495
    %v497 = vtanh.pop %v257
    %v498 = vxor.u32 %v258, 2147483648
    %v499 = vmul.f32 %v498, 1.442695
    %v500 = vpow.pop %v499
    %v501 = vadd.f32 %v500, 1.0
    %v502 = vrcp.pop %v501
    %v503 = vmul.f32 1.0, %v502
    %v504 = vmul.f32 %v496, 0.0
    %v505 = vmul.f32 %v490, %v497
    %v506 = vadd.f32 %v504, %v505
    %v507 = vtanh.pop %v506
    %v508 = vmul.f32 %v503, %v507
    %v509 = vxor.u32 %v481, 2147483648
    %v510 = vmul.f32 %v509, 1.442695
    %v511 = vpow.pop %v510
    %v512 = vadd.f32 %v511, 1.0
    %v513 = vrcp.pop %v512
    %v514 = vmul.f32 1.0, %v513
    %v515 = vxor.u32 %v482, 2147483648
    %v516 = vmul.f32 %v515, 1.442695
    %v517 = vpow.pop %v516
    %v518 = vadd.f32 %v517, 1.0
    %v519 = vrcp.pop %v518
    %v520 = vmul.f32 1.0, %v519
    %v521 = vtanh.pop %v483
    %v522 = vxor.u32 %v484, 2147483648
    %v523 = vmul.f32 %v522, 1.442695
    %v524 = vpow.pop %v523
    %v525 = vadd.f32 %v524, 1.0
    %v526 = vrcp.pop %v525
    %v527 = vmul.f32 1.0, %v526
    %v528 = vmul.f32 %v520, 0.0
    %v529 = vmul.f32 %v514, %v521
    %v530 = vadd.f32 %v528, %v529
    %v531 = vtanh.pop %v530
    %v532 = vmul.f32 %v527, %v531
    %533 = vst [vmem:[%s4] sm:$0x3] %v508
    %534 = vst [vmem:[%s4 + $0x18] sm:$0xc0] %v532
    %v535 = vld [vmem:[%s0] sm:$0xc]
    %v536 = vld [vmem:[%s0 + $0x8] sm:$0xc]
    %v537 = vld [vmem:[%s0 + $0x10] sm:$0xc]
    %v538 = vld [vmem:[%s0 + $0x18] sm:$0xc]
    %v539 = vld [vmem:[#allocation2] sm:$0xff]
    %v540 = vld [vmem:[#allocation2 + $0x8] sm:$0xff]
    %v541 = vld [vmem:[#allocation2 + $0x10] sm:$0xff]
    %v542 = vld [vmem:[#allocation2 + $0x18] sm:$0xff]
    %v543 = vld [vmem:[#allocation2 + $0x20] sm:$0xff]
    %v544 = vld [vmem:[#allocation2 + $0x28] sm:$0xff]
    %v545 = vld [vmem:[#allocation2 + $0x30] sm:$0xff]
    %v546 = vld [vmem:[#allocation2 + $0x38] sm:$0xff]
    %v547 = vld [vmem:[#allocation2 + $0x40] sm:$0xff]
    %v548 = vld [vmem:[#allocation2 + $0x48] sm:$0xff]
    %v549 = vld [vmem:[#allocation2 + $0x50] sm:$0xff]
    %v550 = vld [vmem:[#allocation2 + $0x58] sm:$0xff]
    %v551 = vld [vmem:[#allocation2 + $0x60] sm:$0xff]
    %v552 = vld [vmem:[#allocation2 + $0x68] sm:$0xff]
    %v553 = vld [vmem:[#allocation2 + $0x70] sm:$0xff]
    %v554 = vld [vmem:[#allocation2 + $0x78] sm:$0xff]
    %v555 = vld [vmem:[#allocation2 + $0x80] sm:$0xff]
    %v556 = vld [vmem:[#allocation2 + $0x88] sm:$0xff]
    %v557 = vld [vmem:[#allocation2 + $0x90] sm:$0xff]
    %v558 = vld [vmem:[#allocation2 + $0x98] sm:$0xff]
    %v559 = vld [vmem:[#allocation2 + $0xa0] sm:$0xff]
    %v560 = vld [vmem:[#allocation2 + $0xa8] sm:$0xff]
    %v561 = vld [vmem:[#allocation2 + $0xb0] sm:$0xff]
    %v562 = vld [vmem:[#allocation2 + $0xb8] sm:$0xff]
    %v563 = vld [vmem:[#allocation2 + $0xc0] sm:$0xff]
    %v564 = vld [vmem:[#allocation2 + $0xc8] sm:$0xff]
    %v565 = vld [vmem:[#allocation2 + $0xd0] sm:$0xff]
    %v566 = vld [vmem:[#allocation2 + $0xd8] sm:$0xff]
    %v567 = vld [vmem:[#allocation2 + $0xe0] sm:$0xff]
    %v568 = vld [vmem:[#allocation2 + $0xe8] sm:$0xff]
    %v569 = vld [vmem:[#allocation2 + $0xf0] sm:$0xff]
    %v570 = vld [vmem:[#allocation2 + $0xf8] sm:$0xff]
    %v571 = vld [vmem:[#allocation2 + $0x100] sm:$0xff]
    %v572 = vld [vmem:[#allocation2 + $0x108] sm:$0xff]
    %v573 = vld [vmem:[#allocation2 + $0x110] sm:$0xff]
    %v574 = vld [vmem:[#allocation2 + $0x118] sm:$0xff]
    %v575 = vld [vmem:[#allocation2 + $0x120] sm:$0xff]
    %v576 = vld [vmem:[#allocation2 + $0x128] sm:$0xff]
    %v577 = vld [vmem:[#allocation2 + $0x130] sm:$0xff]
    %v578 = vld [vmem:[#allocation2 + $0x138] sm:$0xff]
    %v579 = vld [vmem:[#allocation2 + $0x140] sm:$0xff]
    %v580 = vld [vmem:[#allocation2 + $0x148] sm:$0xff]
    %v581 = vld [vmem:[#allocation2 + $0x150] sm:$0xff]
    %v582 = vld [vmem:[#allocation2 + $0x158] sm:$0xff]
    %v583 = vld [vmem:[#allocation2 + $0x160] sm:$0xff]
    %v584 = vld [vmem:[#allocation2 + $0x168] sm:$0xff]
    %v585 = vld [vmem:[#allocation2 + $0x170] sm:$0xff]
    %v586 = vld [vmem:[#allocation2 + $0x178] sm:$0xff]
    %v587 = vld [vmem:[#allocation2 + $0x180] sm:$0xff]
    %v588 = vld [vmem:[#allocation2 + $0x188] sm:$0xff]
    %v589 = vld [vmem:[#allocation2 + $0x190] sm:$0xff]
    %v590 = vld [vmem:[#allocation2 + $0x198] sm:$0xff]
    %v591 = vld [vmem:[#allocation2 + $0x1a0] sm:$0xff]
    %v592 = vld [vmem:[#allocation2 + $0x1a8] sm:$0xff]
    %v593 = vld [vmem:[#allocation2 + $0x1b0] sm:$0xff]
    %v594 = vld [vmem:[#allocation2 + $0x1b8] sm:$0xff]
    %v595 = vld [vmem:[#allocation2 + $0x1c0] sm:$0xff]
    %v596 = vld [vmem:[#allocation2 + $0x1c8] sm:$0xff]
    %v597 = vld [vmem:[#allocation2 + $0x1d0] sm:$0xff]
    %v598 = vld [vmem:[#allocation2 + $0x1d8] sm:$0xff]
    %v599 = vld [vmem:[#allocation2 + $0x1e0] sm:$0xff]
    %v600 = vld [vmem:[#allocation2 + $0x1e8] sm:$0xff]
    %v601 = vld [vmem:[#allocation2 + $0x1f0] sm:$0xff]
    %v602 = vld [vmem:[#allocation2 + $0x1f8] sm:$0xff]
    %603 = vmatprep.subr.mxu0 %v600
    %604 = vmatpush1.msra.mxu0 %v599
    %605 = vmatprep.subr.mxu0 %v596
    %606 = vmatpush1.msra.mxu0 %v595
    %607 = vmatprep.subr.mxu0 %v592
    %608 = vmatpush1.msra.mxu0 %v591
    %609 = vmatprep.subr.mxu0 %v588
    %610 = vmatpush1.msra.mxu0 %v587
    %611 = vmatprep.subr.mxu0 %v584
    %612 = vmatpush1.msra.mxu0 %v583
    %613 = vmatprep.subr.mxu0 %v580
    %614 = vmatpush1.msra.mxu0 %v579
    %615 = vmatprep.subr.mxu0 %v576
    %616 = vmatpush1.msra.mxu0 %v575
    %617 = vmatprep.subr.mxu0 %v572
    %618 = vmatpush1.msra.mxu0 %v571
    %619 = vmatprep.subr.mxu0 %v568
    %620 = vmatpush1.msra.mxu0 %v567
    %621 = vmatprep.subr.mxu0 %v564
    %622 = vmatpush1.msra.mxu0 %v563
    %623 = vmatprep.subr.mxu0 %v560
    %624 = vmatpush1.msra.mxu0 %v559
    %625 = vmatprep.subr.mxu0 %v556
    %626 = vmatpush1.msra.mxu0 %v555
    %627 = vmatprep.subr.mxu0 %v552
    %628 = vmatpush1.msra.mxu0 %v551
    %629 = vmatprep.subr.mxu0 %v548
    %630 = vmatpush1.msra.mxu0 %v547
    %631 = vmatprep.subr.mxu0 %v544
    %632 = vmatpush1.msra.mxu0 %v543
    %633 = vmatprep.subr.mxu0 %v540
    %634 = vmatpush1.msra.mxu0 %v539
    %635 = vmatprep.subr.mxu0 0.0
    %636 = vmatpush2.msra.mxu0 0.0
    %637 = vmatprep.subr.mxu0 0.0
    %638 = vmatpush2.msra.mxu0 0.0
    %639 = vmatprep.subr.mxu0 0.0
    %640 = vmatpush2.msra.mxu0 0.0
    %641 = vmatprep.subr.mxu0 0.0
    %642 = vmatpush2.msra.mxu0 0.0
    %643 = vmatprep.subr.mxu0 0.0
    %644 = vmatpush2.msra.mxu0 0.0
    %645 = vmatprep.subr.mxu0 0.0
    %646 = vmatpush2.msra.mxu0 0.0
    %647 = vmatprep.subr.mxu0 0.0
    %648 = vmatpush2.msra.mxu0 0.0
    %649 = vmatprep.subr.mxu0 0.0
    %650 = vmatpush2.msra.mxu0 0.0
    %651 = vmatprep.subr.mxu0 0.0
    %652 = vmatpush2.msra.mxu0 0.0
    %653 = vmatprep.subr.mxu0 0.0
    %654 = vmatpush2.msra.mxu0 0.0
    %655 = vmatprep.subr.mxu0 0.0
    %656 = vmatpush2.msra.mxu0 0.0
    %657 = vmatprep.subr.mxu0 0.0
    %658 = vmatpush2.msra.mxu0 0.0
    %659 = vmatprep.subr.mxu0 0.0
    %660 = vmatpush2.msra.mxu0 0.0
    %661 = vmatprep.subr.mxu0 0.0
    %662 = vmatpush2.msra.mxu0 0.0
    %663 = vmatprep.subr.mxu0 0.0
    %664 = vmatpush2.msra.mxu0 0.0
    %665 = vmatprep.subr.mxu0 0.0
    %666 = vmatpush2.msra.mxu0 0.0
    %667 = vmatprep.mubr.f32.mxu0 0.0
    %668 = vmatmul.mubr.f32.gmra.mxu0 %v508
    %v669 = vpop.f32.mrf.mxu0
    %v670 = vadd.f32 0.0, %v669
    %v671 = vpop.f32.mrf.mxu0
    %v672 = vadd.f32 0.0, %v671
    %673 = vdwg.mxu0
    %674 = vmatprep.subr.mxu0 %v602
    %675 = vmatpush1.msra.mxu0 %v601
    %676 = vmatprep.subr.mxu0 %v598
    %677 = vmatpush1.msra.mxu0 %v597
    %678 = vmatprep.subr.mxu0 %v594
    %679 = vmatpush1.msra.mxu0 %v593
    %680 = vmatprep.subr.mxu0 %v590
    %681 = vmatpush1.msra.mxu0 %v589
    %682 = vmatprep.subr.mxu0 %v586
    %683 = vmatpush1.msra.mxu0 %v585
    %684 = vmatprep.subr.mxu0 %v582
    %685 = vmatpush1.msra.mxu0 %v581
    %686 = vmatprep.subr.mxu0 %v578
    %687 = vmatpush1.msra.mxu0 %v577
    %688 = vmatprep.subr.mxu0 %v574
    %689 = vmatpush1.msra.mxu0 %v573
    %690 = vmatprep.subr.mxu0 %v570
    %691 = vmatpush1.msra.mxu0 %v569
    %692 = vmatprep.subr.mxu0 %v566
    %693 = vmatpush1.msra.mxu0 %v565
    %694 = vmatprep.subr.mxu0 %v562
    %695 = vmatpush1.msra.mxu0 %v561
    %696 = vmatprep.subr.mxu0 %v558
    %697 = vmatpush1.msra.mxu0 %v557
    %698 = vmatprep.subr.mxu0 %v554
    %699 = vmatpush1.msra.mxu0 %v553
    %700 = vmatprep.subr.mxu0 %v550
    %701 = vmatpush1.msra.mxu0 %v549
    %702 = vmatprep.subr.mxu0 %v546
    %703 = vmatpush1.msra.mxu0 %v545
    %704 = vmatprep.subr.mxu0 %v542
    %705 = vmatpush1.msra.mxu0 %v541
    %706 = vmatprep.subr.mxu0 0.0
    %707 = vmatpush2.msra.mxu0 0.0
    %708 = vmatprep.subr.mxu0 0.0
    %709 = vmatpush2.msra.mxu0 0.0
    %710 = vmatprep.subr.mxu0 0.0
    %711 = vmatpush2.msra.mxu0 0.0
    %712 = vmatprep.subr.mxu0 0.0
    %713 = vmatpush2.msra.mxu0 0.0
    %714 = vmatprep.subr.mxu0 0.0
    %715 = vmatpush2.msra.mxu0 0.0
    %716 = vmatprep.subr.mxu0 0.0
    %717 = vmatpush2.msra.mxu0 0.0
    %718 = vmatprep.subr.mxu0 0.0
    %719 = vmatpush2.msra.mxu0 0.0
    %720 = vmatprep.subr.mxu0 0.0
    %721 = vmatpush2.msra.mxu0 0.0
    %722 = vmatprep.subr.mxu0 0.0
    %723 = vmatpush2.msra.mxu0 0.0
    %724 = vmatprep.subr.mxu0 0.0
    %725 = vmatpush2.msra.mxu0 0.0
    %726 = vmatprep.subr.mxu0 0.0
    %727 = vmatpush2.msra.mxu0 0.0
    %728 = vmatprep.subr.mxu0 0.0
    %729 = vmatpush2.msra.mxu0 0.0
    %730 = vmatprep.subr.mxu0 0.0
    %731 = vmatpush2.msra.mxu0 0.0
    %732 = vmatprep.subr.mxu0 0.0
    %733 = vmatpush2.msra.mxu0 0.0
    %734 = vmatprep.subr.mxu0 0.0
    %735 = vmatpush2.msra.mxu0 0.0
    %736 = vmatprep.subr.mxu0 0.0
    %737 = vmatpush2.msra.mxu0 0.0
    %738 = vmatprep.mubr.f32.mxu0 0.0
    %739 = vmatmul.mubr.f32.gmra.mxu0 %v508
    %v740 = vpop.f32.mrf.mxu0
    %v741 = vadd.f32 0.0, %v740
    %v742 = vpop.f32.mrf.mxu0
    %v743 = vadd.f32 0.0, %v742
    %744 = vdwg.mxu0
    %v749 = vrot.slane %v670, 6
    %v750 = vrot.slane %v672, 6
    %v751 = vrot.slane %v741, 6
    %v752 = vrot.slane %v743, 6
    %v757 = vadd.f32 %v535, %v749
    %v758 = vadd.f32 %v536, %v750
    %v759 = vadd.f32 %v537, %v751
    %v760 = vadd.f32 %v538, %v752
    %v761 = vld [vmem:[%s1 + $0x20] sm:$0x30]
    %v762 = vld [vmem:[%s1 + $0x28] sm:$0x30]
    %v763 = vld [vmem:[%s1 + $0x30] sm:$0x30]
    %v764 = vld [vmem:[%s1 + $0x38] sm:$0x30]
    %v765 = vld [vmem:[#allocation4] sm:$0xff]
    %v766 = vld [vmem:[#allocation4 + $0x8] sm:$0xff]
    %v767 = vld [vmem:[#allocation4 + $0x10] sm:$0xff]
    %v768 = vld [vmem:[#allocation4 + $0x18] sm:$0xff]
    %v769 = vld [vmem:[#allocation4 + $0x20] sm:$0xff]
    %v770 = vld [vmem:[#allocation4 + $0x28] sm:$0xff]
    %v771 = vld [vmem:[#allocation4 + $0x30] sm:$0xff]
    %v772 = vld [vmem:[#allocation4 + $0x38] sm:$0xff]
    %v773 = vld [vmem:[#allocation4 + $0x40] sm:$0xff]
    %v774 = vld [vmem:[#allocation4 + $0x48] sm:$0xff]
    %v775 = vld [vmem:[#allocation4 + $0x50] sm:$0xff]
    %v776 = vld [vmem:[#allocation4 + $0x58] sm:$0xff]
    %v777 = vld [vmem:[#allocation4 + $0x60] sm:$0xff]
    %v778 = vld [vmem:[#allocation4 + $0x68] sm:$0xff]
    %v779 = vld [vmem:[#allocation4 + $0x70] sm:$0xff]
    %v780 = vld [vmem:[#allocation4 + $0x78] sm:$0xff]
    %v781 = vld [vmem:[#allocation4 + $0x80] sm:$0xff]
    %v782 = vld [vmem:[#allocation4 + $0x88] sm:$0xff]
    %v783 = vld [vmem:[#allocation4 + $0x90] sm:$0xff]
    %v784 = vld [vmem:[#allocation4 + $0x98] sm:$0xff]
    %v785 = vld [vmem:[#allocation4 + $0xa0] sm:$0xff]
    %v786 = vld [vmem:[#allocation4 + $0xa8] sm:$0xff]
    %v787 = vld [vmem:[#allocation4 + $0xb0] sm:$0xff]
    %v788 = vld [vmem:[#allocation4 + $0xb8] sm:$0xff]
    %v789 = vld [vmem:[#allocation4 + $0xc0] sm:$0xff]
    %v790 = vld [vmem:[#allocation4 + $0xc8] sm:$0xff]
    %v791 = vld [vmem:[#allocation4 + $0xd0] sm:$0xff]
    %v792 = vld [vmem:[#allocation4 + $0xd8] sm:$0xff]
    %v793 = vld [vmem:[#allocation4 + $0xe0] sm:$0xff]
    %v794 = vld [vmem:[#allocation4 + $0xe8] sm:$0xff]
    %v795 = vld [vmem:[#allocation4 + $0xf0] sm:$0xff]
    %v796 = vld [vmem:[#allocation4 + $0xf8] sm:$0xff]
    %v797 = vld [vmem:[#allocation4 + $0x100] sm:$0xff]
    %v798 = vld [vmem:[#allocation4 + $0x108] sm:$0xff]
    %v799 = vld [vmem:[#allocation4 + $0x110] sm:$0xff]
    %v800 = vld [vmem:[#allocation4 + $0x118] sm:$0xff]
    %v801 = vld [vmem:[#allocation4 + $0x120] sm:$0xff]
    %v802 = vld [vmem:[#allocation4 + $0x128] sm:$0xff]
    %v803 = vld [vmem:[#allocation4 + $0x130] sm:$0xff]
    %v804 = vld [vmem:[#allocation4 + $0x138] sm:$0xff]
    %v805 = vld [vmem:[#allocation4 + $0x140] sm:$0xff]
    %v806 = vld [vmem:[#allocation4 + $0x148] sm:$0xff]
    %v807 = vld [vmem:[#allocation4 + $0x150] sm:$0xff]
    %v808 = vld [vmem:[#allocation4 + $0x158] sm:$0xff]
    %v809 = vld [vmem:[#allocation4 + $0x160] sm:$0xff]
    %v810 = vld [vmem:[#allocation4 + $0x168] sm:$0xff]
    %v811 = vld [vmem:[#allocation4 + $0x170] sm:$0xff]
    %v812 = vld [vmem:[#allocation4 + $0x178] sm:$0xff]
    %v813 = vld [vmem:[#allocation4 + $0x180] sm:$0xff]
    %v814 = vld [vmem:[#allocation4 + $0x188] sm:$0xff]
    %v815 = vld [vmem:[#allocation4 + $0x190] sm:$0xff]
    %v816 = vld [vmem:[#allocation4 + $0x198] sm:$0xff]
    %v817 = vld [vmem:[#allocation4 + $0x1a0] sm:$0xff]
    %v818 = vld [vmem:[#allocation4 + $0x1a8] sm:$0xff]
    %v819 = vld [vmem:[#allocation4 + $0x1b0] sm:$0xff]
    %v820 = vld [vmem:[#allocation4 + $0x1b8] sm:$0xff]
    %v821 = vld [vmem:[#allocation4 + $0x1c0] sm:$0xff]
    %v822 = vld [vmem:[#allocation4 + $0x1c8] sm:$0xff]
    %v823 = vld [vmem:[#allocation4 + $0x1d0] sm:$0xff]
    %v824 = vld [vmem:[#allocation4 + $0x1d8] sm:$0xff]
    %v825 = vld [vmem:[#allocation4 + $0x1e0] sm:$0xff]
    %v826 = vld [vmem:[#allocation4 + $0x1e8] sm:$0xff]
    %v827 = vld [vmem:[#allocation4 + $0x1f0] sm:$0xff]
    %v828 = vld [vmem:[#allocation4 + $0x1f8] sm:$0xff]
    %v830 = vrot.slane %v532, 6
    %832 = vmatprep.subr.mxu0 %v826
    %833 = vmatpush1.msra.mxu0 %v825
    %834 = vmatprep.subr.mxu0 %v822
    %835 = vmatpush1.msra.mxu0 %v821
    %836 = vmatprep.subr.mxu0 %v818
    %837 = vmatpush1.msra.mxu0 %v817
    %838 = vmatprep.subr.mxu0 %v814
    %839 = vmatpush1.msra.mxu0 %v813
    %840 = vmatprep.subr.mxu0 %v810
    %841 = vmatpush1.msra.mxu0 %v809
    %842 = vmatprep.subr.mxu0 %v806
    %843 = vmatpush1.msra.mxu0 %v805
    %844 = vmatprep.subr.mxu0 %v802
    %845 = vmatpush1.msra.mxu0 %v801
    %846 = vmatprep.subr.mxu0 %v798
    %847 = vmatpush1.msra.mxu0 %v797
    %848 = vmatprep.subr.mxu0 %v794
    %849 = vmatpush1.msra.mxu0 %v793
    %850 = vmatprep.subr.mxu0 %v790
    %851 = vmatpush1.msra.mxu0 %v789
    %852 = vmatprep.subr.mxu0 %v786
    %853 = vmatpush1.msra.mxu0 %v785
    %854 = vmatprep.subr.mxu0 %v782
    %855 = vmatpush1.msra.mxu0 %v781
    %856 = vmatprep.subr.mxu0 %v778
    %857 = vmatpush1.msra.mxu0 %v777
    %858 = vmatprep.subr.mxu0 %v774
    %859 = vmatpush1.msra.mxu0 %v773
    %860 = vmatprep.subr.mxu0 %v770
    %861 = vmatpush1.msra.mxu0 %v769
    %862 = vmatprep.subr.mxu0 %v766
    %863 = vmatpush1.msra.mxu0 %v765
    %864 = vmatprep.subr.mxu0 0.0
    %865 = vmatpush2.msra.mxu0 0.0
    %866 = vmatprep.subr.mxu0 0.0
    %867 = vmatpush2.msra.mxu0 0.0
    %868 = vmatprep.subr.mxu0 0.0
    %869 = vmatpush2.msra.mxu0 0.0
    %870 = vmatprep.subr.mxu0 0.0
    %871 = vmatpush2.msra.mxu0 0.0
    %872 = vmatprep.subr.mxu0 0.0
    %873 = vmatpush2.msra.mxu0 0.0
    %874 = vmatprep.subr.mxu0 0.0
    %875 = vmatpush2.msra.mxu0 0.0
    %876 = vmatprep.subr.mxu0 0.0
    %877 = vmatpush2.msra.mxu0 0.0
    %878 = vmatprep.subr.mxu0 0.0
    %879 = vmatpush2.msra.mxu0 0.0
    %880 = vmatprep.subr.mxu0 0.0
    %881 = vmatpush2.msra.mxu0 0.0
    %882 = vmatprep.subr.mxu0 0.0
    %883 = vmatpush2.msra.mxu0 0.0
    %884 = vmatprep.subr.mxu0 0.0
    %885 = vmatpush2.msra.mxu0 0.0
    %886 = vmatprep.subr.mxu0 0.0
    %887 = vmatpush2.msra.mxu0 0.0
    %888 = vmatprep.subr.mxu0 0.0
    %889 = vmatpush2.msra.mxu0 0.0
    %890 = vmatprep.subr.mxu0 0.0
    %891 = vmatpush2.msra.mxu0 0.0
    %892 = vmatprep.subr.mxu0 0.0
    %893 = vmatpush2.msra.mxu0 0.0
    %894 = vmatprep.subr.mxu0 0.0
    %895 = vmatpush2.msra.mxu0 0.0
    %896 = vmatprep.mubr.f32.mxu0 0.0
    %897 = vmatmul.mubr.f32.gmra.mxu0 %v830
    %v898 = vpop.f32.mrf.mxu0
    %v899 = vadd.f32 0.0, %v898
    %v900 = vpop.f32.mrf.mxu0
    %v901 = vadd.f32 0.0, %v900
    %902 = vdwg.mxu0
    %903 = vmatprep.subr.mxu0 %v828
    %904 = vmatpush1.msra.mxu0 %v827
    %905 = vmatprep.subr.mxu0 %v824
    %906 = vmatpush1.msra.mxu0 %v823
    %907 = vmatprep.subr.mxu0 %v820
    %908 = vmatpush1.msra.mxu0 %v819
    %909 = vmatprep.subr.mxu0 %v816
    %910 = vmatpush1.msra.mxu0 %v815
    %911 = vmatprep.subr.mxu0 %v812
    %912 = vmatpush1.msra.mxu0 %v811
    %913 = vmatprep.subr.mxu0 %v808
    %914 = vmatpush1.msra.mxu0 %v807
    %915 = vmatprep.subr.mxu0 %v804
    %916 = vmatpush1.msra.mxu0 %v803
    %917 = vmatprep.subr.mxu0 %v800
    %918 = vmatpush1.msra.mxu0 %v799
    %919 = vmatprep.subr.mxu0 %v796
    %920 = vmatpush1.msra.mxu0 %v795
    %921 = vmatprep.subr.mxu0 %v792
    %922 = vmatpush1.msra.mxu0 %v791
    %923 = vmatprep.subr.mxu0 %v788
    %924 = vmatpush1.msra.mxu0 %v787
    %925 = vmatprep.subr.mxu0 %v784
    %926 = vmatpush1.msra.mxu0 %v783
    %927 = vmatprep.subr.mxu0 %v780
    %928 = vmatpush1.msra.mxu0 %v779
    %929 = vmatprep.subr.mxu0 %v776
    %930 = vmatpush1.msra.mxu0 %v775
    %931 = vmatprep.subr.mxu0 %v772
    %932 = vmatpush1.msra.mxu0 %v771
    %933 = vmatprep.subr.mxu0 %v768
    %934 = vmatpush1.msra.mxu0 %v767
    %935 = vmatprep.subr.mxu0 0.0
    %936 = vmatpush2.msra.mxu0 0.0
    %937 = vmatprep.subr.mxu0 0.0
    %938 = vmatpush2.msra.mxu0 0.0
    %939 = vmatprep.subr.mxu0 0.0
    %940 = vmatpush2.msra.mxu0 0.0
    %941 = vmatprep.subr.mxu0 0.0
    %942 = vmatpush2.msra.mxu0 0.0
    %943 = vmatprep.subr.mxu0 0.0
    %944 = vmatpush2.msra.mxu0 0.0
    %945 = vmatprep.subr.mxu0 0.0
    %946 = vmatpush2.msra.mxu0 0.0
    %947 = vmatprep.subr.mxu0 0.0
    %948 = vmatpush2.msra.mxu0 0.0
    %949 = vmatprep.subr.mxu0 0.0
    %950 = vmatpush2.msra.mxu0 0.0
    %951 = vmatprep.subr.mxu0 0.0
    %952 = vmatpush2.msra.mxu0 0.0
    %953 = vmatprep.subr.mxu0 0.0
    %954 = vmatpush2.msra.mxu0 0.0
    %955 = vmatprep.subr.mxu0 0.0
    %956 = vmatpush2.msra.mxu0 0.0
    %957 = vmatprep.subr.mxu0 0.0
    %958 = vmatpush2.msra.mxu0 0.0
    %959 = vmatprep.subr.mxu0 0.0
    %960 = vmatpush2.msra.mxu0 0.0
    %961 = vmatprep.subr.mxu0 0.0
    %962 = vmatpush2.msra.mxu0 0.0
    %963 = vmatprep.subr.mxu0 0.0
    %964 = vmatpush2.msra.mxu0 0.0
    %965 = vmatprep.subr.mxu0 0.0
    %966 = vmatpush2.msra.mxu0 0.0
    %967 = vmatprep.mubr.f32.mxu0 0.0
    %968 = vmatmul.mubr.f32.gmra.mxu0 %v830
    %v969 = vpop.f32.mrf.mxu0
    %v970 = vadd.f32 0.0, %v969
    %v971 = vpop.f32.mrf.mxu0
    %v972 = vadd.f32 0.0, %v971
    %973 = vdwg.mxu0
    %v978 = vrot.slane %v899, 4
    %v979 = vrot.slane %v901, 4
    %v980 = vrot.slane %v970, 4
    %v981 = vrot.slane %v972, 4
    %v986 = vadd.f32 %v761, %v978
    %v987 = vadd.f32 %v762, %v979
    %v988 = vadd.f32 %v763, %v980
    %v989 = vadd.f32 %v764, %v981
    %v990 = vxor.u32 %v757, 2147483648
    %v991 = vmul.f32 %v990, 1.442695
    %v992 = vpow.pop %v991
    %v993 = vadd.f32 %v992, 1.0
    %v994 = vrcp.pop %v993
    %v995 = vmul.f32 1.0, %v994
    %v996 = vxor.u32 %v758, 2147483648
    %v997 = vmul.f32 %v996, 1.442695
    %v998 = vpow.pop %v997
    %v999 = vadd.f32 %v998, 1.0
    %v1000 = vrcp.pop %v999
    %v1001 = vmul.f32 1.0, %v1000
    %v1002 = vtanh.pop %v759
    %v1003 = vxor.u32 %v760, 2147483648
    %v1004 = vmul.f32 %v1003, 1.442695
    %v1005 = vpow.pop %v1004
    %v1006 = vadd.f32 %v1005, 1.0
    %v1007 = vrcp.pop %v1006
    %v1008 = vmul.f32 1.0, %v1007
    %v1010 = vrot.slane %v506, 6
    %v1012 = vmul.f32 %v1001, %v1010
    %v1013 = vmul.f32 %v995, %v1002
    %v1014 = vadd.f32 %v1012, %v1013
    %v1015 = vtanh.pop %v1014
    %v1016 = vmul.f32 %v1008, %v1015
    %v1017 = vxor.u32 %v986, 2147483648
    %v1018 = vmul.f32 %v1017, 1.442695
    %v1019 = vpow.pop %v1018
    %v1020 = vadd.f32 %v1019, 1.0
    %v1021 = vrcp.pop %v1020
    %v1022 = vmul.f32 1.0, %v1021
    %v1023 = vxor.u32 %v987, 2147483648
    %v1024 = vmul.f32 %v1023, 1.442695
    %v1025 = vpow.pop %v1024
    %v1026 = vadd.f32 %v1025, 1.0
    %v1027 = vrcp.pop %v1026
    %v1028 = vmul.f32 1.0, %v1027
    %v1029 = vtanh.pop %v988
    %v1030 = vxor.u32 %v989, 2147483648
    %v1031 = vmul.f32 %v1030, 1.442695
    %v1032 = vpow.pop %v1031
    %v1033 = vadd.f32 %v1032, 1.0
    %v1034 = vrcp.pop %v1033
    %v1035 = vmul.f32 1.0, %v1034
    %v1037 = vrot.slane %v530, 2
    %v1039 = vmul.f32 %v1028, %v1037
    %v1040 = vmul.f32 %v1022, %v1029
    %v1041 = vadd.f32 %v1039, %v1040
    %v1042 = vtanh.pop %v1041
    %v1043 = vmul.f32 %v1035, %v1042
    %1044 = vst [vmem:[%s4] sm:$0xc] %v1016
    %1045 = vst [vmem:[%s4 + $0x18] sm:$0x30] %v1043
    %v1046 = vld [vmem:[%s0] sm:$0x30]
    %v1047 = vld [vmem:[%s0 + $0x8] sm:$0x30]
    %v1048 = vld [vmem:[%s0 + $0x10] sm:$0x30]
    %v1049 = vld [vmem:[%s0 + $0x18] sm:$0x30]
    %v1050 = vld [vmem:[#allocation2] sm:$0xff]
    %v1051 = vld [vmem:[#allocation2 + $0x8] sm:$0xff]
    %v1052 = vld [vmem:[#allocation2 + $0x10] sm:$0xff]
    %v1053 = vld [vmem:[#allocation2 + $0x18] sm:$0xff]
    %v1054 = vld [vmem:[#allocation2 + $0x20] sm:$0xff]
    %v1055 = vld [vmem:[#allocation2 + $0x28] sm:$0xff]
    %v1056 = vld [vmem:[#allocation2 + $0x30] sm:$0xff]
    %v1057 = vld [vmem:[#allocation2 + $0x38] sm:$0xff]
    %v1058 = vld [vmem:[#allocation2 + $0x40] sm:$0xff]
    %v1059 = vld [vmem:[#allocation2 + $0x48] sm:$0xff]
    %v1060 = vld [vmem:[#allocation2 + $0x50] sm:$0xff]
    %v1061 = vld [vmem:[#allocation2 + $0x58] sm:$0xff]
    %v1062 = vld [vmem:[#allocation2 + $0x60] sm:$0xff]
    %v1063 = vld [vmem:[#allocation2 + $0x68] sm:$0xff]
    %v1064 = vld [vmem:[#allocation2 + $0x70] sm:$0xff]
    %v1065 = vld [vmem:[#allocation2 + $0x78] sm:$0xff]
    %v1066 = vld [vmem:[#allocation2 + $0x80] sm:$0xff]
    %v1067 = vld [vmem:[#allocation2 + $0x88] sm:$0xff]
    %v1068 = vld [vmem:[#allocation2 + $0x90] sm:$0xff]
    %v1069 = vld [vmem:[#allocation2 + $0x98] sm:$0xff]
    %v1070 = vld [vmem:[#allocation2 + $0xa0] sm:$0xff]
    %v1071 = vld [vmem:[#allocation2 + $0xa8] sm:$0xff]
    %v1072 = vld [vmem:[#allocation2 + $0xb0] sm:$0xff]
    %v1073 = vld [vmem:[#allocation2 + $0xb8] sm:$0xff]
    %v1074 = vld [vmem:[#allocation2 + $0xc0] sm:$0xff]
    %v1075 = vld [vmem:[#allocation2 + $0xc8] sm:$0xff]
    %v1076 = vld [vmem:[#allocation2 + $0xd0] sm:$0xff]
    %v1077 = vld [vmem:[#allocation2 + $0xd8] sm:$0xff]
    %v1078 = vld [vmem:[#allocation2 + $0xe0] sm:$0xff]
    %v1079 = vld [vmem:[#allocation2 + $0xe8] sm:$0xff]
    %v1080 = vld [vmem:[#allocation2 + $0xf0] sm:$0xff]
    %v1081 = vld [vmem:[#allocation2 + $0xf8] sm:$0xff]
    %v1082 = vld [vmem:[#allocation2 + $0x100] sm:$0xff]
    %v1083 = vld [vmem:[#allocation2 + $0x108] sm:$0xff]
    %v1084 = vld [vmem:[#allocation2 + $0x110] sm:$0xff]
    %v1085 = vld [vmem:[#allocation2 + $0x118] sm:$0xff]
    %v1086 = vld [vmem:[#allocation2 + $0x120] sm:$0xff]
    %v1087 = vld [vmem:[#allocation2 + $0x128] sm:$0xff]
    %v1088 = vld [vmem:[#allocation2 + $0x130] sm:$0xff]
    %v1089 = vld [vmem:[#allocation2 + $0x138] sm:$0xff]
    %v1090 = vld [vmem:[#allocation2 + $0x140] sm:$0xff]
    %v1091 = vld [vmem:[#allocation2 + $0x148] sm:$0xff]
    %v1092 = vld [vmem:[#allocation2 + $0x150] sm:$0xff]
    %v1093 = vld [vmem:[#allocation2 + $0x158] sm:$0xff]
    %v1094 = vld [vmem:[#allocation2 + $0x160] sm:$0xff]
    %v1095 = vld [vmem:[#allocation2 + $0x168] sm:$0xff]
    %v1096 = vld [vmem:[#allocation2 + $0x170] sm:$0xff]
    %v1097 = vld [vmem:[#allocation2 + $0x178] sm:$0xff]
    %v1098 = vld [vmem:[#allocation2 + $0x180] sm:$0xff]
    %v1099 = vld [vmem:[#allocation2 + $0x188] sm:$0xff]
    %v1100 = vld [vmem:[#allocation2 + $0x190] sm:$0xff]
    %v1101 = vld [vmem:[#allocation2 + $0x198] sm:$0xff]
    %v1102 = vld [vmem:[#allocation2 + $0x1a0] sm:$0xff]
    %v1103 = vld [vmem:[#allocation2 + $0x1a8] sm:$0xff]
    %v1104 = vld [vmem:[#allocation2 + $0x1b0] sm:$0xff]
    %v1105 = vld [vmem:[#allocation2 + $0x1b8] sm:$0xff]
    %v1106 = vld [vmem:[#allocation2 + $0x1c0] sm:$0xff]
    %v1107 = vld [vmem:[#allocation2 + $0x1c8] sm:$0xff]
    %v1108 = vld [vmem:[#allocation2 + $0x1d0] sm:$0xff]
    %v1109 = vld [vmem:[#allocation2 + $0x1d8] sm:$0xff]
    %v1110 = vld [vmem:[#allocation2 + $0x1e0] sm:$0xff]
    %v1111 = vld [vmem:[#allocation2 + $0x1e8] sm:$0xff]
    %v1112 = vld [vmem:[#allocation2 + $0x1f0] sm:$0xff]
    %v1113 = vld [vmem:[#allocation2 + $0x1f8] sm:$0xff]
    %v1115 = vrot.slane %v1016, 2
    %1117 = vmatprep.subr.mxu0 %v1111
    %1118 = vmatpush1.msra.mxu0 %v1110
    %1119 = vmatprep.subr.mxu0 %v1107
    %1120 = vmatpush1.msra.mxu0 %v1106
    %1121 = vmatprep.subr.mxu0 %v1103
    %1122 = vmatpush1.msra.mxu0 %v1102
    %1123 = vmatprep.subr.mxu0 %v1099
    %1124 = vmatpush1.msra.mxu0 %v1098
    %1125 = vmatprep.subr.mxu0 %v1095
    %1126 = vmatpush1.msra.mxu0 %v1094
    %1127 = vmatprep.subr.mxu0 %v1091
    %1128 = vmatpush1.msra.mxu0 %v1090
    %1129 = vmatprep.subr.mxu0 %v1087
    %1130 = vmatpush1.msra.mxu0 %v1086
    %1131 = vmatprep.subr.mxu0 %v1083
    %1132 = vmatpush1.msra.mxu0 %v1082
    %1133 = vmatprep.subr.mxu0 %v1079
    %1134 = vmatpush1.msra.mxu0 %v1078
    %1135 = vmatprep.subr.mxu0 %v1075
    %1136 = vmatpush1.msra.mxu0 %v1074
    %1137 = vmatprep.subr.mxu0 %v1071
    %1138 = vmatpush1.msra.mxu0 %v1070
    %1139 = vmatprep.subr.mxu0 %v1067
    %1140 = vmatpush1.msra.mxu0 %v1066
    %1141 = vmatprep.subr.mxu0 %v1063
    %1142 = vmatpush1.msra.mxu0 %v1062
    %1143 = vmatprep.subr.mxu0 %v1059
    %1144 = vmatpush1.msra.mxu0 %v1058
    %1145 = vmatprep.subr.mxu0 %v1055
    %1146 = vmatpush1.msra.mxu0 %v1054
    %1147 = vmatprep.subr.mxu0 %v1051
    %1148 = vmatpush1.msra.mxu0 %v1050
    %1149 = vmatprep.subr.mxu0 0.0
    %1150 = vmatpush2.msra.mxu0 0.0
    %1151 = vmatprep.subr.mxu0 0.0
    %1152 = vmatpush2.msra.mxu0 0.0
    %1153 = vmatprep.subr.mxu0 0.0
    %1154 = vmatpush2.msra.mxu0 0.0
    %1155 = vmatprep.subr.mxu0 0.0
    %1156 = vmatpush2.msra.mxu0 0.0
    %1157 = vmatprep.subr.mxu0 0.0
    %1158 = vmatpush2.msra.mxu0 0.0
    %1159 = vmatprep.subr.mxu0 0.0
    %1160 = vmatpush2.msra.mxu0 0.0
    %1161 = vmatprep.subr.mxu0 0.0
    %1162 = vmatpush2.msra.mxu0 0.0
    %1163 = vmatprep.subr.mxu0 0.0
    %1164 = vmatpush2.msra.mxu0 0.0
    %1165 = vmatprep.subr.mxu0 0.0
    %1166 = vmatpush2.msra.mxu0 0.0
    %1167 = vmatprep.subr.mxu0 0.0
    %1168 = vmatpush2.msra.mxu0 0.0
    %1169 = vmatprep.subr.mxu0 0.0
    %1170 = vmatpush2.msra.mxu0 0.0
    %1171 = vmatprep.subr.mxu0 0.0
    %1172 = vmatpush2.msra.mxu0 0.0
    %1173 = vmatprep.subr.mxu0 0.0
    %1174 = vmatpush2.msra.mxu0 0.0
    %1175 = vmatprep.subr.mxu0 0.0
    %1176 = vmatpush2.msra.mxu0 0.0
    %1177 = vmatprep.subr.mxu0 0.0
    %1178 = vmatpush2.msra.mxu0 0.0
    %1179 = vmatprep.subr.mxu0 0.0
    %1180 = vmatpush2.msra.mxu0 0.0
    %1181 = vmatprep.mubr.f32.mxu0 0.0
    %1182 = vmatmul.mubr.f32.gmra.mxu0 %v1115
    %v1183 = vpop.f32.mrf.mxu0
    %v1184 = vadd.f32 0.0, %v1183
    %v1185 = vpop.f32.mrf.mxu0
    %v1186 = vadd.f32 0.0, %v1185
    %1187 = vdwg.mxu0
    %1188 = vmatprep.subr.mxu0 %v1113
    %1189 = vmatpush1.msra.mxu0 %v1112
    %1190 = vmatprep.subr.mxu0 %v1109
    %1191 = vmatpush1.msra.mxu0 %v1108
    %1192 = vmatprep.subr.mxu0 %v1105
    %1193 = vmatpush1.msra.mxu0 %v1104
    %1194 = vmatprep.subr.mxu0 %v1101
    %1195 = vmatpush1.msra.mxu0 %v1100
    %1196 = vmatprep.subr.mxu0 %v1097
    %1197 = vmatpush1.msra.mxu0 %v1096
    %1198 = vmatprep.subr.mxu0 %v1093
    %1199 = vmatpush1.msra.mxu0 %v1092
    %1200 = vmatprep.subr.mxu0 %v1089
    %1201 = vmatpush1.msra.mxu0 %v1088
    %1202 = vmatprep.subr.mxu0 %v1085
    %1203 = vmatpush1.msra.mxu0 %v1084
    %1204 = vmatprep.subr.mxu0 %v1081
    %1205 = vmatpush1.msra.mxu0 %v1080
    %1206 = vmatprep.subr.mxu0 %v1077
    %1207 = vmatpush1.msra.mxu0 %v1076
    %1208 = vmatprep.subr.mxu0 %v1073
    %1209 = vmatpush1.msra.mxu0 %v1072
    %1210 = vmatprep.subr.mxu0 %v1069
    %1211 = vmatpush1.msra.mxu0 %v1068
    %1212 = vmatprep.subr.mxu0 %v1065
    %1213 = vmatpush1.msra.mxu0 %v1064
    %1214 = vmatprep.subr.mxu0 %v1061
    %1215 = vmatpush1.msra.mxu0 %v1060
    %1216 = vmatprep.subr.mxu0 %v1057
    %1217 = vmatpush1.msra.mxu0 %v1056
    %1218 = vmatprep.subr.mxu0 %v1053
    %1219 = vmatpush1.msra.mxu0 %v1052
    %1220 = vmatprep.subr.mxu0 0.0
    %1221 = vmatpush2.msra.mxu0 0.0
    %1222 = vmatprep.subr.mxu0 0.0
    %1223 = vmatpush2.msra.mxu0 0.0
    %1224 = vmatprep.subr.mxu0 0.0
    %1225 = vmatpush2.msra.mxu0 0.0
    %1226 = vmatprep.subr.mxu0 0.0
    %1227 = vmatpush2.msra.mxu0 0.0
    %1228 = vmatprep.subr.mxu0 0.0
    %1229 = vmatpush2.msra.mxu0 0.0
    %1230 = vmatprep.subr.mxu0 0.0
    %1231 = vmatpush2.msra.mxu0 0.0
    %1232 = vmatprep.subr.mxu0 0.0
    %1233 = vmatpush2.msra.mxu0 0.0
    %1234 = vmatprep.subr.mxu0 0.0
    %1235 = vmatpush2.msra.mxu0 0.0
    %1236 = vmatprep.subr.mxu0 0.0
    %1237 = vmatpush2.msra.mxu0 0.0
    %1238 = vmatprep.subr.mxu0 0.0
    %1239 = vmatpush2.msra.mxu0 0.0
    %1240 = vmatprep.subr.mxu0 0.0
    %1241 = vmatpush2.msra.mxu0 0.0
    %1242 = vmatprep.subr.mxu0 0.0
    %1243 = vmatpush2.msra.mxu0 0.0
    %1244 = vmatprep.subr.mxu0 0.0
    %1245 = vmatpush2.msra.mxu0 0.0
    %1246 = vmatprep.subr.mxu0 0.0
    %1247 = vmatpush2.msra.mxu0 0.0
    %1248 = vmatprep.subr.mxu0 0.0
    %1249 = vmatpush2.msra.mxu0 0.0
    %1250 = vmatprep.subr.mxu0 0.0
    %1251 = vmatpush2.msra.mxu0 0.0
    %1252 = vmatprep.mubr.f32.mxu0 0.0
    %1253 = vmatmul.mubr.f32.gmra.mxu0 %v1115
    %v1254 = vpop.f32.mrf.mxu0
    %v1255 = vadd.f32 0.0, %v1254
    %v1256 = vpop.f32.mrf.mxu0
    %v1257 = vadd.f32 0.0, %v1256
    %1258 = vdwg.mxu0
    %v1263 = vrot.slane %v1184, 4
    %v1264 = vrot.slane %v1186, 4
    %v1265 = vrot.slane %v1255, 4
    %v1266 = vrot.slane %v1257, 4
    %v1271 = vadd.f32 %v1046, %v1263
    %v1272 = vadd.f32 %v1047, %v1264
    %v1273 = vadd.f32 %v1048, %v1265
    %v1274 = vadd.f32 %v1049, %v1266
    %v1275 = vld [vmem:[%s1 + $0x20] sm:$0xc]
    %v1276 = vld [vmem:[%s1 + $0x28] sm:$0xc]
    %v1277 = vld [vmem:[%s1 + $0x30] sm:$0xc]
    %v1278 = vld [vmem:[%s1 + $0x38] sm:$0xc]
    %v1279 = vld [vmem:[#allocation4] sm:$0xff]
    %v1280 = vld [vmem:[#allocation4 + $0x8] sm:$0xff]
    %v1281 = vld [vmem:[#allocation4 + $0x10] sm:$0xff]
    %v1282 = vld [vmem:[#allocation4 + $0x18] sm:$0xff]
    %v1283 = vld [vmem:[#allocation4 + $0x20] sm:$0xff]
    %v1284 = vld [vmem:[#allocation4 + $0x28] sm:$0xff]
    %v1285 = vld [vmem:[#allocation4 + $0x30] sm:$0xff]
    %v1286 = vld [vmem:[#allocation4 + $0x38] sm:$0xff]
    %v1287 = vld [vmem:[#allocation4 + $0x40] sm:$0xff]
    %v1288 = vld [vmem:[#allocation4 + $0x48] sm:$0xff]
    %v1289 = vld [vmem:[#allocation4 + $0x50] sm:$0xff]
    %v1290 = vld [vmem:[#allocation4 + $0x58] sm:$0xff]
    %v1291 = vld [vmem:[#allocation4 + $0x60] sm:$0xff]
    %v1292 = vld [vmem:[#allocation4 + $0x68] sm:$0xff]
    %v1293 = vld [vmem:[#allocation4 + $0x70] sm:$0xff]
    %v1294 = vld [vmem:[#allocation4 + $0x78] sm:$0xff]
    %v1295 = vld [vmem:[#allocation4 + $0x80] sm:$0xff]
    %v1296 = vld [vmem:[#allocation4 + $0x88] sm:$0xff]
    %v1297 = vld [vmem:[#allocation4 + $0x90] sm:$0xff]
    %v1298 = vld [vmem:[#allocation4 + $0x98] sm:$0xff]
    %v1299 = vld [vmem:[#allocation4 + $0xa0] sm:$0xff]
    %v1300 = vld [vmem:[#allocation4 + $0xa8] sm:$0xff]
    %v1301 = vld [vmem:[#allocation4 + $0xb0] sm:$0xff]
    %v1302 = vld [vmem:[#allocation4 + $0xb8] sm:$0xff]
    %v1303 = vld [vmem:[#allocation4 + $0xc0] sm:$0xff]
    %v1304 = vld [vmem:[#allocation4 + $0xc8] sm:$0xff]
    %v1305 = vld [vmem:[#allocation4 + $0xd0] sm:$0xff]
    %v1306 = vld [vmem:[#allocation4 + $0xd8] sm:$0xff]
    %v1307 = vld [vmem:[#allocation4 + $0xe0] sm:$0xff]
    %v1308 = vld [vmem:[#allocation4 + $0xe8] sm:$0xff]
    %v1309 = vld [vmem:[#allocation4 + $0xf0] sm:$0xff]
    %v1310 = vld [vmem:[#allocation4 + $0xf8] sm:$0xff]
    %v1311 = vld [vmem:[#allocation4 + $0x100] sm:$0xff]
    %v1312 = vld [vmem:[#allocation4 + $0x108] sm:$0xff]
    %v1313 = vld [vmem:[#allocation4 + $0x110] sm:$0xff]
    %v1314 = vld [vmem:[#allocation4 + $0x118] sm:$0xff]
    %v1315 = vld [vmem:[#allocation4 + $0x120] sm:$0xff]
    %v1316 = vld [vmem:[#allocation4 + $0x128] sm:$0xff]
    %v1317 = vld [vmem:[#allocation4 + $0x130] sm:$0xff]
    %v1318 = vld [vmem:[#allocation4 + $0x138] sm:$0xff]
    %v1319 = vld [vmem:[#allocation4 + $0x140] sm:$0xff]
    %v1320 = vld [vmem:[#allocation4 + $0x148] sm:$0xff]
    %v1321 = vld [vmem:[#allocation4 + $0x150] sm:$0xff]
    %v1322 = vld [vmem:[#allocation4 + $0x158] sm:$0xff]
    %v1323 = vld [vmem:[#allocation4 + $0x160] sm:$0xff]
    %v1324 = vld [vmem:[#allocation4 + $0x168] sm:$0xff]
    %v1325 = vld [vmem:[#allocation4 + $0x170] sm:$0xff]
    %v1326 = vld [vmem:[#allocation4 + $0x178] sm:$0xff]
    %v1327 = vld [vmem:[#allocation4 + $0x180] sm:$0xff]
    %v1328 = vld [vmem:[#allocation4 + $0x188] sm:$0xff]
    %v1329 = vld [vmem:[#allocation4 + $0x190] sm:$0xff]
    %v1330 = vld [vmem:[#allocation4 + $0x198] sm:$0xff]
    %v1331 = vld [vmem:[#allocation4 + $0x1a0] sm:$0xff]
    %v1332 = vld [vmem:[#allocation4 + $0x1a8] sm:$0xff]
    %v1333 = vld [vmem:[#allocation4 + $0x1b0] sm:$0xff]
    %v1334 = vld [vmem:[#allocation4 + $0x1b8] sm:$0xff]
    %v1335 = vld [vmem:[#allocation4 + $0x1c0] sm:$0xff]
    %v1336 = vld [vmem:[#allocation4 + $0x1c8] sm:$0xff]
    %v1337 = vld [vmem:[#allocation4 + $0x1d0] sm:$0xff]
    %v1338 = vld [vmem:[#allocation4 + $0x1d8] sm:$0xff]
    %v1339 = vld [vmem:[#allocation4 + $0x1e0] sm:$0xff]
    %v1340 = vld [vmem:[#allocation4 + $0x1e8] sm:$0xff]
    %v1341 = vld [vmem:[#allocation4 + $0x1f0] sm:$0xff]
    %v1342 = vld [vmem:[#allocation4 + $0x1f8] sm:$0xff]
    %v1344 = vrot.slane %v1043, 4
    %1346 = vmatprep.subr.mxu0 %v1340
    %1347 = vmatpush1.msra.mxu0 %v1339
    %1348 = vmatprep.subr.mxu0 %v1336
    %1349 = vmatpush1.msra.mxu0 %v1335
    %1350 = vmatprep.subr.mxu0 %v1332
    %1351 = vmatpush1.msra.mxu0 %v1331
    %1352 = vmatprep.subr.mxu0 %v1328
    %1353 = vmatpush1.msra.mxu0 %v1327
    %1354 = vmatprep.subr.mxu0 %v1324
    %1355 = vmatpush1.msra.mxu0 %v1323
    %1356 = vmatprep.subr.mxu0 %v1320
    %1357 = vmatpush1.msra.mxu0 %v1319
    %1358 = vmatprep.subr.mxu0 %v1316
    %1359 = vmatpush1.msra.mxu0 %v1315
    %1360 = vmatprep.subr.mxu0 %v1312
    %1361 = vmatpush1.msra.mxu0 %v1311
    %1362 = vmatprep.subr.mxu0 %v1308
    %1363 = vmatpush1.msra.mxu0 %v1307
    %1364 = vmatprep.subr.mxu0 %v1304
    %1365 = vmatpush1.msra.mxu0 %v1303
    %1366 = vmatprep.subr.mxu0 %v1300
    %1367 = vmatpush1.msra.mxu0 %v1299
    %1368 = vmatprep.subr.mxu0 %v1296
    %1369 = vmatpush1.msra.mxu0 %v1295
    %1370 = vmatprep.subr.mxu0 %v1292
    %1371 = vmatpush1.msra.mxu0 %v1291
    %1372 = vmatprep.subr.mxu0 %v1288
    %1373 = vmatpush1.msra.mxu0 %v1287
    %1374 = vmatprep.subr.mxu0 %v1284
    %1375 = vmatpush1.msra.mxu0 %v1283
    %1376 = vmatprep.subr.mxu0 %v1280
    %1377 = vmatpush1.msra.mxu0 %v1279
    %1378 = vmatprep.subr.mxu0 0.0
    %1379 = vmatpush2.msra.mxu0 0.0
    %1380 = vmatprep.subr.mxu0 0.0
    %1381 = vmatpush2.msra.mxu0 0.0
    %1382 = vmatprep.subr.mxu0 0.0
    %1383 = vmatpush2.msra.mxu0 0.0
    %1384 = vmatprep.subr.mxu0 0.0
    %1385 = vmatpush2.msra.mxu0 0.0
    %1386 = vmatprep.subr.mxu0 0.0
    %1387 = vmatpush2.msra.mxu0 0.0
    %1388 = vmatprep.subr.mxu0 0.0
    %1389 = vmatpush2.msra.mxu0 0.0
    %1390 = vmatprep.subr.mxu0 0.0
    %1391 = vmatpush2.msra.mxu0 0.0
    %1392 = vmatprep.subr.mxu0 0.0
    %1393 = vmatpush2.msra.mxu0 0.0
    %1394 = vmatprep.subr.mxu0 0.0
    %1395 = vmatpush2.msra.mxu0 0.0
    %1396 = vmatprep.subr.mxu0 0.0
    %1397 = vmatpush2.msra.mxu0 0.0
    %1398 = vmatprep.subr.mxu0 0.0
    %1399 = vmatpush2.msra.mxu0 0.0
    %1400 = vmatprep.subr.mxu0 0.0
    %1401 = vmatpush2.msra.mxu0 0.0
    %1402 = vmatprep.subr.mxu0 0.0
    %1403 = vmatpush2.msra.mxu0 0.0
    %1404 = vmatprep.subr.mxu0 0.0
    %1405 = vmatpush2.msra.mxu0 0.0
    %1406 = vmatprep.subr.mxu0 0.0
    %1407 = vmatpush2.msra.mxu0 0.0
    %1408 = vmatprep.subr.mxu0 0.0
    %1409 = vmatpush2.msra.mxu0 0.0
    %1410 = vmatprep.mubr.f32.mxu0 0.0
    %1411 = vmatmul.mubr.f32.gmra.mxu0 %v1344
    %v1412 = vpop.f32.mrf.mxu0
    %v1413 = vadd.f32 0.0, %v1412
    %v1414 = vpop.f32.mrf.mxu0
    %v1415 = vadd.f32 0.0, %v1414
    %1416 = vdwg.mxu0
    %1417 = vmatprep.subr.mxu0 %v1342
    %1418 = vmatpush1.msra.mxu0 %v1341
    %1419 = vmatprep.subr.mxu0 %v1338
    %1420 = vmatpush1.msra.mxu0 %v1337
    %1421 = vmatprep.subr.mxu0 %v1334
    %1422 = vmatpush1.msra.mxu0 %v1333
    %1423 = vmatprep.subr.mxu0 %v1330
    %1424 = vmatpush1.msra.mxu0 %v1329
    %1425 = vmatprep.subr.mxu0 %v1326
    %1426 = vmatpush1.msra.mxu0 %v1325
    %1427 = vmatprep.subr.mxu0 %v1322
    %1428 = vmatpush1.msra.mxu0 %v1321
    %1429 = vmatprep.subr.mxu0 %v1318
    %1430 = vmatpush1.msra.mxu0 %v1317
    %1431 = vmatprep.subr.mxu0 %v1314
    %1432 = vmatpush1.msra.mxu0 %v1313
    %1433 = vmatprep.subr.mxu0 %v1310
    %1434 = vmatpush1.msra.mxu0 %v1309
    %1435 = vmatprep.subr.mxu0 %v1306
    %1436 = vmatpush1.msra.mxu0 %v1305
    %1437 = vmatprep.subr.mxu0 %v1302
    %1438 = vmatpush1.msra.mxu0 %v1301
    %1439 = vmatprep.subr.mxu0 %v1298
    %1440 = vmatpush1.msra.mxu0 %v1297
    %1441 = vmatprep.subr.mxu0 %v1294
    %1442 = vmatpush1.msra.mxu0 %v1293
    %1443 = vmatprep.subr.mxu0 %v1290
    %1444 = vmatpush1.msra.mxu0 %v1289
    %1445 = vmatprep.subr.mxu0 %v1286
    %1446 = vmatpush1.msra.mxu0 %v1285
    %1447 = vmatprep.subr.mxu0 %v1282
    %1448 = vmatpush1.msra.mxu0 %v1281
    %1449 = vmatprep.subr.mxu0 0.0
    %1450 = vmatpush2.msra.mxu0 0.0
    %1451 = vmatprep.subr.mxu0 0.0
    %1452 = vmatpush2.msra.mxu0 0.0
    %1453 = vmatprep.subr.mxu0 0.0
    %1454 = vmatpush2.msra.mxu0 0.0
    %1455 = vmatprep.subr.mxu0 0.0
    %1456 = vmatpush2.msra.mxu0 0.0
    %1457 = vmatprep.subr.mxu0 0.0
    %1458 = vmatpush2.msra.mxu0 0.0
    %1459 = vmatprep.subr.mxu0 0.0
    %1460 = vmatpush2.msra.mxu0 0.0
    %1461 = vmatprep.subr.mxu0 0.0
    %1462 = vmatpush2.msra.mxu0 0.0
    %1463 = vmatprep.subr.mxu0 0.0
    %1464 = vmatpush2.msra.mxu0 0.0
    %1465 = vmatprep.subr.mxu0 0.0
    %1466 = vmatpush2.msra.mxu0 0.0
    %1467 = vmatprep.subr.mxu0 0.0
    %1468 = vmatpush2.msra.mxu0 0.0
    %1469 = vmatprep.subr.mxu0 0.0
    %1470 = vmatpush2.msra.mxu0 0.0
    %1471 = vmatprep.subr.mxu0 0.0
    %1472 = vmatpush2.msra.mxu0 0.0
    %1473 = vmatprep.subr.mxu0 0.0
    %1474 = vmatpush2.msra.mxu0 0.0
    %1475 = vmatprep.subr.mxu0 0.0
    %1476 = vmatpush2.msra.mxu0 0.0
    %1477 = vmatprep.subr.mxu0 0.0
    %1478 = vmatpush2.msra.mxu0 0.0
    %1479 = vmatprep.subr.mxu0 0.0
    %1480 = vmatpush2.msra.mxu0 0.0
    %1481 = vmatprep.mubr.f32.mxu0 0.0
    %1482 = vmatmul.mubr.f32.gmra.mxu0 %v1344
    %v1483 = vpop.f32.mrf.mxu0
    %v1484 = vadd.f32 0.0, %v1483
    %v1485 = vpop.f32.mrf.mxu0
    %v1486 = vadd.f32 0.0, %v1485
    %1487 = vdwg.mxu0
    %v1492 = vrot.slane %v1413, 6
    %v1493 = vrot.slane %v1415, 6
    %v1494 = vrot.slane %v1484, 6
    %v1495 = vrot.slane %v1486, 6
    %v1500 = vadd.f32 %v1275, %v1492
    %v1501 = vadd.f32 %v1276, %v1493
    %v1502 = vadd.f32 %v1277, %v1494
    %v1503 = vadd.f32 %v1278, %v1495
    %v1504 = vxor.u32 %v1271, 2147483648
    %v1505 = vmul.f32 %v1504, 1.442695
    %v1506 = vpow.pop %v1505
    %v1507 = vadd.f32 %v1506, 1.0
    %v1508 = vrcp.pop %v1507
    %v1509 = vmul.f32 1.0, %v1508
    %v1510 = vxor.u32 %v1272, 2147483648
    %v1511 = vmul.f32 %v1510, 1.442695
    %v1512 = vpow.pop %v1511
    %v1513 = vadd.f32 %v1512, 1.0
    %v1514 = vrcp.pop %v1513
    %v1515 = vmul.f32 1.0, %v1514
    %v1516 = vtanh.pop %v1273
    %v1517 = vxor.u32 %v1274, 2147483648
    %v1518 = vmul.f32 %v1517, 1.442695
    %v1519 = vpow.pop %v1518
    %v1520 = vadd.f32 %v1519, 1.0
    %v1521 = vrcp.pop %v1520
    %v1522 = vmul.f32 1.0, %v1521
    %v1524 = vrot.slane %v1014, 6
    %v1526 = vmul.f32 %v1515, %v1524
    %v1527 = vmul.f32 %v1509, %v1516
    %v1528 = vadd.f32 %v1526, %v1527
    %v1529 = vtanh.pop %v1528
    %v1530 = vmul.f32 %v1522, %v1529
    %v1531 = vxor.u32 %v1500, 2147483648
    %v1532 = vmul.f32 %v1531, 1.442695
    %v1533 = vpow.pop %v1532
    %v1534 = vadd.f32 %v1533, 1.0
    %v1535 = vrcp.pop %v1534
    %v1536 = vmul.f32 1.0, %v1535
    %v1537 = vxor.u32 %v1501, 2147483648
    %v1538 = vmul.f32 %v1537, 1.442695
    %v1539 = vpow.pop %v1538
    %v1540 = vadd.f32 %v1539, 1.0
    %v1541 = vrcp.pop %v1540
    %v1542 = vmul.f32 1.0, %v1541
    %v1543 = vtanh.pop %v1502
    %v1544 = vxor.u32 %v1503, 2147483648
    %v1545 = vmul.f32 %v1544, 1.442695
    %v1546 = vpow.pop %v1545
    %v1547 = vadd.f32 %v1546, 1.0
    %v1548 = vrcp.pop %v1547
    %v1549 = vmul.f32 1.0, %v1548
    %v1551 = vrot.slane %v1041, 2
    %v1553 = vmul.f32 %v1542, %v1551
    %v1554 = vmul.f32 %v1536, %v1543
    %v1555 = vadd.f32 %v1553, %v1554
    %v1556 = vtanh.pop %v1555
    %v1557 = vmul.f32 %v1549, %v1556
    %1558 = vst [vmem:[%s4] sm:$0x30] %v1530
    %1559 = vst [vmem:[%s4 + $0x18] sm:$0xc] %v1557
    %v1560 = vld [vmem:[%s0] sm:$0xc0]
    %v1561 = vld [vmem:[%s0 + $0x8] sm:$0xc0]
    %v1562 = vld [vmem:[%s0 + $0x10] sm:$0xc0]
    %v1563 = vld [vmem:[%s0 + $0x18] sm:$0xc0]
    %v1564 = vld [vmem:[#allocation2] sm:$0xff]
    %v1565 = vld [vmem:[#allocation2 + $0x8] sm:$0xff]
    %v1566 = vld [vmem:[#allocation2 + $0x10] sm:$0xff]
    %v1567 = vld [vmem:[#allocation2 + $0x18] sm:$0xff]
    %v1568 = vld [vmem:[#allocation2 + $0x20] sm:$0xff]
    %v1569 = vld [vmem:[#allocation2 + $0x28] sm:$0xff]
    %v1570 = vld [vmem:[#allocation2 + $0x30] sm:$0xff]
    %v1571 = vld [vmem:[#allocation2 + $0x38] sm:$0xff]
    %v1572 = vld [vmem:[#allocation2 + $0x40] sm:$0xff]
    %v1573 = vld [vmem:[#allocation2 + $0x48] sm:$0xff]
    %v1574 = vld [vmem:[#allocation2 + $0x50] sm:$0xff]
    %v1575 = vld [vmem:[#allocation2 + $0x58] sm:$0xff]
    %v1576 = vld [vmem:[#allocation2 + $0x60] sm:$0xff]
    %v1577 = vld [vmem:[#allocation2 + $0x68] sm:$0xff]
    %v1578 = vld [vmem:[#allocation2 + $0x70] sm:$0xff]
    %v1579 = vld [vmem:[#allocation2 + $0x78] sm:$0xff]
    %v1580 = vld [vmem:[#allocation2 + $0x80] sm:$0xff]
    %v1581 = vld [vmem:[#allocation2 + $0x88] sm:$0xff]
    %v1582 = vld [vmem:[#allocation2 + $0x90] sm:$0xff]
    %v1583 = vld [vmem:[#allocation2 + $0x98] sm:$0xff]
    %v1584 = vld [vmem:[#allocation2 + $0xa0] sm:$0xff]
    %v1585 = vld [vmem:[#allocation2 + $0xa8] sm:$0xff]
    %v1586 = vld [vmem:[#allocation2 + $0xb0] sm:$0xff]
    %v1587 = vld [vmem:[#allocation2 + $0xb8] sm:$0xff]
    %v1588 = vld [vmem:[#allocation2 + $0xc0] sm:$0xff]
    %v1589 = vld [vmem:[#allocation2 + $0xc8] sm:$0xff]
    %v1590 = vld [vmem:[#allocation2 + $0xd0] sm:$0xff]
    %v1591 = vld [vmem:[#allocation2 + $0xd8] sm:$0xff]
    %v1592 = vld [vmem:[#allocation2 + $0xe0] sm:$0xff]
    %v1593 = vld [vmem:[#allocation2 + $0xe8] sm:$0xff]
    %v1594 = vld [vmem:[#allocation2 + $0xf0] sm:$0xff]
    %v1595 = vld [vmem:[#allocation2 + $0xf8] sm:$0xff]
    %v1596 = vld [vmem:[#allocation2 + $0x100] sm:$0xff]
    %v1597 = vld [vmem:[#allocation2 + $0x108] sm:$0xff]
    %v1598 = vld [vmem:[#allocation2 + $0x110] sm:$0xff]
    %v1599 = vld [vmem:[#allocation2 + $0x118] sm:$0xff]
    %v1600 = vld [vmem:[#allocation2 + $0x120] sm:$0xff]
    %v1601 = vld [vmem:[#allocation2 + $0x128] sm:$0xff]
    %v1602 = vld [vmem:[#allocation2 + $0x130] sm:$0xff]
    %v1603 = vld [vmem:[#allocation2 + $0x138] sm:$0xff]
    %v1604 = vld [vmem:[#allocation2 + $0x140] sm:$0xff]
    %v1605 = vld [vmem:[#allocation2 + $0x148] sm:$0xff]
    %v1606 = vld [vmem:[#allocation2 + $0x150] sm:$0xff]
    %v1607 = vld [vmem:[#allocation2 + $0x158] sm:$0xff]
    %v1608 = vld [vmem:[#allocation2 + $0x160] sm:$0xff]
    %v1609 = vld [vmem:[#allocation2 + $0x168] sm:$0xff]
    %v1610 = vld [vmem:[#allocation2 + $0x170] sm:$0xff]
    %v1611 = vld [vmem:[#allocation2 + $0x178] sm:$0xff]
    %v1612 = vld [vmem:[#allocation2 + $0x180] sm:$0xff]
    %v1613 = vld [vmem:[#allocation2 + $0x188] sm:$0xff]
    %v1614 = vld [vmem:[#allocation2 + $0x190] sm:$0xff]
    %v1615 = vld [vmem:[#allocation2 + $0x198] sm:$0xff]
    %v1616 = vld [vmem:[#allocation2 + $0x1a0] sm:$0xff]
    %v1617 = vld [vmem:[#allocation2 + $0x1a8] sm:$0xff]
    %v1618 = vld [vmem:[#allocation2 + $0x1b0] sm:$0xff]
    %v1619 = vld [vmem:[#allocation2 + $0x1b8] sm:$0xff]
    %v1620 = vld [vmem:[#allocation2 + $0x1c0] sm:$0xff]
    %v1621 = vld [vmem:[#allocation2 + $0x1c8] sm:$0xff]
    %v1622 = vld [vmem:[#allocation2 + $0x1d0] sm:$0xff]
    %v1623 = vld [vmem:[#allocation2 + $0x1d8] sm:$0xff]
    %v1624 = vld [vmem:[#allocation2 + $0x1e0] sm:$0xff]
    %v1625 = vld [vmem:[#allocation2 + $0x1e8] sm:$0xff]
    %v1626 = vld [vmem:[#allocation2 + $0x1f0] sm:$0xff]
    %v1627 = vld [vmem:[#allocation2 + $0x1f8] sm:$0xff]
    %v1629 = vrot.slane %v1530, 4
    %1631 = vmatprep.subr.mxu0 %v1625
    %1632 = vmatpush1.msra.mxu0 %v1624
    %1633 = vmatprep.subr.mxu0 %v1621
    %1634 = vmatpush1.msra.mxu0 %v1620
    %1635 = vmatprep.subr.mxu0 %v1617
    %1636 = vmatpush1.msra.mxu0 %v1616
    %1637 = vmatprep.subr.mxu0 %v1613
    %1638 = vmatpush1.msra.mxu0 %v1612
    %1639 = vmatprep.subr.mxu0 %v1609
    %1640 = vmatpush1.msra.mxu0 %v1608
    %1641 = vmatprep.subr.mxu0 %v1605
    %1642 = vmatpush1.msra.mxu0 %v1604
    %1643 = vmatprep.subr.mxu0 %v1601
    %1644 = vmatpush1.msra.mxu0 %v1600
    %1645 = vmatprep.subr.mxu0 %v1597
    %1646 = vmatpush1.msra.mxu0 %v1596
    %1647 = vmatprep.subr.mxu0 %v1593
    %1648 = vmatpush1.msra.mxu0 %v1592
    %1649 = vmatprep.subr.mxu0 %v1589
    %1650 = vmatpush1.msra.mxu0 %v1588
    %1651 = vmatprep.subr.mxu0 %v1585
    %1652 = vmatpush1.msra.mxu0 %v1584
    %1653 = vmatprep.subr.mxu0 %v1581
    %1654 = vmatpush1.msra.mxu0 %v1580
    %1655 = vmatprep.subr.mxu0 %v1577
    %1656 = vmatpush1.msra.mxu0 %v1576
    %1657 = vmatprep.subr.mxu0 %v1573
    %1658 = vmatpush1.msra.mxu0 %v1572
    %1659 = vmatprep.subr.mxu0 %v1569
    %1660 = vmatpush1.msra.mxu0 %v1568
    %1661 = vmatprep.subr.mxu0 %v1565
    %1662 = vmatpush1.msra.mxu0 %v1564
    %1663 = vmatprep.subr.mxu0 0.0
    %1664 = vmatpush2.msra.mxu0 0.0
    %1665 = vmatprep.subr.mxu0 0.0
    %1666 = vmatpush2.msra.mxu0 0.0
    %1667 = vmatprep.subr.mxu0 0.0
    %1668 = vmatpush2.msra.mxu0 0.0
    %1669 = vmatprep.subr.mxu0 0.0
    %1670 = vmatpush2.msra.mxu0 0.0
    %1671 = vmatprep.subr.mxu0 0.0
    %1672 = vmatpush2.msra.mxu0 0.0
    %1673 = vmatprep.subr.mxu0 0.0
    %1674 = vmatpush2.msra.mxu0 0.0
    %1675 = vmatprep.subr.mxu0 0.0
    %1676 = vmatpush2.msra.mxu0 0.0
    %1677 = vmatprep.subr.mxu0 0.0
    %1678 = vmatpush2.msra.mxu0 0.0
    %1679 = vmatprep.subr.mxu0 0.0
    %1680 = vmatpush2.msra.mxu0 0.0
    %1681 = vmatprep.subr.mxu0 0.0
    %1682 = vmatpush2.msra.mxu0 0.0
    %1683 = vmatprep.subr.mxu0 0.0
    %1684 = vmatpush2.msra.mxu0 0.0
    %1685 = vmatprep.subr.mxu0 0.0
    %1686 = vmatpush2.msra.mxu0 0.0
    %1687 = vmatprep.subr.mxu0 0.0
    %1688 = vmatpush2.msra.mxu0 0.0
    %1689 = vmatprep.subr.mxu0 0.0
    %1690 = vmatpush2.msra.mxu0 0.0
    %1691 = vmatprep.subr.mxu0 0.0
    %1692 = vmatpush2.msra.mxu0 0.0
    %1693 = vmatprep.subr.mxu0 0.0
    %1694 = vmatpush2.msra.mxu0 0.0
    %1695 = vmatprep.mubr.f32.mxu0 0.0
    %1696 = vmatmul.mubr.f32.gmra.mxu0 %v1629
    %v1697 = vpop.f32.mrf.mxu0
    %v1698 = vadd.f32 0.0, %v1697
    %v1699 = vpop.f32.mrf.mxu0
    %v1700 = vadd.f32 0.0, %v1699
    %1701 = vdwg.mxu0
    %1702 = vmatprep.subr.mxu0 %v1627
    %1703 = vmatpush1.msra.mxu0 %v1626
    %1704 = vmatprep.subr.mxu0 %v1623
    %1705 = vmatpush1.msra.mxu0 %v1622
    %1706 = vmatprep.subr.mxu0 %v1619
    %1707 = vmatpush1.msra.mxu0 %v1618
    %1708 = vmatprep.subr.mxu0 %v1615
    %1709 = vmatpush1.msra.mxu0 %v1614
    %1710 = vmatprep.subr.mxu0 %v1611
    %1711 = vmatpush1.msra.mxu0 %v1610
    %1712 = vmatprep.subr.mxu0 %v1607
    %1713 = vmatpush1.msra.mxu0 %v1606
    %1714 = vmatprep.subr.mxu0 %v1603
    %1715 = vmatpush1.msra.mxu0 %v1602
    %1716 = vmatprep.subr.mxu0 %v1599
    %1717 = vmatpush1.msra.mxu0 %v1598
    %1718 = vmatprep.subr.mxu0 %v1595
    %1719 = vmatpush1.msra.mxu0 %v1594
    %1720 = vmatprep.subr.mxu0 %v1591
    %1721 = vmatpush1.msra.mxu0 %v1590
    %1722 = vmatprep.subr.mxu0 %v1587
    %1723 = vmatpush1.msra.mxu0 %v1586
    %1724 = vmatprep.subr.mxu0 %v1583
    %1725 = vmatpush1.msra.mxu0 %v1582
    %1726 = vmatprep.subr.mxu0 %v1579
    %1727 = vmatpush1.msra.mxu0 %v1578
    %1728 = vmatprep.subr.mxu0 %v1575
    %1729 = vmatpush1.msra.mxu0 %v1574
    %1730 = vmatprep.subr.mxu0 %v1571
    %1731 = vmatpush1.msra.mxu0 %v1570
    %1732 = vmatprep.subr.mxu0 %v1567
    %1733 = vmatpush1.msra.mxu0 %v1566
    %1734 = vmatprep.subr.mxu0 0.0
    %1735 = vmatpush2.msra.mxu0 0.0
    %1736 = vmatprep.subr.mxu0 0.0
    %1737 = vmatpush2.msra.mxu0 0.0
    %1738 = vmatprep.subr.mxu0 0.0
    %1739 = vmatpush2.msra.mxu0 0.0
    %1740 = vmatprep.subr.mxu0 0.0
    %1741 = vmatpush2.msra.mxu0 0.0
    %1742 = vmatprep.subr.mxu0 0.0
    %1743 = vmatpush2.msra.mxu0 0.0
    %1744 = vmatprep.subr.mxu0 0.0
    %1745 = vmatpush2.msra.mxu0 0.0
    %1746 = vmatprep.subr.mxu0 0.0
    %1747 = vmatpush2.msra.mxu0 0.0
    %1748 = vmatprep.subr.mxu0 0.0
    %1749 = vmatpush2.msra.mxu0 0.0
    %1750 = vmatprep.subr.mxu0 0.0
    %1751 = vmatpush2.msra.mxu0 0.0
    %1752 = vmatprep.subr.mxu0 0.0
    %1753 = vmatpush2.msra.mxu0 0.0
    %1754 = vmatprep.subr.mxu0 0.0
    %1755 = vmatpush2.msra.mxu0 0.0
    %1756 = vmatprep.subr.mxu0 0.0
    %1757 = vmatpush2.msra.mxu0 0.0
    %1758 = vmatprep.subr.mxu0 0.0
    %1759 = vmatpush2.msra.mxu0 0.0
    %1760 = vmatprep.subr.mxu0 0.0
    %1761 = vmatpush2.msra.mxu0 0.0
    %1762 = vmatprep.subr.mxu0 0.0
    %1763 = vmatpush2.msra.mxu0 0.0
    %1764 = vmatprep.subr.mxu0 0.0
    %1765 = vmatpush2.msra.mxu0 0.0
    %1766 = vmatprep.mubr.f32.mxu0 0.0
    %1767 = vmatmul.mubr.f32.gmra.mxu0 %v1629
    %v1768 = vpop.f32.mrf.mxu0
    %v1769 = vadd.f32 0.0, %v1768
    %v1770 = vpop.f32.mrf.mxu0
    %v1771 = vadd.f32 0.0, %v1770
    %1772 = vdwg.mxu0
    %v1777 = vrot.slane %v1698, 2
    %v1778 = vrot.slane %v1700, 2
    %v1779 = vrot.slane %v1769, 2
    %v1780 = vrot.slane %v1771, 2
    %v1785 = vadd.f32 %v1560, %v1777
    %v1786 = vadd.f32 %v1561, %v1778
    %v1787 = vadd.f32 %v1562, %v1779
    %v1788 = vadd.f32 %v1563, %v1780
    %v1789 = vld [vmem:[%s1 + $0x20] sm:$0x3]
    %v1790 = vld [vmem:[%s1 + $0x28] sm:$0x3]
    %v1791 = vld [vmem:[%s1 + $0x30] sm:$0x3]
    %v1792 = vld [vmem:[%s1 + $0x38] sm:$0x3]
    %v1793 = vld [vmem:[#allocation4] sm:$0xff]
    %v1794 = vld [vmem:[#allocation4 + $0x8] sm:$0xff]
    %v1795 = vld [vmem:[#allocation4 + $0x10] sm:$0xff]
    %v1796 = vld [vmem:[#allocation4 + $0x18] sm:$0xff]
    %v1797 = vld [vmem:[#allocation4 + $0x20] sm:$0xff]
    %v1798 = vld [vmem:[#allocation4 + $0x28] sm:$0xff]
    %v1799 = vld [vmem:[#allocation4 + $0x30] sm:$0xff]
    %v1800 = vld [vmem:[#allocation4 + $0x38] sm:$0xff]
    %v1801 = vld [vmem:[#allocation4 + $0x40] sm:$0xff]
    %v1802 = vld [vmem:[#allocation4 + $0x48] sm:$0xff]
    %v1803 = vld [vmem:[#allocation4 + $0x50] sm:$0xff]
    %v1804 = vld [vmem:[#allocation4 + $0x58] sm:$0xff]
    %v1805 = vld [vmem:[#allocation4 + $0x60] sm:$0xff]
    %v1806 = vld [vmem:[#allocation4 + $0x68] sm:$0xff]
    %v1807 = vld [vmem:[#allocation4 + $0x70] sm:$0xff]
    %v1808 = vld [vmem:[#allocation4 + $0x78] sm:$0xff]
    %v1809 = vld [vmem:[#allocation4 + $0x80] sm:$0xff]
    %v1810 = vld [vmem:[#allocation4 + $0x88] sm:$0xff]
    %v1811 = vld [vmem:[#allocation4 + $0x90] sm:$0xff]
    %v1812 = vld [vmem:[#allocation4 + $0x98] sm:$0xff]
    %v1813 = vld [vmem:[#allocation4 + $0xa0] sm:$0xff]
    %v1814 = vld [vmem:[#allocation4 + $0xa8] sm:$0xff]
    %v1815 = vld [vmem:[#allocation4 + $0xb0] sm:$0xff]
    %v1816 = vld [vmem:[#allocation4 + $0xb8] sm:$0xff]
    %v1817 = vld [vmem:[#allocation4 + $0xc0] sm:$0xff]
    %v1818 = vld [vmem:[#allocation4 + $0xc8] sm:$0xff]
    %v1819 = vld [vmem:[#allocation4 + $0xd0] sm:$0xff]
    %v1820 = vld [vmem:[#allocation4 + $0xd8] sm:$0xff]
    %v1821 = vld [vmem:[#allocation4 + $0xe0] sm:$0xff]
    %v1822 = vld [vmem:[#allocation4 + $0xe8] sm:$0xff]
    %v1823 = vld [vmem:[#allocation4 + $0xf0] sm:$0xff]
    %v1824 = vld [vmem:[#allocation4 + $0xf8] sm:$0xff]
    %v1825 = vld [vmem:[#allocation4 + $0x100] sm:$0xff]
    %v1826 = vld [vmem:[#allocation4 + $0x108] sm:$0xff]
    %v1827 = vld [vmem:[#allocation4 + $0x110] sm:$0xff]
    %v1828 = vld [vmem:[#allocation4 + $0x118] sm:$0xff]
    %v1829 = vld [vmem:[#allocation4 + $0x120] sm:$0xff]
    %v1830 = vld [vmem:[#allocation4 + $0x128] sm:$0xff]
    %v1831 = vld [vmem:[#allocation4 + $0x130] sm:$0xff]
    %v1832 = vld [vmem:[#allocation4 + $0x138] sm:$0xff]
    %v1833 = vld [vmem:[#allocation4 + $0x140] sm:$0xff]
    %v1834 = vld [vmem:[#allocation4 + $0x148] sm:$0xff]
    %v1835 = vld [vmem:[#allocation4 + $0x150] sm:$0xff]
    %v1836 = vld [vmem:[#allocation4 + $0x158] sm:$0xff]
    %v1837 = vld [vmem:[#allocation4 + $0x160] sm:$0xff]
    %v1838 = vld [vmem:[#allocation4 + $0x168] sm:$0xff]
    %v1839 = vld [vmem:[#allocation4 + $0x170] sm:$0xff]
    %v1840 = vld [vmem:[#allocation4 + $0x178] sm:$0xff]
    %v1841 = vld [vmem:[#allocation4 + $0x180] sm:$0xff]
    %v1842 = vld [vmem:[#allocation4 + $0x188] sm:$0xff]
    %v1843 = vld [vmem:[#allocation4 + $0x190] sm:$0xff]
    %v1844 = vld [vmem:[#allocation4 + $0x198] sm:$0xff]
    %v1845 = vld [vmem:[#allocation4 + $0x1a0] sm:$0xff]
    %v1846 = vld [vmem:[#allocation4 + $0x1a8] sm:$0xff]
    %v1847 = vld [vmem:[#allocation4 + $0x1b0] sm:$0xff]
    %v1848 = vld [vmem:[#allocation4 + $0x1b8] sm:$0xff]
    %v1849 = vld [vmem:[#allocation4 + $0x1c0] sm:$0xff]
    %v1850 = vld [vmem:[#allocation4 + $0x1c8] sm:$0xff]
    %v1851 = vld [vmem:[#allocation4 + $0x1d0] sm:$0xff]
    %v1852 = vld [vmem:[#allocation4 + $0x1d8] sm:$0xff]
    %v1853 = vld [vmem:[#allocation4 + $0x1e0] sm:$0xff]
    %v1854 = vld [vmem:[#allocation4 + $0x1e8] sm:$0xff]
    %v1855 = vld [vmem:[#allocation4 + $0x1f0] sm:$0xff]
    %v1856 = vld [vmem:[#allocation4 + $0x1f8] sm:$0xff]
    %v1858 = vrot.slane %v1557, 2
    %1860 = vmatprep.subr.mxu0 %v1854
    %1861 = vmatpush1.msra.mxu0 %v1853
    %1862 = vmatprep.subr.mxu0 %v1850
    %1863 = vmatpush1.msra.mxu0 %v1849
    %1864 = vmatprep.subr.mxu0 %v1846
    %1865 = vmatpush1.msra.mxu0 %v1845
    %1866 = vmatprep.subr.mxu0 %v1842
    %1867 = vmatpush1.msra.mxu0 %v1841
    %1868 = vmatprep.subr.mxu0 %v1838
    %1869 = vmatpush1.msra.mxu0 %v1837
    %1870 = vmatprep.subr.mxu0 %v1834
    %1871 = vmatpush1.msra.mxu0 %v1833
    %1872 = vmatprep.subr.mxu0 %v1830
    %1873 = vmatpush1.msra.mxu0 %v1829
    %1874 = vmatprep.subr.mxu0 %v1826
    %1875 = vmatpush1.msra.mxu0 %v1825
    %1876 = vmatprep.subr.mxu0 %v1822
    %1877 = vmatpush1.msra.mxu0 %v1821
    %1878 = vmatprep.subr.mxu0 %v1818
    %1879 = vmatpush1.msra.mxu0 %v1817
    %1880 = vmatprep.subr.mxu0 %v1814
    %1881 = vmatpush1.msra.mxu0 %v1813
    %1882 = vmatprep.subr.mxu0 %v1810
    %1883 = vmatpush1.msra.mxu0 %v1809
    %1884 = vmatprep.subr.mxu0 %v1806
    %1885 = vmatpush1.msra.mxu0 %v1805
    %1886 = vmatprep.subr.mxu0 %v1802
    %1887 = vmatpush1.msra.mxu0 %v1801
    %1888 = vmatprep.subr.mxu0 %v1798
    %1889 = vmatpush1.msra.mxu0 %v1797
    %1890 = vmatprep.subr.mxu0 %v1794
    %1891 = vmatpush1.msra.mxu0 %v1793
    %1892 = vmatprep.subr.mxu0 0.0
    %1893 = vmatpush2.msra.mxu0 0.0
    %1894 = vmatprep.subr.mxu0 0.0
    %1895 = vmatpush2.msra.mxu0 0.0
    %1896 = vmatprep.subr.mxu0 0.0
    %1897 = vmatpush2.msra.mxu0 0.0
    %1898 = vmatprep.subr.mxu0 0.0
    %1899 = vmatpush2.msra.mxu0 0.0
    %1900 = vmatprep.subr.mxu0 0.0
    %1901 = vmatpush2.msra.mxu0 0.0
    %1902 = vmatprep.subr.mxu0 0.0
    %1903 = vmatpush2.msra.mxu0 0.0
    %1904 = vmatprep.subr.mxu0 0.0
    %1905 = vmatpush2.msra.mxu0 0.0
    %1906 = vmatprep.subr.mxu0 0.0
    %1907 = vmatpush2.msra.mxu0 0.0
    %1908 = vmatprep.subr.mxu0 0.0
    %1909 = vmatpush2.msra.mxu0 0.0
    %1910 = vmatprep.subr.mxu0 0.0
    %1911 = vmatpush2.msra.mxu0 0.0
    %1912 = vmatprep.subr.mxu0 0.0
    %1913 = vmatpush2.msra.mxu0 0.0
    %1914 = vmatprep.subr.mxu0 0.0
    %1915 = vmatpush2.msra.mxu0 0.0
    %1916 = vmatprep.subr.mxu0 0.0
    %1917 = vmatpush2.msra.mxu0 0.0
    %1918 = vmatprep.subr.mxu0 0.0
    %1919 = vmatpush2.msra.mxu0 0.0
    %1920 = vmatprep.subr.mxu0 0.0
    %1921 = vmatpush2.msra.mxu0 0.0
    %1922 = vmatprep.subr.mxu0 0.0
    %1923 = vmatpush2.msra.mxu0 0.0
    %1924 = vmatprep.mubr.f32.mxu0 0.0
    %1925 = vmatmul.mubr.f32.gmra.mxu0 %v1858
    %v1926 = vpop.f32.mrf.mxu0
    %v1927 = vadd.f32 0.0, %v1926
    %v1928 = vpop.f32.mrf.mxu0
    %v1929 = vadd.f32 0.0, %v1928
    %1930 = vdwg.mxu0
    %1931 = vmatprep.subr.mxu0 %v1856
    %1932 = vmatpush1.msra.mxu0 %v1855
    %1933 = vmatprep.subr.mxu0 %v1852
    %1934 = vmatpush1.msra.mxu0 %v1851
    %1935 = vmatprep.subr.mxu0 %v1848
    %1936 = vmatpush1.msra.mxu0 %v1847
    %1937 = vmatprep.subr.mxu0 %v1844
    %1938 = vmatpush1.msra.mxu0 %v1843
    %1939 = vmatprep.subr.mxu0 %v1840
    %1940 = vmatpush1.msra.mxu0 %v1839
    %1941 = vmatprep.subr.mxu0 %v1836
    %1942 = vmatpush1.msra.mxu0 %v1835
    %1943 = vmatprep.subr.mxu0 %v1832
    %1944 = vmatpush1.msra.mxu0 %v1831
    %1945 = vmatprep.subr.mxu0 %v1828
    %1946 = vmatpush1.msra.mxu0 %v1827
    %1947 = vmatprep.subr.mxu0 %v1824
    %1948 = vmatpush1.msra.mxu0 %v1823
    %1949 = vmatprep.subr.mxu0 %v1820
    %1950 = vmatpush1.msra.mxu0 %v1819
    %1951 = vmatprep.subr.mxu0 %v1816
    %1952 = vmatpush1.msra.mxu0 %v1815
    %1953 = vmatprep.subr.mxu0 %v1812
    %1954 = vmatpush1.msra.mxu0 %v1811
    %1955 = vmatprep.subr.mxu0 %v1808
    %1956 = vmatpush1.msra.mxu0 %v1807
    %1957 = vmatprep.subr.mxu0 %v1804
    %1958 = vmatpush1.msra.mxu0 %v1803
    %1959 = vmatprep.subr.mxu0 %v1800
    %1960 = vmatpush1.msra.mxu0 %v1799
    %1961 = vmatprep.subr.mxu0 %v1796
    %1962 = vmatpush1.msra.mxu0 %v1795
    %1963 = vmatprep.subr.mxu0 0.0
    %1964 = vmatpush2.msra.mxu0 0.0
    %1965 = vmatprep.subr.mxu0 0.0
    %1966 = vmatpush2.msra.mxu0 0.0
    %1967 = vmatprep.subr.mxu0 0.0
    %1968 = vmatpush2.msra.mxu0 0.0
    %1969 = vmatprep.subr.mxu0 0.0
    %1970 = vmatpush2.msra.mxu0 0.0
    %1971 = vmatprep.subr.mxu0 0.0
    %1972 = vmatpush2.msra.mxu0 0.0
    %1973 = vmatprep.subr.mxu0 0.0
    %1974 = vmatpush2.msra.mxu0 0.0
    %1975 = vmatprep.subr.mxu0 0.0
    %1976 = vmatpush2.msra.mxu0 0.0
    %1977 = vmatprep.subr.mxu0 0.0
    %1978 = vmatpush2.msra.mxu0 0.0
    %1979 = vmatprep.subr.mxu0 0.0
    %1980 = vmatpush2.msra.mxu0 0.0
    %1981 = vmatprep.subr.mxu0 0.0
    %1982 = vmatpush2.msra.mxu0 0.0
    %1983 = vmatprep.subr.mxu0 0.0
    %1984 = vmatpush2.msra.mxu0 0.0
    %1985 = vmatprep.subr.mxu0 0.0
    %1986 = vmatpush2.msra.mxu0 0.0
    %1987 = vmatprep.subr.mxu0 0.0
    %1988 = vmatpush2.msra.mxu0 0.0
    %1989 = vmatprep.subr.mxu0 0.0
    %1990 = vmatpush2.msra.mxu0 0.0
    %1991 = vmatprep.subr.mxu0 0.0
    %1992 = vmatpush2.msra.mxu0 0.0
    %1993 = vmatprep.subr.mxu0 0.0
    %1994 = vmatpush2.msra.mxu0 0.0
    %1995 = vmatprep.mubr.f32.mxu0 0.0
    %1996 = vmatmul.mubr.f32.gmra.mxu0 %v1858
    %v1997 = vpop.f32.mrf.mxu0
    %v1998 = vadd.f32 0.0, %v1997
    %v1999 = vpop.f32.mrf.mxu0
    %v2000 = vadd.f32 0.0, %v1999
    %2001 = vdwg.mxu0
    %v2002 = vadd.f32 %v1789, %v1927
    %v2003 = vadd.f32 %v1790, %v1929
    %v2004 = vadd.f32 %v1791, %v1998
    %v2005 = vadd.f32 %v1792, %v2000
    %v2006 = vxor.u32 %v1785, 2147483648
    %v2007 = vmul.f32 %v2006, 1.442695
    %v2008 = vpow.pop %v2007
    %v2009 = vadd.f32 %v2008, 1.0
    %v2010 = vrcp.pop %v2009
    %v2011 = vmul.f32 1.0, %v2010
    %v2012 = vxor.u32 %v1786, 2147483648
    %v2013 = vmul.f32 %v2012, 1.442695
    %v2014 = vpow.pop %v2013
    %v2015 = vadd.f32 %v2014, 1.0
    %v2016 = vrcp.pop %v2015
    %v2017 = vmul.f32 1.0, %v2016
    %v2018 = vtanh.pop %v1787
    %v2019 = vxor.u32 %v1788, 2147483648
    %v2020 = vmul.f32 %v2019, 1.442695
    %v2021 = vpow.pop %v2020
    %v2022 = vadd.f32 %v2021, 1.0
    %v2023 = vrcp.pop %v2022
    %v2024 = vmul.f32 1.0, %v2023
    %v2026 = vrot.slane %v1528, 6
    %v2028 = vmul.f32 %v2017, %v2026
    %v2029 = vmul.f32 %v2011, %v2018
    %v2030 = vadd.f32 %v2028, %v2029
    %v2031 = vtanh.pop %v2030
    %v2032 = vmul.f32 %v2024, %v2031
    %v2033 = vxor.u32 %v2002, 2147483648
    %v2034 = vmul.f32 %v2033, 1.442695
    %v2035 = vpow.pop %v2034
    %v2036 = vadd.f32 %v2035, 1.0
    %v2037 = vrcp.pop %v2036
    %v2038 = vmul.f32 1.0, %v2037
    %v2039 = vxor.u32 %v2003, 2147483648
    %v2040 = vmul.f32 %v2039, 1.442695
    %v2041 = vpow.pop %v2040
    %v2042 = vadd.f32 %v2041, 1.0
    %v2043 = vrcp.pop %v2042
    %v2044 = vmul.f32 1.0, %v2043
    %v2045 = vtanh.pop %v2004
    %v2046 = vxor.u32 %v2005, 2147483648
    %v2047 = vmul.f32 %v2046, 1.442695
    %v2048 = vpow.pop %v2047
    %v2049 = vadd.f32 %v2048, 1.0
    %v2050 = vrcp.pop %v2049
    %v2051 = vmul.f32 1.0, %v2050
    %v2053 = vrot.slane %v1555, 2
    %v2055 = vmul.f32 %v2044, %v2053
    %v2056 = vmul.f32 %v2038, %v2045
    %v2057 = vadd.f32 %v2055, %v2056
    %v2058 = vtanh.pop %v2057
    %v2059 = vmul.f32 %v2051, %v2058
    %2060 = vst [vmem:[%s4] sm:$0xc0] %v2032
    %2061 = vst [vmem:[%s4 + $0x18] sm:$0x3] %v2059
    %v2062 = vld [vmem:[%s0 + $0x20] sm:$0x3]
    %v2063 = vld [vmem:[%s0 + $0x28] sm:$0x3]
    %v2064 = vld [vmem:[%s0 + $0x30] sm:$0x3]
    %v2065 = vld [vmem:[%s0 + $0x38] sm:$0x3]
    %v2066 = vld [vmem:[#allocation2] sm:$0xff]
    %v2067 = vld [vmem:[#allocation2 + $0x8] sm:$0xff]
    %v2068 = vld [vmem:[#allocation2 + $0x10] sm:$0xff]
    %v2069 = vld [vmem:[#allocation2 + $0x18] sm:$0xff]
    %v2070 = vld [vmem:[#allocation2 + $0x20] sm:$0xff]
    %v2071 = vld [vmem:[#allocation2 + $0x28] sm:$0xff]
    %v2072 = vld [vmem:[#allocation2 + $0x30] sm:$0xff]
    %v2073 = vld [vmem:[#allocation2 + $0x38] sm:$0xff]
    %v2074 = vld [vmem:[#allocation2 + $0x40] sm:$0xff]
    %v2075 = vld [vmem:[#allocation2 + $0x48] sm:$0xff]
    %v2076 = vld [vmem:[#allocation2 + $0x50] sm:$0xff]
    %v2077 = vld [vmem:[#allocation2 + $0x58] sm:$0xff]
    %v2078 = vld [vmem:[#allocation2 + $0x60] sm:$0xff]
    %v2079 = vld [vmem:[#allocation2 + $0x68] sm:$0xff]
    %v2080 = vld [vmem:[#allocation2 + $0x70] sm:$0xff]
    %v2081 = vld [vmem:[#allocation2 + $0x78] sm:$0xff]
    %v2082 = vld [vmem:[#allocation2 + $0x80] sm:$0xff]
    %v2083 = vld [vmem:[#allocation2 + $0x88] sm:$0xff]
    %v2084 = vld [vmem:[#allocation2 + $0x90] sm:$0xff]
    %v2085 = vld [vmem:[#allocation2 + $0x98] sm:$0xff]
    %v2086 = vld [vmem:[#allocation2 + $0xa0] sm:$0xff]
    %v2087 = vld [vmem:[#allocation2 + $0xa8] sm:$0xff]
    %v2088 = vld [vmem:[#allocation2 + $0xb0] sm:$0xff]
    %v2089 = vld [vmem:[#allocation2 + $0xb8] sm:$0xff]
    %v2090 = vld [vmem:[#allocation2 + $0xc0] sm:$0xff]
    %v2091 = vld [vmem:[#allocation2 + $0xc8] sm:$0xff]
    %v2092 = vld [vmem:[#allocation2 + $0xd0] sm:$0xff]
    %v2093 = vld [vmem:[#allocation2 + $0xd8] sm:$0xff]
    %v2094 = vld [vmem:[#allocation2 + $0xe0] sm:$0xff]
    %v2095 = vld [vmem:[#allocation2 + $0xe8] sm:$0xff]
    %v2096 = vld [vmem:[#allocation2 + $0xf0] sm:$0xff]
    %v2097 = vld [vmem:[#allocation2 + $0xf8] sm:$0xff]
    %v2098 = vld [vmem:[#allocation2 + $0x100] sm:$0xff]
    %v2099 = vld [vmem:[#allocation2 + $0x108] sm:$0xff]
    %v2100 = vld [vmem:[#allocation2 + $0x110] sm:$0xff]
    %v2101 = vld [vmem:[#allocation2 + $0x118] sm:$0xff]
    %v2102 = vld [vmem:[#allocation2 + $0x120] sm:$0xff]
    %v2103 = vld [vmem:[#allocation2 + $0x128] sm:$0xff]
    %v2104 = vld [vmem:[#allocation2 + $0x130] sm:$0xff]
    %v2105 = vld [vmem:[#allocation2 + $0x138] sm:$0xff]
    %v2106 = vld [vmem:[#allocation2 + $0x140] sm:$0xff]
    %v2107 = vld [vmem:[#allocation2 + $0x148] sm:$0xff]
    %v2108 = vld [vmem:[#allocation2 + $0x150] sm:$0xff]
    %v2109 = vld [vmem:[#allocation2 + $0x158] sm:$0xff]
    %v2110 = vld [vmem:[#allocation2 + $0x160] sm:$0xff]
    %v2111 = vld [vmem:[#allocation2 + $0x168] sm:$0xff]
    %v2112 = vld [vmem:[#allocation2 + $0x170] sm:$0xff]
    %v2113 = vld [vmem:[#allocation2 + $0x178] sm:$0xff]
    %v2114 = vld [vmem:[#allocation2 + $0x180] sm:$0xff]
    %v2115 = vld [vmem:[#allocation2 + $0x188] sm:$0xff]
    %v2116 = vld [vmem:[#allocation2 + $0x190] sm:$0xff]
    %v2117 = vld [vmem:[#allocation2 + $0x198] sm:$0xff]
    %v2118 = vld [vmem:[#allocation2 + $0x1a0] sm:$0xff]
    %v2119 = vld [vmem:[#allocation2 + $0x1a8] sm:$0xff]
    %v2120 = vld [vmem:[#allocation2 + $0x1b0] sm:$0xff]
    %v2121 = vld [vmem:[#allocation2 + $0x1b8] sm:$0xff]
    %v2122 = vld [vmem:[#allocation2 + $0x1c0] sm:$0xff]
    %v2123 = vld [vmem:[#allocation2 + $0x1c8] sm:$0xff]
    %v2124 = vld [vmem:[#allocation2 + $0x1d0] sm:$0xff]
    %v2125 = vld [vmem:[#allocation2 + $0x1d8] sm:$0xff]
    %v2126 = vld [vmem:[#allocation2 + $0x1e0] sm:$0xff]
    %v2127 = vld [vmem:[#allocation2 + $0x1e8] sm:$0xff]
    %v2128 = vld [vmem:[#allocation2 + $0x1f0] sm:$0xff]
    %v2129 = vld [vmem:[#allocation2 + $0x1f8] sm:$0xff]
    %v2131 = vrot.slane %v2032, 6
    %2133 = vmatprep.subr.mxu0 %v2127
    %2134 = vmatpush1.msra.mxu0 %v2126
    %2135 = vmatprep.subr.mxu0 %v2123
    %2136 = vmatpush1.msra.mxu0 %v2122
    %2137 = vmatprep.subr.mxu0 %v2119
    %2138 = vmatpush1.msra.mxu0 %v2118
    %2139 = vmatprep.subr.mxu0 %v2115
    %2140 = vmatpush1.msra.mxu0 %v2114
    %2141 = vmatprep.subr.mxu0 %v2111
    %2142 = vmatpush1.msra.mxu0 %v2110
    %2143 = vmatprep.subr.mxu0 %v2107
    %2144 = vmatpush1.msra.mxu0 %v2106
    %2145 = vmatprep.subr.mxu0 %v2103
    %2146 = vmatpush1.msra.mxu0 %v2102
    %2147 = vmatprep.subr.mxu0 %v2099
    %2148 = vmatpush1.msra.mxu0 %v2098
    %2149 = vmatprep.subr.mxu0 %v2095
    %2150 = vmatpush1.msra.mxu0 %v2094
    %2151 = vmatprep.subr.mxu0 %v2091
    %2152 = vmatpush1.msra.mxu0 %v2090
    %2153 = vmatprep.subr.mxu0 %v2087
    %2154 = vmatpush1.msra.mxu0 %v2086
    %2155 = vmatprep.subr.mxu0 %v2083
    %2156 = vmatpush1.msra.mxu0 %v2082
    %2157 = vmatprep.subr.mxu0 %v2079
    %2158 = vmatpush1.msra.mxu0 %v2078
    %2159 = vmatprep.subr.mxu0 %v2075
    %2160 = vmatpush1.msra.mxu0 %v2074
    %2161 = vmatprep.subr.mxu0 %v2071
    %2162 = vmatpush1.msra.mxu0 %v2070
    %2163 = vmatprep.subr.mxu0 %v2067
    %2164 = vmatpush1.msra.mxu0 %v2066
    %2165 = vmatprep.subr.mxu0 0.0
    %2166 = vmatpush2.msra.mxu0 0.0
    %2167 = vmatprep.subr.mxu0 0.0
    %2168 = vmatpush2.msra.mxu0 0.0
    %2169 = vmatprep.subr.mxu0 0.0
    %2170 = vmatpush2.msra.mxu0 0.0
    %2171 = vmatprep.subr.mxu0 0.0
    %2172 = vmatpush2.msra.mxu0 0.0
    %2173 = vmatprep.subr.mxu0 0.0
    %2174 = vmatpush2.msra.mxu0 0.0
    %2175 = vmatprep.subr.mxu0 0.0
    %2176 = vmatpush2.msra.mxu0 0.0
    %2177 = vmatprep.subr.mxu0 0.0
    %2178 = vmatpush2.msra.mxu0 0.0
    %2179 = vmatprep.subr.mxu0 0.0
    %2180 = vmatpush2.msra.mxu0 0.0
    %2181 = vmatprep.subr.mxu0 0.0
    %2182 = vmatpush2.msra.mxu0 0.0
    %2183 = vmatprep.subr.mxu0 0.0
    %2184 = vmatpush2.msra.mxu0 0.0
    %2185 = vmatprep.subr.mxu0 0.0
    %2186 = vmatpush2.msra.mxu0 0.0
    %2187 = vmatprep.subr.mxu0 0.0
    %2188 = vmatpush2.msra.mxu0 0.0
    %2189 = vmatprep.subr.mxu0 0.0
    %2190 = vmatpush2.msra.mxu0 0.0
    %2191 = vmatprep.subr.mxu0 0.0
    %2192 = vmatpush2.msra.mxu0 0.0
    %2193 = vmatprep.subr.mxu0 0.0
    %2194 = vmatpush2.msra.mxu0 0.0
    %2195 = vmatprep.subr.mxu0 0.0
    %2196 = vmatpush2.msra.mxu0 0.0
    %2197 = vmatprep.mubr.f32.mxu0 0.0
    %2198 = vmatmul.mubr.f32.gmra.mxu0 %v2131
    %v2199 = vpop.f32.mrf.mxu0
    %v2200 = vadd.f32 0.0, %v2199
    %v2201 = vpop.f32.mrf.mxu0
    %v2202 = vadd.f32 0.0, %v2201
    %2203 = vdwg.mxu0
    %2204 = vmatprep.subr.mxu0 %v2129
    %2205 = vmatpush1.msra.mxu0 %v2128
    %2206 = vmatprep.subr.mxu0 %v2125
    %2207 = vmatpush1.msra.mxu0 %v2124
    %2208 = vmatprep.subr.mxu0 %v2121
    %2209 = vmatpush1.msra.mxu0 %v2120
    %2210 = vmatprep.subr.mxu0 %v2117
    %2211 = vmatpush1.msra.mxu0 %v2116
    %2212 = vmatprep.subr.mxu0 %v2113
    %2213 = vmatpush1.msra.mxu0 %v2112
    %2214 = vmatprep.subr.mxu0 %v2109
    %2215 = vmatpush1.msra.mxu0 %v2108
    %2216 = vmatprep.subr.mxu0 %v2105
    %2217 = vmatpush1.msra.mxu0 %v2104
    %2218 = vmatprep.subr.mxu0 %v2101
    %2219 = vmatpush1.msra.mxu0 %v2100
    %2220 = vmatprep.subr.mxu0 %v2097
    %2221 = vmatpush1.msra.mxu0 %v2096
    %2222 = vmatprep.subr.mxu0 %v2093
    %2223 = vmatpush1.msra.mxu0 %v2092
    %2224 = vmatprep.subr.mxu0 %v2089
    %2225 = vmatpush1.msra.mxu0 %v2088
    %2226 = vmatprep.subr.mxu0 %v2085
    %2227 = vmatpush1.msra.mxu0 %v2084
    %2228 = vmatprep.subr.mxu0 %v2081
    %2229 = vmatpush1.msra.mxu0 %v2080
    %2230 = vmatprep.subr.mxu0 %v2077
    %2231 = vmatpush1.msra.mxu0 %v2076
    %2232 = vmatprep.subr.mxu0 %v2073
    %2233 = vmatpush1.msra.mxu0 %v2072
    %2234 = vmatprep.subr.mxu0 %v2069
    %2235 = vmatpush1.msra.mxu0 %v2068
    %2236 = vmatprep.subr.mxu0 0.0
    %2237 = vmatpush2.msra.mxu0 0.0
    %2238 = vmatprep.subr.mxu0 0.0
    %2239 = vmatpush2.msra.mxu0 0.0
    %2240 = vmatprep.subr.mxu0 0.0
    %2241 = vmatpush2.msra.mxu0 0.0
    %2242 = vmatprep.subr.mxu0 0.0
    %2243 = vmatpush2.msra.mxu0 0.0
    %2244 = vmatprep.subr.mxu0 0.0
    %2245 = vmatpush2.msra.mxu0 0.0
    %2246 = vmatprep.subr.mxu0 0.0
    %2247 = vmatpush2.msra.mxu0 0.0
    %2248 = vmatprep.subr.mxu0 0.0
    %2249 = vmatpush2.msra.mxu0 0.0
    %2250 = vmatprep.subr.mxu0 0.0
    %2251 = vmatpush2.msra.mxu0 0.0
    %2252 = vmatprep.subr.mxu0 0.0
    %2253 = vmatpush2.msra.mxu0 0.0
    %2254 = vmatprep.subr.mxu0 0.0
    %2255 = vmatpush2.msra.mxu0 0.0
    %2256 = vmatprep.subr.mxu0 0.0
    %2257 = vmatpush2.msra.mxu0 0.0
    %2258 = vmatprep.subr.mxu0 0.0
    %2259 = vmatpush2.msra.mxu0 0.0
    %2260 = vmatprep.subr.mxu0 0.0
    %2261 = vmatpush2.msra.mxu0 0.0
    %2262 = vmatprep.subr.mxu0 0.0
    %2263 = vmatpush2.msra.mxu0 0.0
    %2264 = vmatprep.subr.mxu0 0.0
    %2265 = vmatpush2.msra.mxu0 0.0
    %2266 = vmatprep.subr.mxu0 0.0
    %2267 = vmatpush2.msra.mxu0 0.0
    %2268 = vmatprep.mubr.f32.mxu0 0.0
    %2269 = vmatmul.mubr.f32.gmra.mxu0 %v2131
    %v2270 = vpop.f32.mrf.mxu0
    %v2271 = vadd.f32 0.0, %v2270
    %v2272 = vpop.f32.mrf.mxu0
    %v2273 = vadd.f32 0.0, %v2272
    %2274 = vdwg.mxu0
    %v2275 = vadd.f32 %v2062, %v2200
    %v2276 = vadd.f32 %v2063, %v2202
    %v2277 = vadd.f32 %v2064, %v2271
    %v2278 = vadd.f32 %v2065, %v2273
    %v2279 = vld [vmem:[%s1] sm:$0xc0]
    %v2280 = vld [vmem:[%s1 + $0x8] sm:$0xc0]
    %v2281 = vld [vmem:[%s1 + $0x10] sm:$0xc0]
    %v2282 = vld [vmem:[%s1 + $0x18] sm:$0xc0]
    %v2283 = vld [vmem:[#allocation4] sm:$0xff]
    %v2284 = vld [vmem:[#allocation4 + $0x8] sm:$0xff]
    %v2285 = vld [vmem:[#allocation4 + $0x10] sm:$0xff]
    %v2286 = vld [vmem:[#allocation4 + $0x18] sm:$0xff]
    %v2287 = vld [vmem:[#allocation4 + $0x20] sm:$0xff]
    %v2288 = vld [vmem:[#allocation4 + $0x28] sm:$0xff]
    %v2289 = vld [vmem:[#allocation4 + $0x30] sm:$0xff]
    %v2290 = vld [vmem:[#allocation4 + $0x38] sm:$0xff]
    %v2291 = vld [vmem:[#allocation4 + $0x40] sm:$0xff]
    %v2292 = vld [vmem:[#allocation4 + $0x48] sm:$0xff]
    %v2293 = vld [vmem:[#allocation4 + $0x50] sm:$0xff]
    %v2294 = vld [vmem:[#allocation4 + $0x58] sm:$0xff]
    %v2295 = vld [vmem:[#allocation4 + $0x60] sm:$0xff]
    %v2296 = vld [vmem:[#allocation4 + $0x68] sm:$0xff]
    %v2297 = vld [vmem:[#allocation4 + $0x70] sm:$0xff]
    %v2298 = vld [vmem:[#allocation4 + $0x78] sm:$0xff]
    %v2299 = vld [vmem:[#allocation4 + $0x80] sm:$0xff]
    %v2300 = vld [vmem:[#allocation4 + $0x88] sm:$0xff]
    %v2301 = vld [vmem:[#allocation4 + $0x90] sm:$0xff]
    %v2302 = vld [vmem:[#allocation4 + $0x98] sm:$0xff]
    %v2303 = vld [vmem:[#allocation4 + $0xa0] sm:$0xff]
    %v2304 = vld [vmem:[#allocation4 + $0xa8] sm:$0xff]
    %v2305 = vld [vmem:[#allocation4 + $0xb0] sm:$0xff]
    %v2306 = vld [vmem:[#allocation4 + $0xb8] sm:$0xff]
    %v2307 = vld [vmem:[#allocation4 + $0xc0] sm:$0xff]
    %v2308 = vld [vmem:[#allocation4 + $0xc8] sm:$0xff]
    %v2309 = vld [vmem:[#allocation4 + $0xd0] sm:$0xff]
    %v2310 = vld [vmem:[#allocation4 + $0xd8] sm:$0xff]
    %v2311 = vld [vmem:[#allocation4 + $0xe0] sm:$0xff]
    %v2312 = vld [vmem:[#allocation4 + $0xe8] sm:$0xff]
    %v2313 = vld [vmem:[#allocation4 + $0xf0] sm:$0xff]
    %v2314 = vld [vmem:[#allocation4 + $0xf8] sm:$0xff]
    %v2315 = vld [vmem:[#allocation4 + $0x100] sm:$0xff]
    %v2316 = vld [vmem:[#allocation4 + $0x108] sm:$0xff]
    %v2317 = vld [vmem:[#allocation4 + $0x110] sm:$0xff]
    %v2318 = vld [vmem:[#allocation4 + $0x118] sm:$0xff]
    %v2319 = vld [vmem:[#allocation4 + $0x120] sm:$0xff]
    %v2320 = vld [vmem:[#allocation4 + $0x128] sm:$0xff]
    %v2321 = vld [vmem:[#allocation4 + $0x130] sm:$0xff]
    %v2322 = vld [vmem:[#allocation4 + $0x138] sm:$0xff]
    %v2323 = vld [vmem:[#allocation4 + $0x140] sm:$0xff]
    %v2324 = vld [vmem:[#allocation4 + $0x148] sm:$0xff]
    %v2325 = vld [vmem:[#allocation4 + $0x150] sm:$0xff]
    %v2326 = vld [vmem:[#allocation4 + $0x158] sm:$0xff]
    %v2327 = vld [vmem:[#allocation4 + $0x160] sm:$0xff]
    %v2328 = vld [vmem:[#allocation4 + $0x168] sm:$0xff]
    %v2329 = vld [vmem:[#allocation4 + $0x170] sm:$0xff]
    %v2330 = vld [vmem:[#allocation4 + $0x178] sm:$0xff]
    %v2331 = vld [vmem:[#allocation4 + $0x180] sm:$0xff]
    %v2332 = vld [vmem:[#allocation4 + $0x188] sm:$0xff]
    %v2333 = vld [vmem:[#allocation4 + $0x190] sm:$0xff]
    %v2334 = vld [vmem:[#allocation4 + $0x198] sm:$0xff]
    %v2335 = vld [vmem:[#allocation4 + $0x1a0] sm:$0xff]
    %v2336 = vld [vmem:[#allocation4 + $0x1a8] sm:$0xff]
    %v2337 = vld [vmem:[#allocation4 + $0x1b0] sm:$0xff]
    %v2338 = vld [vmem:[#allocation4 + $0x1b8] sm:$0xff]
    %v2339 = vld [vmem:[#allocation4 + $0x1c0] sm:$0xff]
    %v2340 = vld [vmem:[#allocation4 + $0x1c8] sm:$0xff]
    %v2341 = vld [vmem:[#allocation4 + $0x1d0] sm:$0xff]
    %v2342 = vld [vmem:[#allocation4 + $0x1d8] sm:$0xff]
    %v2343 = vld [vmem:[#allocation4 + $0x1e0] sm:$0xff]
    %v2344 = vld [vmem:[#allocation4 + $0x1e8] sm:$0xff]
    %v2345 = vld [vmem:[#allocation4 + $0x1f0] sm:$0xff]
    %v2346 = vld [vmem:[#allocation4 + $0x1f8] sm:$0xff]
    %2347 = vmatprep.subr.mxu0 %v2344
    %2348 = vmatpush1.msra.mxu0 %v2343
    %2349 = vmatprep.subr.mxu0 %v2340
    %2350 = vmatpush1.msra.mxu0 %v2339
    %2351 = vmatprep.subr.mxu0 %v2336
    %2352 = vmatpush1.msra.mxu0 %v2335
    %2353 = vmatprep.subr.mxu0 %v2332
    %2354 = vmatpush1.msra.mxu0 %v2331
    %2355 = vmatprep.subr.mxu0 %v2328
    %2356 = vmatpush1.msra.mxu0 %v2327
    %2357 = vmatprep.subr.mxu0 %v2324
    %2358 = vmatpush1.msra.mxu0 %v2323
    %2359 = vmatprep.subr.mxu0 %v2320
    %2360 = vmatpush1.msra.mxu0 %v2319
    %2361 = vmatprep.subr.mxu0 %v2316
    %2362 = vmatpush1.msra.mxu0 %v2315
    %2363 = vmatprep.subr.mxu0 %v2312
    %2364 = vmatpush1.msra.mxu0 %v2311
    %2365 = vmatprep.subr.mxu0 %v2308
    %2366 = vmatpush1.msra.mxu0 %v2307
    %2367 = vmatprep.subr.mxu0 %v2304
    %2368 = vmatpush1.msra.mxu0 %v2303
    %2369 = vmatprep.subr.mxu0 %v2300
    %2370 = vmatpush1.msra.mxu0 %v2299
    %2371 = vmatprep.subr.mxu0 %v2296
    %2372 = vmatpush1.msra.mxu0 %v2295
    %2373 = vmatprep.subr.mxu0 %v2292
    %2374 = vmatpush1.msra.mxu0 %v2291
    %2375 = vmatprep.subr.mxu0 %v2288
    %2376 = vmatpush1.msra.mxu0 %v2287
    %2377 = vmatprep.subr.mxu0 %v2284
    %2378 = vmatpush1.msra.mxu0 %v2283
    %2379 = vmatprep.subr.mxu0 0.0
    %2380 = vmatpush2.msra.mxu0 0.0
    %2381 = vmatprep.subr.mxu0 0.0
    %2382 = vmatpush2.msra.mxu0 0.0
    %2383 = vmatprep.subr.mxu0 0.0
    %2384 = vmatpush2.msra.mxu0 0.0
    %2385 = vmatprep.subr.mxu0 0.0
    %2386 = vmatpush2.msra.mxu0 0.0
    %2387 = vmatprep.subr.mxu0 0.0
    %2388 = vmatpush2.msra.mxu0 0.0
    %2389 = vmatprep.subr.mxu0 0.0
    %2390 = vmatpush2.msra.mxu0 0.0
    %2391 = vmatprep.subr.mxu0 0.0
    %2392 = vmatpush2.msra.mxu0 0.0
    %2393 = vmatprep.subr.mxu0 0.0
    %2394 = vmatpush2.msra.mxu0 0.0
    %2395 = vmatprep.subr.mxu0 0.0
    %2396 = vmatpush2.msra.mxu0 0.0
    %2397 = vmatprep.subr.mxu0 0.0
    %2398 = vmatpush2.msra.mxu0 0.0
    %2399 = vmatprep.subr.mxu0 0.0
    %2400 = vmatpush2.msra.mxu0 0.0
    %2401 = vmatprep.subr.mxu0 0.0
    %2402 = vmatpush2.msra.mxu0 0.0
    %2403 = vmatprep.subr.mxu0 0.0
    %2404 = vmatpush2.msra.mxu0 0.0
    %2405 = vmatprep.subr.mxu0 0.0
    %2406 = vmatpush2.msra.mxu0 0.0
    %2407 = vmatprep.subr.mxu0 0.0
    %2408 = vmatpush2.msra.mxu0 0.0
    %2409 = vmatprep.subr.mxu0 0.0
    %2410 = vmatpush2.msra.mxu0 0.0
    %2411 = vmatprep.mubr.f32.mxu0 0.0
    %2412 = vmatmul.mubr.f32.gmra.mxu0 %v2059
    %v2413 = vpop.f32.mrf.mxu0
    %v2414 = vadd.f32 0.0, %v2413
    %v2415 = vpop.f32.mrf.mxu0
    %v2416 = vadd.f32 0.0, %v2415
    %2417 = vdwg.mxu0
    %2418 = vmatprep.subr.mxu0 %v2346
    %2419 = vmatpush1.msra.mxu0 %v2345
    %2420 = vmatprep.subr.mxu0 %v2342
    %2421 = vmatpush1.msra.mxu0 %v2341
    %2422 = vmatprep.subr.mxu0 %v2338
    %2423 = vmatpush1.msra.mxu0 %v2337
    %2424 = vmatprep.subr.mxu0 %v2334
    %2425 = vmatpush1.msra.mxu0 %v2333
    %2426 = vmatprep.subr.mxu0 %v2330
    %2427 = vmatpush1.msra.mxu0 %v2329
    %2428 = vmatprep.subr.mxu0 %v2326
    %2429 = vmatpush1.msra.mxu0 %v2325
    %2430 = vmatprep.subr.mxu0 %v2322
    %2431 = vmatpush1.msra.mxu0 %v2321
    %2432 = vmatprep.subr.mxu0 %v2318
    %2433 = vmatpush1.msra.mxu0 %v2317
    %2434 = vmatprep.subr.mxu0 %v2314
    %2435 = vmatpush1.msra.mxu0 %v2313
    %2436 = vmatprep.subr.mxu0 %v2310
    %2437 = vmatpush1.msra.mxu0 %v2309
    %2438 = vmatprep.subr.mxu0 %v2306
    %2439 = vmatpush1.msra.mxu0 %v2305
    %2440 = vmatprep.subr.mxu0 %v2302
    %2441 = vmatpush1.msra.mxu0 %v2301
    %2442 = vmatprep.subr.mxu0 %v2298
    %2443 = vmatpush1.msra.mxu0 %v2297
    %2444 = vmatprep.subr.mxu0 %v2294
    %2445 = vmatpush1.msra.mxu0 %v2293
    %2446 = vmatprep.subr.mxu0 %v2290
    %2447 = vmatpush1.msra.mxu0 %v2289
    %2448 = vmatprep.subr.mxu0 %v2286
    %2449 = vmatpush1.msra.mxu0 %v2285
    %2450 = vmatprep.subr.mxu0 0.0
    %2451 = vmatpush2.msra.mxu0 0.0
    %2452 = vmatprep.subr.mxu0 0.0
    %2453 = vmatpush2.msra.mxu0 0.0
    %2454 = vmatprep.subr.mxu0 0.0
    %2455 = vmatpush2.msra.mxu0 0.0
    %2456 = vmatprep.subr.mxu0 0.0
    %2457 = vmatpush2.msra.mxu0 0.0
    %2458 = vmatprep.subr.mxu0 0.0
    %2459 = vmatpush2.msra.mxu0 0.0
    %2460 = vmatprep.subr.mxu0 0.0
    %2461 = vmatpush2.msra.mxu0 0.0
    %2462 = vmatprep.subr.mxu0 0.0
    %2463 = vmatpush2.msra.mxu0 0.0
    %2464 = vmatprep.subr.mxu0 0.0
    %2465 = vmatpush2.msra.mxu0 0.0
    %2466 = vmatprep.subr.mxu0 0.0
    %2467 = vmatpush2.msra.mxu0 0.0
    %2468 = vmatprep.subr.mxu0 0.0
    %2469 = vmatpush2.msra.mxu0 0.0
    %2470 = vmatprep.subr.mxu0 0.0
    %2471 = vmatpush2.msra.mxu0 0.0
    %2472 = vmatprep.subr.mxu0 0.0
    %2473 = vmatpush2.msra.mxu0 0.0
    %2474 = vmatprep.subr.mxu0 0.0
    %2475 = vmatpush2.msra.mxu0 0.0
    %2476 = vmatprep.subr.mxu0 0.0
    %2477 = vmatpush2.msra.mxu0 0.0
    %2478 = vmatprep.subr.mxu0 0.0
    %2479 = vmatpush2.msra.mxu0 0.0
    %2480 = vmatprep.subr.mxu0 0.0
    %2481 = vmatpush2.msra.mxu0 0.0
    %2482 = vmatprep.mubr.f32.mxu0 0.0
    %2483 = vmatmul.mubr.f32.gmra.mxu0 %v2059
    %v2484 = vpop.f32.mrf.mxu0
    %v2485 = vadd.f32 0.0, %v2484
    %v2486 = vpop.f32.mrf.mxu0
    %v2487 = vadd.f32 0.0, %v2486
    %2488 = vdwg.mxu0
    %v2493 = vrot.slane %v2414, 2
    %v2494 = vrot.slane %v2416, 2
    %v2495 = vrot.slane %v2485, 2
    %v2496 = vrot.slane %v2487, 2
    %v2501 = vadd.f32 %v2279, %v2493
    %v2502 = vadd.f32 %v2280, %v2494
    %v2503 = vadd.f32 %v2281, %v2495
    %v2504 = vadd.f32 %v2282, %v2496
    %v2505 = vxor.u32 %v2275, 2147483648
    %v2506 = vmul.f32 %v2505, 1.442695
    %v2507 = vpow.pop %v2506
    %v2508 = vadd.f32 %v2507, 1.0
    %v2509 = vrcp.pop %v2508
    %v2510 = vmul.f32 1.0, %v2509
    %v2511 = vxor.u32 %v2276, 2147483648
    %v2512 = vmul.f32 %v2511, 1.442695
    %v2513 = vpow.pop %v2512
    %v2514 = vadd.f32 %v2513, 1.0
    %v2515 = vrcp.pop %v2514
    %v2516 = vmul.f32 1.0, %v2515
    %v2517 = vtanh.pop %v2277
    %v2518 = vxor.u32 %v2278, 2147483648
    %v2519 = vmul.f32 %v2518, 1.442695
    %v2520 = vpow.pop %v2519
    %v2521 = vadd.f32 %v2520, 1.0
    %v2522 = vrcp.pop %v2521
    %v2523 = vmul.f32 1.0, %v2522
    %v2525 = vrot.slane %v2030, 6
    %v2527 = vmul.f32 %v2516, %v2525
    %v2528 = vmul.f32 %v2510, %v2517
    %v2529 = vadd.f32 %v2527, %v2528
    %v2530 = vtanh.pop %v2529
    %v2531 = vmul.f32 %v2523, %v2530
    %v2532 = vxor.u32 %v2501, 2147483648
    %v2533 = vmul.f32 %v2532, 1.442695
    %v2534 = vpow.pop %v2533
    %v2535 = vadd.f32 %v2534, 1.0
    %v2536 = vrcp.pop %v2535
    %v2537 = vmul.f32 1.0, %v2536
    %v2538 = vxor.u32 %v2502, 2147483648
    %v2539 = vmul.f32 %v2538, 1.442695
    %v2540 = vpow.pop %v2539
    %v2541 = vadd.f32 %v2540, 1.0
    %v2542 = vrcp.pop %v2541
    %v2543 = vmul.f32 1.0, %v2542
    %v2544 = vtanh.pop %v2503
    %v2545 = vxor.u32 %v2504, 2147483648
    %v2546 = vmul.f32 %v2545, 1.442695
    %v2547 = vpow.pop %v2546
    %v2548 = vadd.f32 %v2547, 1.0
    %v2549 = vrcp.pop %v2548
    %v2550 = vmul.f32 1.0, %v2549
    %v2552 = vrot.slane %v2057, 2
    %v2554 = vmul.f32 %v2543, %v2552
    %v2555 = vmul.f32 %v2537, %v2544
    %v2556 = vadd.f32 %v2554, %v2555
    %v2557 = vtanh.pop %v2556
    %v2558 = vmul.f32 %v2550, %v2557
    %2559 = vst [vmem:[%s4 + $0x10] sm:$0x3] %v2531
    %2560 = vst [vmem:[%s4 + $0x8] sm:$0xc0] %v2558
    %v2561 = vld [vmem:[%s0 + $0x20] sm:$0xc]
    %v2562 = vld [vmem:[%s0 + $0x28] sm:$0xc]
    %v2563 = vld [vmem:[%s0 + $0x30] sm:$0xc]
    %v2564 = vld [vmem:[%s0 + $0x38] sm:$0xc]
    %v2565 = vld [vmem:[#allocation2] sm:$0xff]
    %v2566 = vld [vmem:[#allocation2 + $0x8] sm:$0xff]
    %v2567 = vld [vmem:[#allocation2 + $0x10] sm:$0xff]
    %v2568 = vld [vmem:[#allocation2 + $0x18] sm:$0xff]
    %v2569 = vld [vmem:[#allocation2 + $0x20] sm:$0xff]
    %v2570 = vld [vmem:[#allocation2 + $0x28] sm:$0xff]
    %v2571 = vld [vmem:[#allocation2 + $0x30] sm:$0xff]
    %v2572 = vld [vmem:[#allocation2 + $0x38] sm:$0xff]
    %v2573 = vld [vmem:[#allocation2 + $0x40] sm:$0xff]
    %v2574 = vld [vmem:[#allocation2 + $0x48] sm:$0xff]
    %v2575 = vld [vmem:[#allocation2 + $0x50] sm:$0xff]
    %v2576 = vld [vmem:[#allocation2 + $0x58] sm:$0xff]
    %v2577 = vld [vmem:[#allocation2 + $0x60] sm:$0xff]
    %v2578 = vld [vmem:[#allocation2 + $0x68] sm:$0xff]
    %v2579 = vld [vmem:[#allocation2 + $0x70] sm:$0xff]
    %v2580 = vld [vmem:[#allocation2 + $0x78] sm:$0xff]
    %v2581 = vld [vmem:[#allocation2 + $0x80] sm:$0xff]
    %v2582 = vld [vmem:[#allocation2 + $0x88] sm:$0xff]
    %v2583 = vld [vmem:[#allocation2 + $0x90] sm:$0xff]
    %v2584 = vld [vmem:[#allocation2 + $0x98] sm:$0xff]
    %v2585 = vld [vmem:[#allocation2 + $0xa0] sm:$0xff]
    %v2586 = vld [vmem:[#allocation2 + $0xa8] sm:$0xff]
    %v2587 = vld [vmem:[#allocation2 + $0xb0] sm:$0xff]
    %v2588 = vld [vmem:[#allocation2 + $0xb8] sm:$0xff]
    %v2589 = vld [vmem:[#allocation2 + $0xc0] sm:$0xff]
    %v2590 = vld [vmem:[#allocation2 + $0xc8] sm:$0xff]
    %v2591 = vld [vmem:[#allocation2 + $0xd0] sm:$0xff]
    %v2592 = vld [vmem:[#allocation2 + $0xd8] sm:$0xff]
    %v2593 = vld [vmem:[#allocation2 + $0xe0] sm:$0xff]
    %v2594 = vld [vmem:[#allocation2 + $0xe8] sm:$0xff]
    %v2595 = vld [vmem:[#allocation2 + $0xf0] sm:$0xff]
    %v2596 = vld [vmem:[#allocation2 + $0xf8] sm:$0xff]
    %v2597 = vld [vmem:[#allocation2 + $0x100] sm:$0xff]
    %v2598 = vld [vmem:[#allocation2 + $0x108] sm:$0xff]
    %v2599 = vld [vmem:[#allocation2 + $0x110] sm:$0xff]
    %v2600 = vld [vmem:[#allocation2 + $0x118] sm:$0xff]
    %v2601 = vld [vmem:[#allocation2 + $0x120] sm:$0xff]
    %v2602 = vld [vmem:[#allocation2 + $0x128] sm:$0xff]
    %v2603 = vld [vmem:[#allocation2 + $0x130] sm:$0xff]
    %v2604 = vld [vmem:[#allocation2 + $0x138] sm:$0xff]
    %v2605 = vld [vmem:[#allocation2 + $0x140] sm:$0xff]
    %v2606 = vld [vmem:[#allocation2 + $0x148] sm:$0xff]
    %v2607 = vld [vmem:[#allocation2 + $0x150] sm:$0xff]
    %v2608 = vld [vmem:[#allocation2 + $0x158] sm:$0xff]
    %v2609 = vld [vmem:[#allocation2 + $0x160] sm:$0xff]
    %v2610 = vld [vmem:[#allocation2 + $0x168] sm:$0xff]
    %v2611 = vld [vmem:[#allocation2 + $0x170] sm:$0xff]
    %v2612 = vld [vmem:[#allocation2 + $0x178] sm:$0xff]
    %v2613 = vld [vmem:[#allocation2 + $0x180] sm:$0xff]
    %v2614 = vld [vmem:[#allocation2 + $0x188] sm:$0xff]
    %v2615 = vld [vmem:[#allocation2 + $0x190] sm:$0xff]
    %v2616 = vld [vmem:[#allocation2 + $0x198] sm:$0xff]
    %v2617 = vld [vmem:[#allocation2 + $0x1a0] sm:$0xff]
    %v2618 = vld [vmem:[#allocation2 + $0x1a8] sm:$0xff]
    %v2619 = vld [vmem:[#allocation2 + $0x1b0] sm:$0xff]
    %v2620 = vld [vmem:[#allocation2 + $0x1b8] sm:$0xff]
    %v2621 = vld [vmem:[#allocation2 + $0x1c0] sm:$0xff]
    %v2622 = vld [vmem:[#allocation2 + $0x1c8] sm:$0xff]
    %v2623 = vld [vmem:[#allocation2 + $0x1d0] sm:$0xff]
    %v2624 = vld [vmem:[#allocation2 + $0x1d8] sm:$0xff]
    %v2625 = vld [vmem:[#allocation2 + $0x1e0] sm:$0xff]
    %v2626 = vld [vmem:[#allocation2 + $0x1e8] sm:$0xff]
    %v2627 = vld [vmem:[#allocation2 + $0x1f0] sm:$0xff]
    %v2628 = vld [vmem:[#allocation2 + $0x1f8] sm:$0xff]
    %2629 = vmatprep.subr.mxu0 %v2626
    %2630 = vmatpush1.msra.mxu0 %v2625
    %2631 = vmatprep.subr.mxu0 %v2622
    %2632 = vmatpush1.msra.mxu0 %v2621
    %2633 = vmatprep.subr.mxu0 %v2618
    %2634 = vmatpush1.msra.mxu0 %v2617
    %2635 = vmatprep.subr.mxu0 %v2614
    %2636 = vmatpush1.msra.mxu0 %v2613
    %2637 = vmatprep.subr.mxu0 %v2610
    %2638 = vmatpush1.msra.mxu0 %v2609
    %2639 = vmatprep.subr.mxu0 %v2606
    %2640 = vmatpush1.msra.mxu0 %v2605
    %2641 = vmatprep.subr.mxu0 %v2602
    %2642 = vmatpush1.msra.mxu0 %v2601
    %2643 = vmatprep.subr.mxu0 %v2598
    %2644 = vmatpush1.msra.mxu0 %v2597
    %2645 = vmatprep.subr.mxu0 %v2594
    %2646 = vmatpush1.msra.mxu0 %v2593
    %2647 = vmatprep.subr.mxu0 %v2590
    %2648 = vmatpush1.msra.mxu0 %v2589
    %2649 = vmatprep.subr.mxu0 %v2586
    %2650 = vmatpush1.msra.mxu0 %v2585
    %2651 = vmatprep.subr.mxu0 %v2582
    %2652 = vmatpush1.msra.mxu0 %v2581
    %2653 = vmatprep.subr.mxu0 %v2578
    %2654 = vmatpush1.msra.mxu0 %v2577
    %2655 = vmatprep.subr.mxu0 %v2574
    %2656 = vmatpush1.msra.mxu0 %v2573
    %2657 = vmatprep.subr.mxu0 %v2570
    %2658 = vmatpush1.msra.mxu0 %v2569
    %2659 = vmatprep.subr.mxu0 %v2566
    %2660 = vmatpush1.msra.mxu0 %v2565
    %2661 = vmatprep.subr.mxu0 0.0
    %2662 = vmatpush2.msra.mxu0 0.0
    %2663 = vmatprep.subr.mxu0 0.0
    %2664 = vmatpush2.msra.mxu0 0.0
    %2665 = vmatprep.subr.mxu0 0.0
    %2666 = vmatpush2.msra.mxu0 0.0
    %2667 = vmatprep.subr.mxu0 0.0
    %2668 = vmatpush2.msra.mxu0 0.0
    %2669 = vmatprep.subr.mxu0 0.0
    %2670 = vmatpush2.msra.mxu0 0.0
    %2671 = vmatprep.subr.mxu0 0.0
    %2672 = vmatpush2.msra.mxu0 0.0
    %2673 = vmatprep.subr.mxu0 0.0
    %2674 = vmatpush2.msra.mxu0 0.0
    %2675 = vmatprep.subr.mxu0 0.0
    %2676 = vmatpush2.msra.mxu0 0.0
    %2677 = vmatprep.subr.mxu0 0.0
    %2678 = vmatpush2.msra.mxu0 0.0
    %2679 = vmatprep.subr.mxu0 0.0
    %2680 = vmatpush2.msra.mxu0 0.0
    %2681 = vmatprep.subr.mxu0 0.0
    %2682 = vmatpush2.msra.mxu0 0.0
    %2683 = vmatprep.subr.mxu0 0.0
    %2684 = vmatpush2.msra.mxu0 0.0
    %2685 = vmatprep.subr.mxu0 0.0
    %2686 = vmatpush2.msra.mxu0 0.0
    %2687 = vmatprep.subr.mxu0 0.0
    %2688 = vmatpush2.msra.mxu0 0.0
    %2689 = vmatprep.subr.mxu0 0.0
    %2690 = vmatpush2.msra.mxu0 0.0
    %2691 = vmatprep.subr.mxu0 0.0
    %2692 = vmatpush2.msra.mxu0 0.0
    %2693 = vmatprep.mubr.f32.mxu0 0.0
    %2694 = vmatmul.mubr.f32.gmra.mxu0 %v2531
    %v2695 = vpop.f32.mrf.mxu0
    %v2696 = vadd.f32 0.0, %v2695
    %v2697 = vpop.f32.mrf.mxu0
    %v2698 = vadd.f32 0.0, %v2697
    %2699 = vdwg.mxu0
    %2700 = vmatprep.subr.mxu0 %v2628
    %2701 = vmatpush1.msra.mxu0 %v2627
    %2702 = vmatprep.subr.mxu0 %v2624
    %2703 = vmatpush1.msra.mxu0 %v2623
    %2704 = vmatprep.subr.mxu0 %v2620
    %2705 = vmatpush1.msra.mxu0 %v2619
    %2706 = vmatprep.subr.mxu0 %v2616
    %2707 = vmatpush1.msra.mxu0 %v2615
    %2708 = vmatprep.subr.mxu0 %v2612
    %2709 = vmatpush1.msra.mxu0 %v2611
    %2710 = vmatprep.subr.mxu0 %v2608
    %2711 = vmatpush1.msra.mxu0 %v2607
    %2712 = vmatprep.subr.mxu0 %v2604
    %2713 = vmatpush1.msra.mxu0 %v2603
    %2714 = vmatprep.subr.mxu0 %v2600
    %2715 = vmatpush1.msra.mxu0 %v2599
    %2716 = vmatprep.subr.mxu0 %v2596
    %2717 = vmatpush1.msra.mxu0 %v2595
    %2718 = vmatprep.subr.mxu0 %v2592
    %2719 = vmatpush1.msra.mxu0 %v2591
    %2720 = vmatprep.subr.mxu0 %v2588
    %2721 = vmatpush1.msra.mxu0 %v2587
    %2722 = vmatprep.subr.mxu0 %v2584
    %2723 = vmatpush1.msra.mxu0 %v2583
    %2724 = vmatprep.subr.mxu0 %v2580
    %2725 = vmatpush1.msra.mxu0 %v2579
    %2726 = vmatprep.subr.mxu0 %v2576
    %2727 = vmatpush1.msra.mxu0 %v2575
    %2728 = vmatprep.subr.mxu0 %v2572
    %2729 = vmatpush1.msra.mxu0 %v2571
    %2730 = vmatprep.subr.mxu0 %v2568
    %2731 = vmatpush1.msra.mxu0 %v2567
    %2732 = vmatprep.subr.mxu0 0.0
    %2733 = vmatpush2.msra.mxu0 0.0
    %2734 = vmatprep.subr.mxu0 0.0
    %2735 = vmatpush2.msra.mxu0 0.0
    %2736 = vmatprep.subr.mxu0 0.0
    %2737 = vmatpush2.msra.mxu0 0.0
    %2738 = vmatprep.subr.mxu0 0.0
    %2739 = vmatpush2.msra.mxu0 0.0
    %2740 = vmatprep.subr.mxu0 0.0
    %2741 = vmatpush2.msra.mxu0 0.0
    %2742 = vmatprep.subr.mxu0 0.0
    %2743 = vmatpush2.msra.mxu0 0.0
    %2744 = vmatprep.subr.mxu0 0.0
    %2745 = vmatpush2.msra.mxu0 0.0
    %2746 = vmatprep.subr.mxu0 0.0
    %2747 = vmatpush2.msra.mxu0 0.0
    %2748 = vmatprep.subr.mxu0 0.0
    %2749 = vmatpush2.msra.mxu0 0.0
    %2750 = vmatprep.subr.mxu0 0.0
    %2751 = vmatpush2.msra.mxu0 0.0
    %2752 = vmatprep.subr.mxu0 0.0
    %2753 = vmatpush2.msra.mxu0 0.0
    %2754 = vmatprep.subr.mxu0 0.0
    %2755 = vmatpush2.msra.mxu0 0.0
    %2756 = vmatprep.subr.mxu0 0.0
    %2757 = vmatpush2.msra.mxu0 0.0
    %2758 = vmatprep.subr.mxu0 0.0
    %2759 = vmatpush2.msra.mxu0 0.0
    %2760 = vmatprep.subr.mxu0 0.0
    %2761 = vmatpush2.msra.mxu0 0.0
    %2762 = vmatprep.subr.mxu0 0.0
    %2763 = vmatpush2.msra.mxu0 0.0
    %2764 = vmatprep.mubr.f32.mxu0 0.0
    %2765 = vmatmul.mubr.f32.gmra.mxu0 %v2531
    %v2766 = vpop.f32.mrf.mxu0
    %v2767 = vadd.f32 0.0, %v2766
    %v2768 = vpop.f32.mrf.mxu0
    %v2769 = vadd.f32 0.0, %v2768
    %2770 = vdwg.mxu0
    %v2775 = vrot.slane %v2696, 6
    %v2776 = vrot.slane %v2698, 6
    %v2777 = vrot.slane %v2767, 6
    %v2778 = vrot.slane %v2769, 6
    %v2783 = vadd.f32 %v2561, %v2775
    %v2784 = vadd.f32 %v2562, %v2776
    %v2785 = vadd.f32 %v2563, %v2777
    %v2786 = vadd.f32 %v2564, %v2778
    %v2787 = vld [vmem:[%s1] sm:$0x30]
    %v2788 = vld [vmem:[%s1 + $0x8] sm:$0x30]
    %v2789 = vld [vmem:[%s1 + $0x10] sm:$0x30]
    %v2790 = vld [vmem:[%s1 + $0x18] sm:$0x30]
    %v2791 = vld [vmem:[#allocation4] sm:$0xff]
    %v2792 = vld [vmem:[#allocation4 + $0x8] sm:$0xff]
    %v2793 = vld [vmem:[#allocation4 + $0x10] sm:$0xff]
    %v2794 = vld [vmem:[#allocation4 + $0x18] sm:$0xff]
    %v2795 = vld [vmem:[#allocation4 + $0x20] sm:$0xff]
    %v2796 = vld [vmem:[#allocation4 + $0x28] sm:$0xff]
    %v2797 = vld [vmem:[#allocation4 + $0x30] sm:$0xff]
    %v2798 = vld [vmem:[#allocation4 + $0x38] sm:$0xff]
    %v2799 = vld [vmem:[#allocation4 + $0x40] sm:$0xff]
    %v2800 = vld [vmem:[#allocation4 + $0x48] sm:$0xff]
    %v2801 = vld [vmem:[#allocation4 + $0x50] sm:$0xff]
    %v2802 = vld [vmem:[#allocation4 + $0x58] sm:$0xff]
    %v2803 = vld [vmem:[#allocation4 + $0x60] sm:$0xff]
    %v2804 = vld [vmem:[#allocation4 + $0x68] sm:$0xff]
    %v2805 = vld [vmem:[#allocation4 + $0x70] sm:$0xff]
    %v2806 = vld [vmem:[#allocation4 + $0x78] sm:$0xff]
    %v2807 = vld [vmem:[#allocation4 + $0x80] sm:$0xff]
    %v2808 = vld [vmem:[#allocation4 + $0x88] sm:$0xff]
    %v2809 = vld [vmem:[#allocation4 + $0x90] sm:$0xff]
    %v2810 = vld [vmem:[#allocation4 + $0x98] sm:$0xff]
    %v2811 = vld [vmem:[#allocation4 + $0xa0] sm:$0xff]
    %v2812 = vld [vmem:[#allocation4 + $0xa8] sm:$0xff]
    %v2813 = vld [vmem:[#allocation4 + $0xb0] sm:$0xff]
    %v2814 = vld [vmem:[#allocation4 + $0xb8] sm:$0xff]
    %v2815 = vld [vmem:[#allocation4 + $0xc0] sm:$0xff]
    %v2816 = vld [vmem:[#allocation4 + $0xc8] sm:$0xff]
    %v2817 = vld [vmem:[#allocation4 + $0xd0] sm:$0xff]
    %v2818 = vld [vmem:[#allocation4 + $0xd8] sm:$0xff]
    %v2819 = vld [vmem:[#allocation4 + $0xe0] sm:$0xff]
    %v2820 = vld [vmem:[#allocation4 + $0xe8] sm:$0xff]
    %v2821 = vld [vmem:[#allocation4 + $0xf0] sm:$0xff]
    %v2822 = vld [vmem:[#allocation4 + $0xf8] sm:$0xff]
    %v2823 = vld [vmem:[#allocation4 + $0x100] sm:$0xff]
    %v2824 = vld [vmem:[#allocation4 + $0x108] sm:$0xff]
    %v2825 = vld [vmem:[#allocation4 + $0x110] sm:$0xff]
    %v2826 = vld [vmem:[#allocation4 + $0x118] sm:$0xff]
    %v2827 = vld [vmem:[#allocation4 + $0x120] sm:$0xff]
    %v2828 = vld [vmem:[#allocation4 + $0x128] sm:$0xff]
    %v2829 = vld [vmem:[#allocation4 + $0x130] sm:$0xff]
    %v2830 = vld [vmem:[#allocation4 + $0x138] sm:$0xff]
    %v2831 = vld [vmem:[#allocation4 + $0x140] sm:$0xff]
    %v2832 = vld [vmem:[#allocation4 + $0x148] sm:$0xff]
    %v2833 = vld [vmem:[#allocation4 + $0x150] sm:$0xff]
    %v2834 = vld [vmem:[#allocation4 + $0x158] sm:$0xff]
    %v2835 = vld [vmem:[#allocation4 + $0x160] sm:$0xff]
    %v2836 = vld [vmem:[#allocation4 + $0x168] sm:$0xff]
    %v2837 = vld [vmem:[#allocation4 + $0x170] sm:$0xff]
    %v2838 = vld [vmem:[#allocation4 + $0x178] sm:$0xff]
    %v2839 = vld [vmem:[#allocation4 + $0x180] sm:$0xff]
    %v2840 = vld [vmem:[#allocation4 + $0x188] sm:$0xff]
    %v2841 = vld [vmem:[#allocation4 + $0x190] sm:$0xff]
    %v2842 = vld [vmem:[#allocation4 + $0x198] sm:$0xff]
    %v2843 = vld [vmem:[#allocation4 + $0x1a0] sm:$0xff]
    %v2844 = vld [vmem:[#allocation4 + $0x1a8] sm:$0xff]
    %v2845 = vld [vmem:[#allocation4 + $0x1b0] sm:$0xff]
    %v2846 = vld [vmem:[#allocation4 + $0x1b8] sm:$0xff]
    %v2847 = vld [vmem:[#allocation4 + $0x1c0] sm:$0xff]
    %v2848 = vld [vmem:[#allocation4 + $0x1c8] sm:$0xff]
    %v2849 = vld [vmem:[#allocation4 + $0x1d0] sm:$0xff]
    %v2850 = vld [vmem:[#allocation4 + $0x1d8] sm:$0xff]
    %v2851 = vld [vmem:[#allocation4 + $0x1e0] sm:$0xff]
    %v2852 = vld [vmem:[#allocation4 + $0x1e8] sm:$0xff]
    %v2853 = vld [vmem:[#allocation4 + $0x1f0] sm:$0xff]
    %v2854 = vld [vmem:[#allocation4 + $0x1f8] sm:$0xff]
    %v2856 = vrot.slane %v2558, 6
    %2858 = vmatprep.subr.mxu0 %v2852
    %2859 = vmatpush1.msra.mxu0 %v2851
    %2860 = vmatprep.subr.mxu0 %v2848
    %2861 = vmatpush1.msra.mxu0 %v2847
    %2862 = vmatprep.subr.mxu0 %v2844
    %2863 = vmatpush1.msra.mxu0 %v2843
    %2864 = vmatprep.subr.mxu0 %v2840
    %2865 = vmatpush1.msra.mxu0 %v2839
    %2866 = vmatprep.subr.mxu0 %v2836
    %2867 = vmatpush1.msra.mxu0 %v2835
    %2868 = vmatprep.subr.mxu0 %v2832
    %2869 = vmatpush1.msra.mxu0 %v2831
    %2870 = vmatprep.subr.mxu0 %v2828
    %2871 = vmatpush1.msra.mxu0 %v2827
    %2872 = vmatprep.subr.mxu0 %v2824
    %2873 = vmatpush1.msra.mxu0 %v2823
    %2874 = vmatprep.subr.mxu0 %v2820
    %2875 = vmatpush1.msra.mxu0 %v2819
    %2876 = vmatprep.subr.mxu0 %v2816
    %2877 = vmatpush1.msra.mxu0 %v2815
    %2878 = vmatprep.subr.mxu0 %v2812
    %2879 = vmatpush1.msra.mxu0 %v2811
    %2880 = vmatprep.subr.mxu0 %v2808
    %2881 = vmatpush1.msra.mxu0 %v2807
    %2882 = vmatprep.subr.mxu0 %v2804
    %2883 = vmatpush1.msra.mxu0 %v2803
    %2884 = vmatprep.subr.mxu0 %v2800
    %2885 = vmatpush1.msra.mxu0 %v2799
    %2886 = vmatprep.subr.mxu0 %v2796
    %2887 = vmatpush1.msra.mxu0 %v2795
    %2888 = vmatprep.subr.mxu0 %v2792
    %2889 = vmatpush1.msra.mxu0 %v2791
    %2890 = vmatprep.subr.mxu0 0.0
    %2891 = vmatpush2.msra.mxu0 0.0
    %2892 = vmatprep.subr.mxu0 0.0
    %2893 = vmatpush2.msra.mxu0 0.0
    %2894 = vmatprep.subr.mxu0 0.0
    %2895 = vmatpush2.msra.mxu0 0.0
    %2896 = vmatprep.subr.mxu0 0.0
    %2897 = vmatpush2.msra.mxu0 0.0
    %2898 = vmatprep.subr.mxu0 0.0
    %2899 = vmatpush2.msra.mxu0 0.0
    %2900 = vmatprep.subr.mxu0 0.0
    %2901 = vmatpush2.msra.mxu0 0.0
    %2902 = vmatprep.subr.mxu0 0.0
    %2903 = vmatpush2.msra.mxu0 0.0
    %2904 = vmatprep.subr.mxu0 0.0
    %2905 = vmatpush2.msra.mxu0 0.0
    %2906 = vmatprep.subr.mxu0 0.0
    %2907 = vmatpush2.msra.mxu0 0.0
    %2908 = vmatprep.subr.mxu0 0.0
    %2909 = vmatpush2.msra.mxu0 0.0
    %2910 = vmatprep.subr.mxu0 0.0
    %2911 = vmatpush2.msra.mxu0 0.0
    %2912 = vmatprep.subr.mxu0 0.0
    %2913 = vmatpush2.msra.mxu0 0.0
    %2914 = vmatprep.subr.mxu0 0.0
    %2915 = vmatpush2.msra.mxu0 0.0
    %2916 = vmatprep.subr.mxu0 0.0
    %2917 = vmatpush2.msra.mxu0 0.0
    %2918 = vmatprep.subr.mxu0 0.0
    %2919 = vmatpush2.msra.mxu0 0.0
    %2920 = vmatprep.subr.mxu0 0.0
    %2921 = vmatpush2.msra.mxu0 0.0
    %2922 = vmatprep.mubr.f32.mxu0 0.0
    %2923 = vmatmul.mubr.f32.gmra.mxu0 %v2856
    %v2924 = vpop.f32.mrf.mxu0
    %v2925 = vadd.f32 0.0, %v2924
    %v2926 = vpop.f32.mrf.mxu0
    %v2927 = vadd.f32 0.0, %v2926
    %2928 = vdwg.mxu0
    %2929 = vmatprep.subr.mxu0 %v2854
    %2930 = vmatpush1.msra.mxu0 %v2853
    %2931 = vmatprep.subr.mxu0 %v2850
    %2932 = vmatpush1.msra.mxu0 %v2849
    %2933 = vmatprep.subr.mxu0 %v2846
    %2934 = vmatpush1.msra.mxu0 %v2845
    %2935 = vmatprep.subr.mxu0 %v2842
    %2936 = vmatpush1.msra.mxu0 %v2841
    %2937 = vmatprep.subr.mxu0 %v2838
    %2938 = vmatpush1.msra.mxu0 %v2837
    %2939 = vmatprep.subr.mxu0 %v2834
    %2940 = vmatpush1.msra.mxu0 %v2833
    %2941 = vmatprep.subr.mxu0 %v2830
    %2942 = vmatpush1.msra.mxu0 %v2829
    %2943 = vmatprep.subr.mxu0 %v2826
    %2944 = vmatpush1.msra.mxu0 %v2825
    %2945 = vmatprep.subr.mxu0 %v2822
    %2946 = vmatpush1.msra.mxu0 %v2821
    %2947 = vmatprep.subr.mxu0 %v2818
    %2948 = vmatpush1.msra.mxu0 %v2817
    %2949 = vmatprep.subr.mxu0 %v2814
    %2950 = vmatpush1.msra.mxu0 %v2813
    %2951 = vmatprep.subr.mxu0 %v2810
    %2952 = vmatpush1.msra.mxu0 %v2809
    %2953 = vmatprep.subr.mxu0 %v2806
    %2954 = vmatpush1.msra.mxu0 %v2805
    %2955 = vmatprep.subr.mxu0 %v2802
    %2956 = vmatpush1.msra.mxu0 %v2801
    %2957 = vmatprep.subr.mxu0 %v2798
    %2958 = vmatpush1.msra.mxu0 %v2797
    %2959 = vmatprep.subr.mxu0 %v2794
    %2960 = vmatpush1.msra.mxu0 %v2793
    %2961 = vmatprep.subr.mxu0 0.0
    %2962 = vmatpush2.msra.mxu0 0.0
    %2963 = vmatprep.subr.mxu0 0.0
    %2964 = vmatpush2.msra.mxu0 0.0
    %2965 = vmatprep.subr.mxu0 0.0
    %2966 = vmatpush2.msra.mxu0 0.0
    %2967 = vmatprep.subr.mxu0 0.0
    %2968 = vmatpush2.msra.mxu0 0.0
    %2969 = vmatprep.subr.mxu0 0.0
    %2970 = vmatpush2.msra.mxu0 0.0
    %2971 = vmatprep.subr.mxu0 0.0
    %2972 = vmatpush2.msra.mxu0 0.0
    %2973 = vmatprep.subr.mxu0 0.0
    %2974 = vmatpush2.msra.mxu0 0.0
    %2975 = vmatprep.subr.mxu0 0.0
    %2976 = vmatpush2.msra.mxu0 0.0
    %2977 = vmatprep.subr.mxu0 0.0
    %2978 = vmatpush2.msra.mxu0 0.0
    %2979 = vmatprep.subr.mxu0 0.0
    %2980 = vmatpush2.msra.mxu0 0.0
    %2981 = vmatprep.subr.mxu0 0.0
    %2982 = vmatpush2.msra.mxu0 0.0
    %2983 = vmatprep.subr.mxu0 0.0
    %2984 = vmatpush2.msra.mxu0 0.0
    %2985 = vmatprep.subr.mxu0 0.0
    %2986 = vmatpush2.msra.mxu0 0.0
    %2987 = vmatprep.subr.mxu0 0.0
    %2988 = vmatpush2.msra.mxu0 0.0
    %2989 = vmatprep.subr.mxu0 0.0
    %2990 = vmatpush2.msra.mxu0 0.0
    %2991 = vmatprep.subr.mxu0 0.0
    %2992 = vmatpush2.msra.mxu0 0.0
    %2993 = vmatprep.mubr.f32.mxu0 0.0
    %2994 = vmatmul.mubr.f32.gmra.mxu0 %v2856
    %v2995 = vpop.f32.mrf.mxu0
    %v2996 = vadd.f32 0.0, %v2995
    %v2997 = vpop.f32.mrf.mxu0
    %v2998 = vadd.f32 0.0, %v2997
    %2999 = vdwg.mxu0
    %v3004 = vrot.slane %v2925, 4
    %v3005 = vrot.slane %v2927, 4
    %v3006 = vrot.slane %v2996, 4
    %v3007 = vrot.slane %v2998, 4
    %v3012 = vadd.f32 %v2787, %v3004
    %v3013 = vadd.f32 %v2788, %v3005
    %v3014 = vadd.f32 %v2789, %v3006
    %v3015 = vadd.f32 %v2790, %v3007
    %v3016 = vxor.u32 %v2783, 2147483648
    %v3017 = vmul.f32 %v3016, 1.442695
    %v3018 = vpow.pop %v3017
    %v3019 = vadd.f32 %v3018, 1.0
    %v3020 = vrcp.pop %v3019
    %v3021 = vmul.f32 1.0, %v3020
    %v3022 = vxor.u32 %v2784, 2147483648
    %v3023 = vmul.f32 %v3022, 1.442695
    %v3024 = vpow.pop %v3023
    %v3025 = vadd.f32 %v3024, 1.0
    %v3026 = vrcp.pop %v3025
    %v3027 = vmul.f32 1.0, %v3026
    %v3028 = vtanh.pop %v2785
    %v3029 = vxor.u32 %v2786, 2147483648
    %v3030 = vmul.f32 %v3029, 1.442695
    %v3031 = vpow.pop %v3030
    %v3032 = vadd.f32 %v3031, 1.0
    %v3033 = vrcp.pop %v3032
    %v3034 = vmul.f32 1.0, %v3033
    %v3036 = vrot.slane %v2529, 6
    %v3038 = vmul.f32 %v3027, %v3036
    %v3039 = vmul.f32 %v3021, %v3028
    %v3040 = vadd.f32 %v3038, %v3039
    %v3041 = vtanh.pop %v3040
    %v3042 = vmul.f32 %v3034, %v3041
    %v3043 = vxor.u32 %v3012, 2147483648
    %v3044 = vmul.f32 %v3043, 1.442695
    %v3045 = vpow.pop %v3044
    %v3046 = vadd.f32 %v3045, 1.0
    %v3047 = vrcp.pop %v3046
    %v3048 = vmul.f32 1.0, %v3047
    %v3049 = vxor.u32 %v3013, 2147483648
    %v3050 = vmul.f32 %v3049, 1.442695
    %v3051 = vpow.pop %v3050
    %v3052 = vadd.f32 %v3051, 1.0
    %v3053 = vrcp.pop %v3052
    %v3054 = vmul.f32 1.0, %v3053
    %v3055 = vtanh.pop %v3014
    %v3056 = vxor.u32 %v3015, 2147483648
    %v3057 = vmul.f32 %v3056, 1.442695
    %v3058 = vpow.pop %v3057
    %v3059 = vadd.f32 %v3058, 1.0
    %v3060 = vrcp.pop %v3059
    %v3061 = vmul.f32 1.0, %v3060
    %v3063 = vrot.slane %v2556, 2
    %v3065 = vmul.f32 %v3054, %v3063
    %v3066 = vmul.f32 %v3048, %v3055
    %v3067 = vadd.f32 %v3065, %v3066
    %v3068 = vtanh.pop %v3067
    %v3069 = vmul.f32 %v3061, %v3068
    %3070 = vst [vmem:[%s4 + $0x10] sm:$0xc] %v3042
    %3071 = vst [vmem:[%s4 + $0x8] sm:$0x30] %v3069
    %v3072 = vld [vmem:[%s0 + $0x20] sm:$0x30]
    %v3073 = vld [vmem:[%s0 + $0x28] sm:$0x30]
    %v3074 = vld [vmem:[%s0 + $0x30] sm:$0x30]
    %v3075 = vld [vmem:[%s0 + $0x38] sm:$0x30]
    %v3076 = vld [vmem:[#allocation2] sm:$0xff]
    %v3077 = vld [vmem:[#allocation2 + $0x8] sm:$0xff]
    %v3078 = vld [vmem:[#allocation2 + $0x10] sm:$0xff]
    %v3079 = vld [vmem:[#allocation2 + $0x18] sm:$0xff]
    %v3080 = vld [vmem:[#allocation2 + $0x20] sm:$0xff]
    %v3081 = vld [vmem:[#allocation2 + $0x28] sm:$0xff]
    %v3082 = vld [vmem:[#allocation2 + $0x30] sm:$0xff]
    %v3083 = vld [vmem:[#allocation2 + $0x38] sm:$0xff]
    %v3084 = vld [vmem:[#allocation2 + $0x40] sm:$0xff]
    %v3085 = vld [vmem:[#allocation2 + $0x48] sm:$0xff]
    %v3086 = vld [vmem:[#allocation2 + $0x50] sm:$0xff]
    %v3087 = vld [vmem:[#allocation2 + $0x58] sm:$0xff]
    %v3088 = vld [vmem:[#allocation2 + $0x60] sm:$0xff]
    %v3089 = vld [vmem:[#allocation2 + $0x68] sm:$0xff]
    %v3090 = vld [vmem:[#allocation2 + $0x70] sm:$0xff]
    %v3091 = vld [vmem:[#allocation2 + $0x78] sm:$0xff]
    %v3092 = vld [vmem:[#allocation2 + $0x80] sm:$0xff]
    %v3093 = vld [vmem:[#allocation2 + $0x88] sm:$0xff]
    %v3094 = vld [vmem:[#allocation2 + $0x90] sm:$0xff]
    %v3095 = vld [vmem:[#allocation2 + $0x98] sm:$0xff]
    %v3096 = vld [vmem:[#allocation2 + $0xa0] sm:$0xff]
    %v3097 = vld [vmem:[#allocation2 + $0xa8] sm:$0xff]
    %v3098 = vld [vmem:[#allocation2 + $0xb0] sm:$0xff]
    %v3099 = vld [vmem:[#allocation2 + $0xb8] sm:$0xff]
    %v3100 = vld [vmem:[#allocation2 + $0xc0] sm:$0xff]
    %v3101 = vld [vmem:[#allocation2 + $0xc8] sm:$0xff]
    %v3102 = vld [vmem:[#allocation2 + $0xd0] sm:$0xff]
    %v3103 = vld [vmem:[#allocation2 + $0xd8] sm:$0xff]
    %v3104 = vld [vmem:[#allocation2 + $0xe0] sm:$0xff]
    %v3105 = vld [vmem:[#allocation2 + $0xe8] sm:$0xff]
    %v3106 = vld [vmem:[#allocation2 + $0xf0] sm:$0xff]
    %v3107 = vld [vmem:[#allocation2 + $0xf8] sm:$0xff]
    %v3108 = vld [vmem:[#allocation2 + $0x100] sm:$0xff]
    %v3109 = vld [vmem:[#allocation2 + $0x108] sm:$0xff]
    %v3110 = vld [vmem:[#allocation2 + $0x110] sm:$0xff]
    %v3111 = vld [vmem:[#allocation2 + $0x118] sm:$0xff]
    %v3112 = vld [vmem:[#allocation2 + $0x120] sm:$0xff]
    %v3113 = vld [vmem:[#allocation2 + $0x128] sm:$0xff]
    %v3114 = vld [vmem:[#allocation2 + $0x130] sm:$0xff]
    %v3115 = vld [vmem:[#allocation2 + $0x138] sm:$0xff]
    %v3116 = vld [vmem:[#allocation2 + $0x140] sm:$0xff]
    %v3117 = vld [vmem:[#allocation2 + $0x148] sm:$0xff]
    %v3118 = vld [vmem:[#allocation2 + $0x150] sm:$0xff]
    %v3119 = vld [vmem:[#allocation2 + $0x158] sm:$0xff]
    %v3120 = vld [vmem:[#allocation2 + $0x160] sm:$0xff]
    %v3121 = vld [vmem:[#allocation2 + $0x168] sm:$0xff]
    %v3122 = vld [vmem:[#allocation2 + $0x170] sm:$0xff]
    %v3123 = vld [vmem:[#allocation2 + $0x178] sm:$0xff]
    %v3124 = vld [vmem:[#allocation2 + $0x180] sm:$0xff]
    %v3125 = vld [vmem:[#allocation2 + $0x188] sm:$0xff]
    %v3126 = vld [vmem:[#allocation2 + $0x190] sm:$0xff]
    %v3127 = vld [vmem:[#allocation2 + $0x198] sm:$0xff]
    %v3128 = vld [vmem:[#allocation2 + $0x1a0] sm:$0xff]
    %v3129 = vld [vmem:[#allocation2 + $0x1a8] sm:$0xff]
    %v3130 = vld [vmem:[#allocation2 + $0x1b0] sm:$0xff]
    %v3131 = vld [vmem:[#allocation2 + $0x1b8] sm:$0xff]
    %v3132 = vld [vmem:[#allocation2 + $0x1c0] sm:$0xff]
    %v3133 = vld [vmem:[#allocation2 + $0x1c8] sm:$0xff]
    %v3134 = vld [vmem:[#allocation2 + $0x1d0] sm:$0xff]
    %v3135 = vld [vmem:[#allocation2 + $0x1d8] sm:$0xff]
    %v3136 = vld [vmem:[#allocation2 + $0x1e0] sm:$0xff]
    %v3137 = vld [vmem:[#allocation2 + $0x1e8] sm:$0xff]
    %v3138 = vld [vmem:[#allocation2 + $0x1f0] sm:$0xff]
    %v3139 = vld [vmem:[#allocation2 + $0x1f8] sm:$0xff]
    %v3141 = vrot.slane %v3042, 2
    %3143 = vmatprep.subr.mxu0 %v3137
    %3144 = vmatpush1.msra.mxu0 %v3136
    %3145 = vmatprep.subr.mxu0 %v3133
    %3146 = vmatpush1.msra.mxu0 %v3132
    %3147 = vmatprep.subr.mxu0 %v3129
    %3148 = vmatpush1.msra.mxu0 %v3128
    %3149 = vmatprep.subr.mxu0 %v3125
    %3150 = vmatpush1.msra.mxu0 %v3124
    %3151 = vmatprep.subr.mxu0 %v3121
    %3152 = vmatpush1.msra.mxu0 %v3120
    %3153 = vmatprep.subr.mxu0 %v3117
    %3154 = vmatpush1.msra.mxu0 %v3116
    %3155 = vmatprep.subr.mxu0 %v3113
    %3156 = vmatpush1.msra.mxu0 %v3112
    %3157 = vmatprep.subr.mxu0 %v3109
    %3158 = vmatpush1.msra.mxu0 %v3108
    %3159 = vmatprep.subr.mxu0 %v3105
    %3160 = vmatpush1.msra.mxu0 %v3104
    %3161 = vmatprep.subr.mxu0 %v3101
    %3162 = vmatpush1.msra.mxu0 %v3100
    %3163 = vmatprep.subr.mxu0 %v3097
    %3164 = vmatpush1.msra.mxu0 %v3096
    %3165 = vmatprep.subr.mxu0 %v3093
    %3166 = vmatpush1.msra.mxu0 %v3092
    %3167 = vmatprep.subr.mxu0 %v3089
    %3168 = vmatpush1.msra.mxu0 %v3088
    %3169 = vmatprep.subr.mxu0 %v3085
    %3170 = vmatpush1.msra.mxu0 %v3084
    %3171 = vmatprep.subr.mxu0 %v3081
    %3172 = vmatpush1.msra.mxu0 %v3080
    %3173 = vmatprep.subr.mxu0 %v3077
    %3174 = vmatpush1.msra.mxu0 %v3076
    %3175 = vmatprep.subr.mxu0 0.0
    %3176 = vmatpush2.msra.mxu0 0.0
    %3177 = vmatprep.subr.mxu0 0.0
    %3178 = vmatpush2.msra.mxu0 0.0
    %3179 = vmatprep.subr.mxu0 0.0
    %3180 = vmatpush2.msra.mxu0 0.0
    %3181 = vmatprep.subr.mxu0 0.0
    %3182 = vmatpush2.msra.mxu0 0.0
    %3183 = vmatprep.subr.mxu0 0.0
    %3184 = vmatpush2.msra.mxu0 0.0
    %3185 = vmatprep.subr.mxu0 0.0
    %3186 = vmatpush2.msra.mxu0 0.0
    %3187 = vmatprep.subr.mxu0 0.0
    %3188 = vmatpush2.msra.mxu0 0.0
    %3189 = vmatprep.subr.mxu0 0.0
    %3190 = vmatpush2.msra.mxu0 0.0
    %3191 = vmatprep.subr.mxu0 0.0
    %3192 = vmatpush2.msra.mxu0 0.0
    %3193 = vmatprep.subr.mxu0 0.0
    %3194 = vmatpush2.msra.mxu0 0.0
    %3195 = vmatprep.subr.mxu0 0.0
    %3196 = vmatpush2.msra.mxu0 0.0
    %3197 = vmatprep.subr.mxu0 0.0
    %3198 = vmatpush2.msra.mxu0 0.0
    %3199 = vmatprep.subr.mxu0 0.0
    %3200 = vmatpush2.msra.mxu0 0.0
    %3201 = vmatprep.subr.mxu0 0.0
    %3202 = vmatpush2.msra.mxu0 0.0
    %3203 = vmatprep.subr.mxu0 0.0
    %3204 = vmatpush2.msra.mxu0 0.0
    %3205 = vmatprep.subr.mxu0 0.0
    %3206 = vmatpush2.msra.mxu0 0.0
    %3207 = vmatprep.mubr.f32.mxu0 0.0
    %3208 = vmatmul.mubr.f32.gmra.mxu0 %v3141
    %v3209 = vpop.f32.mrf.mxu0
    %v3210 = vadd.f32 0.0, %v3209
    %v3211 = vpop.f32.mrf.mxu0
    %v3212 = vadd.f32 0.0, %v3211
    %3213 = vdwg.mxu0
    %3214 = vmatprep.subr.mxu0 %v3139
    %3215 = vmatpush1.msra.mxu0 %v3138
    %3216 = vmatprep.subr.mxu0 %v3135
    %3217 = vmatpush1.msra.mxu0 %v3134
    %3218 = vmatprep.subr.mxu0 %v3131
    %3219 = vmatpush1.msra.mxu0 %v3130
    %3220 = vmatprep.subr.mxu0 %v3127
    %3221 = vmatpush1.msra.mxu0 %v3126
    %3222 = vmatprep.subr.mxu0 %v3123
    %3223 = vmatpush1.msra.mxu0 %v3122
    %3224 = vmatprep.subr.mxu0 %v3119
    %3225 = vmatpush1.msra.mxu0 %v3118
    %3226 = vmatprep.subr.mxu0 %v3115
    %3227 = vmatpush1.msra.mxu0 %v3114
    %3228 = vmatprep.subr.mxu0 %v3111
    %3229 = vmatpush1.msra.mxu0 %v3110
    %3230 = vmatprep.subr.mxu0 %v3107
    %3231 = vmatpush1.msra.mxu0 %v3106
    %3232 = vmatprep.subr.mxu0 %v3103
    %3233 = vmatpush1.msra.mxu0 %v3102
    %3234 = vmatprep.subr.mxu0 %v3099
    %3235 = vmatpush1.msra.mxu0 %v3098
    %3236 = vmatprep.subr.mxu0 %v3095
    %3237 = vmatpush1.msra.mxu0 %v3094
    %3238 = vmatprep.subr.mxu0 %v3091
    %3239 = vmatpush1.msra.mxu0 %v3090
    %3240 = vmatprep.subr.mxu0 %v3087
    %3241 = vmatpush1.msra.mxu0 %v3086
    %3242 = vmatprep.subr.mxu0 %v3083
    %3243 = vmatpush1.msra.mxu0 %v3082
    %3244 = vmatprep.subr.mxu0 %v3079
    %3245 = vmatpush1.msra.mxu0 %v3078
    %3246 = vmatprep.subr.mxu0 0.0
    %3247 = vmatpush2.msra.mxu0 0.0
    %3248 = vmatprep.subr.mxu0 0.0
    %3249 = vmatpush2.msra.mxu0 0.0
    %3250 = vmatprep.subr.mxu0 0.0
    %3251 = vmatpush2.msra.mxu0 0.0
    %3252 = vmatprep.subr.mxu0 0.0
    %3253 = vmatpush2.msra.mxu0 0.0
    %3254 = vmatprep.subr.mxu0 0.0
    %3255 = vmatpush2.msra.mxu0 0.0
    %3256 = vmatprep.subr.mxu0 0.0
    %3257 = vmatpush2.msra.mxu0 0.0
    %3258 = vmatprep.subr.mxu0 0.0
    %3259 = vmatpush2.msra.mxu0 0.0
    %3260 = vmatprep.subr.mxu0 0.0
    %3261 = vmatpush2.msra.mxu0 0.0
    %3262 = vmatprep.subr.mxu0 0.0
    %3263 = vmatpush2.msra.mxu0 0.0
    %3264 = vmatprep.subr.mxu0 0.0
    %3265 = vmatpush2.msra.mxu0 0.0
    %3266 = vmatprep.subr.mxu0 0.0
    %3267 = vmatpush2.msra.mxu0 0.0
    %3268 = vmatprep.subr.mxu0 0.0
    %3269 = vmatpush2.msra.mxu0 0.0
    %3270 = vmatprep.subr.mxu0 0.0
    %3271 = vmatpush2.msra.mxu0 0.0
    %3272 = vmatprep.subr.mxu0 0.0
    %3273 = vmatpush2.msra.mxu0 0.0
    %3274 = vmatprep.subr.mxu0 0.0
    %3275 = vmatpush2.msra.mxu0 0.0
    %3276 = vmatprep.subr.mxu0 0.0
    %3277 = vmatpush2.msra.mxu0 0.0
    %3278 = vmatprep.mubr.f32.mxu0 0.0
    %3279 = vmatmul.mubr.f32.gmra.mxu0 %v3141
    %v3280 = vpop.f32.mrf.mxu0
    %v3281 = vadd.f32 0.0, %v3280
    %v3282 = vpop.f32.mrf.mxu0
    %v3283 = vadd.f32 0.0, %v3282
    %3284 = vdwg.mxu0
    %v3289 = vrot.slane %v3210, 4
    %v3290 = vrot.slane %v3212, 4
    %v3291 = vrot.slane %v3281, 4
    %v3292 = vrot.slane %v3283, 4
    %v3297 = vadd.f32 %v3072, %v3289
    %v3298 = vadd.f32 %v3073, %v3290
    %v3299 = vadd.f32 %v3074, %v3291
    %v3300 = vadd.f32 %v3075, %v3292
    %v3301 = vld [vmem:[%s1] sm:$0xc]
    %v3302 = vld [vmem:[%s1 + $0x8] sm:$0xc]
    %v3303 = vld [vmem:[%s1 + $0x10] sm:$0xc]
    %v3304 = vld [vmem:[%s1 + $0x18] sm:$0xc]
    %v3305 = vld [vmem:[#allocation4] sm:$0xff]
    %v3306 = vld [vmem:[#allocation4 + $0x8] sm:$0xff]
    %v3307 = vld [vmem:[#allocation4 + $0x10] sm:$0xff]
    %v3308 = vld [vmem:[#allocation4 + $0x18] sm:$0xff]
    %v3309 = vld [vmem:[#allocation4 + $0x20] sm:$0xff]
    %v3310 = vld [vmem:[#allocation4 + $0x28] sm:$0xff]
    %v3311 = vld [vmem:[#allocation4 + $0x30] sm:$0xff]
    %v3312 = vld [vmem:[#allocation4 + $0x38] sm:$0xff]
    %v3313 = vld [vmem:[#allocation4 + $0x40] sm:$0xff]
    %v3314 = vld [vmem:[#allocation4 + $0x48] sm:$0xff]
    %v3315 = vld [vmem:[#allocation4 + $0x50] sm:$0xff]
    %v3316 = vld [vmem:[#allocation4 + $0x58] sm:$0xff]
    %v3317 = vld [vmem:[#allocation4 + $0x60] sm:$0xff]
    %v3318 = vld [vmem:[#allocation4 + $0x68] sm:$0xff]
    %v3319 = vld [vmem:[#allocation4 + $0x70] sm:$0xff]
    %v3320 = vld [vmem:[#allocation4 + $0x78] sm:$0xff]
    %v3321 = vld [vmem:[#allocation4 + $0x80] sm:$0xff]
    %v3322 = vld [vmem:[#allocation4 + $0x88] sm:$0xff]
    %v3323 = vld [vmem:[#allocation4 + $0x90] sm:$0xff]
    %v3324 = vld [vmem:[#allocation4 + $0x98] sm:$0xff]
    %v3325 = vld [vmem:[#allocation4 + $0xa0] sm:$0xff]
    %v3326 = vld [vmem:[#allocation4 + $0xa8] sm:$0xff]
    %v3327 = vld [vmem:[#allocation4 + $0xb0] sm:$0xff]
    %v3328 = vld [vmem:[#allocation4 + $0xb8] sm:$0xff]
    %v3329 = vld [vmem:[#allocation4 + $0xc0] sm:$0xff]
    %v3330 = vld [vmem:[#allocation4 + $0xc8] sm:$0xff]
    %v3331 = vld [vmem:[#allocation4 + $0xd0] sm:$0xff]
    %v3332 = vld [vmem:[#allocation4 + $0xd8] sm:$0xff]
    %v3333 = vld [vmem:[#allocation4 + $0xe0] sm:$0xff]
    %v3334 = vld [vmem:[#allocation4 + $0xe8] sm:$0xff]
    %v3335 = vld [vmem:[#allocation4 + $0xf0] sm:$0xff]
    %v3336 = vld [vmem:[#allocation4 + $0xf8] sm:$0xff]
    %v3337 = vld [vmem:[#allocation4 + $0x100] sm:$0xff]
    %v3338 = vld [vmem:[#allocation4 + $0x108] sm:$0xff]
    %v3339 = vld [vmem:[#allocation4 + $0x110] sm:$0xff]
    %v3340 = vld [vmem:[#allocation4 + $0x118] sm:$0xff]
    %v3341 = vld [vmem:[#allocation4 + $0x120] sm:$0xff]
    %v3342 = vld [vmem:[#allocation4 + $0x128] sm:$0xff]
    %v3343 = vld [vmem:[#allocation4 + $0x130] sm:$0xff]
    %v3344 = vld [vmem:[#allocation4 + $0x138] sm:$0xff]
    %v3345 = vld [vmem:[#allocation4 + $0x140] sm:$0xff]
    %v3346 = vld [vmem:[#allocation4 + $0x148] sm:$0xff]
    %v3347 = vld [vmem:[#allocation4 + $0x150] sm:$0xff]
    %v3348 = vld [vmem:[#allocation4 + $0x158] sm:$0xff]
    %v3349 = vld [vmem:[#allocation4 + $0x160] sm:$0xff]
    %v3350 = vld [vmem:[#allocation4 + $0x168] sm:$0xff]
    %v3351 = vld [vmem:[#allocation4 + $0x170] sm:$0xff]
    %v3352 = vld [vmem:[#allocation4 + $0x178] sm:$0xff]
    %v3353 = vld [vmem:[#allocation4 + $0x180] sm:$0xff]
    %v3354 = vld [vmem:[#allocation4 + $0x188] sm:$0xff]
    %v3355 = vld [vmem:[#allocation4 + $0x190] sm:$0xff]
    %v3356 = vld [vmem:[#allocation4 + $0x198] sm:$0xff]
    %v3357 = vld [vmem:[#allocation4 + $0x1a0] sm:$0xff]
    %v3358 = vld [vmem:[#allocation4 + $0x1a8] sm:$0xff]
    %v3359 = vld [vmem:[#allocation4 + $0x1b0] sm:$0xff]
    %v3360 = vld [vmem:[#allocation4 + $0x1b8] sm:$0xff]
    %v3361 = vld [vmem:[#allocation4 + $0x1c0] sm:$0xff]
    %v3362 = vld [vmem:[#allocation4 + $0x1c8] sm:$0xff]
    %v3363 = vld [vmem:[#allocation4 + $0x1d0] sm:$0xff]
    %v3364 = vld [vmem:[#allocation4 + $0x1d8] sm:$0xff]
    %v3365 = vld [vmem:[#allocation4 + $0x1e0] sm:$0xff]
    %v3366 = vld [vmem:[#allocation4 + $0x1e8] sm:$0xff]
    %v3367 = vld [vmem:[#allocation4 + $0x1f0] sm:$0xff]
    %v3368 = vld [vmem:[#allocation4 + $0x1f8] sm:$0xff]
    %v3370 = vrot.slane %v3069, 4
    %3372 = vmatprep.subr.mxu0 %v3366
    %3373 = vmatpush1.msra.mxu0 %v3365
    %3374 = vmatprep.subr.mxu0 %v3362
    %3375 = vmatpush1.msra.mxu0 %v3361
    %3376 = vmatprep.subr.mxu0 %v3358
    %3377 = vmatpush1.msra.mxu0 %v3357
    %3378 = vmatprep.subr.mxu0 %v3354
    %3379 = vmatpush1.msra.mxu0 %v3353
    %3380 = vmatprep.subr.mxu0 %v3350
    %3381 = vmatpush1.msra.mxu0 %v3349
    %3382 = vmatprep.subr.mxu0 %v3346
    %3383 = vmatpush1.msra.mxu0 %v3345
    %3384 = vmatprep.subr.mxu0 %v3342
    %3385 = vmatpush1.msra.mxu0 %v3341
    %3386 = vmatprep.subr.mxu0 %v3338
    %3387 = vmatpush1.msra.mxu0 %v3337
    %3388 = vmatprep.subr.mxu0 %v3334
    %3389 = vmatpush1.msra.mxu0 %v3333
    %3390 = vmatprep.subr.mxu0 %v3330
    %3391 = vmatpush1.msra.mxu0 %v3329
    %3392 = vmatprep.subr.mxu0 %v3326
    %3393 = vmatpush1.msra.mxu0 %v3325
    %3394 = vmatprep.subr.mxu0 %v3322
    %3395 = vmatpush1.msra.mxu0 %v3321
    %3396 = vmatprep.subr.mxu0 %v3318
    %3397 = vmatpush1.msra.mxu0 %v3317
    %3398 = vmatprep.subr.mxu0 %v3314
    %3399 = vmatpush1.msra.mxu0 %v3313
    %3400 = vmatprep.subr.mxu0 %v3310
    %3401 = vmatpush1.msra.mxu0 %v3309
    %3402 = vmatprep.subr.mxu0 %v3306
    %3403 = vmatpush1.msra.mxu0 %v3305
    %3404 = vmatprep.subr.mxu0 0.0
    %3405 = vmatpush2.msra.mxu0 0.0
    %3406 = vmatprep.subr.mxu0 0.0
    %3407 = vmatpush2.msra.mxu0 0.0
    %3408 = vmatprep.subr.mxu0 0.0
    %3409 = vmatpush2.msra.mxu0 0.0
    %3410 = vmatprep.subr.mxu0 0.0
    %3411 = vmatpush2.msra.mxu0 0.0
    %3412 = vmatprep.subr.mxu0 0.0
    %3413 = vmatpush2.msra.mxu0 0.0
    %3414 = vmatprep.subr.mxu0 0.0
    %3415 = vmatpush2.msra.mxu0 0.0
    %3416 = vmatprep.subr.mxu0 0.0
    %3417 = vmatpush2.msra.mxu0 0.0
    %3418 = vmatprep.subr.mxu0 0.0
    %3419 = vmatpush2.msra.mxu0 0.0
    %3420 = vmatprep.subr.mxu0 0.0
    %3421 = vmatpush2.msra.mxu0 0.0
    %3422 = vmatprep.subr.mxu0 0.0
    %3423 = vmatpush2.msra.mxu0 0.0
    %3424 = vmatprep.subr.mxu0 0.0
    %3425 = vmatpush2.msra.mxu0 0.0
    %3426 = vmatprep.subr.mxu0 0.0
    %3427 = vmatpush2.msra.mxu0 0.0
    %3428 = vmatprep.subr.mxu0 0.0
    %3429 = vmatpush2.msra.mxu0 0.0
    %3430 = vmatprep.subr.mxu0 0.0
    %3431 = vmatpush2.msra.mxu0 0.0
    %3432 = vmatprep.subr.mxu0 0.0
    %3433 = vmatpush2.msra.mxu0 0.0
    %3434 = vmatprep.subr.mxu0 0.0
    %3435 = vmatpush2.msra.mxu0 0.0
    %3436 = vmatprep.mubr.f32.mxu0 0.0
    %3437 = vmatmul.mubr.f32.gmra.mxu0 %v3370
    %v3438 = vpop.f32.mrf.mxu0
    %v3439 = vadd.f32 0.0, %v3438
    %v3440 = vpop.f32.mrf.mxu0
    %v3441 = vadd.f32 0.0, %v3440
    %3442 = vdwg.mxu0
    %3443 = vmatprep.subr.mxu0 %v3368
    %3444 = vmatpush1.msra.mxu0 %v3367
    %3445 = vmatprep.subr.mxu0 %v3364
    %3446 = vmatpush1.msra.mxu0 %v3363
    %3447 = vmatprep.subr.mxu0 %v3360
    %3448 = vmatpush1.msra.mxu0 %v3359
    %3449 = vmatprep.subr.mxu0 %v3356
    %3450 = vmatpush1.msra.mxu0 %v3355
    %3451 = vmatprep.subr.mxu0 %v3352
    %3452 = vmatpush1.msra.mxu0 %v3351
    %3453 = vmatprep.subr.mxu0 %v3348
    %3454 = vmatpush1.msra.mxu0 %v3347
    %3455 = vmatprep.subr.mxu0 %v3344
    %3456 = vmatpush1.msra.mxu0 %v3343
    %3457 = vmatprep.subr.mxu0 %v3340
    %3458 = vmatpush1.msra.mxu0 %v3339
    %3459 = vmatprep.subr.mxu0 %v3336
    %3460 = vmatpush1.msra.mxu0 %v3335
    %3461 = vmatprep.subr.mxu0 %v3332
    %3462 = vmatpush1.msra.mxu0 %v3331
    %3463 = vmatprep.subr.mxu0 %v3328
    %3464 = vmatpush1.msra.mxu0 %v3327
    %3465 = vmatprep.subr.mxu0 %v3324
    %3466 = vmatpush1.msra.mxu0 %v3323
    %3467 = vmatprep.subr.mxu0 %v3320
    %3468 = vmatpush1.msra.mxu0 %v3319
    %3469 = vmatprep.subr.mxu0 %v3316
    %3470 = vmatpush1.msra.mxu0 %v3315
    %3471 = vmatprep.subr.mxu0 %v3312
    %3472 = vmatpush1.msra.mxu0 %v3311
    %3473 = vmatprep.subr.mxu0 %v3308
    %3474 = vmatpush1.msra.mxu0 %v3307
    %3475 = vmatprep.subr.mxu0 0.0
    %3476 = vmatpush2.msra.mxu0 0.0
    %3477 = vmatprep.subr.mxu0 0.0
    %3478 = vmatpush2.msra.mxu0 0.0
    %3479 = vmatprep.subr.mxu0 0.0
    %3480 = vmatpush2.msra.mxu0 0.0
    %3481 = vmatprep.subr.mxu0 0.0
    %3482 = vmatpush2.msra.mxu0 0.0
    %3483 = vmatprep.subr.mxu0 0.0
    %3484 = vmatpush2.msra.mxu0 0.0
    %3485 = vmatprep.subr.mxu0 0.0
    %3486 = vmatpush2.msra.mxu0 0.0
    %3487 = vmatprep.subr.mxu0 0.0
    %3488 = vmatpush2.msra.mxu0 0.0
    %3489 = vmatprep.subr.mxu0 0.0
    %3490 = vmatpush2.msra.mxu0 0.0
    %3491 = vmatprep.subr.mxu0 0.0
    %3492 = vmatpush2.msra.mxu0 0.0
    %3493 = vmatprep.subr.mxu0 0.0
    %3494 = vmatpush2.msra.mxu0 0.0
    %3495 = vmatprep.subr.mxu0 0.0
    %3496 = vmatpush2.msra.mxu0 0.0
    %3497 = vmatprep.subr.mxu0 0.0
    %3498 = vmatpush2.msra.mxu0 0.0
    %3499 = vmatprep.subr.mxu0 0.0
    %3500 = vmatpush2.msra.mxu0 0.0
    %3501 = vmatprep.subr.mxu0 0.0
    %3502 = vmatpush2.msra.mxu0 0.0
    %3503 = vmatprep.subr.mxu0 0.0
    %3504 = vmatpush2.msra.mxu0 0.0
    %3505 = vmatprep.subr.mxu0 0.0
    %3506 = vmatpush2.msra.mxu0 0.0
    %3507 = vmatprep.mubr.f32.mxu0 0.0
    %3508 = vmatmul.mubr.f32.gmra.mxu0 %v3370
    %v3509 = vpop.f32.mrf.mxu0
    %v3510 = vadd.f32 0.0, %v3509
    %v3511 = vpop.f32.mrf.mxu0
    %v3512 = vadd.f32 0.0, %v3511
    %3513 = vdwg.mxu0
    %v3518 = vrot.slane %v3439, 6
    %v3519 = vrot.slane %v3441, 6
    %v3520 = vrot.slane %v3510, 6
    %v3521 = vrot.slane %v3512, 6
    %v3526 = vadd.f32 %v3301, %v3518
    %v3527 = vadd.f32 %v3302, %v3519
    %v3528 = vadd.f32 %v3303, %v3520
    %v3529 = vadd.f32 %v3304, %v3521
    %v3530 = vxor.u32 %v3297, 2147483648
    %v3531 = vmul.f32 %v3530, 1.442695
    %v3532 = vpow.pop %v3531
    %v3533 = vadd.f32 %v3532, 1.0
    %v3534 = vrcp.pop %v3533
    %v3535 = vmul.f32 1.0, %v3534
    %v3536 = vxor.u32 %v3298, 2147483648
    %v3537 = vmul.f32 %v3536, 1.442695
    %v3538 = vpow.pop %v3537
    %v3539 = vadd.f32 %v3538, 1.0
    %v3540 = vrcp.pop %v3539
    %v3541 = vmul.f32 1.0, %v3540
    %v3542 = vtanh.pop %v3299
    %v3543 = vxor.u32 %v3300, 2147483648
    %v3544 = vmul.f32 %v3543, 1.442695
    %v3545 = vpow.pop %v3544
    %v3546 = vadd.f32 %v3545, 1.0
    %v3547 = vrcp.pop %v3546
    %v3548 = vmul.f32 1.0, %v3547
    %v3550 = vrot.slane %v3040, 6
    %v3552 = vmul.f32 %v3541, %v3550
    %v3553 = vmul.f32 %v3535, %v3542
    %v3554 = vadd.f32 %v3552, %v3553
    %v3555 = vtanh.pop %v3554
    %v3556 = vmul.f32 %v3548, %v3555
    %v3557 = vxor.u32 %v3526, 2147483648
    %v3558 = vmul.f32 %v3557, 1.442695
    %v3559 = vpow.pop %v3558
    %v3560 = vadd.f32 %v3559, 1.0
    %v3561 = vrcp.pop %v3560
    %v3562 = vmul.f32 1.0, %v3561
    %v3563 = vxor.u32 %v3527, 2147483648
    %v3564 = vmul.f32 %v3563, 1.442695
    %v3565 = vpow.pop %v3564
    %v3566 = vadd.f32 %v3565, 1.0
    %v3567 = vrcp.pop %v3566
    %v3568 = vmul.f32 1.0, %v3567
    %v3569 = vtanh.pop %v3528
    %v3570 = vxor.u32 %v3529, 2147483648
    %v3571 = vmul.f32 %v3570, 1.442695
    %v3572 = vpow.pop %v3571
    %v3573 = vadd.f32 %v3572, 1.0
    %v3574 = vrcp.pop %v3573
    %v3575 = vmul.f32 1.0, %v3574
    %v3577 = vrot.slane %v3067, 2
    %v3579 = vmul.f32 %v3568, %v3577
    %v3580 = vmul.f32 %v3562, %v3569
    %v3581 = vadd.f32 %v3579, %v3580
    %v3582 = vtanh.pop %v3581
    %v3583 = vmul.f32 %v3575, %v3582
    %3584 = vst [vmem:[%s4 + $0x10] sm:$0x30] %v3556
    %3585 = vst [vmem:[%s4 + $0x8] sm:$0xc] %v3583
    %v3586 = vld [vmem:[%s0 + $0x20] sm:$0xc0]
    %v3587 = vld [vmem:[%s0 + $0x28] sm:$0xc0]
    %v3588 = vld [vmem:[%s0 + $0x30] sm:$0xc0]
    %v3589 = vld [vmem:[%s0 + $0x38] sm:$0xc0]
    %v3590 = vld [vmem:[#allocation2] sm:$0xff]
    %v3591 = vld [vmem:[#allocation2 + $0x8] sm:$0xff]
    %v3592 = vld [vmem:[#allocation2 + $0x10] sm:$0xff]
    %v3593 = vld [vmem:[#allocation2 + $0x18] sm:$0xff]
    %v3594 = vld [vmem:[#allocation2 + $0x20] sm:$0xff]
    %v3595 = vld [vmem:[#allocation2 + $0x28] sm:$0xff]
    %v3596 = vld [vmem:[#allocation2 + $0x30] sm:$0xff]
    %v3597 = vld [vmem:[#allocation2 + $0x38] sm:$0xff]
    %v3598 = vld [vmem:[#allocation2 + $0x40] sm:$0xff]
    %v3599 = vld [vmem:[#allocation2 + $0x48] sm:$0xff]
    %v3600 = vld [vmem:[#allocation2 + $0x50] sm:$0xff]
    %v3601 = vld [vmem:[#allocation2 + $0x58] sm:$0xff]
    %v3602 = vld [vmem:[#allocation2 + $0x60] sm:$0xff]
    %v3603 = vld [vmem:[#allocation2 + $0x68] sm:$0xff]
    %v3604 = vld [vmem:[#allocation2 + $0x70] sm:$0xff]
    %v3605 = vld [vmem:[#allocation2 + $0x78] sm:$0xff]
    %v3606 = vld [vmem:[#allocation2 + $0x80] sm:$0xff]
    %v3607 = vld [vmem:[#allocation2 + $0x88] sm:$0xff]
    %v3608 = vld [vmem:[#allocation2 + $0x90] sm:$0xff]
    %v3609 = vld [vmem:[#allocation2 + $0x98] sm:$0xff]
    %v3610 = vld [vmem:[#allocation2 + $0xa0] sm:$0xff]
    %v3611 = vld [vmem:[#allocation2 + $0xa8] sm:$0xff]
    %v3612 = vld [vmem:[#allocation2 + $0xb0] sm:$0xff]
    %v3613 = vld [vmem:[#allocation2 + $0xb8] sm:$0xff]
    %v3614 = vld [vmem:[#allocation2 + $0xc0] sm:$0xff]
    %v3615 = vld [vmem:[#allocation2 + $0xc8] sm:$0xff]
    %v3616 = vld [vmem:[#allocation2 + $0xd0] sm:$0xff]
    %v3617 = vld [vmem:[#allocation2 + $0xd8] sm:$0xff]
    %v3618 = vld [vmem:[#allocation2 + $0xe0] sm:$0xff]
    %v3619 = vld [vmem:[#allocation2 + $0xe8] sm:$0xff]
    %v3620 = vld [vmem:[#allocation2 + $0xf0] sm:$0xff]
    %v3621 = vld [vmem:[#allocation2 + $0xf8] sm:$0xff]
    %v3622 = vld [vmem:[#allocation2 + $0x100] sm:$0xff]
    %v3623 = vld [vmem:[#allocation2 + $0x108] sm:$0xff]
    %v3624 = vld [vmem:[#allocation2 + $0x110] sm:$0xff]
    %v3625 = vld [vmem:[#allocation2 + $0x118] sm:$0xff]
    %v3626 = vld [vmem:[#allocation2 + $0x120] sm:$0xff]
    %v3627 = vld [vmem:[#allocation2 + $0x128] sm:$0xff]
    %v3628 = vld [vmem:[#allocation2 + $0x130] sm:$0xff]
    %v3629 = vld [vmem:[#allocation2 + $0x138] sm:$0xff]
    %v3630 = vld [vmem:[#allocation2 + $0x140] sm:$0xff]
    %v3631 = vld [vmem:[#allocation2 + $0x148] sm:$0xff]
    %v3632 = vld [vmem:[#allocation2 + $0x150] sm:$0xff]
    %v3633 = vld [vmem:[#allocation2 + $0x158] sm:$0xff]
    %v3634 = vld [vmem:[#allocation2 + $0x160] sm:$0xff]
    %v3635 = vld [vmem:[#allocation2 + $0x168] sm:$0xff]
    %v3636 = vld [vmem:[#allocation2 + $0x170] sm:$0xff]
    %v3637 = vld [vmem:[#allocation2 + $0x178] sm:$0xff]
    %v3638 = vld [vmem:[#allocation2 + $0x180] sm:$0xff]
    %v3639 = vld [vmem:[#allocation2 + $0x188] sm:$0xff]
    %v3640 = vld [vmem:[#allocation2 + $0x190] sm:$0xff]
    %v3641 = vld [vmem:[#allocation2 + $0x198] sm:$0xff]
    %v3642 = vld [vmem:[#allocation2 + $0x1a0] sm:$0xff]
    %v3643 = vld [vmem:[#allocation2 + $0x1a8] sm:$0xff]
    %v3644 = vld [vmem:[#allocation2 + $0x1b0] sm:$0xff]
    %v3645 = vld [vmem:[#allocation2 + $0x1b8] sm:$0xff]
    %v3646 = vld [vmem:[#allocation2 + $0x1c0] sm:$0xff]
    %v3647 = vld [vmem:[#allocation2 + $0x1c8] sm:$0xff]
    %v3648 = vld [vmem:[#allocation2 + $0x1d0] sm:$0xff]
    %v3649 = vld [vmem:[#allocation2 + $0x1d8] sm:$0xff]
    %v3650 = vld [vmem:[#allocation2 + $0x1e0] sm:$0xff]
    %v3651 = vld [vmem:[#allocation2 + $0x1e8] sm:$0xff]
    %v3652 = vld [vmem:[#allocation2 + $0x1f0] sm:$0xff]
    %v3653 = vld [vmem:[#allocation2 + $0x1f8] sm:$0xff]
    %v3655 = vrot.slane %v3556, 4
    %3657 = vmatprep.subr.mxu0 %v3651
    %3658 = vmatpush1.msra.mxu0 %v3650
    %3659 = vmatprep.subr.mxu0 %v3647
    %3660 = vmatpush1.msra.mxu0 %v3646
    %3661 = vmatprep.subr.mxu0 %v3643
    %3662 = vmatpush1.msra.mxu0 %v3642
    %3663 = vmatprep.subr.mxu0 %v3639
    %3664 = vmatpush1.msra.mxu0 %v3638
    %3665 = vmatprep.subr.mxu0 %v3635
    %3666 = vmatpush1.msra.mxu0 %v3634
    %3667 = vmatprep.subr.mxu0 %v3631
    %3668 = vmatpush1.msra.mxu0 %v3630
    %3669 = vmatprep.subr.mxu0 %v3627
    %3670 = vmatpush1.msra.mxu0 %v3626
    %3671 = vmatprep.subr.mxu0 %v3623
    %3672 = vmatpush1.msra.mxu0 %v3622
    %3673 = vmatprep.subr.mxu0 %v3619
    %3674 = vmatpush1.msra.mxu0 %v3618
    %3675 = vmatprep.subr.mxu0 %v3615
    %3676 = vmatpush1.msra.mxu0 %v3614
    %3677 = vmatprep.subr.mxu0 %v3611
    %3678 = vmatpush1.msra.mxu0 %v3610
    %3679 = vmatprep.subr.mxu0 %v3607
    %3680 = vmatpush1.msra.mxu0 %v3606
    %3681 = vmatprep.subr.mxu0 %v3603
    %3682 = vmatpush1.msra.mxu0 %v3602
    %3683 = vmatprep.subr.mxu0 %v3599
    %3684 = vmatpush1.msra.mxu0 %v3598
    %3685 = vmatprep.subr.mxu0 %v3595
    %3686 = vmatpush1.msra.mxu0 %v3594
    %3687 = vmatprep.subr.mxu0 %v3591
    %3688 = vmatpush1.msra.mxu0 %v3590
    %3689 = vmatprep.subr.mxu0 0.0
    %3690 = vmatpush2.msra.mxu0 0.0
    %3691 = vmatprep.subr.mxu0 0.0
    %3692 = vmatpush2.msra.mxu0 0.0
    %3693 = vmatprep.subr.mxu0 0.0
    %3694 = vmatpush2.msra.mxu0 0.0
    %3695 = vmatprep.subr.mxu0 0.0
    %3696 = vmatpush2.msra.mxu0 0.0
    %3697 = vmatprep.subr.mxu0 0.0
    %3698 = vmatpush2.msra.mxu0 0.0
    %3699 = vmatprep.subr.mxu0 0.0
    %3700 = vmatpush2.msra.mxu0 0.0
    %3701 = vmatprep.subr.mxu0 0.0
    %3702 = vmatpush2.msra.mxu0 0.0
    %3703 = vmatprep.subr.mxu0 0.0
    %3704 = vmatpush2.msra.mxu0 0.0
    %3705 = vmatprep.subr.mxu0 0.0
    %3706 = vmatpush2.msra.mxu0 0.0
    %3707 = vmatprep.subr.mxu0 0.0
    %3708 = vmatpush2.msra.mxu0 0.0
    %3709 = vmatprep.subr.mxu0 0.0
    %3710 = vmatpush2.msra.mxu0 0.0
    %3711 = vmatprep.subr.mxu0 0.0
    %3712 = vmatpush2.msra.mxu0 0.0
    %3713 = vmatprep.subr.mxu0 0.0
    %3714 = vmatpush2.msra.mxu0 0.0
    %3715 = vmatprep.subr.mxu0 0.0
    %3716 = vmatpush2.msra.mxu0 0.0
    %3717 = vmatprep.subr.mxu0 0.0
    %3718 = vmatpush2.msra.mxu0 0.0
    %3719 = vmatprep.subr.mxu0 0.0
    %3720 = vmatpush2.msra.mxu0 0.0
    %3721 = vmatprep.mubr.f32.mxu0 0.0
    %3722 = vmatmul.mubr.f32.gmra.mxu0 %v3655
    %v3723 = vpop.f32.mrf.mxu0
    %v3724 = vadd.f32 0.0, %v3723
    %v3725 = vpop.f32.mrf.mxu0
    %v3726 = vadd.f32 0.0, %v3725
    %3727 = vdwg.mxu0
    %3728 = vmatprep.subr.mxu0 %v3653
    %3729 = vmatpush1.msra.mxu0 %v3652
    %3730 = vmatprep.subr.mxu0 %v3649
    %3731 = vmatpush1.msra.mxu0 %v3648
    %3732 = vmatprep.subr.mxu0 %v3645
    %3733 = vmatpush1.msra.mxu0 %v3644
    %3734 = vmatprep.subr.mxu0 %v3641
    %3735 = vmatpush1.msra.mxu0 %v3640
    %3736 = vmatprep.subr.mxu0 %v3637
    %3737 = vmatpush1.msra.mxu0 %v3636
    %3738 = vmatprep.subr.mxu0 %v3633
    %3739 = vmatpush1.msra.mxu0 %v3632
    %3740 = vmatprep.subr.mxu0 %v3629
    %3741 = vmatpush1.msra.mxu0 %v3628
    %3742 = vmatprep.subr.mxu0 %v3625
    %3743 = vmatpush1.msra.mxu0 %v3624
    %3744 = vmatprep.subr.mxu0 %v3621
    %3745 = vmatpush1.msra.mxu0 %v3620
    %3746 = vmatprep.subr.mxu0 %v3617
    %3747 = vmatpush1.msra.mxu0 %v3616
    %3748 = vmatprep.subr.mxu0 %v3613
    %3749 = vmatpush1.msra.mxu0 %v3612
    %3750 = vmatprep.subr.mxu0 %v3609
    %3751 = vmatpush1.msra.mxu0 %v3608
    %3752 = vmatprep.subr.mxu0 %v3605
    %3753 = vmatpush1.msra.mxu0 %v3604
    %3754 = vmatprep.subr.mxu0 %v3601
    %3755 = vmatpush1.msra.mxu0 %v3600
    %3756 = vmatprep.subr.mxu0 %v3597
    %3757 = vmatpush1.msra.mxu0 %v3596
    %3758 = vmatprep.subr.mxu0 %v3593
    %3759 = vmatpush1.msra.mxu0 %v3592
    %3760 = vmatprep.subr.mxu0 0.0
    %3761 = vmatpush2.msra.mxu0 0.0
    %3762 = vmatprep.subr.mxu0 0.0
    %3763 = vmatpush2.msra.mxu0 0.0
    %3764 = vmatprep.subr.mxu0 0.0
    %3765 = vmatpush2.msra.mxu0 0.0
    %3766 = vmatprep.subr.mxu0 0.0
    %3767 = vmatpush2.msra.mxu0 0.0
    %3768 = vmatprep.subr.mxu0 0.0
    %3769 = vmatpush2.msra.mxu0 0.0
    %3770 = vmatprep.subr.mxu0 0.0
    %3771 = vmatpush2.msra.mxu0 0.0
    %3772 = vmatprep.subr.mxu0 0.0
    %3773 = vmatpush2.msra.mxu0 0.0
    %3774 = vmatprep.subr.mxu0 0.0
    %3775 = vmatpush2.msra.mxu0 0.0
    %3776 = vmatprep.subr.mxu0 0.0
    %3777 = vmatpush2.msra.mxu0 0.0
    %3778 = vmatprep.subr.mxu0 0.0
    %3779 = vmatpush2.msra.mxu0 0.0
    %3780 = vmatprep.subr.mxu0 0.0
    %3781 = vmatpush2.msra.mxu0 0.0
    %3782 = vmatprep.subr.mxu0 0.0
    %3783 = vmatpush2.msra.mxu0 0.0
    %3784 = vmatprep.subr.mxu0 0.0
    %3785 = vmatpush2.msra.mxu0 0.0
    %3786 = vmatprep.subr.mxu0 0.0
    %3787 = vmatpush2.msra.mxu0 0.0
    %3788 = vmatprep.subr.mxu0 0.0
    %3789 = vmatpush2.msra.mxu0 0.0
    %3790 = vmatprep.subr.mxu0 0.0
    %3791 = vmatpush2.msra.mxu0 0.0
    %3792 = vmatprep.mubr.f32.mxu0 0.0
    %3793 = vmatmul.mubr.f32.gmra.mxu0 %v3655
    %v3794 = vpop.f32.mrf.mxu0
    %v3795 = vadd.f32 0.0, %v3794
    %v3796 = vpop.f32.mrf.mxu0
    %v3797 = vadd.f32 0.0, %v3796
    %3798 = vdwg.mxu0
    %v3803 = vrot.slane %v3724, 2
    %v3804 = vrot.slane %v3726, 2
    %v3805 = vrot.slane %v3795, 2
    %v3806 = vrot.slane %v3797, 2
    %v3811 = vadd.f32 %v3586, %v3803
    %v3812 = vadd.f32 %v3587, %v3804
    %v3813 = vadd.f32 %v3588, %v3805
    %v3814 = vadd.f32 %v3589, %v3806
    %v3815 = vld [vmem:[%s1] sm:$0x3]
    %v3816 = vld [vmem:[%s1 + $0x8] sm:$0x3]
    %v3817 = vld [vmem:[%s1 + $0x10] sm:$0x3]
    %v3818 = vld [vmem:[%s1 + $0x18] sm:$0x3]
    %v3819 = vld [vmem:[#allocation4] sm:$0xff]
    %v3820 = vld [vmem:[#allocation4 + $0x8] sm:$0xff]
    %v3821 = vld [vmem:[#allocation4 + $0x10] sm:$0xff]
    %v3822 = vld [vmem:[#allocation4 + $0x18] sm:$0xff]
    %v3823 = vld [vmem:[#allocation4 + $0x20] sm:$0xff]
    %v3824 = vld [vmem:[#allocation4 + $0x28] sm:$0xff]
    %v3825 = vld [vmem:[#allocation4 + $0x30] sm:$0xff]
    %v3826 = vld [vmem:[#allocation4 + $0x38] sm:$0xff]
    %v3827 = vld [vmem:[#allocation4 + $0x40] sm:$0xff]
    %v3828 = vld [vmem:[#allocation4 + $0x48] sm:$0xff]
    %v3829 = vld [vmem:[#allocation4 + $0x50] sm:$0xff]
    %v3830 = vld [vmem:[#allocation4 + $0x58] sm:$0xff]
    %v3831 = vld [vmem:[#allocation4 + $0x60] sm:$0xff]
    %v3832 = vld [vmem:[#allocation4 + $0x68] sm:$0xff]
    %v3833 = vld [vmem:[#allocation4 + $0x70] sm:$0xff]
    %v3834 = vld [vmem:[#allocation4 + $0x78] sm:$0xff]
    %v3835 = vld [vmem:[#allocation4 + $0x80] sm:$0xff]
    %v3836 = vld [vmem:[#allocation4 + $0x88] sm:$0xff]
    %v3837 = vld [vmem:[#allocation4 + $0x90] sm:$0xff]
    %v3838 = vld [vmem:[#allocation4 + $0x98] sm:$0xff]
    %v3839 = vld [vmem:[#allocation4 + $0xa0] sm:$0xff]
    %v3840 = vld [vmem:[#allocation4 + $0xa8] sm:$0xff]
    %v3841 = vld [vmem:[#allocation4 + $0xb0] sm:$0xff]
    %v3842 = vld [vmem:[#allocation4 + $0xb8] sm:$0xff]
    %v3843 = vld [vmem:[#allocation4 + $0xc0] sm:$0xff]
    %v3844 = vld [vmem:[#allocation4 + $0xc8] sm:$0xff]
    %v3845 = vld [vmem:[#allocation4 + $0xd0] sm:$0xff]
    %v3846 = vld [vmem:[#allocation4 + $0xd8] sm:$0xff]
    %v3847 = vld [vmem:[#allocation4 + $0xe0] sm:$0xff]
    %v3848 = vld [vmem:[#allocation4 + $0xe8] sm:$0xff]
    %v3849 = vld [vmem:[#allocation4 + $0xf0] sm:$0xff]
    %v3850 = vld [vmem:[#allocation4 + $0xf8] sm:$0xff]
    %v3851 = vld [vmem:[#allocation4 + $0x100] sm:$0xff]
    %v3852 = vld [vmem:[#allocation4 + $0x108] sm:$0xff]
    %v3853 = vld [vmem:[#allocation4 + $0x110] sm:$0xff]
    %v3854 = vld [vmem:[#allocation4 + $0x118] sm:$0xff]
    %v3855 = vld [vmem:[#allocation4 + $0x120] sm:$0xff]
    %v3856 = vld [vmem:[#allocation4 + $0x128] sm:$0xff]
    %v3857 = vld [vmem:[#allocation4 + $0x130] sm:$0xff]
    %v3858 = vld [vmem:[#allocation4 + $0x138] sm:$0xff]
    %v3859 = vld [vmem:[#allocation4 + $0x140] sm:$0xff]
    %v3860 = vld [vmem:[#allocation4 + $0x148] sm:$0xff]
    %v3861 = vld [vmem:[#allocation4 + $0x150] sm:$0xff]
    %v3862 = vld [vmem:[#allocation4 + $0x158] sm:$0xff]
    %v3863 = vld [vmem:[#allocation4 + $0x160] sm:$0xff]
    %v3864 = vld [vmem:[#allocation4 + $0x168] sm:$0xff]
    %v3865 = vld [vmem:[#allocation4 + $0x170] sm:$0xff]
    %v3866 = vld [vmem:[#allocation4 + $0x178] sm:$0xff]
    %v3867 = vld [vmem:[#allocation4 + $0x180] sm:$0xff]
    %v3868 = vld [vmem:[#allocation4 + $0x188] sm:$0xff]
    %v3869 = vld [vmem:[#allocation4 + $0x190] sm:$0xff]
    %v3870 = vld [vmem:[#allocation4 + $0x198] sm:$0xff]
    %v3871 = vld [vmem:[#allocation4 + $0x1a0] sm:$0xff]
    %v3872 = vld [vmem:[#allocation4 + $0x1a8] sm:$0xff]
    %v3873 = vld [vmem:[#allocation4 + $0x1b0] sm:$0xff]
    %v3874 = vld [vmem:[#allocation4 + $0x1b8] sm:$0xff]
    %v3875 = vld [vmem:[#allocation4 + $0x1c0] sm:$0xff]
    %v3876 = vld [vmem:[#allocation4 + $0x1c8] sm:$0xff]
    %v3877 = vld [vmem:[#allocation4 + $0x1d0] sm:$0xff]
    %v3878 = vld [vmem:[#allocation4 + $0x1d8] sm:$0xff]
    %v3879 = vld [vmem:[#allocation4 + $0x1e0] sm:$0xff]
    %v3880 = vld [vmem:[#allocation4 + $0x1e8] sm:$0xff]
    %v3881 = vld [vmem:[#allocation4 + $0x1f0] sm:$0xff]
    %v3882 = vld [vmem:[#allocation4 + $0x1f8] sm:$0xff]
    %v3884 = vrot.slane %v3583, 2
    %3886 = vmatprep.subr.mxu0 %v3880
    %3887 = vmatpush1.msra.mxu0 %v3879
    %3888 = vmatprep.subr.mxu0 %v3876
    %3889 = vmatpush1.msra.mxu0 %v3875
    %3890 = vmatprep.subr.mxu0 %v3872
    %3891 = vmatpush1.msra.mxu0 %v3871
    %3892 = vmatprep.subr.mxu0 %v3868
    %3893 = vmatpush1.msra.mxu0 %v3867
    %3894 = vmatprep.subr.mxu0 %v3864
    %3895 = vmatpush1.msra.mxu0 %v3863
    %3896 = vmatprep.subr.mxu0 %v3860
    %3897 = vmatpush1.msra.mxu0 %v3859
    %3898 = vmatprep.subr.mxu0 %v3856
    %3899 = vmatpush1.msra.mxu0 %v3855
    %3900 = vmatprep.subr.mxu0 %v3852
    %3901 = vmatpush1.msra.mxu0 %v3851
    %3902 = vmatprep.subr.mxu0 %v3848
    %3903 = vmatpush1.msra.mxu0 %v3847
    %3904 = vmatprep.subr.mxu0 %v3844
    %3905 = vmatpush1.msra.mxu0 %v3843
    %3906 = vmatprep.subr.mxu0 %v3840
    %3907 = vmatpush1.msra.mxu0 %v3839
    %3908 = vmatprep.subr.mxu0 %v3836
    %3909 = vmatpush1.msra.mxu0 %v3835
    %3910 = vmatprep.subr.mxu0 %v3832
    %3911 = vmatpush1.msra.mxu0 %v3831
    %3912 = vmatprep.subr.mxu0 %v3828
    %3913 = vmatpush1.msra.mxu0 %v3827
    %3914 = vmatprep.subr.mxu0 %v3824
    %3915 = vmatpush1.msra.mxu0 %v3823
    %3916 = vmatprep.subr.mxu0 %v3820
    %3917 = vmatpush1.msra.mxu0 %v3819
    %3918 = vmatprep.subr.mxu0 0.0
    %3919 = vmatpush2.msra.mxu0 0.0
    %3920 = vmatprep.subr.mxu0 0.0
    %3921 = vmatpush2.msra.mxu0 0.0
    %3922 = vmatprep.subr.mxu0 0.0
    %3923 = vmatpush2.msra.mxu0 0.0
    %3924 = vmatprep.subr.mxu0 0.0
    %3925 = vmatpush2.msra.mxu0 0.0
    %3926 = vmatprep.subr.mxu0 0.0
    %3927 = vmatpush2.msra.mxu0 0.0
    %3928 = vmatprep.subr.mxu0 0.0
    %3929 = vmatpush2.msra.mxu0 0.0
    %3930 = vmatprep.subr.mxu0 0.0
    %3931 = vmatpush2.msra.mxu0 0.0
    %3932 = vmatprep.subr.mxu0 0.0
    %3933 = vmatpush2.msra.mxu0 0.0
    %3934 = vmatprep.subr.mxu0 0.0
    %3935 = vmatpush2.msra.mxu0 0.0
    %3936 = vmatprep.subr.mxu0 0.0
    %3937 = vmatpush2.msra.mxu0 0.0
    %3938 = vmatprep.subr.mxu0 0.0
    %3939 = vmatpush2.msra.mxu0 0.0
    %3940 = vmatprep.subr.mxu0 0.0
    %3941 = vmatpush2.msra.mxu0 0.0
    %3942 = vmatprep.subr.mxu0 0.0
    %3943 = vmatpush2.msra.mxu0 0.0
    %3944 = vmatprep.subr.mxu0 0.0
    %3945 = vmatpush2.msra.mxu0 0.0
    %3946 = vmatprep.subr.mxu0 0.0
    %3947 = vmatpush2.msra.mxu0 0.0
    %3948 = vmatprep.subr.mxu0 0.0
    %3949 = vmatpush2.msra.mxu0 0.0
    %3950 = vmatprep.mubr.f32.mxu0 0.0
    %3951 = vmatmul.mubr.f32.gmra.mxu0 %v3884
    %v3952 = vpop.f32.mrf.mxu0
    %v3953 = vadd.f32 0.0, %v3952
    %v3954 = vpop.f32.mrf.mxu0
    %v3955 = vadd.f32 0.0, %v3954
    %3956 = vdwg.mxu0
    %3957 = vmatprep.subr.mxu0 %v3882
    %3958 = vmatpush1.msra.mxu0 %v3881
    %3959 = vmatprep.subr.mxu0 %v3878
    %3960 = vmatpush1.msra.mxu0 %v3877
    %3961 = vmatprep.subr.mxu0 %v3874
    %3962 = vmatpush1.msra.mxu0 %v3873
    %3963 = vmatprep.subr.mxu0 %v3870
    %3964 = vmatpush1.msra.mxu0 %v3869
    %3965 = vmatprep.subr.mxu0 %v3866
    %3966 = vmatpush1.msra.mxu0 %v3865
    %3967 = vmatprep.subr.mxu0 %v3862
    %3968 = vmatpush1.msra.mxu0 %v3861
    %3969 = vmatprep.subr.mxu0 %v3858
    %3970 = vmatpush1.msra.mxu0 %v3857
    %3971 = vmatprep.subr.mxu0 %v3854
    %3972 = vmatpush1.msra.mxu0 %v3853
    %3973 = vmatprep.subr.mxu0 %v3850
    %3974 = vmatpush1.msra.mxu0 %v3849
    %3975 = vmatprep.subr.mxu0 %v3846
    %3976 = vmatpush1.msra.mxu0 %v3845
    %3977 = vmatprep.subr.mxu0 %v3842
    %3978 = vmatpush1.msra.mxu0 %v3841
    %3979 = vmatprep.subr.mxu0 %v3838
    %3980 = vmatpush1.msra.mxu0 %v3837
    %3981 = vmatprep.subr.mxu0 %v3834
    %3982 = vmatpush1.msra.mxu0 %v3833
    %3983 = vmatprep.subr.mxu0 %v3830
    %3984 = vmatpush1.msra.mxu0 %v3829
    %3985 = vmatprep.subr.mxu0 %v3826
    %3986 = vmatpush1.msra.mxu0 %v3825
    %3987 = vmatprep.subr.mxu0 %v3822
    %3988 = vmatpush1.msra.mxu0 %v3821
    %3989 = vmatprep.subr.mxu0 0.0
    %3990 = vmatpush2.msra.mxu0 0.0
    %3991 = vmatprep.subr.mxu0 0.0
    %3992 = vmatpush2.msra.mxu0 0.0
    %3993 = vmatprep.subr.mxu0 0.0
    %3994 = vmatpush2.msra.mxu0 0.0
    %3995 = vmatprep.subr.mxu0 0.0
    %3996 = vmatpush2.msra.mxu0 0.0
    %3997 = vmatprep.subr.mxu0 0.0
    %3998 = vmatpush2.msra.mxu0 0.0
    %3999 = vmatprep.subr.mxu0 0.0
    %4000 = vmatpush2.msra.mxu0 0.0
    %4001 = vmatprep.subr.mxu0 0.0
    %4002 = vmatpush2.msra.mxu0 0.0
    %4003 = vmatprep.subr.mxu0 0.0
    %4004 = vmatpush2.msra.mxu0 0.0
    %4005 = vmatprep.subr.mxu0 0.0
    %4006 = vmatpush2.msra.mxu0 0.0
    %4007 = vmatprep.subr.mxu0 0.0
    %4008 = vmatpush2.msra.mxu0 0.0
    %4009 = vmatprep.subr.mxu0 0.0
    %4010 = vmatpush2.msra.mxu0 0.0
    %4011 = vmatprep.subr.mxu0 0.0
    %4012 = vmatpush2.msra.mxu0 0.0
    %4013 = vmatprep.subr.mxu0 0.0
    %4014 = vmatpush2.msra.mxu0 0.0
    %4015 = vmatprep.subr.mxu0 0.0
    %4016 = vmatpush2.msra.mxu0 0.0
    %4017 = vmatprep.subr.mxu0 0.0
    %4018 = vmatpush2.msra.mxu0 0.0
    %4019 = vmatprep.subr.mxu0 0.0
    %4020 = vmatpush2.msra.mxu0 0.0
    %4021 = vmatprep.mubr.f32.mxu0 0.0
    %4022 = vmatmul.mubr.f32.gmra.mxu0 %v3884
    %v4023 = vpop.f32.mrf.mxu0
    %v4024 = vadd.f32 0.0, %v4023
    %v4025 = vpop.f32.mrf.mxu0
    %v4026 = vadd.f32 0.0, %v4025
    %4027 = vdwg.mxu0
    %v4028 = vadd.f32 %v3815, %v3953
    %v4029 = vadd.f32 %v3816, %v3955
    %v4030 = vadd.f32 %v3817, %v4024
    %v4031 = vadd.f32 %v3818, %v4026
    %v4032 = vxor.u32 %v3811, 2147483648
    %v4033 = vmul.f32 %v4032, 1.442695
    %v4034 = vpow.pop %v4033
    %v4035 = vadd.f32 %v4034, 1.0
    %v4036 = vrcp.pop %v4035
    %v4037 = vmul.f32 1.0, %v4036
    %v4038 = vxor.u32 %v3812, 2147483648
    %v4039 = vmul.f32 %v4038, 1.442695
    %v4040 = vpow.pop %v4039
    %v4041 = vadd.f32 %v4040, 1.0
    %v4042 = vrcp.pop %v4041
    %v4043 = vmul.f32 1.0, %v4042
    %v4044 = vtanh.pop %v3813
    %v4045 = vxor.u32 %v3814, 2147483648
    %v4046 = vmul.f32 %v4045, 1.442695
    %v4047 = vpow.pop %v4046
    %v4048 = vadd.f32 %v4047, 1.0
    %v4049 = vrcp.pop %v4048
    %v4050 = vmul.f32 1.0, %v4049
    %v4052 = vrot.slane %v3554, 6
    %v4054 = vmul.f32 %v4043, %v4052
    %v4055 = vmul.f32 %v4037, %v4044
    %v4056 = vadd.f32 %v4054, %v4055
    %v4057 = vtanh.pop %v4056
    %v4058 = vmul.f32 %v4050, %v4057
    %v4059 = vxor.u32 %v4028, 2147483648
    %v4060 = vmul.f32 %v4059, 1.442695
    %v4061 = vpow.pop %v4060
    %v4062 = vadd.f32 %v4061, 1.0
    %v4063 = vrcp.pop %v4062
    %v4064 = vmul.f32 1.0, %v4063
    %v4065 = vxor.u32 %v4029, 2147483648
    %v4066 = vmul.f32 %v4065, 1.442695
    %v4067 = vpow.pop %v4066
    %v4068 = vadd.f32 %v4067, 1.0
    %v4069 = vrcp.pop %v4068
    %v4070 = vmul.f32 1.0, %v4069
    %v4071 = vtanh.pop %v4030
    %v4072 = vxor.u32 %v4031, 2147483648
    %v4073 = vmul.f32 %v4072, 1.442695
    %v4074 = vpow.pop %v4073
    %v4075 = vadd.f32 %v4074, 1.0
    %v4076 = vrcp.pop %v4075
    %v4077 = vmul.f32 1.0, %v4076
    %v4079 = vrot.slane %v3581, 2
    %v4081 = vmul.f32 %v4070, %v4079
    %v4082 = vmul.f32 %v4064, %v4071
    %v4083 = vadd.f32 %v4081, %v4082
    %v4084 = vtanh.pop %v4083
    %v4085 = vmul.f32 %v4077, %v4084
    %4086 = vst [vmem:[%s4 + $0x10] sm:$0xc0] %v4058
    %4087 = vst [vmem:[%s4 + $0x8] sm:$0x3] %v4085
    // Predicated region
    $region26: #{lstm_classifier_forward.5} parent=1 // pred_check
      _
    $region27: #{lstm_classifier_forward.5} parent=1 // pred_check_branch
      %4089 = sbr.rel (0) target = $region29
    $region28: #{lstm_classifier_forward.5} parent=1 // pred_region
      _
    $region29: #{lstm_classifier_forward.5} parent=1 // pred_fallthru
      _
    // Predicated region
    $region30: #{lstm_classifier_forward.5} parent=1 // pred_check
      _
    $region31: #{lstm_classifier_forward.5} parent=1 // pred_check_branch
      %4091 = sbr.rel (0) target = $region33
    $region32: #{lstm_classifier_forward.5} parent=1 // pred_region
      _
    $region33: #{lstm_classifier_forward.5} parent=1 // pred_fallthru
      _
    %4092 = vsyncpa [#allocation3], 1
    %4093 = vsyncpa [#allocation5], 1

</llo_original>
